<compile_context>
chip_gen: v6e
topology: v6e:2x2x1
jax: 0.10.0
libtpu: 0.0.40
codegen_flags: <defaults>
</compile_context>

<pallas_src>
import functools

import jax
import jax.numpy as jnp
from jax.experimental import pallas as pl
from jax.experimental.pallas import tpu as pltpu


def _round_up(x, m):
    return ((x + m - 1) // m) * m


def _vae_forward_kernel(
    x_ref, eps_ref,
    # encoder params (weights bf16, biases f32)
    ew1, eb1, ew2, eb2, ew3, eb3, ew45, eb45,
    # decoder params
    dw1, db1, dw2, db2, dw3, db3, dw4, db4,
    # outputs
    xr_ref, lat_ref,
    *, lp,
):
    f32 = jnp.float32
    bf16 = jnp.bfloat16

    def linear(h_bf16, w_ref, b_ref):
        # bf16 operands into the MXU, f32 accumulation, f32 bias add.
        return jnp.dot(h_bf16, w_ref[...], preferred_element_type=f32) + b_ref[...]

    def relu_bf16(h_f32):
        # ReLU in f32 (v5e has no bf16 VALU); store the activation as bf16 —
        # the next matmul needs bf16 anyway and spills/reloads are halved.
        return jnp.maximum(h_f32, 0.0).astype(bf16)

    x = x_ref[...]                                    # (TB, Dp) bf16

    # ---- Encoder ----
    h = relu_bf16(linear(x, ew1, eb1))                # (TB, 512)
    h = relu_bf16(linear(h, ew2, eb2))                # (TB, 256)
    h = relu_bf16(linear(h, ew3, eb3))                # (TB, 128)

    # Fused latent heads, tile-aligned: lanes [0:Lp) hold mu (valid [0:L)),
    # lanes [Lp:2Lp) hold log_var. Single lane-dense (TB, 2*Lp) store.
    lat = linear(h, ew45, eb45)                       # (TB, 2*Lp) f32
    lat_ref[...] = lat

    # ---- Reparameterization: z = mu + eps * exp(log_var / 2) ----
    # Both slices start on 128-lane tile boundaries -> free views, lane-dense math.
    mu = lat[:, :lp]
    log_var = lat[:, lp:2 * lp]
    z = mu + eps_ref[...] * jnp.exp(log_var * 0.5)    # (TB, Lp) f32; padded lanes stay 0
    z = z.astype(bf16)

    # ---- Decoder ----
    d = relu_bf16(linear(z, dw1, db1))                # (TB, 128), K = Lp = 128
    d = relu_bf16(linear(d, dw2, db2))                # (TB, 256)
    d = relu_bf16(linear(d, dw3, db3))                # (TB, 512)
    logits = linear(d, dw4, db4)                      # (TB, Dp) f32
    # Exact sigmoid via a single EUP op: sigmoid(x) = 0.5*tanh(0.5*x) + 0.5
    xr = 0.5 * jnp.tanh(logits * 0.5) + 0.5
    xr_ref[...] = xr.astype(xr_ref.dtype)             # bf16 store (halves HBM writeback)


def pack_params(params, input_size, latent_dims):
    """Convert f32 (in,out)/(1,out) params into the packed bf16 kernel layout:
    fused latent heads with mu/log_var each in their own 128-lane tile,
    D padded to a multiple of 128, dw1 padded to K=128."""
    bf16, f32 = jnp.bfloat16, jnp.float32
    Dp = _round_up(input_size, 128)
    Lp = _round_up(latent_dims, 128)
    L = latent_dims

    ew1 = jnp.zeros((Dp, 512), bf16).at[:input_size, :].set(params["ew1"].astype(bf16))

    # Fused latent head: mu occupies lanes [0:Lp), log_var lanes [Lp:2Lp).
    ew45 = jnp.zeros((128, 2 * Lp), bf16)
    ew45 = ew45.at[:, :L].set(params["ew4"].astype(bf16))
    ew45 = ew45.at[:, Lp:Lp + L].set(params["ew5"].astype(bf16))
    eb45 = jnp.zeros((1, 2 * Lp), f32)
    eb45 = eb45.at[:, :L].set(params["eb4"].astype(f32))
    eb45 = eb45.at[:, Lp:Lp + L].set(params["eb5"].astype(f32))

    # First decoder matmul runs with K = Lp = 128 (padded z lanes are zero).
    dw1 = jnp.zeros((Lp, 128), bf16).at[:L, :].set(params["dw1"].astype(bf16))

    dw4 = jnp.zeros((512, Dp), bf16).at[:, :input_size].set(params["dw4"].astype(bf16))
    db4 = jnp.zeros((1, Dp), f32).at[:, :input_size].set(params["db4"].astype(f32))

    return [
        ew1, params["eb1"].astype(f32),
        params["ew2"].astype(bf16), params["eb2"].astype(f32),
        params["ew3"].astype(bf16), params["eb3"].astype(f32),
        ew45, eb45,
        dw1, params["db1"].astype(f32),
        params["dw2"].astype(bf16), params["db2"].astype(f32),
        params["dw3"].astype(bf16), params["db3"].astype(f32),
        dw4, db4,
    ]


def _num_tensorcores_per_chip():
    try:
        kind = jax.devices()[0].device_kind.lower()
        if "v7" in kind or "7x" in kind:
            return 2
    except Exception:
        pass
    return 1


def _select_batch_tile(B, Dp, Lp, num_tc, block_budget_bytes=24 << 20):
    """Largest sublane-aligned batch tile whose double-buffered per-tile blocks
    fit the budget; on multi-TC chips split the batch so every core gets a tile."""
    b8 = _round_up(max(B, 1), 8)
    per_row = Dp * 2 + Lp * 4 + Dp * 2 + 2 * Lp * 4          # x, eps, xr, lat bytes/row
    cap = max(8, (block_budget_bytes // (2 * per_row)) // 8 * 8)
    tb = min(512, cap, b8)
    if num_tc >= 2:
        tb = min(tb, _round_up(pl.cdiv(b8, num_tc), 8))       # >= num_tc tiles on v7x
    if tb >= 128 and b8 % 128 == 0:
        tb = (tb // 128) * 128                                 # full 128-row MXU passes
    return tb


def vae_forward(x_nchw, eps, packed_params):
    """Fused VAE forward.

    x_nchw: [B, C, H, W], eps: [B, L] standard-normal noise.
    packed_params: output of pack_params().
    Returns (x_reconst [B, D] bf16, mu [B, L] f32, log_var [B, L] f32).
    """
    B = x_nchw.shape[0]
    D = 1
    for s in x_nchw.shape[1:]:
        D *= int(s)
    L = eps.shape[1]
    Dp = _round_up(D, 128)
    Lp = _round_up(L, 128)
    lat_pad = 2 * Lp

    num_tc = _num_tensorcores_per_chip()
    TB = _select_batch_tile(B, Dp, Lp, num_tc)
    B_pad = _round_up(B, TB)
    n_tiles = B_pad // TB

    # Skip the extra HBM pad passes whenever shapes are already aligned.
    x_flat = x_nchw.reshape(B, D).astype(jnp.bfloat16)
    if B_pad == B and Dp == D:
        x_p = x_flat
    else:
        x_p = jnp.zeros((B_pad, Dp), jnp.bfloat16).at[:B, :D].set(x_flat)
    eps32 = eps.astype(jnp.float32)
    if B_pad == B and Lp == L:
        eps_p = eps32
    else:
        eps_p = jnp.zeros((B_pad, Lp), jnp.float32).at[:B, :L].set(eps32)

    def batch_spec(cols):
        return pl.BlockSpec((TB, cols), lambda i: (i, 0))

    def resident_spec(shape, single_buffer):
        if single_buffer:
            return pl.BlockSpec(shape, lambda i: (0,) * len(shape),
                                pipeline_mode=pl.Buffered(1))
        return pl.BlockSpec(shape, lambda i: (0,) * len(shape))

    out_shapes = (
        jax.ShapeDtypeStruct((B_pad, Dp), jnp.bfloat16),       # x_reconst (padded)
        jax.ShapeDtypeStruct((B_pad, lat_pad), jnp.float32),   # [mu tile | log_var tile]
    )
    out_specs = (batch_spec(Dp), batch_spec(lat_pad))

    param_bytes = sum(int(p.size) * p.dtype.itemsize for p in packed_params)
    io_bytes = int(x_p.size) * 2 + int(eps_p.size) * 4 + B_pad * Dp * 2 + B_pad * lat_pad * 4
    flops = 2 * B_pad * (Dp * 512 + 512 * 256 + 256 * 128 + 128 * lat_pad
                         + Lp * 128 + 128 * 256 + 256 * 512 + 512 * Dp)
    cost = pl.CostEstimate(
        flops=flops,
        transcendentals=B_pad * (Lp + Dp),                     # exp (reparam) + tanh (sigmoid)
        bytes_accessed=int(param_bytes + io_bytes),
    )

    kernel = functools.partial(_vae_forward_kernel, lp=Lp)

    def build(single_buffer_weights):
        block_bytes = 2 * TB * (Dp * 2 + Lp * 4 + Dp * 2 + lat_pad * 4)
        weight_bufs = 1 if single_buffer_weights else 2
        vmem_needed = weight_bufs * param_bytes + block_bytes
        vmem_limit = int(min(max(int(vmem_needed * 1.25), 32 << 20), 96 << 20))
        in_specs = [batch_spec(Dp), batch_spec(Lp)] + [
            resident_spec(p.shape, single_buffer_weights) for p in packed_params
        ]
        return pl.pallas_call(
            kernel,
            out_shape=out_shapes,
            grid_spec=pltpu.PrefetchScalarGridSpec(
                num_scalar_prefetch=0,
                grid=(n_tiles,),
                in_specs=in_specs,
                out_specs=out_specs,
            ),
            compiler_params=pltpu.CompilerParams(
                dimension_semantics=("parallel",),
                vmem_limit_bytes=vmem_limit,
            ),
            cost_estimate=cost,
        )

    try:
        xr_p, lat_p = build(True)(x_p, eps_p, *packed_params)
    except Exception:
        # Fallback for jax versions without single-buffer (Buffered(1)) support.
        xr_p, lat_p = build(False)(x_p, eps_p, *packed_params)

    x_reconst = xr_p if (B_pad == B and Dp == D) else xr_p[:B, :D]
    mu = lat_p[:B, :L]
    log_var = lat_p[:B, Lp:Lp + L]
    return x_reconst, mu, log_var


def init_params(key, input_size, latent_dims):
    """Deterministic synthetic parameters matching the PyTorch module shapes.

    nn.Linear(in, out).weight is (out, in); we store the transpose (in, out) so
    the kernel does x @ W + b. Biases are (1, out). All f32 here; pack_params
    converts to the bf16 kernel layout.
    """
    dims = [
        ("ew1", "eb1", input_size, 512),
        ("ew2", "eb2", 512, 256),
        ("ew3", "eb3", 256, 128),
        ("ew4", "eb4", 128, latent_dims),
        ("ew5", "eb5", 128, latent_dims),
        ("dw1", "db1", latent_dims, 128),
        ("dw2", "db2", 128, 256),
        ("dw3", "db3", 256, 512),
        ("dw4", "db4", 512, input_size),
    ]
    params = {}
    for wname, bname, fan_in, fan_out in dims:
        key, kw, kb = jax.random.split(key, 3)
        bound = 1.0 / jnp.sqrt(jnp.float32(fan_in))  # PyTorch default init range
        params[wname] = jax.random.uniform(
            kw, (fan_in, fan_out), jnp.float32, minval=-bound, maxval=bound)
        params[bname] = jax.random.uniform(
            kb, (1, fan_out), jnp.float32, minval=-bound, maxval=bound)
    return params


def reference_forward(x_nchw, eps, params):
    """Pure-JAX f32 reference with the original module's semantics."""
    B = x_nchw.shape[0]
    x = x_nchw.reshape(B, -1).astype(jnp.float32)
    h = jax.nn.relu(x @ params["ew1"] + params["eb1"])
    h = jax.nn.relu(h @ params["ew2"] + params["eb2"])
    h = jax.nn.relu(h @ params["ew3"] + params["eb3"])
    mu = h @ params["ew4"] + params["eb4"]
    log_var = h @ params["ew5"] + params["eb5"]
    z = mu + eps * jnp.exp(log_var * 0.5)
    d = jax.nn.relu(z @ params["dw1"] + params["db1"])
    d = jax.nn.relu(d @ params["dw2"] + params["db2"])
    d = jax.nn.relu(d @ params["dw3"] + params["db3"])
    x_reconst = jax.nn.sigmoid(d @ params["dw4"] + params["db4"])
    return x_reconst, mu, log_var


if __name__ == "__main__":
    # Small, deterministic example consistent with the module:
    # x: [B, C, H, W] = [2, 4, 16, 16] -> input_size = 1024 (lane-aligned), latent_dims = 32
    B, C, H, W = 2, 4, 16, 16
    input_size = C * H * W
    latent_dims = 32

    key = jax.random.PRNGKey(0)
    key, kx, keps, kp = jax.random.split(key, 4)

    x = jax.random.uniform(kx, (B, C, H, W), jnp.float32)          # inputs in [0,1]
    eps = jax.random.normal(keps, (B, latent_dims), jnp.float32)   # reparam noise
    params = init_params(kp, input_size, latent_dims)
    packed = pack_params(params, input_size, latent_dims)

    x_reconst, mu, log_var = vae_forward(x, eps, packed)
    jax.block_until_ready((x_reconst, mu, log_var))

    # Verify against the f32 reference (tolerance loosened for bf16 weights,
    # bf16 inter-layer activations and the bf16 output store; semantics identical).
    xr_ref, mu_ref, lv_ref = reference_forward(x, eps, params)
    assert x_reconst.shape == (B, input_size)
    assert mu.shape == (B, latent_dims) and log_var.shape == (B, latent_dims)
    assert jnp.allclose(x_reconst.astype(jnp.float32), xr_ref, atol=5e-2, rtol=5e-2)
    assert jnp.allclose(mu, mu_ref, atol=5e-2, rtol=5e-2)
    assert jnp.allclose(log_var, lv_ref, atol=5e-2, rtol=5e-2)

    print("KERNEL_OK")
</pallas_src>

<mosaic_0001>
module attributes {stable_mosaic.version = 11 : i64} {
  func.func @_vae_forward_kernel(%arg0: i32, %arg1: memref<8x1024xbf16, #tpu.memory_space<vmem>>, %arg2: memref<8x128xf32, #tpu.memory_space<vmem>>, %arg3: memref<1024x512xbf16, #tpu.memory_space<vmem>>, %arg4: memref<1x512xf32, #tpu.memory_space<vmem>>, %arg5: memref<512x256xbf16, #tpu.memory_space<vmem>>, %arg6: memref<1x256xf32, #tpu.memory_space<vmem>>, %arg7: memref<256x128xbf16, #tpu.memory_space<vmem>>, %arg8: memref<1x128xf32, #tpu.memory_space<vmem>>, %arg9: memref<128x256xbf16, #tpu.memory_space<vmem>>, %arg10: memref<1x256xf32, #tpu.memory_space<vmem>>, %arg11: memref<128x128xbf16, #tpu.memory_space<vmem>>, %arg12: memref<1x128xf32, #tpu.memory_space<vmem>>, %arg13: memref<128x256xbf16, #tpu.memory_space<vmem>>, %arg14: memref<1x256xf32, #tpu.memory_space<vmem>>, %arg15: memref<256x512xbf16, #tpu.memory_space<vmem>>, %arg16: memref<1x512xf32, #tpu.memory_space<vmem>>, %arg17: memref<512x1024xbf16, #tpu.memory_space<vmem>>, %arg18: memref<1x1024xf32, #tpu.memory_space<vmem>>, %arg19: memref<8x1024xbf16, #tpu.memory_space<vmem>>, %arg20: memref<8x256xf32, #tpu.memory_space<vmem>>) attributes {dimension_semantics = [#tpu.dimension_semantics<parallel>], iteration_bounds = array<i64: 1>, scalar_prefetch = 0 : i64, scratch_operands = 0 : i64, tpu.core_type = #tpu.core_type<tc>, window_params = [{transform_indices = @transform_0, window_bounds = array<i64: 8, 1024>}, {transform_indices = @transform_1, window_bounds = array<i64: 8, 128>}, {pipeline_mode = #tpu.pipeline_mode<synchronous>, transform_indices = @transform_2, window_bounds = array<i64: 1024, 512>}, {pipeline_mode = #tpu.pipeline_mode<synchronous>, transform_indices = @transform_3, window_bounds = array<i64: 1, 512>}, {pipeline_mode = #tpu.pipeline_mode<synchronous>, transform_indices = @transform_4, window_bounds = array<i64: 512, 256>}, {pipeline_mode = #tpu.pipeline_mode<synchronous>, transform_indices = @transform_5, window_bounds = array<i64: 1, 256>}, {pipeline_mode = #tpu.pipeline_mode<synchronous>, transform_indices = @transform_6, window_bounds = array<i64: 256, 128>}, {pipeline_mode = #tpu.pipeline_mode<synchronous>, transform_indices = @transform_7, window_bounds = array<i64: 1, 128>}, {pipeline_mode = #tpu.pipeline_mode<synchronous>, transform_indices = @transform_8, window_bounds = array<i64: 128, 256>}, {pipeline_mode = #tpu.pipeline_mode<synchronous>, transform_indices = @transform_9, window_bounds = array<i64: 1, 256>}, {pipeline_mode = #tpu.pipeline_mode<synchronous>, transform_indices = @transform_10, window_bounds = array<i64: 128, 128>}, {pipeline_mode = #tpu.pipeline_mode<synchronous>, transform_indices = @transform_11, window_bounds = array<i64: 1, 128>}, {pipeline_mode = #tpu.pipeline_mode<synchronous>, transform_indices = @transform_12, window_bounds = array<i64: 128, 256>}, {pipeline_mode = #tpu.pipeline_mode<synchronous>, transform_indices = @transform_13, window_bounds = array<i64: 1, 256>}, {pipeline_mode = #tpu.pipeline_mode<synchronous>, transform_indices = @transform_14, window_bounds = array<i64: 256, 512>}, {pipeline_mode = #tpu.pipeline_mode<synchronous>, transform_indices = @transform_15, window_bounds = array<i64: 1, 512>}, {pipeline_mode = #tpu.pipeline_mode<synchronous>, transform_indices = @transform_16, window_bounds = array<i64: 512, 1024>}, {pipeline_mode = #tpu.pipeline_mode<synchronous>, transform_indices = @transform_17, window_bounds = array<i64: 1, 1024>}, {transform_indices = @transform_18, window_bounds = array<i64: 8, 1024>}, {transform_indices = @transform_19, window_bounds = array<i64: 8, 256>}]} {
    %c0 = arith.constant 0 : index
    %c0_0 = arith.constant 0 : index
    %0 = vector.load %arg1[%c0, %c0_0] : memref<8x1024xbf16, #tpu.memory_space<vmem>>, vector<8x1024xbf16>
    %c0_1 = arith.constant 0 : index
    %c0_2 = arith.constant 0 : index
    %1 = vector.load %arg3[%c0_1, %c0_2] : memref<1024x512xbf16, #tpu.memory_space<vmem>>, vector<1024x512xbf16>
    %cst = arith.constant dense<0.000000e+00> : vector<8x512xf32>
    %2 = tpu.matmul %0, %1, %cst {dimension_numbers = #tpu.dot_dimension_numbers<[1], [0], [0], [1], [0, 0, 1, 1], [], []>} : vector<8x1024xbf16>, vector<1024x512xbf16>, vector<8x512xf32> -> vector<8x512xf32>
    %c0_3 = arith.constant 0 : index
    %c0_4 = arith.constant 0 : index
    %3 = vector.load %arg4[%c0_3, %c0_4] : memref<1x512xf32, #tpu.memory_space<vmem>>, vector<1x512xf32>
    %4 = vector.broadcast %3 : vector<1x512xf32> to vector<8x512xf32>
    %5 = arith.addf %2, %4 : vector<8x512xf32>
    %cst_5 = arith.constant 0.000000e+00 : f32
    %6 = vector.broadcast %cst_5 : f32 to vector<8x512xf32>
    %7 = arith.maximumf %5, %6 : vector<8x512xf32>
    %8 = arith.truncf %7 : vector<8x512xf32> to vector<8x512xbf16>
    %c0_6 = arith.constant 0 : index
    %c0_7 = arith.constant 0 : index
    %9 = vector.load %arg5[%c0_6, %c0_7] : memref<512x256xbf16, #tpu.memory_space<vmem>>, vector<512x256xbf16>
    %cst_8 = arith.constant dense<0.000000e+00> : vector<8x256xf32>
    %10 = tpu.matmul %8, %9, %cst_8 {dimension_numbers = #tpu.dot_dimension_numbers<[1], [0], [0], [1], [0, 0, 1, 1], [], []>} : vector<8x512xbf16>, vector<512x256xbf16>, vector<8x256xf32> -> vector<8x256xf32>
    %c0_9 = arith.constant 0 : index
    %c0_10 = arith.constant 0 : index
    %11 = vector.load %arg6[%c0_9, %c0_10] : memref<1x256xf32, #tpu.memory_space<vmem>>, vector<1x256xf32>
    %12 = vector.broadcast %11 : vector<1x256xf32> to vector<8x256xf32>
    %13 = arith.addf %10, %12 : vector<8x256xf32>
    %cst_11 = arith.constant 0.000000e+00 : f32
    %14 = vector.broadcast %cst_11 : f32 to vector<8x256xf32>
    %15 = arith.maximumf %13, %14 : vector<8x256xf32>
    %16 = arith.truncf %15 : vector<8x256xf32> to vector<8x256xbf16>
    %c0_12 = arith.constant 0 : index
    %c0_13 = arith.constant 0 : index
    %17 = vector.load %arg7[%c0_12, %c0_13] : memref<256x128xbf16, #tpu.memory_space<vmem>>, vector<256x128xbf16>
    %cst_14 = arith.constant dense<0.000000e+00> : vector<8x128xf32>
    %18 = tpu.matmul %16, %17, %cst_14 {dimension_numbers = #tpu.dot_dimension_numbers<[1], [0], [0], [1], [0, 0, 1, 1], [], []>} : vector<8x256xbf16>, vector<256x128xbf16>, vector<8x128xf32> -> vector<8x128xf32>
    %c0_15 = arith.constant 0 : index
    %c0_16 = arith.constant 0 : index
    %19 = vector.load %arg8[%c0_15, %c0_16] : memref<1x128xf32, #tpu.memory_space<vmem>>, vector<1x128xf32>
    %20 = vector.broadcast %19 : vector<1x128xf32> to vector<8x128xf32>
    %21 = arith.addf %18, %20 : vector<8x128xf32>
    %cst_17 = arith.constant 0.000000e+00 : f32
    %22 = vector.broadcast %cst_17 : f32 to vector<8x128xf32>
    %23 = arith.maximumf %21, %22 : vector<8x128xf32>
    %24 = arith.truncf %23 : vector<8x128xf32> to vector<8x128xbf16>
    %c0_18 = arith.constant 0 : index
    %c0_19 = arith.constant 0 : index
    %25 = vector.load %arg9[%c0_18, %c0_19] : memref<128x256xbf16, #tpu.memory_space<vmem>>, vector<128x256xbf16>
    %cst_20 = arith.constant dense<0.000000e+00> : vector<8x256xf32>
    %26 = tpu.matmul %24, %25, %cst_20 {dimension_numbers = #tpu.dot_dimension_numbers<[1], [0], [0], [1], [0, 0, 1, 1], [], []>} : vector<8x128xbf16>, vector<128x256xbf16>, vector<8x256xf32> -> vector<8x256xf32>
    %c0_21 = arith.constant 0 : index
    %c0_22 = arith.constant 0 : index
    %27 = vector.load %arg10[%c0_21, %c0_22] : memref<1x256xf32, #tpu.memory_space<vmem>>, vector<1x256xf32>
    %28 = vector.broadcast %27 : vector<1x256xf32> to vector<8x256xf32>
    %29 = arith.addf %26, %28 : vector<8x256xf32>
    %c0_23 = arith.constant 0 : index
    %c0_24 = arith.constant 0 : index
    %30 = vector.load %arg20[%c0_23, %c0_24] : memref<8x256xf32, #tpu.memory_space<vmem>>, vector<8x256xf32>
    tpu.vector_store %arg20[%c0_23, %c0_24], %29 {strides = array<i32>} : memref<8x256xf32, #tpu.memory_space<vmem>>, vector<8x256xf32>,
    %31 = vector.extract_strided_slice %29 {offsets = [0, 0], sizes = [8, 128], strides = [1, 1]} : vector<8x256xf32> to vector<8x128xf32>
    %32 = vector.extract_strided_slice %29 {offsets = [0, 128], sizes = [8, 128], strides = [1, 1]} : vector<8x256xf32> to vector<8x128xf32>
    %c0_25 = arith.constant 0 : index
    %c0_26 = arith.constant 0 : index
    %33 = vector.load %arg2[%c0_25, %c0_26] : memref<8x128xf32, #tpu.memory_space<vmem>>, vector<8x128xf32>
    %cst_27 = arith.constant 5.000000e-01 : f32
    %34 = vector.broadcast %cst_27 : f32 to vector<8x128xf32>
    %35 = arith.mulf %32, %34 : vector<8x128xf32>
    %36 = math.exp %35 : vector<8x128xf32>
    %37 = arith.mulf %33, %36 : vector<8x128xf32>
    %38 = arith.addf %31, %37 : vector<8x128xf32>
    %39 = arith.truncf %38 : vector<8x128xf32> to vector<8x128xbf16>
    %c0_28 = arith.constant 0 : index
    %c0_29 = arith.constant 0 : index
    %40 = vector.load %arg11[%c0_28, %c0_29] : memref<128x128xbf16, #tpu.memory_space<vmem>>, vector<128x128xbf16>
    %cst_30 = arith.constant dense<0.000000e+00> : vector<8x128xf32>
    %41 = tpu.matmul %39, %40, %cst_30 {dimension_numbers = #tpu.dot_dimension_numbers<[1], [0], [0], [1], [0, 0, 1, 1], [], []>} : vector<8x128xbf16>, vector<128x128xbf16>, vector<8x128xf32> -> vector<8x128xf32>
    %c0_31 = arith.constant 0 : index
    %c0_32 = arith.constant 0 : index
    %42 = vector.load %arg12[%c0_31, %c0_32] : memref<1x128xf32, #tpu.memory_space<vmem>>, vector<1x128xf32>
    %43 = vector.broadcast %42 : vector<1x128xf32> to vector<8x128xf32>
    %44 = arith.addf %41, %43 : vector<8x128xf32>
    %cst_33 = arith.constant 0.000000e+00 : f32
    %45 = vector.broadcast %cst_33 : f32 to vector<8x128xf32>
    %46 = arith.maximumf %44, %45 : vector<8x128xf32>
    %47 = arith.truncf %46 : vector<8x128xf32> to vector<8x128xbf16>
    %c0_34 = arith.constant 0 : index
    %c0_35 = arith.constant 0 : index
    %48 = vector.load %arg13[%c0_34, %c0_35] : memref<128x256xbf16, #tpu.memory_space<vmem>>, vector<128x256xbf16>
    %cst_36 = arith.constant dense<0.000000e+00> : vector<8x256xf32>
    %49 = tpu.matmul %47, %48, %cst_36 {dimension_numbers = #tpu.dot_dimension_numbers<[1], [0], [0], [1], [0, 0, 1, 1], [], []>} : vector<8x128xbf16>, vector<128x256xbf16>, vector<8x256xf32> -> vector<8x256xf32>
    %c0_37 = arith.constant 0 : index
    %c0_38 = arith.constant 0 : index
    %50 = vector.load %arg14[%c0_37, %c0_38] : memref<1x256xf32, #tpu.memory_space<vmem>>, vector<1x256xf32>
    %51 = vector.broadcast %50 : vector<1x256xf32> to vector<8x256xf32>
    %52 = arith.addf %49, %51 : vector<8x256xf32>
    %cst_39 = arith.constant 0.000000e+00 : f32
    %53 = vector.broadcast %cst_39 : f32 to vector<8x256xf32>
    %54 = arith.maximumf %52, %53 : vector<8x256xf32>
    %55 = arith.truncf %54 : vector<8x256xf32> to vector<8x256xbf16>
    %c0_40 = arith.constant 0 : index
    %c0_41 = arith.constant 0 : index
    %56 = vector.load %arg15[%c0_40, %c0_41] : memref<256x512xbf16, #tpu.memory_space<vmem>>, vector<256x512xbf16>
    %cst_42 = arith.constant dense<0.000000e+00> : vector<8x512xf32>
    %57 = tpu.matmul %55, %56, %cst_42 {dimension_numbers = #tpu.dot_dimension_numbers<[1], [0], [0], [1], [0, 0, 1, 1], [], []>} : vector<8x256xbf16>, vector<256x512xbf16>, vector<8x512xf32> -> vector<8x512xf32>
    %c0_43 = arith.constant 0 : index
    %c0_44 = arith.constant 0 : index
    %58 = vector.load %arg16[%c0_43, %c0_44] : memref<1x512xf32, #tpu.memory_space<vmem>>, vector<1x512xf32>
    %59 = vector.broadcast %58 : vector<1x512xf32> to vector<8x512xf32>
    %60 = arith.addf %57, %59 : vector<8x512xf32>
    %cst_45 = arith.constant 0.000000e+00 : f32
    %61 = vector.broadcast %cst_45 : f32 to vector<8x512xf32>
    %62 = arith.maximumf %60, %61 : vector<8x512xf32>
    %63 = arith.truncf %62 : vector<8x512xf32> to vector<8x512xbf16>
    %c0_46 = arith.constant 0 : index
    %c0_47 = arith.constant 0 : index
    %64 = vector.load %arg17[%c0_46, %c0_47] : memref<512x1024xbf16, #tpu.memory_space<vmem>>, vector<512x1024xbf16>
    %cst_48 = arith.constant dense<0.000000e+00> : vector<8x1024xf32>
    %65 = tpu.matmul %63, %64, %cst_48 {dimension_numbers = #tpu.dot_dimension_numbers<[1], [0], [0], [1], [0, 0, 1, 1], [], []>} : vector<8x512xbf16>, vector<512x1024xbf16>, vector<8x1024xf32> -> vector<8x1024xf32>
    %c0_49 = arith.constant 0 : index
    %c0_50 = arith.constant 0 : index
    %66 = vector.load %arg18[%c0_49, %c0_50] : memref<1x1024xf32, #tpu.memory_space<vmem>>, vector<1x1024xf32>
    %67 = vector.broadcast %66 : vector<1x1024xf32> to vector<8x1024xf32>
    %68 = arith.addf %65, %67 : vector<8x1024xf32>
    %cst_51 = arith.constant 5.000000e-01 : f32
    %69 = vector.broadcast %cst_51 : f32 to vector<8x1024xf32>
    %70 = arith.mulf %68, %69 : vector<8x1024xf32>
    %71 = math.tanh %70 : vector<8x1024xf32>
    %cst_52 = arith.constant 5.000000e-01 : f32
    %72 = vector.broadcast %cst_52 : f32 to vector<8x1024xf32>
    %73 = arith.mulf %72, %71 : vector<8x1024xf32>
    %cst_53 = arith.constant 5.000000e-01 : f32
    %74 = vector.broadcast %cst_53 : f32 to vector<8x1024xf32>
    %75 = arith.addf %73, %74 : vector<8x1024xf32>
    %76 = arith.truncf %75 : vector<8x1024xf32> to vector<8x1024xbf16>
    %c0_54 = arith.constant 0 : index
    %c0_55 = arith.constant 0 : index
    %77 = vector.load %arg19[%c0_54, %c0_55] : memref<8x1024xbf16, #tpu.memory_space<vmem>>, vector<8x1024xbf16>
    tpu.vector_store %arg19[%c0_54, %c0_55], %76 {strides = array<i32>} : memref<8x1024xbf16, #tpu.memory_space<vmem>>, vector<8x1024xbf16>,
    return
  }
  func.func @transform_0(%arg0: i32) -> (i32, i32) {
    %c0_i32 = arith.constant 0 : i32
    %c0_i32_0 = arith.constant 0 : i32
    return %arg0, %c0_i32 : i32, i32
  }
  func.func @transform_1(%arg0: i32) -> (i32, i32) {
    %c0_i32 = arith.constant 0 : i32
    %c0_i32_0 = arith.constant 0 : i32
    return %arg0, %c0_i32 : i32, i32
  }
  func.func @transform_2(%arg0: i32) -> (i32, i32) {
    %c0_i32 = arith.constant 0 : i32
    %c0_i32_0 = arith.constant 0 : i32
    %c0_i32_1 = arith.constant 0 : i32
    return %c0_i32, %c0_i32_0 : i32, i32
  }
  func.func @transform_3(%arg0: i32) -> (i32, i32) {
    %c0_i32 = arith.constant 0 : i32
    %c0_i32_0 = arith.constant 0 : i32
    %c0_i32_1 = arith.constant 0 : i32
    return %c0_i32, %c0_i32_0 : i32, i32
  }
  func.func @transform_4(%arg0: i32) -> (i32, i32) {
    %c0_i32 = arith.constant 0 : i32
    %c0_i32_0 = arith.constant 0 : i32
    %c0_i32_1 = arith.constant 0 : i32
    return %c0_i32, %c0_i32_0 : i32, i32
  }
  func.func @transform_5(%arg0: i32) -> (i32, i32) {
    %c0_i32 = arith.constant 0 : i32
    %c0_i32_0 = arith.constant 0 : i32
    %c0_i32_1 = arith.constant 0 : i32
    return %c0_i32, %c0_i32_0 : i32, i32
  }
  func.func @transform_6(%arg0: i32) -> (i32, i32) {
    %c0_i32 = arith.constant 0 : i32
    %c0_i32_0 = arith.constant 0 : i32
    %c0_i32_1 = arith.constant 0 : i32
    return %c0_i32, %c0_i32_0 : i32, i32
  }
  func.func @transform_7(%arg0: i32) -> (i32, i32) {
    %c0_i32 = arith.constant 0 : i32
    %c0_i32_0 = arith.constant 0 : i32
    %c0_i32_1 = arith.constant 0 : i32
    return %c0_i32, %c0_i32_0 : i32, i32
  }
  func.func @transform_8(%arg0: i32) -> (i32, i32) {
    %c0_i32 = arith.constant 0 : i32
    %c0_i32_0 = arith.constant 0 : i32
    %c0_i32_1 = arith.constant 0 : i32
    return %c0_i32, %c0_i32_0 : i32, i32
  }
  func.func @transform_9(%arg0: i32) -> (i32, i32) {
    %c0_i32 = arith.constant 0 : i32
    %c0_i32_0 = arith.constant 0 : i32
    %c0_i32_1 = arith.constant 0 : i32
    return %c0_i32, %c0_i32_0 : i32, i32
  }
  func.func @transform_10(%arg0: i32) -> (i32, i32) {
    %c0_i32 = arith.constant 0 : i32
    %c0_i32_0 = arith.constant 0 : i32
    %c0_i32_1 = arith.constant 0 : i32
    return %c0_i32, %c0_i32_0 : i32, i32
  }
  func.func @transform_11(%arg0: i32) -> (i32, i32) {
    %c0_i32 = arith.constant 0 : i32
    %c0_i32_0 = arith.constant 0 : i32
    %c0_i32_1 = arith.constant 0 : i32
    return %c0_i32, %c0_i32_0 : i32, i32
  }
  func.func @transform_12(%arg0: i32) -> (i32, i32) {
    %c0_i32 = arith.constant 0 : i32
    %c0_i32_0 = arith.constant 0 : i32
    %c0_i32_1 = arith.constant 0 : i32
    return %c0_i32, %c0_i32_0 : i32, i32
  }
  func.func @transform_13(%arg0: i32) -> (i32, i32) {
    %c0_i32 = arith.constant 0 : i32
    %c0_i32_0 = arith.constant 0 : i32
    %c0_i32_1 = arith.constant 0 : i32
    return %c0_i32, %c0_i32_0 : i32, i32
  }
  func.func @transform_14(%arg0: i32) -> (i32, i32) {
    %c0_i32 = arith.constant 0 : i32
    %c0_i32_0 = arith.constant 0 : i32
    %c0_i32_1 = arith.constant 0 : i32
    return %c0_i32, %c0_i32_0 : i32, i32
  }
  func.func @transform_15(%arg0: i32) -> (i32, i32) {
    %c0_i32 = arith.constant 0 : i32
    %c0_i32_0 = arith.constant 0 : i32
    %c0_i32_1 = arith.constant 0 : i32
    return %c0_i32, %c0_i32_0 : i32, i32
  }
  func.func @transform_16(%arg0: i32) -> (i32, i32) {
    %c0_i32 = arith.constant 0 : i32
    %c0_i32_0 = arith.constant 0 : i32
    %c0_i32_1 = arith.constant 0 : i32
    return %c0_i32, %c0_i32_0 : i32, i32
  }
  func.func @transform_17(%arg0: i32) -> (i32, i32) {
    %c0_i32 = arith.constant 0 : i32
    %c0_i32_0 = arith.constant 0 : i32
    %c0_i32_1 = arith.constant 0 : i32
    return %c0_i32, %c0_i32_0 : i32, i32
  }
  func.func @transform_18(%arg0: i32) -> (i32, i32) {
    %c0_i32 = arith.constant 0 : i32
    %c0_i32_0 = arith.constant 0 : i32
    return %arg0, %c0_i32 : i32, i32
  }
  func.func @transform_19(%arg0: i32) -> (i32, i32) {
    %c0_i32 = arith.constant 0 : i32
    %c0_i32_0 = arith.constant 0 : i32
    return %arg0, %c0_i32 : i32, i32
  }
}

module attributes {stable_mosaic.version = 11 : i64} {
  func.func @_vae_forward_kernel(%arg0: i32, %arg1: memref<8x1024xbf16, #tpu.memory_space<vmem>>, %arg2: memref<8x128xf32, #tpu.memory_space<vmem>>, %arg3: memref<1024x512xbf16, #tpu.memory_space<vmem>>, %arg4: memref<1x512xf32, #tpu.memory_space<vmem>>, %arg5: memref<512x256xbf16, #tpu.memory_space<vmem>>, %arg6: memref<1x256xf32, #tpu.memory_space<vmem>>, %arg7: memref<256x128xbf16, #tpu.memory_space<vmem>>, %arg8: memref<1x128xf32, #tpu.memory_space<vmem>>, %arg9: memref<128x256xbf16, #tpu.memory_space<vmem>>, %arg10: memref<1x256xf32, #tpu.memory_space<vmem>>, %arg11: memref<128x128xbf16, #tpu.memory_space<vmem>>, %arg12: memref<1x128xf32, #tpu.memory_space<vmem>>, %arg13: memref<128x256xbf16, #tpu.memory_space<vmem>>, %arg14: memref<1x256xf32, #tpu.memory_space<vmem>>, %arg15: memref<256x512xbf16, #tpu.memory_space<vmem>>, %arg16: memref<1x512xf32, #tpu.memory_space<vmem>>, %arg17: memref<512x1024xbf16, #tpu.memory_space<vmem>>, %arg18: memref<1x1024xf32, #tpu.memory_space<vmem>>, %arg19: memref<8x1024xbf16, #tpu.memory_space<vmem>>, %arg20: memref<8x256xf32, #tpu.memory_space<vmem>>) attributes {dimension_semantics = [#tpu.dimension_semantics<parallel>], iteration_bounds = array<i64: 1>, scalar_prefetch = 0 : i64, scratch_operands = 0 : i64, tpu.core_type = #tpu.core_type<tc>, window_params = [{transform_indices = @transform_0, window_bounds = array<i64: 8, 1024>}, {transform_indices = @transform_1, window_bounds = array<i64: 8, 128>}, {pipeline_mode = #tpu.pipeline_mode<synchronous>, transform_indices = @transform_2, window_bounds = array<i64: 1024, 512>}, {pipeline_mode = #tpu.pipeline_mode<synchronous>, transform_indices = @transform_3, window_bounds = array<i64: 1, 512>}, {pipeline_mode = #tpu.pipeline_mode<synchronous>, transform_indices = @transform_4, window_bounds = array<i64: 512, 256>}, {pipeline_mode = #tpu.pipeline_mode<synchronous>, transform_indices = @transform_5, window_bounds = array<i64: 1, 256>}, {pipeline_mode = #tpu.pipeline_mode<synchronous>, transform_indices = @transform_6, window_bounds = array<i64: 256, 128>}, {pipeline_mode = #tpu.pipeline_mode<synchronous>, transform_indices = @transform_7, window_bounds = array<i64: 1, 128>}, {pipeline_mode = #tpu.pipeline_mode<synchronous>, transform_indices = @transform_8, window_bounds = array<i64: 128, 256>}, {pipeline_mode = #tpu.pipeline_mode<synchronous>, transform_indices = @transform_9, window_bounds = array<i64: 1, 256>}, {pipeline_mode = #tpu.pipeline_mode<synchronous>, transform_indices = @transform_10, window_bounds = array<i64: 128, 128>}, {pipeline_mode = #tpu.pipeline_mode<synchronous>, transform_indices = @transform_11, window_bounds = array<i64: 1, 128>}, {pipeline_mode = #tpu.pipeline_mode<synchronous>, transform_indices = @transform_12, window_bounds = array<i64: 128, 256>}, {pipeline_mode = #tpu.pipeline_mode<synchronous>, transform_indices = @transform_13, window_bounds = array<i64: 1, 256>}, {pipeline_mode = #tpu.pipeline_mode<synchronous>, transform_indices = @transform_14, window_bounds = array<i64: 256, 512>}, {pipeline_mode = #tpu.pipeline_mode<synchronous>, transform_indices = @transform_15, window_bounds = array<i64: 1, 512>}, {pipeline_mode = #tpu.pipeline_mode<synchronous>, transform_indices = @transform_16, window_bounds = array<i64: 512, 1024>}, {pipeline_mode = #tpu.pipeline_mode<synchronous>, transform_indices = @transform_17, window_bounds = array<i64: 1, 1024>}, {transform_indices = @transform_18, window_bounds = array<i64: 8, 1024>}, {transform_indices = @transform_19, window_bounds = array<i64: 8, 256>}]} {
    %c0 = arith.constant 0 : index
    %c0_0 = arith.constant 0 : index
    %0 = vector.load %arg1[%c0, %c0_0] : memref<8x1024xbf16, #tpu.memory_space<vmem>>, vector<8x1024xbf16>
    %c0_1 = arith.constant 0 : index
    %c0_2 = arith.constant 0 : index
    %1 = vector.load %arg3[%c0_1, %c0_2] : memref<1024x512xbf16, #tpu.memory_space<vmem>>, vector<1024x512xbf16>
    %cst = arith.constant dense<0.000000e+00> : vector<8x512xf32>
    %2 = tpu.matmul %0, %1, %cst {dimension_numbers = #tpu.dot_dimension_numbers<[1], [0], [0], [1], [0, 0, 1, 1], [], []>} : vector<8x1024xbf16>, vector<1024x512xbf16>, vector<8x512xf32> -> vector<8x512xf32>
    %c0_3 = arith.constant 0 : index
    %c0_4 = arith.constant 0 : index
    %3 = vector.load %arg4[%c0_3, %c0_4] : memref<1x512xf32, #tpu.memory_space<vmem>>, vector<1x512xf32>
    %4 = vector.broadcast %3 : vector<1x512xf32> to vector<8x512xf32>
    %5 = arith.addf %2, %4 : vector<8x512xf32>
    %cst_5 = arith.constant 0.000000e+00 : f32
    %6 = vector.broadcast %cst_5 : f32 to vector<8x512xf32>
    %7 = arith.maximumf %5, %6 : vector<8x512xf32>
    %8 = arith.truncf %7 : vector<8x512xf32> to vector<8x512xbf16>
    %c0_6 = arith.constant 0 : index
    %c0_7 = arith.constant 0 : index
    %9 = vector.load %arg5[%c0_6, %c0_7] : memref<512x256xbf16, #tpu.memory_space<vmem>>, vector<512x256xbf16>
    %cst_8 = arith.constant dense<0.000000e+00> : vector<8x256xf32>
    %10 = tpu.matmul %8, %9, %cst_8 {dimension_numbers = #tpu.dot_dimension_numbers<[1], [0], [0], [1], [0, 0, 1, 1], [], []>} : vector<8x512xbf16>, vector<512x256xbf16>, vector<8x256xf32> -> vector<8x256xf32>
    %c0_9 = arith.constant 0 : index
    %c0_10 = arith.constant 0 : index
    %11 = vector.load %arg6[%c0_9, %c0_10] : memref<1x256xf32, #tpu.memory_space<vmem>>, vector<1x256xf32>
    %12 = vector.broadcast %11 : vector<1x256xf32> to vector<8x256xf32>
    %13 = arith.addf %10, %12 : vector<8x256xf32>
    %cst_11 = arith.constant 0.000000e+00 : f32
    %14 = vector.broadcast %cst_11 : f32 to vector<8x256xf32>
    %15 = arith.maximumf %13, %14 : vector<8x256xf32>
    %16 = arith.truncf %15 : vector<8x256xf32> to vector<8x256xbf16>
    %c0_12 = arith.constant 0 : index
    %c0_13 = arith.constant 0 : index
    %17 = vector.load %arg7[%c0_12, %c0_13] : memref<256x128xbf16, #tpu.memory_space<vmem>>, vector<256x128xbf16>
    %cst_14 = arith.constant dense<0.000000e+00> : vector<8x128xf32>
    %18 = tpu.matmul %16, %17, %cst_14 {dimension_numbers = #tpu.dot_dimension_numbers<[1], [0], [0], [1], [0, 0, 1, 1], [], []>} : vector<8x256xbf16>, vector<256x128xbf16>, vector<8x128xf32> -> vector<8x128xf32>
    %c0_15 = arith.constant 0 : index
    %c0_16 = arith.constant 0 : index
    %19 = vector.load %arg8[%c0_15, %c0_16] : memref<1x128xf32, #tpu.memory_space<vmem>>, vector<1x128xf32>
    %20 = vector.broadcast %19 : vector<1x128xf32> to vector<8x128xf32>
    %21 = arith.addf %18, %20 : vector<8x128xf32>
    %cst_17 = arith.constant 0.000000e+00 : f32
    %22 = vector.broadcast %cst_17 : f32 to vector<8x128xf32>
    %23 = arith.maximumf %21, %22 : vector<8x128xf32>
    %24 = arith.truncf %23 : vector<8x128xf32> to vector<8x128xbf16>
    %c0_18 = arith.constant 0 : index
    %c0_19 = arith.constant 0 : index
    %25 = vector.load %arg9[%c0_18, %c0_19] : memref<128x256xbf16, #tpu.memory_space<vmem>>, vector<128x256xbf16>
    %cst_20 = arith.constant dense<0.000000e+00> : vector<8x256xf32>
    %26 = tpu.matmul %24, %25, %cst_20 {dimension_numbers = #tpu.dot_dimension_numbers<[1], [0], [0], [1], [0, 0, 1, 1], [], []>} : vector<8x128xbf16>, vector<128x256xbf16>, vector<8x256xf32> -> vector<8x256xf32>
    %c0_21 = arith.constant 0 : index
    %c0_22 = arith.constant 0 : index
    %27 = vector.load %arg10[%c0_21, %c0_22] : memref<1x256xf32, #tpu.memory_space<vmem>>, vector<1x256xf32>
    %28 = vector.broadcast %27 : vector<1x256xf32> to vector<8x256xf32>
    %29 = arith.addf %26, %28 : vector<8x256xf32>
    %c0_23 = arith.constant 0 : index
    %c0_24 = arith.constant 0 : index
    %30 = vector.load %arg20[%c0_23, %c0_24] : memref<8x256xf32, #tpu.memory_space<vmem>>, vector<8x256xf32>
    tpu.vector_store %arg20[%c0_23, %c0_24], %29 {strides = array<i32>} : memref<8x256xf32, #tpu.memory_space<vmem>>, vector<8x256xf32>,
    %31 = vector.extract_strided_slice %29 {offsets = [0, 0], sizes = [8, 128], strides = [1, 1]} : vector<8x256xf32> to vector<8x128xf32>
    %32 = vector.extract_strided_slice %29 {offsets = [0, 128], sizes = [8, 128], strides = [1, 1]} : vector<8x256xf32> to vector<8x128xf32>
    %c0_25 = arith.constant 0 : index
    %c0_26 = arith.constant 0 : index
    %33 = vector.load %arg2[%c0_25, %c0_26] : memref<8x128xf32, #tpu.memory_space<vmem>>, vector<8x128xf32>
    %cst_27 = arith.constant 5.000000e-01 : f32
    %34 = vector.broadcast %cst_27 : f32 to vector<8x128xf32>
    %35 = arith.mulf %32, %34 : vector<8x128xf32>
    %36 = math.exp %35 : vector<8x128xf32>
    %37 = arith.mulf %33, %36 : vector<8x128xf32>
    %38 = arith.addf %31, %37 : vector<8x128xf32>
    %39 = arith.truncf %38 : vector<8x128xf32> to vector<8x128xbf16>
    %c0_28 = arith.constant 0 : index
    %c0_29 = arith.constant 0 : index
    %40 = vector.load %arg11[%c0_28, %c0_29] : memref<128x128xbf16, #tpu.memory_space<vmem>>, vector<128x128xbf16>
    %cst_30 = arith.constant dense<0.000000e+00> : vector<8x128xf32>
    %41 = tpu.matmul %39, %40, %cst_30 {dimension_numbers = #tpu.dot_dimension_numbers<[1], [0], [0], [1], [0, 0, 1, 1], [], []>} : vector<8x128xbf16>, vector<128x128xbf16>, vector<8x128xf32> -> vector<8x128xf32>
    %c0_31 = arith.constant 0 : index
    %c0_32 = arith.constant 0 : index
    %42 = vector.load %arg12[%c0_31, %c0_32] : memref<1x128xf32, #tpu.memory_space<vmem>>, vector<1x128xf32>
    %43 = vector.broadcast %42 : vector<1x128xf32> to vector<8x128xf32>
    %44 = arith.addf %41, %43 : vector<8x128xf32>
    %cst_33 = arith.constant 0.000000e+00 : f32
    %45 = vector.broadcast %cst_33 : f32 to vector<8x128xf32>
    %46 = arith.maximumf %44, %45 : vector<8x128xf32>
    %47 = arith.truncf %46 : vector<8x128xf32> to vector<8x128xbf16>
    %c0_34 = arith.constant 0 : index
    %c0_35 = arith.constant 0 : index
    %48 = vector.load %arg13[%c0_34, %c0_35] : memref<128x256xbf16, #tpu.memory_space<vmem>>, vector<128x256xbf16>
    %cst_36 = arith.constant dense<0.000000e+00> : vector<8x256xf32>
    %49 = tpu.matmul %47, %48, %cst_36 {dimension_numbers = #tpu.dot_dimension_numbers<[1], [0], [0], [1], [0, 0, 1, 1], [], []>} : vector<8x128xbf16>, vector<128x256xbf16>, vector<8x256xf32> -> vector<8x256xf32>
    %c0_37 = arith.constant 0 : index
    %c0_38 = arith.constant 0 : index
    %50 = vector.load %arg14[%c0_37, %c0_38] : memref<1x256xf32, #tpu.memory_space<vmem>>, vector<1x256xf32>
    %51 = vector.broadcast %50 : vector<1x256xf32> to vector<8x256xf32>
    %52 = arith.addf %49, %51 : vector<8x256xf32>
    %cst_39 = arith.constant 0.000000e+00 : f32
    %53 = vector.broadcast %cst_39 : f32 to vector<8x256xf32>
    %54 = arith.maximumf %52, %53 : vector<8x256xf32>
    %55 = arith.truncf %54 : vector<8x256xf32> to vector<8x256xbf16>
    %c0_40 = arith.constant 0 : index
    %c0_41 = arith.constant 0 : index
    %56 = vector.load %arg15[%c0_40, %c0_41] : memref<256x512xbf16, #tpu.memory_space<vmem>>, vector<256x512xbf16>
    %cst_42 = arith.constant dense<0.000000e+00> : vector<8x512xf32>
    %57 = tpu.matmul %55, %56, %cst_42 {dimension_numbers = #tpu.dot_dimension_numbers<[1], [0], [0], [1], [0, 0, 1, 1], [], []>} : vector<8x256xbf16>, vector<256x512xbf16>, vector<8x512xf32> -> vector<8x512xf32>
    %c0_43 = arith.constant 0 : index
    %c0_44 = arith.constant 0 : index
    %58 = vector.load %arg16[%c0_43, %c0_44] : memref<1x512xf32, #tpu.memory_space<vmem>>, vector<1x512xf32>
    %59 = vector.broadcast %58 : vector<1x512xf32> to vector<8x512xf32>
    %60 = arith.addf %57, %59 : vector<8x512xf32>
    %cst_45 = arith.constant 0.000000e+00 : f32
    %61 = vector.broadcast %cst_45 : f32 to vector<8x512xf32>
    %62 = arith.maximumf %60, %61 : vector<8x512xf32>
    %63 = arith.truncf %62 : vector<8x512xf32> to vector<8x512xbf16>
    %c0_46 = arith.constant 0 : index
    %c0_47 = arith.constant 0 : index
    %64 = vector.load %arg17[%c0_46, %c0_47] : memref<512x1024xbf16, #tpu.memory_space<vmem>>, vector<512x1024xbf16>
    %cst_48 = arith.constant dense<0.000000e+00> : vector<8x1024xf32>
    %65 = tpu.matmul %63, %64, %cst_48 {dimension_numbers = #tpu.dot_dimension_numbers<[1], [0], [0], [1], [0, 0, 1, 1], [], []>} : vector<8x512xbf16>, vector<512x1024xbf16>, vector<8x1024xf32> -> vector<8x1024xf32>
    %c0_49 = arith.constant 0 : index
    %c0_50 = arith.constant 0 : index
    %66 = vector.load %arg18[%c0_49, %c0_50] : memref<1x1024xf32, #tpu.memory_space<vmem>>, vector<1x1024xf32>
    %67 = vector.broadcast %66 : vector<1x1024xf32> to vector<8x1024xf32>
    %68 = arith.addf %65, %67 : vector<8x1024xf32>
    %cst_51 = arith.constant 5.000000e-01 : f32
    %69 = vector.broadcast %cst_51 : f32 to vector<8x1024xf32>
    %70 = arith.mulf %68, %69 : vector<8x1024xf32>
    %71 = math.tanh %70 : vector<8x1024xf32>
    %cst_52 = arith.constant 5.000000e-01 : f32
    %72 = vector.broadcast %cst_52 : f32 to vector<8x1024xf32>
    %73 = arith.mulf %72, %71 : vector<8x1024xf32>
    %cst_53 = arith.constant 5.000000e-01 : f32
    %74 = vector.broadcast %cst_53 : f32 to vector<8x1024xf32>
    %75 = arith.addf %73, %74 : vector<8x1024xf32>
    %76 = arith.truncf %75 : vector<8x1024xf32> to vector<8x1024xbf16>
    %c0_54 = arith.constant 0 : index
    %c0_55 = arith.constant 0 : index
    %77 = vector.load %arg19[%c0_54, %c0_55] : memref<8x1024xbf16, #tpu.memory_space<vmem>>, vector<8x1024xbf16>
    tpu.vector_store %arg19[%c0_54, %c0_55], %76 {strides = array<i32>} : memref<8x1024xbf16, #tpu.memory_space<vmem>>, vector<8x1024xbf16>,
    return
  }
  func.func @transform_0(%arg0: i32) -> (i32, i32) {
    %c0_i32 = arith.constant 0 : i32
    %c0_i32_0 = arith.constant 0 : i32
    return %arg0, %c0_i32 : i32, i32
  }
  func.func @transform_1(%arg0: i32) -> (i32, i32) {
    %c0_i32 = arith.constant 0 : i32
    %c0_i32_0 = arith.constant 0 : i32
    return %arg0, %c0_i32 : i32, i32
  }
  func.func @transform_2(%arg0: i32) -> (i32, i32) {
    %c0_i32 = arith.constant 0 : i32
    %c0_i32_0 = arith.constant 0 : i32
    %c0_i32_1 = arith.constant 0 : i32
    return %c0_i32, %c0_i32_0 : i32, i32
  }
  func.func @transform_3(%arg0: i32) -> (i32, i32) {
    %c0_i32 = arith.constant 0 : i32
    %c0_i32_0 = arith.constant 0 : i32
    %c0_i32_1 = arith.constant 0 : i32
    return %c0_i32, %c0_i32_0 : i32, i32
  }
  func.func @transform_4(%arg0: i32) -> (i32, i32) {
    %c0_i32 = arith.constant 0 : i32
    %c0_i32_0 = arith.constant 0 : i32
    %c0_i32_1 = arith.constant 0 : i32
    return %c0_i32, %c0_i32_0 : i32, i32
  }
  func.func @transform_5(%arg0: i32) -> (i32, i32) {
    %c0_i32 = arith.constant 0 : i32
    %c0_i32_0 = arith.constant 0 : i32
    %c0_i32_1 = arith.constant 0 : i32
    return %c0_i32, %c0_i32_0 : i32, i32
  }
  func.func @transform_6(%arg0: i32) -> (i32, i32) {
    %c0_i32 = arith.constant 0 : i32
    %c0_i32_0 = arith.constant 0 : i32
    %c0_i32_1 = arith.constant 0 : i32
    return %c0_i32, %c0_i32_0 : i32, i32
  }
  func.func @transform_7(%arg0: i32) -> (i32, i32) {
    %c0_i32 = arith.constant 0 : i32
    %c0_i32_0 = arith.constant 0 : i32
    %c0_i32_1 = arith.constant 0 : i32
    return %c0_i32, %c0_i32_0 : i32, i32
  }
  func.func @transform_8(%arg0: i32) -> (i32, i32) {
    %c0_i32 = arith.constant 0 : i32
    %c0_i32_0 = arith.constant 0 : i32
    %c0_i32_1 = arith.constant 0 : i32
    return %c0_i32, %c0_i32_0 : i32, i32
  }
  func.func @transform_9(%arg0: i32) -> (i32, i32) {
    %c0_i32 = arith.constant 0 : i32
    %c0_i32_0 = arith.constant 0 : i32
    %c0_i32_1 = arith.constant 0 : i32
    return %c0_i32, %c0_i32_0 : i32, i32
  }
  func.func @transform_10(%arg0: i32) -> (i32, i32) {
    %c0_i32 = arith.constant 0 : i32
    %c0_i32_0 = arith.constant 0 : i32
    %c0_i32_1 = arith.constant 0 : i32
    return %c0_i32, %c0_i32_0 : i32, i32
  }
  func.func @transform_11(%arg0: i32) -> (i32, i32) {
    %c0_i32 = arith.constant 0 : i32
    %c0_i32_0 = arith.constant 0 : i32
    %c0_i32_1 = arith.constant 0 : i32
    return %c0_i32, %c0_i32_0 : i32, i32
  }
  func.func @transform_12(%arg0: i32) -> (i32, i32) {
    %c0_i32 = arith.constant 0 : i32
    %c0_i32_0 = arith.constant 0 : i32
    %c0_i32_1 = arith.constant 0 : i32
    return %c0_i32, %c0_i32_0 : i32, i32
  }
  func.func @transform_13(%arg0: i32) -> (i32, i32) {
    %c0_i32 = arith.constant 0 : i32
    %c0_i32_0 = arith.constant 0 : i32
    %c0_i32_1 = arith.constant 0 : i32
    return %c0_i32, %c0_i32_0 : i32, i32
  }
  func.func @transform_14(%arg0: i32) -> (i32, i32) {
    %c0_i32 = arith.constant 0 : i32
    %c0_i32_0 = arith.constant 0 : i32
    %c0_i32_1 = arith.constant 0 : i32
    return %c0_i32, %c0_i32_0 : i32, i32
  }
  func.func @transform_15(%arg0: i32) -> (i32, i32) {
    %c0_i32 = arith.constant 0 : i32
    %c0_i32_0 = arith.constant 0 : i32
    %c0_i32_1 = arith.constant 0 : i32
    return %c0_i32, %c0_i32_0 : i32, i32
  }
  func.func @transform_16(%arg0: i32) -> (i32, i32) {
    %c0_i32 = arith.constant 0 : i32
    %c0_i32_0 = arith.constant 0 : i32
    %c0_i32_1 = arith.constant 0 : i32
    return %c0_i32, %c0_i32_0 : i32, i32
  }
  func.func @transform_17(%arg0: i32) -> (i32, i32) {
    %c0_i32 = arith.constant 0 : i32
    %c0_i32_0 = arith.constant 0 : i32
    %c0_i32_1 = arith.constant 0 : i32
    return %c0_i32, %c0_i32_0 : i32, i32
  }
  func.func @transform_18(%arg0: i32) -> (i32, i32) {
    %c0_i32 = arith.constant 0 : i32
    %c0_i32_0 = arith.constant 0 : i32
    return %arg0, %c0_i32 : i32, i32
  }
  func.func @transform_19(%arg0: i32) -> (i32, i32) {
    %c0_i32 = arith.constant 0 : i32
    %c0_i32_0 = arith.constant 0 : i32
    return %arg0, %c0_i32 : i32, i32
  }
}

</mosaic_0001>

<llo_original>
// kernel: tpu_custom_call.1
$region0: #{tpu_custom_call.1}
  #allocation0 [shape = 'u32[]', space=smem, size = 0x4, offset = 0x4, fixed_abs, tag = 'smem constant byte address 0x4 - core index']
  #allocation1 [shape = 'u32[144,128]{1,0:T(1,128)}', space=vmem, size = 0x12000, scoped, tag = 'internal scratch']
  %s0 = inlined_call_operand.hbm [shape: bf16[8,1024], index: 0, kind: input, shape index: {}]
  %s1 = inlined_call_operand.hbm [shape: f32[8,128], index: 1, kind: input, shape index: {}]
  %s2 = inlined_call_operand.hbm [shape: bf16[1024,512], index: 2, kind: input, shape index: {}]
  %s3 = inlined_call_operand.vmem [shape: f32[1,512], index: 3, kind: input, shape index: {}]
  %s4 = inlined_call_operand.hbm [shape: bf16[512,256], index: 4, kind: input, shape index: {}]
  %s5 = inlined_call_operand.hbm [shape: f32[1,256], index: 5, kind: input, shape index: {}]
  %s6 = inlined_call_operand.hbm [shape: bf16[256,128], index: 6, kind: input, shape index: {}]
  %s7 = inlined_call_operand.hbm [shape: f32[1,128], index: 7, kind: input, shape index: {}]
  %s8 = inlined_call_operand.hbm [shape: bf16[128,256], index: 8, kind: input, shape index: {}]
  %s9 = inlined_call_operand.hbm [shape: f32[1,256], index: 9, kind: input, shape index: {}]
  %s10 = inlined_call_operand.hbm [shape: bf16[128,128], index: 10, kind: input, shape index: {}]
  %s11 = inlined_call_operand.vmem [shape: f32[1,128], index: 11, kind: input, shape index: {}]
  %s12 = inlined_call_operand.hbm [shape: bf16[128,256], index: 12, kind: input, shape index: {}]
  %s13 = inlined_call_operand.vmem [shape: f32[1,256], index: 13, kind: input, shape index: {}]
  %s14 = inlined_call_operand.hbm [shape: bf16[256,512], index: 14, kind: input, shape index: {}]
  %s15 = inlined_call_operand.vmem [shape: f32[1,512], index: 15, kind: input, shape index: {}]
  %s16 = inlined_call_operand.hbm [shape: bf16[512,1024], index: 16, kind: input, shape index: {}]
  %s17 = inlined_call_operand.vmem [shape: f32[1,1024], index: 17, kind: input, shape index: {}]
  %s18 = inlined_call_operand.hbm [shape: bf16[8,1024], index: 18, kind: output, shape index: {0}]
  %s19 = inlined_call_operand.hbm [shape: f32[8,256], index: 19, kind: output, shape index: {1}]
  %20 = xla_tuple %s18, %s19
  %s21 = sld [smem:[#allocation0]]
  $region142: #{tpu_custom_call.1} parent=0
    _
  %s23 = ssub.s32 1, %s21
  %s24 = scalar_select 0, %s23, %s21
  $region1: #{tpu_custom_call.1} parent=0
    #allocation2 [shape = 'u8[16384]{0}', space=vmem, size = 0x4000, scoped, tag = 'input window, operand 0, single buffered']
    #allocation3 [shape = 's32[1]{0}', space=sflag, size = 0x4, scoped, tag = 'scoped memory for tpu_custom_call.1']
    #allocation4 [shape = 's32[1]{0}', space=sflag, size = 0x4, scoped, tag = 'scoped memory for tpu_custom_call.1']
    #allocation5 [shape = 'u8[4096]{0}', space=vmem, size = 0x1000, scoped, tag = 'input window, operand 1, single buffered']
    #allocation6 [shape = 's32[1]{0}', space=sflag, size = 0x4, scoped, tag = 'scoped memory for tpu_custom_call.1']
    #allocation7 [shape = 'u8[1048576]{0}', space=vmem, size = 0x100000, scoped, tag = 'input window, operand 2, single buffered']
    #allocation8 [shape = 'u8[262144]{0}', space=vmem, size = 0x40000, scoped, tag = 'input window, operand 4, single buffered']
    #allocation9 [shape = 's32[1]{0}', space=sflag, size = 0x4, scoped, tag = 'scoped memory for tpu_custom_call.1']
    #allocation10 [shape = 'u8[1024]{0}', space=vmem, size = 0x400, scoped, tag = 'input window, operand 5, single buffered']
    #allocation11 [shape = 'u8[65536]{0}', space=vmem, size = 0x10000, scoped, tag = 'input window, operand 6, single buffered']
    #allocation12 [shape = 's32[1]{0}', space=sflag, size = 0x4, scoped, tag = 'scoped memory for tpu_custom_call.1']
    #allocation13 [shape = 'u8[512]{0}', space=vmem, size = 0x400, scoped, tag = 'input window, operand 7, single buffered']
    #allocation14 [shape = 'u8[65536]{0}', space=vmem, size = 0x10000, scoped, tag = 'input window, operand 8, single buffered']
    #allocation15 [shape = 's32[1]{0}', space=sflag, size = 0x4, scoped, tag = 'scoped memory for tpu_custom_call.1']
    #allocation16 [shape = 'u8[1024]{0}', space=vmem, size = 0x400, scoped, tag = 'input window, operand 9, single buffered']
    #allocation17 [shape = 'u8[32768]{0}', space=vmem, size = 0x8000, scoped, tag = 'input window, operand 10, single buffered']
    #allocation18 [shape = 's32[1]{0}', space=sflag, size = 0x4, scoped, tag = 'scoped memory for tpu_custom_call.1']
    #allocation19 [shape = 'u8[65536]{0}', space=vmem, size = 0x10000, scoped, tag = 'input window, operand 12, single buffered']
    #allocation20 [shape = 'u8[262144]{0}', space=vmem, size = 0x40000, scoped, tag = 'input window, operand 14, single buffered']
    #allocation21 [shape = 's32[1]{0}', space=sflag, size = 0x4, scoped, tag = 'scoped memory for tpu_custom_call.1']
    #allocation22 [shape = 'u8[1048576]{0}', space=vmem, size = 0x100000, scoped, tag = 'input window, operand 16, single buffered']
    #allocation23 [shape = 'u8[16384]{0}', space=vmem, size = 0x4000, scoped, tag = 'output window, operand 0, single buffered']
    #allocation24 [shape = 'u8[8192]{0}', space=vmem, size = 0x2000, scoped, tag = 'output window, operand 1, single buffered']
    #allocation25 [shape = 's32[1]{0}', space=sflag, size = 0x4, scoped, tag = 'scoped memory for tpu_custom_call.1']
    %25 = vsyncpa [#allocation3], 0
    %26 = vsyncpa [#allocation6], 0
    %27 = vsyncpa [#allocation9], 0
    %28 = vsyncpa [#allocation12], 0
    %29 = vsyncpa [#allocation15], 0
    %30 = vsyncpa [#allocation18], 0
    %31 = vsyncpa [#allocation21], 0
    %32 = vsyncpa [#allocation4], 0
    %33 = vsyncpa [#allocation25], 0
    // Predicated region
    $region2: #{tpu_custom_call.1} parent=1 // pred_check
      _
    $region3: #{tpu_custom_call.1} parent=1 // pred_check_branch
      %35 = sbr.rel (0) target = $region5
    $region4: #{tpu_custom_call.1} parent=1 // pred_region
      %s37 = ssub.s32 512, 512
      %38 = vsyncadd [#allocation3], %s37
      %s40 = sshll.u32 [#allocation2], 4
      %s41 = int_to_ptr.vmem [resolvable:$true] %s40
      %43 = dma.hbm_to_vmem [thread:$0]  %s0, 512, %s41, [#allocation3]
    $region5: #{tpu_custom_call.1} parent=1 // pred_fallthru
      _
    // Predicated region
    $region6: #{tpu_custom_call.1} parent=1 // pred_check
      _
    $region7: #{tpu_custom_call.1} parent=1 // pred_check_branch
      %45 = sbr.rel (0) target = $region9
    $region8: #{tpu_custom_call.1} parent=1 // pred_region
      %s47 = ssub.s32 128, 128
      %48 = vsyncadd [#allocation6], %s47
      %s50 = sshll.u32 [#allocation5], 4
      %s51 = int_to_ptr.vmem [resolvable:$true] %s50
      %53 = dma.hbm_to_vmem [thread:$0]  %s1, 128, %s51, [#allocation6]
    $region9: #{tpu_custom_call.1} parent=1 // pred_fallthru
      _
    // Predicated region
    $region10: #{tpu_custom_call.1} parent=1 // pred_check
      _
    $region11: #{tpu_custom_call.1} parent=1 // pred_check_branch
      %55 = sbr.rel (0) target = $region13
    $region12: #{tpu_custom_call.1} parent=1 // pred_region
      %s57 = ssub.s32 32768, 32768
      %58 = vsyncadd [#allocation6], %s57
      %s59 = sshll.u32 [#allocation7], 4
      %s60 = int_to_ptr.vmem [resolvable:$true] %s59
      %65 = dma.hbm_to_vmem [thread:$0]  %s2, 32768, %s60, [#allocation6], 256, 256, 16
    $region13: #{tpu_custom_call.1} parent=1 // pred_fallthru
      _
    // Predicated region
    $region14: #{tpu_custom_call.1} parent=1 // pred_check
      _
    $region15: #{tpu_custom_call.1} parent=1 // pred_check_branch
      %67 = sbr.rel (0) target = $region17
    $region16: #{tpu_custom_call.1} parent=1 // pred_region
      _
    $region17: #{tpu_custom_call.1} parent=1 // pred_fallthru
      _
    // Predicated region
    $region18: #{tpu_custom_call.1} parent=1 // pred_check
      _
    $region19: #{tpu_custom_call.1} parent=1 // pred_check_branch
      %69 = sbr.rel (0) target = $region21
    $region20: #{tpu_custom_call.1} parent=1 // pred_region
      %s71 = ssub.s32 8192, 8192
      %72 = vsyncadd [#allocation9], %s71
      %s73 = sshll.u32 [#allocation8], 4
      %s74 = int_to_ptr.vmem [resolvable:$true] %s73
      %79 = dma.hbm_to_vmem [thread:$0]  %s4, 8192, %s74, [#allocation9], 128, 128, 8
    $region21: #{tpu_custom_call.1} parent=1 // pred_fallthru
      _
    // Predicated region
    $region22: #{tpu_custom_call.1} parent=1 // pred_check
      _
    $region23: #{tpu_custom_call.1} parent=1 // pred_check_branch
      %81 = sbr.rel (0) target = $region25
    $region24: #{tpu_custom_call.1} parent=1 // pred_region
      %s83 = ssub.s32 32, 32
      %84 = vsyncadd [#allocation9], %s83
      %s86 = sshll.u32 [#allocation10], 4
      %s87 = int_to_ptr.vmem [resolvable:$true] %s86
      %89 = dma.hbm_to_vmem [thread:$0]  %s5, 32, %s87, [#allocation9]
    $region25: #{tpu_custom_call.1} parent=1 // pred_fallthru
      _
    // Predicated region
    $region26: #{tpu_custom_call.1} parent=1 // pred_check
      _
    $region27: #{tpu_custom_call.1} parent=1 // pred_check_branch
      %91 = sbr.rel (0) target = $region29
    $region28: #{tpu_custom_call.1} parent=1 // pred_region
      %s93 = ssub.s32 2048, 2048
      %94 = vsyncadd [#allocation12], %s93
      %s95 = sshll.u32 [#allocation11], 4
      %s96 = int_to_ptr.vmem [resolvable:$true] %s95
      %101 = dma.hbm_to_vmem [thread:$0]  %s6, 2048, %s96, [#allocation12], 64, 64, 4
    $region29: #{tpu_custom_call.1} parent=1 // pred_fallthru
      _
    // Predicated region
    $region30: #{tpu_custom_call.1} parent=1 // pred_check
      _
    $region31: #{tpu_custom_call.1} parent=1 // pred_check_branch
      %103 = sbr.rel (0) target = $region33
    $region32: #{tpu_custom_call.1} parent=1 // pred_region
      %s105 = ssub.s32 16, 16
      %106 = vsyncadd [#allocation12], %s105
      %s108 = sshll.u32 [#allocation13], 4
      %s109 = int_to_ptr.vmem [resolvable:$true] %s108
      %111 = dma.hbm_to_vmem [thread:$0]  %s7, 16, %s109, [#allocation12]
    $region33: #{tpu_custom_call.1} parent=1 // pred_fallthru
      _
    // Predicated region
    $region34: #{tpu_custom_call.1} parent=1 // pred_check
      _
    $region35: #{tpu_custom_call.1} parent=1 // pred_check_branch
      %113 = sbr.rel (0) target = $region37
    $region36: #{tpu_custom_call.1} parent=1 // pred_region
      %s115 = ssub.s32 2048, 2048
      %116 = vsyncadd [#allocation15], %s115
      %s117 = sshll.u32 [#allocation14], 4
      %s118 = int_to_ptr.vmem [resolvable:$true] %s117
      %123 = dma.hbm_to_vmem [thread:$0]  %s8, 2048, %s118, [#allocation15], 128, 128, 8
    $region37: #{tpu_custom_call.1} parent=1 // pred_fallthru
      _
    // Predicated region
    $region38: #{tpu_custom_call.1} parent=1 // pred_check
      _
    $region39: #{tpu_custom_call.1} parent=1 // pred_check_branch
      %125 = sbr.rel (0) target = $region41
    $region40: #{tpu_custom_call.1} parent=1 // pred_region
      %s127 = ssub.s32 32, 32
      %128 = vsyncadd [#allocation15], %s127
      %s130 = sshll.u32 [#allocation16], 4
      %s131 = int_to_ptr.vmem [resolvable:$true] %s130
      %133 = dma.hbm_to_vmem [thread:$0]  %s9, 32, %s131, [#allocation15]
    $region41: #{tpu_custom_call.1} parent=1 // pred_fallthru
      _
    // Predicated region
    $region42: #{tpu_custom_call.1} parent=1 // pred_check
      _
    $region43: #{tpu_custom_call.1} parent=1 // pred_check_branch
      %135 = sbr.rel (0) target = $region45
    $region44: #{tpu_custom_call.1} parent=1 // pred_region
      %s137 = ssub.s32 1024, 1024
      %138 = vsyncadd [#allocation18], %s137
      %s139 = sshll.u32 [#allocation17], 4
      %s140 = int_to_ptr.vmem [resolvable:$true] %s139
      %145 = dma.hbm_to_vmem [thread:$0]  %s10, 1024, %s140, [#allocation18], 64, 64, 4
    $region45: #{tpu_custom_call.1} parent=1 // pred_fallthru
      _
    // Predicated region
    $region46: #{tpu_custom_call.1} parent=1 // pred_check
      _
    $region47: #{tpu_custom_call.1} parent=1 // pred_check_branch
      %147 = sbr.rel (0) target = $region49
    $region48: #{tpu_custom_call.1} parent=1 // pred_region
      _
    $region49: #{tpu_custom_call.1} parent=1 // pred_fallthru
      _
    // Predicated region
    $region50: #{tpu_custom_call.1} parent=1 // pred_check
      _
    $region51: #{tpu_custom_call.1} parent=1 // pred_check_branch
      %149 = sbr.rel (0) target = $region53
    $region52: #{tpu_custom_call.1} parent=1 // pred_region
      %s151 = ssub.s32 2048, 2048
      %152 = vsyncadd [#allocation18], %s151
      %s153 = sshll.u32 [#allocation19], 4
      %s154 = int_to_ptr.vmem [resolvable:$true] %s153
      %159 = dma.hbm_to_vmem [thread:$0]  %s12, 2048, %s154, [#allocation18], 128, 128, 8
    $region53: #{tpu_custom_call.1} parent=1 // pred_fallthru
      _
    // Predicated region
    $region54: #{tpu_custom_call.1} parent=1 // pred_check
      _
    $region55: #{tpu_custom_call.1} parent=1 // pred_check_branch
      %161 = sbr.rel (0) target = $region57
    $region56: #{tpu_custom_call.1} parent=1 // pred_region
      _
    $region57: #{tpu_custom_call.1} parent=1 // pred_fallthru
      _
    // Predicated region
    $region58: #{tpu_custom_call.1} parent=1 // pred_check
      _
    $region59: #{tpu_custom_call.1} parent=1 // pred_check_branch
      %163 = sbr.rel (0) target = $region61
    $region60: #{tpu_custom_call.1} parent=1 // pred_region
      %s165 = ssub.s32 8192, 8192
      %166 = vsyncadd [#allocation21], %s165
      %s167 = sshll.u32 [#allocation20], 4
      %s168 = int_to_ptr.vmem [resolvable:$true] %s167
      %173 = dma.hbm_to_vmem [thread:$0]  %s14, 8192, %s168, [#allocation21], 256, 256, 16
    $region61: #{tpu_custom_call.1} parent=1 // pred_fallthru
      _
    // Predicated region
    $region62: #{tpu_custom_call.1} parent=1 // pred_check
      _
    $region63: #{tpu_custom_call.1} parent=1 // pred_check_branch
      %175 = sbr.rel (0) target = $region65
    $region64: #{tpu_custom_call.1} parent=1 // pred_region
      _
    $region65: #{tpu_custom_call.1} parent=1 // pred_fallthru
      _
    // Predicated region
    $region66: #{tpu_custom_call.1} parent=1 // pred_check
      _
    $region67: #{tpu_custom_call.1} parent=1 // pred_check_branch
      %177 = sbr.rel (0) target = $region69
    $region68: #{tpu_custom_call.1} parent=1 // pred_region
      %s179 = ssub.s32 32768, 32768
      %180 = vsyncadd [#allocation21], %s179
      %s181 = sshll.u32 [#allocation22], 4
      %s182 = int_to_ptr.vmem [resolvable:$true] %s181
      %187 = dma.hbm_to_vmem [thread:$0]  %s16, 32768, %s182, [#allocation21], 512, 512, 32
    $region69: #{tpu_custom_call.1} parent=1 // pred_fallthru
      _
    // Predicated region
    $region70: #{tpu_custom_call.1} parent=1 // pred_check
      _
    $region71: #{tpu_custom_call.1} parent=1 // pred_check_branch
      %189 = sbr.rel (0) target = $region73
    $region72: #{tpu_custom_call.1} parent=1 // pred_region
      _
    $region73: #{tpu_custom_call.1} parent=1 // pred_fallthru
      _
    // Predicated region
    $region74: #{tpu_custom_call.1} parent=1 // pred_check
      _
    $region75: #{tpu_custom_call.1} parent=1 // pred_check_branch
      %191 = sbr.rel (0) target = $region77
    $region76: #{tpu_custom_call.1} parent=1 // pred_region
      %192 = dma.done [#allocation3], 512
    $region77: #{tpu_custom_call.1} parent=1 // pred_fallthru
      _
    // Predicated region
    $region78: #{tpu_custom_call.1} parent=1 // pred_check
      _
    $region79: #{tpu_custom_call.1} parent=1 // pred_check_branch
      %194 = sbr.rel (0) target = $region81
    $region80: #{tpu_custom_call.1} parent=1 // pred_region
      %195 = dma.done [#allocation6], 128
    $region81: #{tpu_custom_call.1} parent=1 // pred_fallthru
      _
    // Predicated region
    $region82: #{tpu_custom_call.1} parent=1 // pred_check
      _
    $region83: #{tpu_custom_call.1} parent=1 // pred_check_branch
      %197 = sbr.rel (0) target = $region85
    $region84: #{tpu_custom_call.1} parent=1 // pred_region
      %198 = dma.done [#allocation6], 32768
    $region85: #{tpu_custom_call.1} parent=1 // pred_fallthru
      _
    // Predicated region
    $region86: #{tpu_custom_call.1} parent=1 // pred_check
      _
    $region87: #{tpu_custom_call.1} parent=1 // pred_check_branch
      %200 = sbr.rel (0) target = $region89
    $region88: #{tpu_custom_call.1} parent=1 // pred_region
      %201 = dma.done [#allocation9], 8192
    $region89: #{tpu_custom_call.1} parent=1 // pred_fallthru
      _
    // Predicated region
    $region90: #{tpu_custom_call.1} parent=1 // pred_check
      _
    $region91: #{tpu_custom_call.1} parent=1 // pred_check_branch
      %203 = sbr.rel (0) target = $region93
    $region92: #{tpu_custom_call.1} parent=1 // pred_region
      %204 = dma.done [#allocation9], 32
    $region93: #{tpu_custom_call.1} parent=1 // pred_fallthru
      _
    // Predicated region
    $region94: #{tpu_custom_call.1} parent=1 // pred_check
      _
    $region95: #{tpu_custom_call.1} parent=1 // pred_check_branch
      %206 = sbr.rel (0) target = $region97
    $region96: #{tpu_custom_call.1} parent=1 // pred_region
      %207 = dma.done [#allocation12], 2048
    $region97: #{tpu_custom_call.1} parent=1 // pred_fallthru
      _
    // Predicated region
    $region98: #{tpu_custom_call.1} parent=1 // pred_check
      _
    $region99: #{tpu_custom_call.1} parent=1 // pred_check_branch
      %209 = sbr.rel (0) target = $region101
    $region100: #{tpu_custom_call.1} parent=1 // pred_region
      %210 = dma.done [#allocation12], 16
    $region101: #{tpu_custom_call.1} parent=1 // pred_fallthru
      _
    // Predicated region
    $region102: #{tpu_custom_call.1} parent=1 // pred_check
      _
    $region103: #{tpu_custom_call.1} parent=1 // pred_check_branch
      %212 = sbr.rel (0) target = $region105
    $region104: #{tpu_custom_call.1} parent=1 // pred_region
      %213 = dma.done [#allocation15], 2048
    $region105: #{tpu_custom_call.1} parent=1 // pred_fallthru
      _
    // Predicated region
    $region106: #{tpu_custom_call.1} parent=1 // pred_check
      _
    $region107: #{tpu_custom_call.1} parent=1 // pred_check_branch
      %215 = sbr.rel (0) target = $region109
    $region108: #{tpu_custom_call.1} parent=1 // pred_region
      %216 = dma.done [#allocation15], 32
    $region109: #{tpu_custom_call.1} parent=1 // pred_fallthru
      _
    // Predicated region
    $region110: #{tpu_custom_call.1} parent=1 // pred_check
      _
    $region111: #{tpu_custom_call.1} parent=1 // pred_check_branch
      %218 = sbr.rel (0) target = $region113
    $region112: #{tpu_custom_call.1} parent=1 // pred_region
      %219 = dma.done [#allocation18], 1024
    $region113: #{tpu_custom_call.1} parent=1 // pred_fallthru
      _
    // Predicated region
    $region114: #{tpu_custom_call.1} parent=1 // pred_check
      _
    $region115: #{tpu_custom_call.1} parent=1 // pred_check_branch
      %221 = sbr.rel (0) target = $region117
    $region116: #{tpu_custom_call.1} parent=1 // pred_region
      %222 = dma.done [#allocation18], 2048
    $region117: #{tpu_custom_call.1} parent=1 // pred_fallthru
      _
    // Predicated region
    $region118: #{tpu_custom_call.1} parent=1 // pred_check
      _
    $region119: #{tpu_custom_call.1} parent=1 // pred_check_branch
      %224 = sbr.rel (0) target = $region121
    $region120: #{tpu_custom_call.1} parent=1 // pred_region
      %225 = dma.done [#allocation21], 8192
    $region121: #{tpu_custom_call.1} parent=1 // pred_fallthru
      _
    // Predicated region
    $region122: #{tpu_custom_call.1} parent=1 // pred_check
      _
    $region123: #{tpu_custom_call.1} parent=1 // pred_check_branch
      %227 = sbr.rel (0) target = $region125
    $region124: #{tpu_custom_call.1} parent=1 // pred_region
      %228 = dma.done [#allocation21], 32768
    $region125: #{tpu_custom_call.1} parent=1 // pred_fallthru
      _
    %v230 = vld [vmem:[#allocation2] sm:$0xff]
    %v231 = vld [vmem:[#allocation2 + $0x8] sm:$0xff]
    %v232 = vld [vmem:[#allocation2 + $0x10] sm:$0xff]
    %v233 = vld [vmem:[#allocation2 + $0x18] sm:$0xff]
    %v234 = vld [vmem:[#allocation7] sm:$0xff]
    %v235 = vld [vmem:[#allocation7 + $0x8] sm:$0xff]
    %v236 = vld [vmem:[#allocation7 + $0x10] sm:$0xff]
    %v237 = vld [vmem:[#allocation7 + $0x18] sm:$0xff]
    %v238 = vld [vmem:[#allocation7 + $0x20] sm:$0xff]
    %v239 = vld [vmem:[#allocation7 + $0x28] sm:$0xff]
    %v240 = vld [vmem:[#allocation7 + $0x30] sm:$0xff]
    %v241 = vld [vmem:[#allocation7 + $0x38] sm:$0xff]
    %v242 = vld [vmem:[#allocation7 + $0x40] sm:$0xff]
    %v243 = vld [vmem:[#allocation7 + $0x48] sm:$0xff]
    %v244 = vld [vmem:[#allocation7 + $0x50] sm:$0xff]
    %v245 = vld [vmem:[#allocation7 + $0x58] sm:$0xff]
    %v246 = vld [vmem:[#allocation7 + $0x60] sm:$0xff]
    %v247 = vld [vmem:[#allocation7 + $0x68] sm:$0xff]
    %v248 = vld [vmem:[#allocation7 + $0x70] sm:$0xff]
    %v249 = vld [vmem:[#allocation7 + $0x78] sm:$0xff]
    %v250 = vld [vmem:[#allocation7 + $0x80] sm:$0xff]
    %v251 = vld [vmem:[#allocation7 + $0x88] sm:$0xff]
    %v252 = vld [vmem:[#allocation7 + $0x90] sm:$0xff]
    %v253 = vld [vmem:[#allocation7 + $0x98] sm:$0xff]
    %v254 = vld [vmem:[#allocation7 + $0xa0] sm:$0xff]
    %v255 = vld [vmem:[#allocation7 + $0xa8] sm:$0xff]
    %v256 = vld [vmem:[#allocation7 + $0xb0] sm:$0xff]
    %v257 = vld [vmem:[#allocation7 + $0xb8] sm:$0xff]
    %v258 = vld [vmem:[#allocation7 + $0xc0] sm:$0xff]
    %v259 = vld [vmem:[#allocation7 + $0xc8] sm:$0xff]
    %v260 = vld [vmem:[#allocation7 + $0xd0] sm:$0xff]
    %v261 = vld [vmem:[#allocation7 + $0xd8] sm:$0xff]
    %v262 = vld [vmem:[#allocation7 + $0xe0] sm:$0xff]
    %v263 = vld [vmem:[#allocation7 + $0xe8] sm:$0xff]
    %v264 = vld [vmem:[#allocation7 + $0xf0] sm:$0xff]
    %v265 = vld [vmem:[#allocation7 + $0xf8] sm:$0xff]
    %v266 = vld [vmem:[#allocation7 + $0x100] sm:$0xff]
    %v267 = vld [vmem:[#allocation7 + $0x108] sm:$0xff]
    %v268 = vld [vmem:[#allocation7 + $0x110] sm:$0xff]
    %v269 = vld [vmem:[#allocation7 + $0x118] sm:$0xff]
    %v270 = vld [vmem:[#allocation7 + $0x120] sm:$0xff]
    %v271 = vld [vmem:[#allocation7 + $0x128] sm:$0xff]
    %v272 = vld [vmem:[#allocation7 + $0x130] sm:$0xff]
    %v273 = vld [vmem:[#allocation7 + $0x138] sm:$0xff]
    %v274 = vld [vmem:[#allocation7 + $0x140] sm:$0xff]
    %v275 = vld [vmem:[#allocation7 + $0x148] sm:$0xff]
    %v276 = vld [vmem:[#allocation7 + $0x150] sm:$0xff]
    %v277 = vld [vmem:[#allocation7 + $0x158] sm:$0xff]
    %v278 = vld [vmem:[#allocation7 + $0x160] sm:$0xff]
    %v279 = vld [vmem:[#allocation7 + $0x168] sm:$0xff]
    %v280 = vld [vmem:[#allocation7 + $0x170] sm:$0xff]
    %v281 = vld [vmem:[#allocation7 + $0x178] sm:$0xff]
    %v282 = vld [vmem:[#allocation7 + $0x180] sm:$0xff]
    %v283 = vld [vmem:[#allocation7 + $0x188] sm:$0xff]
    %v284 = vld [vmem:[#allocation7 + $0x190] sm:$0xff]
    %v285 = vld [vmem:[#allocation7 + $0x198] sm:$0xff]
    %v286 = vld [vmem:[#allocation7 + $0x1a0] sm:$0xff]
    %v287 = vld [vmem:[#allocation7 + $0x1a8] sm:$0xff]
    %v288 = vld [vmem:[#allocation7 + $0x1b0] sm:$0xff]
    %v289 = vld [vmem:[#allocation7 + $0x1b8] sm:$0xff]
    %v290 = vld [vmem:[#allocation7 + $0x1c0] sm:$0xff]
    %v291 = vld [vmem:[#allocation7 + $0x1c8] sm:$0xff]
    %v292 = vld [vmem:[#allocation7 + $0x1d0] sm:$0xff]
    %v293 = vld [vmem:[#allocation7 + $0x1d8] sm:$0xff]
    %v294 = vld [vmem:[#allocation7 + $0x1e0] sm:$0xff]
    %v295 = vld [vmem:[#allocation7 + $0x1e8] sm:$0xff]
    %v296 = vld [vmem:[#allocation7 + $0x1f0] sm:$0xff]
    %v297 = vld [vmem:[#allocation7 + $0x1f8] sm:$0xff]
    %v298 = vld [vmem:[#allocation7 + $0x200] sm:$0xff]
    %v299 = vld [vmem:[#allocation7 + $0x208] sm:$0xff]
    %v300 = vld [vmem:[#allocation7 + $0x210] sm:$0xff]
    %v301 = vld [vmem:[#allocation7 + $0x218] sm:$0xff]
    %v302 = vld [vmem:[#allocation7 + $0x220] sm:$0xff]
    %v303 = vld [vmem:[#allocation7 + $0x228] sm:$0xff]
    %v304 = vld [vmem:[#allocation7 + $0x230] sm:$0xff]
    %v305 = vld [vmem:[#allocation7 + $0x238] sm:$0xff]
    %v306 = vld [vmem:[#allocation7 + $0x240] sm:$0xff]
    %v307 = vld [vmem:[#allocation7 + $0x248] sm:$0xff]
    %v308 = vld [vmem:[#allocation7 + $0x250] sm:$0xff]
    %v309 = vld [vmem:[#allocation7 + $0x258] sm:$0xff]
    %v310 = vld [vmem:[#allocation7 + $0x260] sm:$0xff]
    %v311 = vld [vmem:[#allocation7 + $0x268] sm:$0xff]
    %v312 = vld [vmem:[#allocation7 + $0x270] sm:$0xff]
    %v313 = vld [vmem:[#allocation7 + $0x278] sm:$0xff]
    %v314 = vld [vmem:[#allocation7 + $0x280] sm:$0xff]
    %v315 = vld [vmem:[#allocation7 + $0x288] sm:$0xff]
    %v316 = vld [vmem:[#allocation7 + $0x290] sm:$0xff]
    %v317 = vld [vmem:[#allocation7 + $0x298] sm:$0xff]
    %v318 = vld [vmem:[#allocation7 + $0x2a0] sm:$0xff]
    %v319 = vld [vmem:[#allocation7 + $0x2a8] sm:$0xff]
    %v320 = vld [vmem:[#allocation7 + $0x2b0] sm:$0xff]
    %v321 = vld [vmem:[#allocation7 + $0x2b8] sm:$0xff]
    %v322 = vld [vmem:[#allocation7 + $0x2c0] sm:$0xff]
    %v323 = vld [vmem:[#allocation7 + $0x2c8] sm:$0xff]
    %v324 = vld [vmem:[#allocation7 + $0x2d0] sm:$0xff]
    %v325 = vld [vmem:[#allocation7 + $0x2d8] sm:$0xff]
    %v326 = vld [vmem:[#allocation7 + $0x2e0] sm:$0xff]
    %v327 = vld [vmem:[#allocation7 + $0x2e8] sm:$0xff]
    %v328 = vld [vmem:[#allocation7 + $0x2f0] sm:$0xff]
    %v329 = vld [vmem:[#allocation7 + $0x2f8] sm:$0xff]
    %v330 = vld [vmem:[#allocation7 + $0x300] sm:$0xff]
    %v331 = vld [vmem:[#allocation7 + $0x308] sm:$0xff]
    %v332 = vld [vmem:[#allocation7 + $0x310] sm:$0xff]
    %v333 = vld [vmem:[#allocation7 + $0x318] sm:$0xff]
    %v334 = vld [vmem:[#allocation7 + $0x320] sm:$0xff]
    %v335 = vld [vmem:[#allocation7 + $0x328] sm:$0xff]
    %v336 = vld [vmem:[#allocation7 + $0x330] sm:$0xff]
    %v337 = vld [vmem:[#allocation7 + $0x338] sm:$0xff]
    %v338 = vld [vmem:[#allocation7 + $0x340] sm:$0xff]
    %v339 = vld [vmem:[#allocation7 + $0x348] sm:$0xff]
    %v340 = vld [vmem:[#allocation7 + $0x350] sm:$0xff]
    %v341 = vld [vmem:[#allocation7 + $0x358] sm:$0xff]
    %v342 = vld [vmem:[#allocation7 + $0x360] sm:$0xff]
    %v343 = vld [vmem:[#allocation7 + $0x368] sm:$0xff]
    %v344 = vld [vmem:[#allocation7 + $0x370] sm:$0xff]
    %v345 = vld [vmem:[#allocation7 + $0x378] sm:$0xff]
    %v346 = vld [vmem:[#allocation7 + $0x380] sm:$0xff]
    %v347 = vld [vmem:[#allocation7 + $0x388] sm:$0xff]
    %v348 = vld [vmem:[#allocation7 + $0x390] sm:$0xff]
    %v349 = vld [vmem:[#allocation7 + $0x398] sm:$0xff]
    %v350 = vld [vmem:[#allocation7 + $0x3a0] sm:$0xff]
    %v351 = vld [vmem:[#allocation7 + $0x3a8] sm:$0xff]
    %v352 = vld [vmem:[#allocation7 + $0x3b0] sm:$0xff]
    %v353 = vld [vmem:[#allocation7 + $0x3b8] sm:$0xff]
    %v354 = vld [vmem:[#allocation7 + $0x3c0] sm:$0xff]
    %v355 = vld [vmem:[#allocation7 + $0x3c8] sm:$0xff]
    %v356 = vld [vmem:[#allocation7 + $0x3d0] sm:$0xff]
    %v357 = vld [vmem:[#allocation7 + $0x3d8] sm:$0xff]
    %v358 = vld [vmem:[#allocation7 + $0x3e0] sm:$0xff]
    %v359 = vld [vmem:[#allocation7 + $0x3e8] sm:$0xff]
    %v360 = vld [vmem:[#allocation7 + $0x3f0] sm:$0xff]
    %v361 = vld [vmem:[#allocation7 + $0x3f8] sm:$0xff]
    %v362 = vld [vmem:[#allocation7 + $0x400] sm:$0xff]
    %v363 = vld [vmem:[#allocation7 + $0x408] sm:$0xff]
    %v364 = vld [vmem:[#allocation7 + $0x410] sm:$0xff]
    %v365 = vld [vmem:[#allocation7 + $0x418] sm:$0xff]
    %v366 = vld [vmem:[#allocation7 + $0x420] sm:$0xff]
    %v367 = vld [vmem:[#allocation7 + $0x428] sm:$0xff]
    %v368 = vld [vmem:[#allocation7 + $0x430] sm:$0xff]
    %v369 = vld [vmem:[#allocation7 + $0x438] sm:$0xff]
    %v370 = vld [vmem:[#allocation7 + $0x440] sm:$0xff]
    %v371 = vld [vmem:[#allocation7 + $0x448] sm:$0xff]
    %v372 = vld [vmem:[#allocation7 + $0x450] sm:$0xff]
    %v373 = vld [vmem:[#allocation7 + $0x458] sm:$0xff]
    %v374 = vld [vmem:[#allocation7 + $0x460] sm:$0xff]
    %v375 = vld [vmem:[#allocation7 + $0x468] sm:$0xff]
    %v376 = vld [vmem:[#allocation7 + $0x470] sm:$0xff]
    %v377 = vld [vmem:[#allocation7 + $0x478] sm:$0xff]
    %v378 = vld [vmem:[#allocation7 + $0x480] sm:$0xff]
    %v379 = vld [vmem:[#allocation7 + $0x488] sm:$0xff]
    %v380 = vld [vmem:[#allocation7 + $0x490] sm:$0xff]
    %v381 = vld [vmem:[#allocation7 + $0x498] sm:$0xff]
    %v382 = vld [vmem:[#allocation7 + $0x4a0] sm:$0xff]
    %v383 = vld [vmem:[#allocation7 + $0x4a8] sm:$0xff]
    %v384 = vld [vmem:[#allocation7 + $0x4b0] sm:$0xff]
    %v385 = vld [vmem:[#allocation7 + $0x4b8] sm:$0xff]
    %v386 = vld [vmem:[#allocation7 + $0x4c0] sm:$0xff]
    %v387 = vld [vmem:[#allocation7 + $0x4c8] sm:$0xff]
    %v388 = vld [vmem:[#allocation7 + $0x4d0] sm:$0xff]
    %v389 = vld [vmem:[#allocation7 + $0x4d8] sm:$0xff]
    %v390 = vld [vmem:[#allocation7 + $0x4e0] sm:$0xff]
    %v391 = vld [vmem:[#allocation7 + $0x4e8] sm:$0xff]
    %v392 = vld [vmem:[#allocation7 + $0x4f0] sm:$0xff]
    %v393 = vld [vmem:[#allocation7 + $0x4f8] sm:$0xff]
    %v394 = vld [vmem:[#allocation7 + $0x500] sm:$0xff]
    %v395 = vld [vmem:[#allocation7 + $0x508] sm:$0xff]
    %v396 = vld [vmem:[#allocation7 + $0x510] sm:$0xff]
    %v397 = vld [vmem:[#allocation7 + $0x518] sm:$0xff]
    %v398 = vld [vmem:[#allocation7 + $0x520] sm:$0xff]
    %v399 = vld [vmem:[#allocation7 + $0x528] sm:$0xff]
    %v400 = vld [vmem:[#allocation7 + $0x530] sm:$0xff]
    %v401 = vld [vmem:[#allocation7 + $0x538] sm:$0xff]
    %v402 = vld [vmem:[#allocation7 + $0x540] sm:$0xff]
    %v403 = vld [vmem:[#allocation7 + $0x548] sm:$0xff]
    %v404 = vld [vmem:[#allocation7 + $0x550] sm:$0xff]
    %v405 = vld [vmem:[#allocation7 + $0x558] sm:$0xff]
    %v406 = vld [vmem:[#allocation7 + $0x560] sm:$0xff]
    %v407 = vld [vmem:[#allocation7 + $0x568] sm:$0xff]
    %v408 = vld [vmem:[#allocation7 + $0x570] sm:$0xff]
    %v409 = vld [vmem:[#allocation7 + $0x578] sm:$0xff]
    %v410 = vld [vmem:[#allocation7 + $0x580] sm:$0xff]
    %v411 = vld [vmem:[#allocation7 + $0x588] sm:$0xff]
    %v412 = vld [vmem:[#allocation7 + $0x590] sm:$0xff]
    %v413 = vld [vmem:[#allocation7 + $0x598] sm:$0xff]
    %v414 = vld [vmem:[#allocation7 + $0x5a0] sm:$0xff]
    %v415 = vld [vmem:[#allocation7 + $0x5a8] sm:$0xff]
    %v416 = vld [vmem:[#allocation7 + $0x5b0] sm:$0xff]
    %v417 = vld [vmem:[#allocation7 + $0x5b8] sm:$0xff]
    %v418 = vld [vmem:[#allocation7 + $0x5c0] sm:$0xff]
    %v419 = vld [vmem:[#allocation7 + $0x5c8] sm:$0xff]
    %v420 = vld [vmem:[#allocation7 + $0x5d0] sm:$0xff]
    %v421 = vld [vmem:[#allocation7 + $0x5d8] sm:$0xff]
    %v422 = vld [vmem:[#allocation7 + $0x5e0] sm:$0xff]
    %v423 = vld [vmem:[#allocation7 + $0x5e8] sm:$0xff]
    %v424 = vld [vmem:[#allocation7 + $0x5f0] sm:$0xff]
    %v425 = vld [vmem:[#allocation7 + $0x5f8] sm:$0xff]
    %v426 = vld [vmem:[#allocation7 + $0x600] sm:$0xff]
    %v427 = vld [vmem:[#allocation7 + $0x608] sm:$0xff]
    %v428 = vld [vmem:[#allocation7 + $0x610] sm:$0xff]
    %v429 = vld [vmem:[#allocation7 + $0x618] sm:$0xff]
    %v430 = vld [vmem:[#allocation7 + $0x620] sm:$0xff]
    %v431 = vld [vmem:[#allocation7 + $0x628] sm:$0xff]
    %v432 = vld [vmem:[#allocation7 + $0x630] sm:$0xff]
    %v433 = vld [vmem:[#allocation7 + $0x638] sm:$0xff]
    %v434 = vld [vmem:[#allocation7 + $0x640] sm:$0xff]
    %v435 = vld [vmem:[#allocation7 + $0x648] sm:$0xff]
    %v436 = vld [vmem:[#allocation7 + $0x650] sm:$0xff]
    %v437 = vld [vmem:[#allocation7 + $0x658] sm:$0xff]
    %v438 = vld [vmem:[#allocation7 + $0x660] sm:$0xff]
    %v439 = vld [vmem:[#allocation7 + $0x668] sm:$0xff]
    %v440 = vld [vmem:[#allocation7 + $0x670] sm:$0xff]
    %v441 = vld [vmem:[#allocation7 + $0x678] sm:$0xff]
    %v442 = vld [vmem:[#allocation7 + $0x680] sm:$0xff]
    %v443 = vld [vmem:[#allocation7 + $0x688] sm:$0xff]
    %v444 = vld [vmem:[#allocation7 + $0x690] sm:$0xff]
    %v445 = vld [vmem:[#allocation7 + $0x698] sm:$0xff]
    %v446 = vld [vmem:[#allocation7 + $0x6a0] sm:$0xff]
    %v447 = vld [vmem:[#allocation7 + $0x6a8] sm:$0xff]
    %v448 = vld [vmem:[#allocation7 + $0x6b0] sm:$0xff]
    %v449 = vld [vmem:[#allocation7 + $0x6b8] sm:$0xff]
    %v450 = vld [vmem:[#allocation7 + $0x6c0] sm:$0xff]
    %v451 = vld [vmem:[#allocation7 + $0x6c8] sm:$0xff]
    %v452 = vld [vmem:[#allocation7 + $0x6d0] sm:$0xff]
    %v453 = vld [vmem:[#allocation7 + $0x6d8] sm:$0xff]
    %v454 = vld [vmem:[#allocation7 + $0x6e0] sm:$0xff]
    %v455 = vld [vmem:[#allocation7 + $0x6e8] sm:$0xff]
    %v456 = vld [vmem:[#allocation7 + $0x6f0] sm:$0xff]
    %v457 = vld [vmem:[#allocation7 + $0x6f8] sm:$0xff]
    %v458 = vld [vmem:[#allocation7 + $0x700] sm:$0xff]
    %v459 = vld [vmem:[#allocation7 + $0x708] sm:$0xff]
    %v460 = vld [vmem:[#allocation7 + $0x710] sm:$0xff]
    %v461 = vld [vmem:[#allocation7 + $0x718] sm:$0xff]
    %v462 = vld [vmem:[#allocation7 + $0x720] sm:$0xff]
    %v463 = vld [vmem:[#allocation7 + $0x728] sm:$0xff]
    %v464 = vld [vmem:[#allocation7 + $0x730] sm:$0xff]
    %v465 = vld [vmem:[#allocation7 + $0x738] sm:$0xff]
    %v466 = vld [vmem:[#allocation7 + $0x740] sm:$0xff]
    %v467 = vld [vmem:[#allocation7 + $0x748] sm:$0xff]
    %v468 = vld [vmem:[#allocation7 + $0x750] sm:$0xff]
    %v469 = vld [vmem:[#allocation7 + $0x758] sm:$0xff]
    %v470 = vld [vmem:[#allocation7 + $0x760] sm:$0xff]
    %v471 = vld [vmem:[#allocation7 + $0x768] sm:$0xff]
    %v472 = vld [vmem:[#allocation7 + $0x770] sm:$0xff]
    %v473 = vld [vmem:[#allocation7 + $0x778] sm:$0xff]
    %v474 = vld [vmem:[#allocation7 + $0x780] sm:$0xff]
    %v475 = vld [vmem:[#allocation7 + $0x788] sm:$0xff]
    %v476 = vld [vmem:[#allocation7 + $0x790] sm:$0xff]
    %v477 = vld [vmem:[#allocation7 + $0x798] sm:$0xff]
    %v478 = vld [vmem:[#allocation7 + $0x7a0] sm:$0xff]
    %v479 = vld [vmem:[#allocation7 + $0x7a8] sm:$0xff]
    %v480 = vld [vmem:[#allocation7 + $0x7b0] sm:$0xff]
    %v481 = vld [vmem:[#allocation7 + $0x7b8] sm:$0xff]
    %v482 = vld [vmem:[#allocation7 + $0x7c0] sm:$0xff]
    %v483 = vld [vmem:[#allocation7 + $0x7c8] sm:$0xff]
    %v484 = vld [vmem:[#allocation7 + $0x7d0] sm:$0xff]
    %v485 = vld [vmem:[#allocation7 + $0x7d8] sm:$0xff]
    %v486 = vld [vmem:[#allocation7 + $0x7e0] sm:$0xff]
    %v487 = vld [vmem:[#allocation7 + $0x7e8] sm:$0xff]
    %v488 = vld [vmem:[#allocation7 + $0x7f0] sm:$0xff]
    %v489 = vld [vmem:[#allocation7 + $0x7f8] sm:$0xff]
    %v490 = vld [vmem:[%s3] sm:$0xf]
    %v492 = vlaneseq
    %v493 = vshrl.u32 %v492, 7
    %v494 = vsub.s32 0, %v493
    %v495 = vrot.slane %v490, %v494
    %v496 = vlaneseq
    %v497 = vshrl.u32 %v496, 7
    %v498 = vsub.s32 1, %v497
    %v499 = vrot.slane %v490, %v498
    %v500 = vlaneseq
    %v501 = vshrl.u32 %v500, 7
    %v502 = vsub.s32 2, %v501
    %v503 = vrot.slane %v490, %v502
    %v504 = vlaneseq
    %v505 = vshrl.u32 %v504, 7
    %v506 = vsub.s32 3, %v505
    %v507 = vrot.slane %v490, %v506
    %v516 = vunpack.c.l.b16 %v230
    %v517 = vunpack.c.h.b16 %v230
    %v518 = vunpack.c.l.b16 %v231
    %v519 = vunpack.c.h.b16 %v231
    %v520 = vunpack.c.l.b16 %v232
    %v521 = vunpack.c.h.b16 %v232
    %v522 = vunpack.c.l.b16 %v233
    %v523 = vunpack.c.h.b16 %v233
    %v524 = vpack.c.b16 %v516, %v516
    %v525 = vpack.c.b16 %v517, %v517
    %v526 = vpack.c.b16 %v518, %v518
    %v527 = vpack.c.b16 %v519, %v519
    %v528 = vpack.c.b16 %v520, %v520
    %v529 = vpack.c.b16 %v521, %v521
    %v530 = vpack.c.b16 %v522, %v522
    %v531 = vpack.c.b16 %v523, %v523
    %v796 = vunpack.c.l.b16 %v234
    %v797 = vunpack.c.h.b16 %v234
    %v798 = vunpack.c.l.b16 %v235
    %v799 = vunpack.c.h.b16 %v235
    %v800 = vunpack.c.l.b16 %v236
    %v801 = vunpack.c.h.b16 %v236
    %v802 = vunpack.c.l.b16 %v237
    %v803 = vunpack.c.h.b16 %v237
    %v804 = vunpack.c.l.b16 %v238
    %v805 = vunpack.c.h.b16 %v238
    %v806 = vunpack.c.l.b16 %v239
    %v807 = vunpack.c.h.b16 %v239
    %v808 = vunpack.c.l.b16 %v240
    %v809 = vunpack.c.h.b16 %v240
    %v810 = vunpack.c.l.b16 %v241
    %v811 = vunpack.c.h.b16 %v241
    %v812 = vunpack.c.l.b16 %v242
    %v813 = vunpack.c.h.b16 %v242
    %v814 = vunpack.c.l.b16 %v243
    %v815 = vunpack.c.h.b16 %v243
    %v816 = vunpack.c.l.b16 %v244
    %v817 = vunpack.c.h.b16 %v244
    %v818 = vunpack.c.l.b16 %v245
    %v819 = vunpack.c.h.b16 %v245
    %v820 = vunpack.c.l.b16 %v246
    %v821 = vunpack.c.h.b16 %v246
    %v822 = vunpack.c.l.b16 %v247
    %v823 = vunpack.c.h.b16 %v247
    %v824 = vunpack.c.l.b16 %v248
    %v825 = vunpack.c.h.b16 %v248
    %v826 = vunpack.c.l.b16 %v249
    %v827 = vunpack.c.h.b16 %v249
    %v828 = vunpack.c.l.b16 %v250
    %v829 = vunpack.c.h.b16 %v250
    %v830 = vunpack.c.l.b16 %v251
    %v831 = vunpack.c.h.b16 %v251
    %v832 = vunpack.c.l.b16 %v252
    %v833 = vunpack.c.h.b16 %v252
    %v834 = vunpack.c.l.b16 %v253
    %v835 = vunpack.c.h.b16 %v253
    %v836 = vunpack.c.l.b16 %v254
    %v837 = vunpack.c.h.b16 %v254
    %v838 = vunpack.c.l.b16 %v255
    %v839 = vunpack.c.h.b16 %v255
    %v840 = vunpack.c.l.b16 %v256
    %v841 = vunpack.c.h.b16 %v256
    %v842 = vunpack.c.l.b16 %v257
    %v843 = vunpack.c.h.b16 %v257
    %v844 = vunpack.c.l.b16 %v258
    %v845 = vunpack.c.h.b16 %v258
    %v846 = vunpack.c.l.b16 %v259
    %v847 = vunpack.c.h.b16 %v259
    %v848 = vunpack.c.l.b16 %v260
    %v849 = vunpack.c.h.b16 %v260
    %v850 = vunpack.c.l.b16 %v261
    %v851 = vunpack.c.h.b16 %v261
    %v852 = vunpack.c.l.b16 %v262
    %v853 = vunpack.c.h.b16 %v262
    %v854 = vunpack.c.l.b16 %v263
    %v855 = vunpack.c.h.b16 %v263
    %v856 = vunpack.c.l.b16 %v264
    %v857 = vunpack.c.h.b16 %v264
    %v858 = vunpack.c.l.b16 %v265
    %v859 = vunpack.c.h.b16 %v265
    %v860 = vunpack.c.l.b16 %v266
    %v861 = vunpack.c.h.b16 %v266
    %v862 = vunpack.c.l.b16 %v267
    %v863 = vunpack.c.h.b16 %v267
    %v864 = vunpack.c.l.b16 %v268
    %v865 = vunpack.c.h.b16 %v268
    %v866 = vunpack.c.l.b16 %v269
    %v867 = vunpack.c.h.b16 %v269
    %v868 = vunpack.c.l.b16 %v270
    %v869 = vunpack.c.h.b16 %v270
    %v870 = vunpack.c.l.b16 %v271
    %v871 = vunpack.c.h.b16 %v271
    %v872 = vunpack.c.l.b16 %v272
    %v873 = vunpack.c.h.b16 %v272
    %v874 = vunpack.c.l.b16 %v273
    %v875 = vunpack.c.h.b16 %v273
    %v876 = vunpack.c.l.b16 %v274
    %v877 = vunpack.c.h.b16 %v274
    %v878 = vunpack.c.l.b16 %v275
    %v879 = vunpack.c.h.b16 %v275
    %v880 = vunpack.c.l.b16 %v276
    %v881 = vunpack.c.h.b16 %v276
    %v882 = vunpack.c.l.b16 %v277
    %v883 = vunpack.c.h.b16 %v277
    %v884 = vunpack.c.l.b16 %v278
    %v885 = vunpack.c.h.b16 %v278
    %v886 = vunpack.c.l.b16 %v279
    %v887 = vunpack.c.h.b16 %v279
    %v888 = vunpack.c.l.b16 %v280
    %v889 = vunpack.c.h.b16 %v280
    %v890 = vunpack.c.l.b16 %v281
    %v891 = vunpack.c.h.b16 %v281
    %v892 = vunpack.c.l.b16 %v282
    %v893 = vunpack.c.h.b16 %v282
    %v894 = vunpack.c.l.b16 %v283
    %v895 = vunpack.c.h.b16 %v283
    %v896 = vunpack.c.l.b16 %v284
    %v897 = vunpack.c.h.b16 %v284
    %v898 = vunpack.c.l.b16 %v285
    %v899 = vunpack.c.h.b16 %v285
    %v900 = vunpack.c.l.b16 %v286
    %v901 = vunpack.c.h.b16 %v286
    %v902 = vunpack.c.l.b16 %v287
    %v903 = vunpack.c.h.b16 %v287
    %v904 = vunpack.c.l.b16 %v288
    %v905 = vunpack.c.h.b16 %v288
    %v906 = vunpack.c.l.b16 %v289
    %v907 = vunpack.c.h.b16 %v289
    %v908 = vunpack.c.l.b16 %v290
    %v909 = vunpack.c.h.b16 %v290
    %v910 = vunpack.c.l.b16 %v291
    %v911 = vunpack.c.h.b16 %v291
    %v912 = vunpack.c.l.b16 %v292
    %v913 = vunpack.c.h.b16 %v292
    %v914 = vunpack.c.l.b16 %v293
    %v915 = vunpack.c.h.b16 %v293
    %v916 = vunpack.c.l.b16 %v294
    %v917 = vunpack.c.h.b16 %v294
    %v918 = vunpack.c.l.b16 %v295
    %v919 = vunpack.c.h.b16 %v295
    %v920 = vunpack.c.l.b16 %v296
    %v921 = vunpack.c.h.b16 %v296
    %v922 = vunpack.c.l.b16 %v297
    %v923 = vunpack.c.h.b16 %v297
    %v924 = vunpack.c.l.b16 %v298
    %v925 = vunpack.c.h.b16 %v298
    %v926 = vunpack.c.l.b16 %v299
    %v927 = vunpack.c.h.b16 %v299
    %v928 = vunpack.c.l.b16 %v300
    %v929 = vunpack.c.h.b16 %v300
    %v930 = vunpack.c.l.b16 %v301
    %v931 = vunpack.c.h.b16 %v301
    %v932 = vunpack.c.l.b16 %v302
    %v933 = vunpack.c.h.b16 %v302
    %v934 = vunpack.c.l.b16 %v303
    %v935 = vunpack.c.h.b16 %v303
    %v936 = vunpack.c.l.b16 %v304
    %v937 = vunpack.c.h.b16 %v304
    %v938 = vunpack.c.l.b16 %v305
    %v939 = vunpack.c.h.b16 %v305
    %v940 = vunpack.c.l.b16 %v306
    %v941 = vunpack.c.h.b16 %v306
    %v942 = vunpack.c.l.b16 %v307
    %v943 = vunpack.c.h.b16 %v307
    %v944 = vunpack.c.l.b16 %v308
    %v945 = vunpack.c.h.b16 %v308
    %v946 = vunpack.c.l.b16 %v309
    %v947 = vunpack.c.h.b16 %v309
    %v948 = vunpack.c.l.b16 %v310
    %v949 = vunpack.c.h.b16 %v310
    %v950 = vunpack.c.l.b16 %v311
    %v951 = vunpack.c.h.b16 %v311
    %v952 = vunpack.c.l.b16 %v312
    %v953 = vunpack.c.h.b16 %v312
    %v954 = vunpack.c.l.b16 %v313
    %v955 = vunpack.c.h.b16 %v313
    %v956 = vunpack.c.l.b16 %v314
    %v957 = vunpack.c.h.b16 %v314
    %v958 = vunpack.c.l.b16 %v315
    %v959 = vunpack.c.h.b16 %v315
    %v960 = vunpack.c.l.b16 %v316
    %v961 = vunpack.c.h.b16 %v316
    %v962 = vunpack.c.l.b16 %v317
    %v963 = vunpack.c.h.b16 %v317
    %v964 = vunpack.c.l.b16 %v318
    %v965 = vunpack.c.h.b16 %v318
    %v966 = vunpack.c.l.b16 %v319
    %v967 = vunpack.c.h.b16 %v319
    %v968 = vunpack.c.l.b16 %v320
    %v969 = vunpack.c.h.b16 %v320
    %v970 = vunpack.c.l.b16 %v321
    %v971 = vunpack.c.h.b16 %v321
    %v972 = vunpack.c.l.b16 %v322
    %v973 = vunpack.c.h.b16 %v322
    %v974 = vunpack.c.l.b16 %v323
    %v975 = vunpack.c.h.b16 %v323
    %v976 = vunpack.c.l.b16 %v324
    %v977 = vunpack.c.h.b16 %v324
    %v978 = vunpack.c.l.b16 %v325
    %v979 = vunpack.c.h.b16 %v325
    %v980 = vunpack.c.l.b16 %v326
    %v981 = vunpack.c.h.b16 %v326
    %v982 = vunpack.c.l.b16 %v327
    %v983 = vunpack.c.h.b16 %v327
    %v984 = vunpack.c.l.b16 %v328
    %v985 = vunpack.c.h.b16 %v328
    %v986 = vunpack.c.l.b16 %v329
    %v987 = vunpack.c.h.b16 %v329
    %v988 = vunpack.c.l.b16 %v330
    %v989 = vunpack.c.h.b16 %v330
    %v990 = vunpack.c.l.b16 %v331
    %v991 = vunpack.c.h.b16 %v331
    %v992 = vunpack.c.l.b16 %v332
    %v993 = vunpack.c.h.b16 %v332
    %v994 = vunpack.c.l.b16 %v333
    %v995 = vunpack.c.h.b16 %v333
    %v996 = vunpack.c.l.b16 %v334
    %v997 = vunpack.c.h.b16 %v334
    %v998 = vunpack.c.l.b16 %v335
    %v999 = vunpack.c.h.b16 %v335
    %v1000 = vunpack.c.l.b16 %v336
    %v1001 = vunpack.c.h.b16 %v336
    %v1002 = vunpack.c.l.b16 %v337
    %v1003 = vunpack.c.h.b16 %v337
    %v1004 = vunpack.c.l.b16 %v338
    %v1005 = vunpack.c.h.b16 %v338
    %v1006 = vunpack.c.l.b16 %v339
    %v1007 = vunpack.c.h.b16 %v339
    %v1008 = vunpack.c.l.b16 %v340
    %v1009 = vunpack.c.h.b16 %v340
    %v1010 = vunpack.c.l.b16 %v341
    %v1011 = vunpack.c.h.b16 %v341
    %v1012 = vunpack.c.l.b16 %v342
    %v1013 = vunpack.c.h.b16 %v342
    %v1014 = vunpack.c.l.b16 %v343
    %v1015 = vunpack.c.h.b16 %v343
    %v1016 = vunpack.c.l.b16 %v344
    %v1017 = vunpack.c.h.b16 %v344
    %v1018 = vunpack.c.l.b16 %v345
    %v1019 = vunpack.c.h.b16 %v345
    %v1020 = vunpack.c.l.b16 %v346
    %v1021 = vunpack.c.h.b16 %v346
    %v1022 = vunpack.c.l.b16 %v347
    %v1023 = vunpack.c.h.b16 %v347
    %v1024 = vunpack.c.l.b16 %v348
    %v1025 = vunpack.c.h.b16 %v348
    %v1026 = vunpack.c.l.b16 %v349
    %v1027 = vunpack.c.h.b16 %v349
    %v1028 = vunpack.c.l.b16 %v350
    %v1029 = vunpack.c.h.b16 %v350
    %v1030 = vunpack.c.l.b16 %v351
    %v1031 = vunpack.c.h.b16 %v351
    %v1032 = vunpack.c.l.b16 %v352
    %v1033 = vunpack.c.h.b16 %v352
    %v1034 = vunpack.c.l.b16 %v353
    %v1035 = vunpack.c.h.b16 %v353
    %v1036 = vunpack.c.l.b16 %v354
    %v1037 = vunpack.c.h.b16 %v354
    %v1038 = vunpack.c.l.b16 %v355
    %v1039 = vunpack.c.h.b16 %v355
    %v1040 = vunpack.c.l.b16 %v356
    %v1041 = vunpack.c.h.b16 %v356
    %v1042 = vunpack.c.l.b16 %v357
    %v1043 = vunpack.c.h.b16 %v357
    %v1044 = vunpack.c.l.b16 %v358
    %v1045 = vunpack.c.h.b16 %v358
    %v1046 = vunpack.c.l.b16 %v359
    %v1047 = vunpack.c.h.b16 %v359
    %v1048 = vunpack.c.l.b16 %v360
    %v1049 = vunpack.c.h.b16 %v360
    %v1050 = vunpack.c.l.b16 %v361
    %v1051 = vunpack.c.h.b16 %v361
    %v1052 = vunpack.c.l.b16 %v362
    %v1053 = vunpack.c.h.b16 %v362
    %v1054 = vunpack.c.l.b16 %v363
    %v1055 = vunpack.c.h.b16 %v363
    %v1056 = vunpack.c.l.b16 %v364
    %v1057 = vunpack.c.h.b16 %v364
    %v1058 = vunpack.c.l.b16 %v365
    %v1059 = vunpack.c.h.b16 %v365
    %v1060 = vunpack.c.l.b16 %v366
    %v1061 = vunpack.c.h.b16 %v366
    %v1062 = vunpack.c.l.b16 %v367
    %v1063 = vunpack.c.h.b16 %v367
    %v1064 = vunpack.c.l.b16 %v368
    %v1065 = vunpack.c.h.b16 %v368
    %v1066 = vunpack.c.l.b16 %v369
    %v1067 = vunpack.c.h.b16 %v369
    %v1068 = vunpack.c.l.b16 %v370
    %v1069 = vunpack.c.h.b16 %v370
    %v1070 = vunpack.c.l.b16 %v371
    %v1071 = vunpack.c.h.b16 %v371
    %v1072 = vunpack.c.l.b16 %v372
    %v1073 = vunpack.c.h.b16 %v372
    %v1074 = vunpack.c.l.b16 %v373
    %v1075 = vunpack.c.h.b16 %v373
    %v1076 = vunpack.c.l.b16 %v374
    %v1077 = vunpack.c.h.b16 %v374
    %v1078 = vunpack.c.l.b16 %v375
    %v1079 = vunpack.c.h.b16 %v375
    %v1080 = vunpack.c.l.b16 %v376
    %v1081 = vunpack.c.h.b16 %v376
    %v1082 = vunpack.c.l.b16 %v377
    %v1083 = vunpack.c.h.b16 %v377
    %v1084 = vunpack.c.l.b16 %v378
    %v1085 = vunpack.c.h.b16 %v378
    %v1086 = vunpack.c.l.b16 %v379
    %v1087 = vunpack.c.h.b16 %v379
    %v1088 = vunpack.c.l.b16 %v380
    %v1089 = vunpack.c.h.b16 %v380
    %v1090 = vunpack.c.l.b16 %v381
    %v1091 = vunpack.c.h.b16 %v381
    %v1092 = vunpack.c.l.b16 %v382
    %v1093 = vunpack.c.h.b16 %v382
    %v1094 = vunpack.c.l.b16 %v383
    %v1095 = vunpack.c.h.b16 %v383
    %v1096 = vunpack.c.l.b16 %v384
    %v1097 = vunpack.c.h.b16 %v384
    %v1098 = vunpack.c.l.b16 %v385
    %v1099 = vunpack.c.h.b16 %v385
    %v1100 = vunpack.c.l.b16 %v386
    %v1101 = vunpack.c.h.b16 %v386
    %v1102 = vunpack.c.l.b16 %v387
    %v1103 = vunpack.c.h.b16 %v387
    %v1104 = vunpack.c.l.b16 %v388
    %v1105 = vunpack.c.h.b16 %v388
    %v1106 = vunpack.c.l.b16 %v389
    %v1107 = vunpack.c.h.b16 %v389
    %v1108 = vunpack.c.l.b16 %v390
    %v1109 = vunpack.c.h.b16 %v390
    %v1110 = vunpack.c.l.b16 %v391
    %v1111 = vunpack.c.h.b16 %v391
    %v1112 = vunpack.c.l.b16 %v392
    %v1113 = vunpack.c.h.b16 %v392
    %v1114 = vunpack.c.l.b16 %v393
    %v1115 = vunpack.c.h.b16 %v393
    %v1116 = vunpack.c.l.b16 %v394
    %v1117 = vunpack.c.h.b16 %v394
    %v1118 = vunpack.c.l.b16 %v395
    %v1119 = vunpack.c.h.b16 %v395
    %v1120 = vunpack.c.l.b16 %v396
    %v1121 = vunpack.c.h.b16 %v396
    %v1122 = vunpack.c.l.b16 %v397
    %v1123 = vunpack.c.h.b16 %v397
    %v1124 = vunpack.c.l.b16 %v398
    %v1125 = vunpack.c.h.b16 %v398
    %v1126 = vunpack.c.l.b16 %v399
    %v1127 = vunpack.c.h.b16 %v399
    %v1128 = vunpack.c.l.b16 %v400
    %v1129 = vunpack.c.h.b16 %v400
    %v1130 = vunpack.c.l.b16 %v401
    %v1131 = vunpack.c.h.b16 %v401
    %v1132 = vunpack.c.l.b16 %v402
    %v1133 = vunpack.c.h.b16 %v402
    %v1134 = vunpack.c.l.b16 %v403
    %v1135 = vunpack.c.h.b16 %v403
    %v1136 = vunpack.c.l.b16 %v404
    %v1137 = vunpack.c.h.b16 %v404
    %v1138 = vunpack.c.l.b16 %v405
    %v1139 = vunpack.c.h.b16 %v405
    %v1140 = vunpack.c.l.b16 %v406
    %v1141 = vunpack.c.h.b16 %v406
    %v1142 = vunpack.c.l.b16 %v407
    %v1143 = vunpack.c.h.b16 %v407
    %v1144 = vunpack.c.l.b16 %v408
    %v1145 = vunpack.c.h.b16 %v408
    %v1146 = vunpack.c.l.b16 %v409
    %v1147 = vunpack.c.h.b16 %v409
    %v1148 = vunpack.c.l.b16 %v410
    %v1149 = vunpack.c.h.b16 %v410
    %v1150 = vunpack.c.l.b16 %v411
    %v1151 = vunpack.c.h.b16 %v411
    %v1152 = vunpack.c.l.b16 %v412
    %v1153 = vunpack.c.h.b16 %v412
    %v1154 = vunpack.c.l.b16 %v413
    %v1155 = vunpack.c.h.b16 %v413
    %v1156 = vunpack.c.l.b16 %v414
    %v1157 = vunpack.c.h.b16 %v414
    %v1158 = vunpack.c.l.b16 %v415
    %v1159 = vunpack.c.h.b16 %v415
    %v1160 = vunpack.c.l.b16 %v416
    %v1161 = vunpack.c.h.b16 %v416
    %v1162 = vunpack.c.l.b16 %v417
    %v1163 = vunpack.c.h.b16 %v417
    %v1164 = vunpack.c.l.b16 %v418
    %v1165 = vunpack.c.h.b16 %v418
    %v1166 = vunpack.c.l.b16 %v419
    %v1167 = vunpack.c.h.b16 %v419
    %v1168 = vunpack.c.l.b16 %v420
    %v1169 = vunpack.c.h.b16 %v420
    %v1170 = vunpack.c.l.b16 %v421
    %v1171 = vunpack.c.h.b16 %v421
    %v1172 = vunpack.c.l.b16 %v422
    %v1173 = vunpack.c.h.b16 %v422
    %v1174 = vunpack.c.l.b16 %v423
    %v1175 = vunpack.c.h.b16 %v423
    %v1176 = vunpack.c.l.b16 %v424
    %v1177 = vunpack.c.h.b16 %v424
    %v1178 = vunpack.c.l.b16 %v425
    %v1179 = vunpack.c.h.b16 %v425
    %v1180 = vunpack.c.l.b16 %v426
    %v1181 = vunpack.c.h.b16 %v426
    %v1182 = vunpack.c.l.b16 %v427
    %v1183 = vunpack.c.h.b16 %v427
    %v1184 = vunpack.c.l.b16 %v428
    %v1185 = vunpack.c.h.b16 %v428
    %v1186 = vunpack.c.l.b16 %v429
    %v1187 = vunpack.c.h.b16 %v429
    %v1188 = vunpack.c.l.b16 %v430
    %v1189 = vunpack.c.h.b16 %v430
    %v1190 = vunpack.c.l.b16 %v431
    %v1191 = vunpack.c.h.b16 %v431
    %v1192 = vunpack.c.l.b16 %v432
    %v1193 = vunpack.c.h.b16 %v432
    %v1194 = vunpack.c.l.b16 %v433
    %v1195 = vunpack.c.h.b16 %v433
    %v1196 = vunpack.c.l.b16 %v434
    %v1197 = vunpack.c.h.b16 %v434
    %v1198 = vunpack.c.l.b16 %v435
    %v1199 = vunpack.c.h.b16 %v435
    %v1200 = vunpack.c.l.b16 %v436
    %v1201 = vunpack.c.h.b16 %v436
    %v1202 = vunpack.c.l.b16 %v437
    %v1203 = vunpack.c.h.b16 %v437
    %v1204 = vunpack.c.l.b16 %v438
    %v1205 = vunpack.c.h.b16 %v438
    %v1206 = vunpack.c.l.b16 %v439
    %v1207 = vunpack.c.h.b16 %v439
    %v1208 = vunpack.c.l.b16 %v440
    %v1209 = vunpack.c.h.b16 %v440
    %v1210 = vunpack.c.l.b16 %v441
    %v1211 = vunpack.c.h.b16 %v441
    %v1212 = vunpack.c.l.b16 %v442
    %v1213 = vunpack.c.h.b16 %v442
    %v1214 = vunpack.c.l.b16 %v443
    %v1215 = vunpack.c.h.b16 %v443
    %v1216 = vunpack.c.l.b16 %v444
    %v1217 = vunpack.c.h.b16 %v444
    %v1218 = vunpack.c.l.b16 %v445
    %v1219 = vunpack.c.h.b16 %v445
    %v1220 = vunpack.c.l.b16 %v446
    %v1221 = vunpack.c.h.b16 %v446
    %v1222 = vunpack.c.l.b16 %v447
    %v1223 = vunpack.c.h.b16 %v447
    %v1224 = vunpack.c.l.b16 %v448
    %v1225 = vunpack.c.h.b16 %v448
    %v1226 = vunpack.c.l.b16 %v449
    %v1227 = vunpack.c.h.b16 %v449
    %v1228 = vunpack.c.l.b16 %v450
    %v1229 = vunpack.c.h.b16 %v450
    %v1230 = vunpack.c.l.b16 %v451
    %v1231 = vunpack.c.h.b16 %v451
    %v1232 = vunpack.c.l.b16 %v452
    %v1233 = vunpack.c.h.b16 %v452
    %v1234 = vunpack.c.l.b16 %v453
    %v1235 = vunpack.c.h.b16 %v453
    %v1236 = vunpack.c.l.b16 %v454
    %v1237 = vunpack.c.h.b16 %v454
    %v1238 = vunpack.c.l.b16 %v455
    %v1239 = vunpack.c.h.b16 %v455
    %v1240 = vunpack.c.l.b16 %v456
    %v1241 = vunpack.c.h.b16 %v456
    %v1242 = vunpack.c.l.b16 %v457
    %v1243 = vunpack.c.h.b16 %v457
    %v1244 = vunpack.c.l.b16 %v458
    %v1245 = vunpack.c.h.b16 %v458
    %v1246 = vunpack.c.l.b16 %v459
    %v1247 = vunpack.c.h.b16 %v459
    %v1248 = vunpack.c.l.b16 %v460
    %v1249 = vunpack.c.h.b16 %v460
    %v1250 = vunpack.c.l.b16 %v461
    %v1251 = vunpack.c.h.b16 %v461
    %v1252 = vunpack.c.l.b16 %v462
    %v1253 = vunpack.c.h.b16 %v462
    %v1254 = vunpack.c.l.b16 %v463
    %v1255 = vunpack.c.h.b16 %v463
    %v1256 = vunpack.c.l.b16 %v464
    %v1257 = vunpack.c.h.b16 %v464
    %v1258 = vunpack.c.l.b16 %v465
    %v1259 = vunpack.c.h.b16 %v465
    %v1260 = vunpack.c.l.b16 %v466
    %v1261 = vunpack.c.h.b16 %v466
    %v1262 = vunpack.c.l.b16 %v467
    %v1263 = vunpack.c.h.b16 %v467
    %v1264 = vunpack.c.l.b16 %v468
    %v1265 = vunpack.c.h.b16 %v468
    %v1266 = vunpack.c.l.b16 %v469
    %v1267 = vunpack.c.h.b16 %v469
    %v1268 = vunpack.c.l.b16 %v470
    %v1269 = vunpack.c.h.b16 %v470
    %v1270 = vunpack.c.l.b16 %v471
    %v1271 = vunpack.c.h.b16 %v471
    %v1272 = vunpack.c.l.b16 %v472
    %v1273 = vunpack.c.h.b16 %v472
    %v1274 = vunpack.c.l.b16 %v473
    %v1275 = vunpack.c.h.b16 %v473
    %v1276 = vunpack.c.l.b16 %v474
    %v1277 = vunpack.c.h.b16 %v474
    %v1278 = vunpack.c.l.b16 %v475
    %v1279 = vunpack.c.h.b16 %v475
    %v1280 = vunpack.c.l.b16 %v476
    %v1281 = vunpack.c.h.b16 %v476
    %v1282 = vunpack.c.l.b16 %v477
    %v1283 = vunpack.c.h.b16 %v477
    %v1284 = vunpack.c.l.b16 %v478
    %v1285 = vunpack.c.h.b16 %v478
    %v1286 = vunpack.c.l.b16 %v479
    %v1287 = vunpack.c.h.b16 %v479
    %v1288 = vunpack.c.l.b16 %v480
    %v1289 = vunpack.c.h.b16 %v480
    %v1290 = vunpack.c.l.b16 %v481
    %v1291 = vunpack.c.h.b16 %v481
    %v1292 = vunpack.c.l.b16 %v482
    %v1293 = vunpack.c.h.b16 %v482
    %v1294 = vunpack.c.l.b16 %v483
    %v1295 = vunpack.c.h.b16 %v483
    %v1296 = vunpack.c.l.b16 %v484
    %v1297 = vunpack.c.h.b16 %v484
    %v1298 = vunpack.c.l.b16 %v485
    %v1299 = vunpack.c.h.b16 %v485
    %v1300 = vunpack.c.l.b16 %v486
    %v1301 = vunpack.c.h.b16 %v486
    %v1302 = vunpack.c.l.b16 %v487
    %v1303 = vunpack.c.h.b16 %v487
    %v1304 = vunpack.c.l.b16 %v488
    %v1305 = vunpack.c.h.b16 %v488
    %v1306 = vunpack.c.l.b16 %v489
    %v1307 = vunpack.c.h.b16 %v489
    %v1308 = vpack.c.b16 %v800, %v796
    %v1309 = vpack.c.b16 %v801, %v797
    %v1310 = vpack.c.b16 %v802, %v798
    %v1311 = vpack.c.b16 %v803, %v799
    %v1312 = vpack.c.b16 %v808, %v804
    %v1313 = vpack.c.b16 %v809, %v805
    %v1314 = vpack.c.b16 %v810, %v806
    %v1315 = vpack.c.b16 %v811, %v807
    %v1316 = vpack.c.b16 %v816, %v812
    %v1317 = vpack.c.b16 %v817, %v813
    %v1318 = vpack.c.b16 %v818, %v814
    %v1319 = vpack.c.b16 %v819, %v815
    %v1320 = vpack.c.b16 %v824, %v820
    %v1321 = vpack.c.b16 %v825, %v821
    %v1322 = vpack.c.b16 %v826, %v822
    %v1323 = vpack.c.b16 %v827, %v823
    %v1324 = vpack.c.b16 %v832, %v828
    %v1325 = vpack.c.b16 %v833, %v829
    %v1326 = vpack.c.b16 %v834, %v830
    %v1327 = vpack.c.b16 %v835, %v831
    %v1328 = vpack.c.b16 %v840, %v836
    %v1329 = vpack.c.b16 %v841, %v837
    %v1330 = vpack.c.b16 %v842, %v838
    %v1331 = vpack.c.b16 %v843, %v839
    %v1332 = vpack.c.b16 %v848, %v844
    %v1333 = vpack.c.b16 %v849, %v845
    %v1334 = vpack.c.b16 %v850, %v846
    %v1335 = vpack.c.b16 %v851, %v847
    %v1336 = vpack.c.b16 %v856, %v852
    %v1337 = vpack.c.b16 %v857, %v853
    %v1338 = vpack.c.b16 %v858, %v854
    %v1339 = vpack.c.b16 %v859, %v855
    %v1340 = vpack.c.b16 %v864, %v860
    %v1341 = vpack.c.b16 %v865, %v861
    %v1342 = vpack.c.b16 %v866, %v862
    %v1343 = vpack.c.b16 %v867, %v863
    %v1344 = vpack.c.b16 %v872, %v868
    %v1345 = vpack.c.b16 %v873, %v869
    %v1346 = vpack.c.b16 %v874, %v870
    %v1347 = vpack.c.b16 %v875, %v871
    %v1348 = vpack.c.b16 %v880, %v876
    %v1349 = vpack.c.b16 %v881, %v877
    %v1350 = vpack.c.b16 %v882, %v878
    %v1351 = vpack.c.b16 %v883, %v879
    %v1352 = vpack.c.b16 %v888, %v884
    %v1353 = vpack.c.b16 %v889, %v885
    %v1354 = vpack.c.b16 %v890, %v886
    %v1355 = vpack.c.b16 %v891, %v887
    %v1356 = vpack.c.b16 %v896, %v892
    %v1357 = vpack.c.b16 %v897, %v893
    %v1358 = vpack.c.b16 %v898, %v894
    %v1359 = vpack.c.b16 %v899, %v895
    %v1360 = vpack.c.b16 %v904, %v900
    %v1361 = vpack.c.b16 %v905, %v901
    %v1362 = vpack.c.b16 %v906, %v902
    %v1363 = vpack.c.b16 %v907, %v903
    %v1364 = vpack.c.b16 %v912, %v908
    %v1365 = vpack.c.b16 %v913, %v909
    %v1366 = vpack.c.b16 %v914, %v910
    %v1367 = vpack.c.b16 %v915, %v911
    %v1368 = vpack.c.b16 %v920, %v916
    %v1369 = vpack.c.b16 %v921, %v917
    %v1370 = vpack.c.b16 %v922, %v918
    %v1371 = vpack.c.b16 %v923, %v919
    %v1372 = vpack.c.b16 %v928, %v924
    %v1373 = vpack.c.b16 %v929, %v925
    %v1374 = vpack.c.b16 %v930, %v926
    %v1375 = vpack.c.b16 %v931, %v927
    %v1376 = vpack.c.b16 %v936, %v932
    %v1377 = vpack.c.b16 %v937, %v933
    %v1378 = vpack.c.b16 %v938, %v934
    %v1379 = vpack.c.b16 %v939, %v935
    %v1380 = vpack.c.b16 %v944, %v940
    %v1381 = vpack.c.b16 %v945, %v941
    %v1382 = vpack.c.b16 %v946, %v942
    %v1383 = vpack.c.b16 %v947, %v943
    %v1384 = vpack.c.b16 %v952, %v948
    %v1385 = vpack.c.b16 %v953, %v949
    %v1386 = vpack.c.b16 %v954, %v950
    %v1387 = vpack.c.b16 %v955, %v951
    %v1388 = vpack.c.b16 %v960, %v956
    %v1389 = vpack.c.b16 %v961, %v957
    %v1390 = vpack.c.b16 %v962, %v958
    %v1391 = vpack.c.b16 %v963, %v959
    %v1392 = vpack.c.b16 %v968, %v964
    %v1393 = vpack.c.b16 %v969, %v965
    %v1394 = vpack.c.b16 %v970, %v966
    %v1395 = vpack.c.b16 %v971, %v967
    %v1396 = vpack.c.b16 %v976, %v972
    %v1397 = vpack.c.b16 %v977, %v973
    %v1398 = vpack.c.b16 %v978, %v974
    %v1399 = vpack.c.b16 %v979, %v975
    %v1400 = vpack.c.b16 %v984, %v980
    %v1401 = vpack.c.b16 %v985, %v981
    %v1402 = vpack.c.b16 %v986, %v982
    %v1403 = vpack.c.b16 %v987, %v983
    %v1404 = vpack.c.b16 %v992, %v988
    %v1405 = vpack.c.b16 %v993, %v989
    %v1406 = vpack.c.b16 %v994, %v990
    %v1407 = vpack.c.b16 %v995, %v991
    %v1408 = vpack.c.b16 %v1000, %v996
    %v1409 = vpack.c.b16 %v1001, %v997
    %v1410 = vpack.c.b16 %v1002, %v998
    %v1411 = vpack.c.b16 %v1003, %v999
    %v1412 = vpack.c.b16 %v1008, %v1004
    %v1413 = vpack.c.b16 %v1009, %v1005
    %v1414 = vpack.c.b16 %v1010, %v1006
    %v1415 = vpack.c.b16 %v1011, %v1007
    %v1416 = vpack.c.b16 %v1016, %v1012
    %v1417 = vpack.c.b16 %v1017, %v1013
    %v1418 = vpack.c.b16 %v1018, %v1014
    %v1419 = vpack.c.b16 %v1019, %v1015
    %v1420 = vpack.c.b16 %v1024, %v1020
    %v1421 = vpack.c.b16 %v1025, %v1021
    %v1422 = vpack.c.b16 %v1026, %v1022
    %v1423 = vpack.c.b16 %v1027, %v1023
    %v1424 = vpack.c.b16 %v1032, %v1028
    %v1425 = vpack.c.b16 %v1033, %v1029
    %v1426 = vpack.c.b16 %v1034, %v1030
    %v1427 = vpack.c.b16 %v1035, %v1031
    %v1428 = vpack.c.b16 %v1040, %v1036
    %v1429 = vpack.c.b16 %v1041, %v1037
    %v1430 = vpack.c.b16 %v1042, %v1038
    %v1431 = vpack.c.b16 %v1043, %v1039
    %v1432 = vpack.c.b16 %v1048, %v1044
    %v1433 = vpack.c.b16 %v1049, %v1045
    %v1434 = vpack.c.b16 %v1050, %v1046
    %v1435 = vpack.c.b16 %v1051, %v1047
    %v1436 = vpack.c.b16 %v1056, %v1052
    %v1437 = vpack.c.b16 %v1057, %v1053
    %v1438 = vpack.c.b16 %v1058, %v1054
    %v1439 = vpack.c.b16 %v1059, %v1055
    %v1440 = vpack.c.b16 %v1064, %v1060
    %v1441 = vpack.c.b16 %v1065, %v1061
    %v1442 = vpack.c.b16 %v1066, %v1062
    %v1443 = vpack.c.b16 %v1067, %v1063
    %v1444 = vpack.c.b16 %v1072, %v1068
    %v1445 = vpack.c.b16 %v1073, %v1069
    %v1446 = vpack.c.b16 %v1074, %v1070
    %v1447 = vpack.c.b16 %v1075, %v1071
    %v1448 = vpack.c.b16 %v1080, %v1076
    %v1449 = vpack.c.b16 %v1081, %v1077
    %v1450 = vpack.c.b16 %v1082, %v1078
    %v1451 = vpack.c.b16 %v1083, %v1079
    %v1452 = vpack.c.b16 %v1088, %v1084
    %v1453 = vpack.c.b16 %v1089, %v1085
    %v1454 = vpack.c.b16 %v1090, %v1086
    %v1455 = vpack.c.b16 %v1091, %v1087
    %v1456 = vpack.c.b16 %v1096, %v1092
    %v1457 = vpack.c.b16 %v1097, %v1093
    %v1458 = vpack.c.b16 %v1098, %v1094
    %v1459 = vpack.c.b16 %v1099, %v1095
    %v1460 = vpack.c.b16 %v1104, %v1100
    %v1461 = vpack.c.b16 %v1105, %v1101
    %v1462 = vpack.c.b16 %v1106, %v1102
    %v1463 = vpack.c.b16 %v1107, %v1103
    %v1464 = vpack.c.b16 %v1112, %v1108
    %v1465 = vpack.c.b16 %v1113, %v1109
    %v1466 = vpack.c.b16 %v1114, %v1110
    %v1467 = vpack.c.b16 %v1115, %v1111
    %v1468 = vpack.c.b16 %v1120, %v1116
    %v1469 = vpack.c.b16 %v1121, %v1117
    %v1470 = vpack.c.b16 %v1122, %v1118
    %v1471 = vpack.c.b16 %v1123, %v1119
    %v1472 = vpack.c.b16 %v1128, %v1124
    %v1473 = vpack.c.b16 %v1129, %v1125
    %v1474 = vpack.c.b16 %v1130, %v1126
    %v1475 = vpack.c.b16 %v1131, %v1127
    %v1476 = vpack.c.b16 %v1136, %v1132
    %v1477 = vpack.c.b16 %v1137, %v1133
    %v1478 = vpack.c.b16 %v1138, %v1134
    %v1479 = vpack.c.b16 %v1139, %v1135
    %v1480 = vpack.c.b16 %v1144, %v1140
    %v1481 = vpack.c.b16 %v1145, %v1141
    %v1482 = vpack.c.b16 %v1146, %v1142
    %v1483 = vpack.c.b16 %v1147, %v1143
    %v1484 = vpack.c.b16 %v1152, %v1148
    %v1485 = vpack.c.b16 %v1153, %v1149
    %v1486 = vpack.c.b16 %v1154, %v1150
    %v1487 = vpack.c.b16 %v1155, %v1151
    %v1488 = vpack.c.b16 %v1160, %v1156
    %v1489 = vpack.c.b16 %v1161, %v1157
    %v1490 = vpack.c.b16 %v1162, %v1158
    %v1491 = vpack.c.b16 %v1163, %v1159
    %v1492 = vpack.c.b16 %v1168, %v1164
    %v1493 = vpack.c.b16 %v1169, %v1165
    %v1494 = vpack.c.b16 %v1170, %v1166
    %v1495 = vpack.c.b16 %v1171, %v1167
    %v1496 = vpack.c.b16 %v1176, %v1172
    %v1497 = vpack.c.b16 %v1177, %v1173
    %v1498 = vpack.c.b16 %v1178, %v1174
    %v1499 = vpack.c.b16 %v1179, %v1175
    %v1500 = vpack.c.b16 %v1184, %v1180
    %v1501 = vpack.c.b16 %v1185, %v1181
    %v1502 = vpack.c.b16 %v1186, %v1182
    %v1503 = vpack.c.b16 %v1187, %v1183
    %v1504 = vpack.c.b16 %v1192, %v1188
    %v1505 = vpack.c.b16 %v1193, %v1189
    %v1506 = vpack.c.b16 %v1194, %v1190
    %v1507 = vpack.c.b16 %v1195, %v1191
    %v1508 = vpack.c.b16 %v1200, %v1196
    %v1509 = vpack.c.b16 %v1201, %v1197
    %v1510 = vpack.c.b16 %v1202, %v1198
    %v1511 = vpack.c.b16 %v1203, %v1199
    %v1512 = vpack.c.b16 %v1208, %v1204
    %v1513 = vpack.c.b16 %v1209, %v1205
    %v1514 = vpack.c.b16 %v1210, %v1206
    %v1515 = vpack.c.b16 %v1211, %v1207
    %v1516 = vpack.c.b16 %v1216, %v1212
    %v1517 = vpack.c.b16 %v1217, %v1213
    %v1518 = vpack.c.b16 %v1218, %v1214
    %v1519 = vpack.c.b16 %v1219, %v1215
    %v1520 = vpack.c.b16 %v1224, %v1220
    %v1521 = vpack.c.b16 %v1225, %v1221
    %v1522 = vpack.c.b16 %v1226, %v1222
    %v1523 = vpack.c.b16 %v1227, %v1223
    %v1524 = vpack.c.b16 %v1232, %v1228
    %v1525 = vpack.c.b16 %v1233, %v1229
    %v1526 = vpack.c.b16 %v1234, %v1230
    %v1527 = vpack.c.b16 %v1235, %v1231
    %v1528 = vpack.c.b16 %v1240, %v1236
    %v1529 = vpack.c.b16 %v1241, %v1237
    %v1530 = vpack.c.b16 %v1242, %v1238
    %v1531 = vpack.c.b16 %v1243, %v1239
    %v1532 = vpack.c.b16 %v1248, %v1244
    %v1533 = vpack.c.b16 %v1249, %v1245
    %v1534 = vpack.c.b16 %v1250, %v1246
    %v1535 = vpack.c.b16 %v1251, %v1247
    %v1536 = vpack.c.b16 %v1256, %v1252
    %v1537 = vpack.c.b16 %v1257, %v1253
    %v1538 = vpack.c.b16 %v1258, %v1254
    %v1539 = vpack.c.b16 %v1259, %v1255
    %v1540 = vpack.c.b16 %v1264, %v1260
    %v1541 = vpack.c.b16 %v1265, %v1261
    %v1542 = vpack.c.b16 %v1266, %v1262
    %v1543 = vpack.c.b16 %v1267, %v1263
    %v1544 = vpack.c.b16 %v1272, %v1268
    %v1545 = vpack.c.b16 %v1273, %v1269
    %v1546 = vpack.c.b16 %v1274, %v1270
    %v1547 = vpack.c.b16 %v1275, %v1271
    %v1548 = vpack.c.b16 %v1280, %v1276
    %v1549 = vpack.c.b16 %v1281, %v1277
    %v1550 = vpack.c.b16 %v1282, %v1278
    %v1551 = vpack.c.b16 %v1283, %v1279
    %v1552 = vpack.c.b16 %v1288, %v1284
    %v1553 = vpack.c.b16 %v1289, %v1285
    %v1554 = vpack.c.b16 %v1290, %v1286
    %v1555 = vpack.c.b16 %v1291, %v1287
    %v1556 = vpack.c.b16 %v1296, %v1292
    %v1557 = vpack.c.b16 %v1297, %v1293
    %v1558 = vpack.c.b16 %v1298, %v1294
    %v1559 = vpack.c.b16 %v1299, %v1295
    %v1560 = vpack.c.b16 %v1304, %v1300
    %v1561 = vpack.c.b16 %v1305, %v1301
    %v1562 = vpack.c.b16 %v1306, %v1302
    %v1563 = vpack.c.b16 %v1307, %v1303
    %1820 = vmatprep.subr.bf16.mxu0 %v1337
    %1821 = vmatpush1.bf16.msra.mxu0 %v1336
    %1822 = vmatprep.subr.bf16.mxu0 %v1333
    %1823 = vmatpush1.bf16.msra.mxu0 %v1332
    %1824 = vmatprep.subr.bf16.mxu0 %v1329
    %1825 = vmatpush1.bf16.msra.mxu0 %v1328
    %1826 = vmatprep.subr.bf16.mxu0 %v1325
    %1827 = vmatpush1.bf16.msra.mxu0 %v1324
    %1828 = vmatprep.subr.bf16.mxu0 %v1321
    %1829 = vmatpush1.bf16.msra.mxu0 %v1320
    %1830 = vmatprep.subr.bf16.mxu0 %v1317
    %1831 = vmatpush1.bf16.msra.mxu0 %v1316
    %1832 = vmatprep.subr.bf16.mxu0 %v1313
    %1833 = vmatpush1.bf16.msra.mxu0 %v1312
    %1834 = vmatprep.subr.bf16.mxu0 %v1309
    %1835 = vmatpush1.bf16.msra.mxu0 %v1308
    %1836 = vmatprep.subr.bf16.mxu0 %v1369
    %1837 = vmatpush2.bf16.msra.mxu0 %v1368
    %1838 = vmatprep.subr.bf16.mxu0 %v1365
    %1839 = vmatpush2.bf16.msra.mxu0 %v1364
    %1840 = vmatprep.subr.bf16.mxu0 %v1361
    %1841 = vmatpush2.bf16.msra.mxu0 %v1360
    %1842 = vmatprep.subr.bf16.mxu0 %v1357
    %1843 = vmatpush2.bf16.msra.mxu0 %v1356
    %1844 = vmatprep.subr.bf16.mxu0 %v1353
    %1845 = vmatpush2.bf16.msra.mxu0 %v1352
    %1846 = vmatprep.subr.bf16.mxu0 %v1349
    %1847 = vmatpush2.bf16.msra.mxu0 %v1348
    %1848 = vmatprep.subr.bf16.mxu0 %v1345
    %1849 = vmatpush2.bf16.msra.mxu0 %v1344
    %1850 = vmatprep.subr.bf16.mxu0 %v1341
    %1851 = vmatpush2.bf16.msra.mxu0 %v1340
    %1852 = vmatprep.mubr.bf16.mxu0 %v525
    %1853 = vmatmul.mubr.bf16.gmra.mxu0 %v524
    %v1854 = vpop.f32.mrf.mxu0
    %v1855 = vadd.f32 %v495, %v1854
    %v1856 = vpop.f32.mrf.mxu0
    %v1857 = vadd.f32 %v499, %v1856
    %v1858 = vpop.f32.mrf.mxu0
    %v1859 = vpop.f32.mrf.mxu0
    %1860 = vdwg.mxu0
    %1861 = vmatprep.subr.bf16.mxu0 %v1401
    %1862 = vmatpush1.bf16.msra.mxu0 %v1400
    %1863 = vmatprep.subr.bf16.mxu0 %v1397
    %1864 = vmatpush1.bf16.msra.mxu0 %v1396
    %1865 = vmatprep.subr.bf16.mxu0 %v1393
    %1866 = vmatpush1.bf16.msra.mxu0 %v1392
    %1867 = vmatprep.subr.bf16.mxu0 %v1389
    %1868 = vmatpush1.bf16.msra.mxu0 %v1388
    %1869 = vmatprep.subr.bf16.mxu0 %v1385
    %1870 = vmatpush1.bf16.msra.mxu0 %v1384
    %1871 = vmatprep.subr.bf16.mxu0 %v1381
    %1872 = vmatpush1.bf16.msra.mxu0 %v1380
    %1873 = vmatprep.subr.bf16.mxu0 %v1377
    %1874 = vmatpush1.bf16.msra.mxu0 %v1376
    %1875 = vmatprep.subr.bf16.mxu0 %v1373
    %1876 = vmatpush1.bf16.msra.mxu0 %v1372
    %1877 = vmatprep.subr.bf16.mxu0 %v1433
    %1878 = vmatpush2.bf16.msra.mxu0 %v1432
    %1879 = vmatprep.subr.bf16.mxu0 %v1429
    %1880 = vmatpush2.bf16.msra.mxu0 %v1428
    %1881 = vmatprep.subr.bf16.mxu0 %v1425
    %1882 = vmatpush2.bf16.msra.mxu0 %v1424
    %1883 = vmatprep.subr.bf16.mxu0 %v1421
    %1884 = vmatpush2.bf16.msra.mxu0 %v1420
    %1885 = vmatprep.subr.bf16.mxu0 %v1417
    %1886 = vmatpush2.bf16.msra.mxu0 %v1416
    %1887 = vmatprep.subr.bf16.mxu0 %v1413
    %1888 = vmatpush2.bf16.msra.mxu0 %v1412
    %1889 = vmatprep.subr.bf16.mxu0 %v1409
    %1890 = vmatpush2.bf16.msra.mxu0 %v1408
    %1891 = vmatprep.subr.bf16.mxu0 %v1405
    %1892 = vmatpush2.bf16.msra.mxu0 %v1404
    %1893 = vmatprep.mubr.bf16.mxu0 %v527
    %1894 = vmatmul.mubr.bf16.gmra.mxu0 %v526
    %v1895 = vpop.f32.mrf.mxu0
    %v1896 = vadd.f32 %v1855, %v1895
    %v1897 = vpop.f32.mrf.mxu0
    %v1898 = vadd.f32 %v1857, %v1897
    %v1899 = vpop.f32.mrf.mxu0
    %v1900 = vpop.f32.mrf.mxu0
    %1901 = vdwg.mxu0
    %1902 = vmatprep.subr.bf16.mxu0 %v1465
    %1903 = vmatpush1.bf16.msra.mxu0 %v1464
    %1904 = vmatprep.subr.bf16.mxu0 %v1461
    %1905 = vmatpush1.bf16.msra.mxu0 %v1460
    %1906 = vmatprep.subr.bf16.mxu0 %v1457
    %1907 = vmatpush1.bf16.msra.mxu0 %v1456
    %1908 = vmatprep.subr.bf16.mxu0 %v1453
    %1909 = vmatpush1.bf16.msra.mxu0 %v1452
    %1910 = vmatprep.subr.bf16.mxu0 %v1449
    %1911 = vmatpush1.bf16.msra.mxu0 %v1448
    %1912 = vmatprep.subr.bf16.mxu0 %v1445
    %1913 = vmatpush1.bf16.msra.mxu0 %v1444
    %1914 = vmatprep.subr.bf16.mxu0 %v1441
    %1915 = vmatpush1.bf16.msra.mxu0 %v1440
    %1916 = vmatprep.subr.bf16.mxu0 %v1437
    %1917 = vmatpush1.bf16.msra.mxu0 %v1436
    %1918 = vmatprep.subr.bf16.mxu0 %v1497
    %1919 = vmatpush2.bf16.msra.mxu0 %v1496
    %1920 = vmatprep.subr.bf16.mxu0 %v1493
    %1921 = vmatpush2.bf16.msra.mxu0 %v1492
    %1922 = vmatprep.subr.bf16.mxu0 %v1489
    %1923 = vmatpush2.bf16.msra.mxu0 %v1488
    %1924 = vmatprep.subr.bf16.mxu0 %v1485
    %1925 = vmatpush2.bf16.msra.mxu0 %v1484
    %1926 = vmatprep.subr.bf16.mxu0 %v1481
    %1927 = vmatpush2.bf16.msra.mxu0 %v1480
    %1928 = vmatprep.subr.bf16.mxu0 %v1477
    %1929 = vmatpush2.bf16.msra.mxu0 %v1476
    %1930 = vmatprep.subr.bf16.mxu0 %v1473
    %1931 = vmatpush2.bf16.msra.mxu0 %v1472
    %1932 = vmatprep.subr.bf16.mxu0 %v1469
    %1933 = vmatpush2.bf16.msra.mxu0 %v1468
    %1934 = vmatprep.mubr.bf16.mxu0 %v529
    %1935 = vmatmul.mubr.bf16.gmra.mxu0 %v528
    %v1936 = vpop.f32.mrf.mxu0
    %v1937 = vadd.f32 %v1896, %v1936
    %v1938 = vpop.f32.mrf.mxu0
    %v1939 = vadd.f32 %v1898, %v1938
    %v1940 = vpop.f32.mrf.mxu0
    %v1941 = vpop.f32.mrf.mxu0
    %1942 = vdwg.mxu0
    %1943 = vmatprep.subr.bf16.mxu0 %v1529
    %1944 = vmatpush1.bf16.msra.mxu0 %v1528
    %1945 = vmatprep.subr.bf16.mxu0 %v1525
    %1946 = vmatpush1.bf16.msra.mxu0 %v1524
    %1947 = vmatprep.subr.bf16.mxu0 %v1521
    %1948 = vmatpush1.bf16.msra.mxu0 %v1520
    %1949 = vmatprep.subr.bf16.mxu0 %v1517
    %1950 = vmatpush1.bf16.msra.mxu0 %v1516
    %1951 = vmatprep.subr.bf16.mxu0 %v1513
    %1952 = vmatpush1.bf16.msra.mxu0 %v1512
    %1953 = vmatprep.subr.bf16.mxu0 %v1509
    %1954 = vmatpush1.bf16.msra.mxu0 %v1508
    %1955 = vmatprep.subr.bf16.mxu0 %v1505
    %1956 = vmatpush1.bf16.msra.mxu0 %v1504
    %1957 = vmatprep.subr.bf16.mxu0 %v1501
    %1958 = vmatpush1.bf16.msra.mxu0 %v1500
    %1959 = vmatprep.subr.bf16.mxu0 %v1561
    %1960 = vmatpush2.bf16.msra.mxu0 %v1560
    %1961 = vmatprep.subr.bf16.mxu0 %v1557
    %1962 = vmatpush2.bf16.msra.mxu0 %v1556
    %1963 = vmatprep.subr.bf16.mxu0 %v1553
    %1964 = vmatpush2.bf16.msra.mxu0 %v1552
    %1965 = vmatprep.subr.bf16.mxu0 %v1549
    %1966 = vmatpush2.bf16.msra.mxu0 %v1548
    %1967 = vmatprep.subr.bf16.mxu0 %v1545
    %1968 = vmatpush2.bf16.msra.mxu0 %v1544
    %1969 = vmatprep.subr.bf16.mxu0 %v1541
    %1970 = vmatpush2.bf16.msra.mxu0 %v1540
    %1971 = vmatprep.subr.bf16.mxu0 %v1537
    %1972 = vmatpush2.bf16.msra.mxu0 %v1536
    %1973 = vmatprep.subr.bf16.mxu0 %v1533
    %1974 = vmatpush2.bf16.msra.mxu0 %v1532
    %1975 = vmatprep.mubr.bf16.mxu0 %v531
    %1976 = vmatmul.mubr.bf16.gmra.mxu0 %v530
    %v1977 = vpop.f32.mrf.mxu0
    %v1978 = vadd.f32 %v1937, %v1977
    %v1979 = vpop.f32.mrf.mxu0
    %v1980 = vadd.f32 %v1939, %v1979
    %v1981 = vpop.f32.mrf.mxu0
    %v1982 = vpop.f32.mrf.mxu0
    %1983 = vdwg.mxu0
    %1984 = vmatprep.subr.bf16.mxu0 %v1339
    %1985 = vmatpush1.bf16.msra.mxu0 %v1338
    %1986 = vmatprep.subr.bf16.mxu0 %v1335
    %1987 = vmatpush1.bf16.msra.mxu0 %v1334
    %1988 = vmatprep.subr.bf16.mxu0 %v1331
    %1989 = vmatpush1.bf16.msra.mxu0 %v1330
    %1990 = vmatprep.subr.bf16.mxu0 %v1327
    %1991 = vmatpush1.bf16.msra.mxu0 %v1326
    %1992 = vmatprep.subr.bf16.mxu0 %v1323
    %1993 = vmatpush1.bf16.msra.mxu0 %v1322
    %1994 = vmatprep.subr.bf16.mxu0 %v1319
    %1995 = vmatpush1.bf16.msra.mxu0 %v1318
    %1996 = vmatprep.subr.bf16.mxu0 %v1315
    %1997 = vmatpush1.bf16.msra.mxu0 %v1314
    %1998 = vmatprep.subr.bf16.mxu0 %v1311
    %1999 = vmatpush1.bf16.msra.mxu0 %v1310
    %2000 = vmatprep.subr.bf16.mxu0 %v1371
    %2001 = vmatpush2.bf16.msra.mxu0 %v1370
    %2002 = vmatprep.subr.bf16.mxu0 %v1367
    %2003 = vmatpush2.bf16.msra.mxu0 %v1366
    %2004 = vmatprep.subr.bf16.mxu0 %v1363
    %2005 = vmatpush2.bf16.msra.mxu0 %v1362
    %2006 = vmatprep.subr.bf16.mxu0 %v1359
    %2007 = vmatpush2.bf16.msra.mxu0 %v1358
    %2008 = vmatprep.subr.bf16.mxu0 %v1355
    %2009 = vmatpush2.bf16.msra.mxu0 %v1354
    %2010 = vmatprep.subr.bf16.mxu0 %v1351
    %2011 = vmatpush2.bf16.msra.mxu0 %v1350
    %2012 = vmatprep.subr.bf16.mxu0 %v1347
    %2013 = vmatpush2.bf16.msra.mxu0 %v1346
    %2014 = vmatprep.subr.bf16.mxu0 %v1343
    %2015 = vmatpush2.bf16.msra.mxu0 %v1342
    %2016 = vmatprep.mubr.bf16.mxu0 %v525
    %2017 = vmatmul.mubr.bf16.gmra.mxu0 %v524
    %v2018 = vpop.f32.mrf.mxu0
    %v2019 = vadd.f32 %v503, %v2018
    %v2020 = vpop.f32.mrf.mxu0
    %v2021 = vadd.f32 %v507, %v2020
    %v2022 = vpop.f32.mrf.mxu0
    %v2023 = vpop.f32.mrf.mxu0
    %2024 = vdwg.mxu0
    %2025 = vmatprep.subr.bf16.mxu0 %v1403
    %2026 = vmatpush1.bf16.msra.mxu0 %v1402
    %2027 = vmatprep.subr.bf16.mxu0 %v1399
    %2028 = vmatpush1.bf16.msra.mxu0 %v1398
    %2029 = vmatprep.subr.bf16.mxu0 %v1395
    %2030 = vmatpush1.bf16.msra.mxu0 %v1394
    %2031 = vmatprep.subr.bf16.mxu0 %v1391
    %2032 = vmatpush1.bf16.msra.mxu0 %v1390
    %2033 = vmatprep.subr.bf16.mxu0 %v1387
    %2034 = vmatpush1.bf16.msra.mxu0 %v1386
    %2035 = vmatprep.subr.bf16.mxu0 %v1383
    %2036 = vmatpush1.bf16.msra.mxu0 %v1382
    %2037 = vmatprep.subr.bf16.mxu0 %v1379
    %2038 = vmatpush1.bf16.msra.mxu0 %v1378
    %2039 = vmatprep.subr.bf16.mxu0 %v1375
    %2040 = vmatpush1.bf16.msra.mxu0 %v1374
    %2041 = vmatprep.subr.bf16.mxu0 %v1435
    %2042 = vmatpush2.bf16.msra.mxu0 %v1434
    %2043 = vmatprep.subr.bf16.mxu0 %v1431
    %2044 = vmatpush2.bf16.msra.mxu0 %v1430
    %2045 = vmatprep.subr.bf16.mxu0 %v1427
    %2046 = vmatpush2.bf16.msra.mxu0 %v1426
    %2047 = vmatprep.subr.bf16.mxu0 %v1423
    %2048 = vmatpush2.bf16.msra.mxu0 %v1422
    %2049 = vmatprep.subr.bf16.mxu0 %v1419
    %2050 = vmatpush2.bf16.msra.mxu0 %v1418
    %2051 = vmatprep.subr.bf16.mxu0 %v1415
    %2052 = vmatpush2.bf16.msra.mxu0 %v1414
    %2053 = vmatprep.subr.bf16.mxu0 %v1411
    %2054 = vmatpush2.bf16.msra.mxu0 %v1410
    %2055 = vmatprep.subr.bf16.mxu0 %v1407
    %2056 = vmatpush2.bf16.msra.mxu0 %v1406
    %2057 = vmatprep.mubr.bf16.mxu0 %v527
    %2058 = vmatmul.mubr.bf16.gmra.mxu0 %v526
    %v2059 = vpop.f32.mrf.mxu0
    %v2060 = vadd.f32 %v2019, %v2059
    %v2061 = vpop.f32.mrf.mxu0
    %v2062 = vadd.f32 %v2021, %v2061
    %v2063 = vpop.f32.mrf.mxu0
    %v2064 = vpop.f32.mrf.mxu0
    %2065 = vdwg.mxu0
    %2066 = vmatprep.subr.bf16.mxu0 %v1467
    %2067 = vmatpush1.bf16.msra.mxu0 %v1466
    %2068 = vmatprep.subr.bf16.mxu0 %v1463
    %2069 = vmatpush1.bf16.msra.mxu0 %v1462
    %2070 = vmatprep.subr.bf16.mxu0 %v1459
    %2071 = vmatpush1.bf16.msra.mxu0 %v1458
    %2072 = vmatprep.subr.bf16.mxu0 %v1455
    %2073 = vmatpush1.bf16.msra.mxu0 %v1454
    %2074 = vmatprep.subr.bf16.mxu0 %v1451
    %2075 = vmatpush1.bf16.msra.mxu0 %v1450
    %2076 = vmatprep.subr.bf16.mxu0 %v1447
    %2077 = vmatpush1.bf16.msra.mxu0 %v1446
    %2078 = vmatprep.subr.bf16.mxu0 %v1443
    %2079 = vmatpush1.bf16.msra.mxu0 %v1442
    %2080 = vmatprep.subr.bf16.mxu0 %v1439
    %2081 = vmatpush1.bf16.msra.mxu0 %v1438
    %2082 = vmatprep.subr.bf16.mxu0 %v1499
    %2083 = vmatpush2.bf16.msra.mxu0 %v1498
    %2084 = vmatprep.subr.bf16.mxu0 %v1495
    %2085 = vmatpush2.bf16.msra.mxu0 %v1494
    %2086 = vmatprep.subr.bf16.mxu0 %v1491
    %2087 = vmatpush2.bf16.msra.mxu0 %v1490
    %2088 = vmatprep.subr.bf16.mxu0 %v1487
    %2089 = vmatpush2.bf16.msra.mxu0 %v1486
    %2090 = vmatprep.subr.bf16.mxu0 %v1483
    %2091 = vmatpush2.bf16.msra.mxu0 %v1482
    %2092 = vmatprep.subr.bf16.mxu0 %v1479
    %2093 = vmatpush2.bf16.msra.mxu0 %v1478
    %2094 = vmatprep.subr.bf16.mxu0 %v1475
    %2095 = vmatpush2.bf16.msra.mxu0 %v1474
    %2096 = vmatprep.subr.bf16.mxu0 %v1471
    %2097 = vmatpush2.bf16.msra.mxu0 %v1470
    %2098 = vmatprep.mubr.bf16.mxu0 %v529
    %2099 = vmatmul.mubr.bf16.gmra.mxu0 %v528
    %v2100 = vpop.f32.mrf.mxu0
    %v2101 = vadd.f32 %v2060, %v2100
    %v2102 = vpop.f32.mrf.mxu0
    %v2103 = vadd.f32 %v2062, %v2102
    %v2104 = vpop.f32.mrf.mxu0
    %v2105 = vpop.f32.mrf.mxu0
    %2106 = vdwg.mxu0
    %2107 = vmatprep.subr.bf16.mxu0 %v1531
    %2108 = vmatpush1.bf16.msra.mxu0 %v1530
    %2109 = vmatprep.subr.bf16.mxu0 %v1527
    %2110 = vmatpush1.bf16.msra.mxu0 %v1526
    %2111 = vmatprep.subr.bf16.mxu0 %v1523
    %2112 = vmatpush1.bf16.msra.mxu0 %v1522
    %2113 = vmatprep.subr.bf16.mxu0 %v1519
    %2114 = vmatpush1.bf16.msra.mxu0 %v1518
    %2115 = vmatprep.subr.bf16.mxu0 %v1515
    %2116 = vmatpush1.bf16.msra.mxu0 %v1514
    %2117 = vmatprep.subr.bf16.mxu0 %v1511
    %2118 = vmatpush1.bf16.msra.mxu0 %v1510
    %2119 = vmatprep.subr.bf16.mxu0 %v1507
    %2120 = vmatpush1.bf16.msra.mxu0 %v1506
    %2121 = vmatprep.subr.bf16.mxu0 %v1503
    %2122 = vmatpush1.bf16.msra.mxu0 %v1502
    %2123 = vmatprep.subr.bf16.mxu0 %v1563
    %2124 = vmatpush2.bf16.msra.mxu0 %v1562
    %2125 = vmatprep.subr.bf16.mxu0 %v1559
    %2126 = vmatpush2.bf16.msra.mxu0 %v1558
    %2127 = vmatprep.subr.bf16.mxu0 %v1555
    %2128 = vmatpush2.bf16.msra.mxu0 %v1554
    %2129 = vmatprep.subr.bf16.mxu0 %v1551
    %2130 = vmatpush2.bf16.msra.mxu0 %v1550
    %2131 = vmatprep.subr.bf16.mxu0 %v1547
    %2132 = vmatpush2.bf16.msra.mxu0 %v1546
    %2133 = vmatprep.subr.bf16.mxu0 %v1543
    %2134 = vmatpush2.bf16.msra.mxu0 %v1542
    %2135 = vmatprep.subr.bf16.mxu0 %v1539
    %2136 = vmatpush2.bf16.msra.mxu0 %v1538
    %2137 = vmatprep.subr.bf16.mxu0 %v1535
    %2138 = vmatpush2.bf16.msra.mxu0 %v1534
    %2139 = vmatprep.mubr.bf16.mxu0 %v531
    %2140 = vmatmul.mubr.bf16.gmra.mxu0 %v530
    %v2141 = vpop.f32.mrf.mxu0
    %v2142 = vadd.f32 %v2101, %v2141
    %v2143 = vpop.f32.mrf.mxu0
    %v2144 = vadd.f32 %v2103, %v2143
    %v2145 = vpop.f32.mrf.mxu0
    %v2146 = vpop.f32.mrf.mxu0
    %2147 = vdwg.mxu0
    %v2148 = vmax.f32 %v1978, 0.0
    %v2149 = vmax.f32 %v1980, 0.0
    %v2150 = vmax.f32 %v2142, 0.0
    %v2151 = vmax.f32 %v2144, 0.0
    %v2152 = vpack.c.bf16 %v2148, %v2148
    %v2153 = vpack.c.bf16 %v2149, %v2149
    %v2154 = vpack.c.bf16 %v2150, %v2150
    %v2155 = vpack.c.bf16 %v2151, %v2151
    %v2156 = vld [vmem:[#allocation8] sm:$0xff]
    %v2157 = vld [vmem:[#allocation8 + $0x8] sm:$0xff]
    %v2158 = vld [vmem:[#allocation8 + $0x10] sm:$0xff]
    %v2159 = vld [vmem:[#allocation8 + $0x18] sm:$0xff]
    %v2160 = vld [vmem:[#allocation8 + $0x20] sm:$0xff]
    %v2161 = vld [vmem:[#allocation8 + $0x28] sm:$0xff]
    %v2162 = vld [vmem:[#allocation8 + $0x30] sm:$0xff]
    %v2163 = vld [vmem:[#allocation8 + $0x38] sm:$0xff]
    %v2164 = vld [vmem:[#allocation8 + $0x40] sm:$0xff]
    %v2165 = vld [vmem:[#allocation8 + $0x48] sm:$0xff]
    %v2166 = vld [vmem:[#allocation8 + $0x50] sm:$0xff]
    %v2167 = vld [vmem:[#allocation8 + $0x58] sm:$0xff]
    %v2168 = vld [vmem:[#allocation8 + $0x60] sm:$0xff]
    %v2169 = vld [vmem:[#allocation8 + $0x68] sm:$0xff]
    %v2170 = vld [vmem:[#allocation8 + $0x70] sm:$0xff]
    %v2171 = vld [vmem:[#allocation8 + $0x78] sm:$0xff]
    %v2172 = vld [vmem:[#allocation8 + $0x80] sm:$0xff]
    %v2173 = vld [vmem:[#allocation8 + $0x88] sm:$0xff]
    %v2174 = vld [vmem:[#allocation8 + $0x90] sm:$0xff]
    %v2175 = vld [vmem:[#allocation8 + $0x98] sm:$0xff]
    %v2176 = vld [vmem:[#allocation8 + $0xa0] sm:$0xff]
    %v2177 = vld [vmem:[#allocation8 + $0xa8] sm:$0xff]
    %v2178 = vld [vmem:[#allocation8 + $0xb0] sm:$0xff]
    %v2179 = vld [vmem:[#allocation8 + $0xb8] sm:$0xff]
    %v2180 = vld [vmem:[#allocation8 + $0xc0] sm:$0xff]
    %v2181 = vld [vmem:[#allocation8 + $0xc8] sm:$0xff]
    %v2182 = vld [vmem:[#allocation8 + $0xd0] sm:$0xff]
    %v2183 = vld [vmem:[#allocation8 + $0xd8] sm:$0xff]
    %v2184 = vld [vmem:[#allocation8 + $0xe0] sm:$0xff]
    %v2185 = vld [vmem:[#allocation8 + $0xe8] sm:$0xff]
    %v2186 = vld [vmem:[#allocation8 + $0xf0] sm:$0xff]
    %v2187 = vld [vmem:[#allocation8 + $0xf8] sm:$0xff]
    %v2188 = vld [vmem:[#allocation8 + $0x100] sm:$0xff]
    %v2189 = vld [vmem:[#allocation8 + $0x108] sm:$0xff]
    %v2190 = vld [vmem:[#allocation8 + $0x110] sm:$0xff]
    %v2191 = vld [vmem:[#allocation8 + $0x118] sm:$0xff]
    %v2192 = vld [vmem:[#allocation8 + $0x120] sm:$0xff]
    %v2193 = vld [vmem:[#allocation8 + $0x128] sm:$0xff]
    %v2194 = vld [vmem:[#allocation8 + $0x130] sm:$0xff]
    %v2195 = vld [vmem:[#allocation8 + $0x138] sm:$0xff]
    %v2196 = vld [vmem:[#allocation8 + $0x140] sm:$0xff]
    %v2197 = vld [vmem:[#allocation8 + $0x148] sm:$0xff]
    %v2198 = vld [vmem:[#allocation8 + $0x150] sm:$0xff]
    %v2199 = vld [vmem:[#allocation8 + $0x158] sm:$0xff]
    %v2200 = vld [vmem:[#allocation8 + $0x160] sm:$0xff]
    %v2201 = vld [vmem:[#allocation8 + $0x168] sm:$0xff]
    %v2202 = vld [vmem:[#allocation8 + $0x170] sm:$0xff]
    %v2203 = vld [vmem:[#allocation8 + $0x178] sm:$0xff]
    %v2204 = vld [vmem:[#allocation8 + $0x180] sm:$0xff]
    %v2205 = vld [vmem:[#allocation8 + $0x188] sm:$0xff]
    %v2206 = vld [vmem:[#allocation8 + $0x190] sm:$0xff]
    %v2207 = vld [vmem:[#allocation8 + $0x198] sm:$0xff]
    %v2208 = vld [vmem:[#allocation8 + $0x1a0] sm:$0xff]
    %v2209 = vld [vmem:[#allocation8 + $0x1a8] sm:$0xff]
    %v2210 = vld [vmem:[#allocation8 + $0x1b0] sm:$0xff]
    %v2211 = vld [vmem:[#allocation8 + $0x1b8] sm:$0xff]
    %v2212 = vld [vmem:[#allocation8 + $0x1c0] sm:$0xff]
    %v2213 = vld [vmem:[#allocation8 + $0x1c8] sm:$0xff]
    %v2214 = vld [vmem:[#allocation8 + $0x1d0] sm:$0xff]
    %v2215 = vld [vmem:[#allocation8 + $0x1d8] sm:$0xff]
    %v2216 = vld [vmem:[#allocation8 + $0x1e0] sm:$0xff]
    %v2217 = vld [vmem:[#allocation8 + $0x1e8] sm:$0xff]
    %v2218 = vld [vmem:[#allocation8 + $0x1f0] sm:$0xff]
    %v2219 = vld [vmem:[#allocation8 + $0x1f8] sm:$0xff]
    %v2220 = vld [vmem:[#allocation10] sm:$0x3]
    %v2222 = vlaneseq
    %v2223 = vshrl.u32 %v2222, 7
    %v2224 = vsub.s32 0, %v2223
    %v2225 = vrot.slane %v2220, %v2224
    %v2226 = vlaneseq
    %v2227 = vshrl.u32 %v2226, 7
    %v2228 = vsub.s32 1, %v2227
    %v2229 = vrot.slane %v2220, %v2228
    %v2296 = vunpack.c.l.b16 %v2156
    %v2297 = vunpack.c.h.b16 %v2156
    %v2298 = vunpack.c.l.b16 %v2157
    %v2299 = vunpack.c.h.b16 %v2157
    %v2300 = vunpack.c.l.b16 %v2158
    %v2301 = vunpack.c.h.b16 %v2158
    %v2302 = vunpack.c.l.b16 %v2159
    %v2303 = vunpack.c.h.b16 %v2159
    %v2304 = vunpack.c.l.b16 %v2160
    %v2305 = vunpack.c.h.b16 %v2160
    %v2306 = vunpack.c.l.b16 %v2161
    %v2307 = vunpack.c.h.b16 %v2161
    %v2308 = vunpack.c.l.b16 %v2162
    %v2309 = vunpack.c.h.b16 %v2162
    %v2310 = vunpack.c.l.b16 %v2163
    %v2311 = vunpack.c.h.b16 %v2163
    %v2312 = vunpack.c.l.b16 %v2164
    %v2313 = vunpack.c.h.b16 %v2164
    %v2314 = vunpack.c.l.b16 %v2165
    %v2315 = vunpack.c.h.b16 %v2165
    %v2316 = vunpack.c.l.b16 %v2166
    %v2317 = vunpack.c.h.b16 %v2166
    %v2318 = vunpack.c.l.b16 %v2167
    %v2319 = vunpack.c.h.b16 %v2167
    %v2320 = vunpack.c.l.b16 %v2168
    %v2321 = vunpack.c.h.b16 %v2168
    %v2322 = vunpack.c.l.b16 %v2169
    %v2323 = vunpack.c.h.b16 %v2169
    %v2324 = vunpack.c.l.b16 %v2170
    %v2325 = vunpack.c.h.b16 %v2170
    %v2326 = vunpack.c.l.b16 %v2171
    %v2327 = vunpack.c.h.b16 %v2171
    %v2328 = vunpack.c.l.b16 %v2172
    %v2329 = vunpack.c.h.b16 %v2172
    %v2330 = vunpack.c.l.b16 %v2173
    %v2331 = vunpack.c.h.b16 %v2173
    %v2332 = vunpack.c.l.b16 %v2174
    %v2333 = vunpack.c.h.b16 %v2174
    %v2334 = vunpack.c.l.b16 %v2175
    %v2335 = vunpack.c.h.b16 %v2175
    %v2336 = vunpack.c.l.b16 %v2176
    %v2337 = vunpack.c.h.b16 %v2176
    %v2338 = vunpack.c.l.b16 %v2177
    %v2339 = vunpack.c.h.b16 %v2177
    %v2340 = vunpack.c.l.b16 %v2178
    %v2341 = vunpack.c.h.b16 %v2178
    %v2342 = vunpack.c.l.b16 %v2179
    %v2343 = vunpack.c.h.b16 %v2179
    %v2344 = vunpack.c.l.b16 %v2180
    %v2345 = vunpack.c.h.b16 %v2180
    %v2346 = vunpack.c.l.b16 %v2181
    %v2347 = vunpack.c.h.b16 %v2181
    %v2348 = vunpack.c.l.b16 %v2182
    %v2349 = vunpack.c.h.b16 %v2182
    %v2350 = vunpack.c.l.b16 %v2183
    %v2351 = vunpack.c.h.b16 %v2183
    %v2352 = vunpack.c.l.b16 %v2184
    %v2353 = vunpack.c.h.b16 %v2184
    %v2354 = vunpack.c.l.b16 %v2185
    %v2355 = vunpack.c.h.b16 %v2185
    %v2356 = vunpack.c.l.b16 %v2186
    %v2357 = vunpack.c.h.b16 %v2186
    %v2358 = vunpack.c.l.b16 %v2187
    %v2359 = vunpack.c.h.b16 %v2187
    %v2360 = vunpack.c.l.b16 %v2188
    %v2361 = vunpack.c.h.b16 %v2188
    %v2362 = vunpack.c.l.b16 %v2189
    %v2363 = vunpack.c.h.b16 %v2189
    %v2364 = vunpack.c.l.b16 %v2190
    %v2365 = vunpack.c.h.b16 %v2190
    %v2366 = vunpack.c.l.b16 %v2191
    %v2367 = vunpack.c.h.b16 %v2191
    %v2368 = vunpack.c.l.b16 %v2192
    %v2369 = vunpack.c.h.b16 %v2192
    %v2370 = vunpack.c.l.b16 %v2193
    %v2371 = vunpack.c.h.b16 %v2193
    %v2372 = vunpack.c.l.b16 %v2194
    %v2373 = vunpack.c.h.b16 %v2194
    %v2374 = vunpack.c.l.b16 %v2195
    %v2375 = vunpack.c.h.b16 %v2195
    %v2376 = vunpack.c.l.b16 %v2196
    %v2377 = vunpack.c.h.b16 %v2196
    %v2378 = vunpack.c.l.b16 %v2197
    %v2379 = vunpack.c.h.b16 %v2197
    %v2380 = vunpack.c.l.b16 %v2198
    %v2381 = vunpack.c.h.b16 %v2198
    %v2382 = vunpack.c.l.b16 %v2199
    %v2383 = vunpack.c.h.b16 %v2199
    %v2384 = vunpack.c.l.b16 %v2200
    %v2385 = vunpack.c.h.b16 %v2200
    %v2386 = vunpack.c.l.b16 %v2201
    %v2387 = vunpack.c.h.b16 %v2201
    %v2388 = vunpack.c.l.b16 %v2202
    %v2389 = vunpack.c.h.b16 %v2202
    %v2390 = vunpack.c.l.b16 %v2203
    %v2391 = vunpack.c.h.b16 %v2203
    %v2392 = vunpack.c.l.b16 %v2204
    %v2393 = vunpack.c.h.b16 %v2204
    %v2394 = vunpack.c.l.b16 %v2205
    %v2395 = vunpack.c.h.b16 %v2205
    %v2396 = vunpack.c.l.b16 %v2206
    %v2397 = vunpack.c.h.b16 %v2206
    %v2398 = vunpack.c.l.b16 %v2207
    %v2399 = vunpack.c.h.b16 %v2207
    %v2400 = vunpack.c.l.b16 %v2208
    %v2401 = vunpack.c.h.b16 %v2208
    %v2402 = vunpack.c.l.b16 %v2209
    %v2403 = vunpack.c.h.b16 %v2209
    %v2404 = vunpack.c.l.b16 %v2210
    %v2405 = vunpack.c.h.b16 %v2210
    %v2406 = vunpack.c.l.b16 %v2211
    %v2407 = vunpack.c.h.b16 %v2211
    %v2408 = vunpack.c.l.b16 %v2212
    %v2409 = vunpack.c.h.b16 %v2212
    %v2410 = vunpack.c.l.b16 %v2213
    %v2411 = vunpack.c.h.b16 %v2213
    %v2412 = vunpack.c.l.b16 %v2214
    %v2413 = vunpack.c.h.b16 %v2214
    %v2414 = vunpack.c.l.b16 %v2215
    %v2415 = vunpack.c.h.b16 %v2215
    %v2416 = vunpack.c.l.b16 %v2216
    %v2417 = vunpack.c.h.b16 %v2216
    %v2418 = vunpack.c.l.b16 %v2217
    %v2419 = vunpack.c.h.b16 %v2217
    %v2420 = vunpack.c.l.b16 %v2218
    %v2421 = vunpack.c.h.b16 %v2218
    %v2422 = vunpack.c.l.b16 %v2219
    %v2423 = vunpack.c.h.b16 %v2219
    %v2424 = vpack.c.b16 %v2298, %v2296
    %v2425 = vpack.c.b16 %v2299, %v2297
    %v2426 = vpack.c.b16 %v2302, %v2300
    %v2427 = vpack.c.b16 %v2303, %v2301
    %v2428 = vpack.c.b16 %v2306, %v2304
    %v2429 = vpack.c.b16 %v2307, %v2305
    %v2430 = vpack.c.b16 %v2310, %v2308
    %v2431 = vpack.c.b16 %v2311, %v2309
    %v2432 = vpack.c.b16 %v2314, %v2312
    %v2433 = vpack.c.b16 %v2315, %v2313
    %v2434 = vpack.c.b16 %v2318, %v2316
    %v2435 = vpack.c.b16 %v2319, %v2317
    %v2436 = vpack.c.b16 %v2322, %v2320
    %v2437 = vpack.c.b16 %v2323, %v2321
    %v2438 = vpack.c.b16 %v2326, %v2324
    %v2439 = vpack.c.b16 %v2327, %v2325
    %v2440 = vpack.c.b16 %v2330, %v2328
    %v2441 = vpack.c.b16 %v2331, %v2329
    %v2442 = vpack.c.b16 %v2334, %v2332
    %v2443 = vpack.c.b16 %v2335, %v2333
    %v2444 = vpack.c.b16 %v2338, %v2336
    %v2445 = vpack.c.b16 %v2339, %v2337
    %v2446 = vpack.c.b16 %v2342, %v2340
    %v2447 = vpack.c.b16 %v2343, %v2341
    %v2448 = vpack.c.b16 %v2346, %v2344
    %v2449 = vpack.c.b16 %v2347, %v2345
    %v2450 = vpack.c.b16 %v2350, %v2348
    %v2451 = vpack.c.b16 %v2351, %v2349
    %v2452 = vpack.c.b16 %v2354, %v2352
    %v2453 = vpack.c.b16 %v2355, %v2353
    %v2454 = vpack.c.b16 %v2358, %v2356
    %v2455 = vpack.c.b16 %v2359, %v2357
    %v2456 = vpack.c.b16 %v2362, %v2360
    %v2457 = vpack.c.b16 %v2363, %v2361
    %v2458 = vpack.c.b16 %v2366, %v2364
    %v2459 = vpack.c.b16 %v2367, %v2365
    %v2460 = vpack.c.b16 %v2370, %v2368
    %v2461 = vpack.c.b16 %v2371, %v2369
    %v2462 = vpack.c.b16 %v2374, %v2372
    %v2463 = vpack.c.b16 %v2375, %v2373
    %v2464 = vpack.c.b16 %v2378, %v2376
    %v2465 = vpack.c.b16 %v2379, %v2377
    %v2466 = vpack.c.b16 %v2382, %v2380
    %v2467 = vpack.c.b16 %v2383, %v2381
    %v2468 = vpack.c.b16 %v2386, %v2384
    %v2469 = vpack.c.b16 %v2387, %v2385
    %v2470 = vpack.c.b16 %v2390, %v2388
    %v2471 = vpack.c.b16 %v2391, %v2389
    %v2472 = vpack.c.b16 %v2394, %v2392
    %v2473 = vpack.c.b16 %v2395, %v2393
    %v2474 = vpack.c.b16 %v2398, %v2396
    %v2475 = vpack.c.b16 %v2399, %v2397
    %v2476 = vpack.c.b16 %v2402, %v2400
    %v2477 = vpack.c.b16 %v2403, %v2401
    %v2478 = vpack.c.b16 %v2406, %v2404
    %v2479 = vpack.c.b16 %v2407, %v2405
    %v2480 = vpack.c.b16 %v2410, %v2408
    %v2481 = vpack.c.b16 %v2411, %v2409
    %v2482 = vpack.c.b16 %v2414, %v2412
    %v2483 = vpack.c.b16 %v2415, %v2413
    %v2484 = vpack.c.b16 %v2418, %v2416
    %v2485 = vpack.c.b16 %v2419, %v2417
    %v2486 = vpack.c.b16 %v2422, %v2420
    %v2487 = vpack.c.b16 %v2423, %v2421
    %2552 = vmatprep.subr.bf16.mxu0 %v2439
    %2553 = vmatpush1.bf16.msra.mxu0 %v2438
    %2554 = vmatprep.subr.bf16.mxu0 %v2437
    %2555 = vmatpush1.bf16.msra.mxu0 %v2436
    %2556 = vmatprep.subr.bf16.mxu0 %v2435
    %2557 = vmatpush1.bf16.msra.mxu0 %v2434
    %2558 = vmatprep.subr.bf16.mxu0 %v2433
    %2559 = vmatpush1.bf16.msra.mxu0 %v2432
    %2560 = vmatprep.subr.bf16.mxu0 %v2431
    %2561 = vmatpush1.bf16.msra.mxu0 %v2430
    %2562 = vmatprep.subr.bf16.mxu0 %v2429
    %2563 = vmatpush1.bf16.msra.mxu0 %v2428
    %2564 = vmatprep.subr.bf16.mxu0 %v2427
    %2565 = vmatpush1.bf16.msra.mxu0 %v2426
    %2566 = vmatprep.subr.bf16.mxu0 %v2425
    %2567 = vmatpush1.bf16.msra.mxu0 %v2424
    %2568 = vmatprep.subr.bf16.mxu0 %v2455
    %2569 = vmatpush2.bf16.msra.mxu0 %v2454
    %2570 = vmatprep.subr.bf16.mxu0 %v2453
    %2571 = vmatpush2.bf16.msra.mxu0 %v2452
    %2572 = vmatprep.subr.bf16.mxu0 %v2451
    %2573 = vmatpush2.bf16.msra.mxu0 %v2450
    %2574 = vmatprep.subr.bf16.mxu0 %v2449
    %2575 = vmatpush2.bf16.msra.mxu0 %v2448
    %2576 = vmatprep.subr.bf16.mxu0 %v2447
    %2577 = vmatpush2.bf16.msra.mxu0 %v2446
    %2578 = vmatprep.subr.bf16.mxu0 %v2445
    %2579 = vmatpush2.bf16.msra.mxu0 %v2444
    %2580 = vmatprep.subr.bf16.mxu0 %v2443
    %2581 = vmatpush2.bf16.msra.mxu0 %v2442
    %2582 = vmatprep.subr.bf16.mxu0 %v2441
    %2583 = vmatpush2.bf16.msra.mxu0 %v2440
    %2584 = vmatprep.mubr.bf16.mxu0 %v2153
    %2585 = vmatmul.mubr.bf16.gmra.mxu0 %v2152
    %v2586 = vpop.f32.mrf.mxu0
    %v2587 = vadd.f32 %v2225, %v2586
    %v2588 = vpop.f32.mrf.mxu0
    %v2589 = vadd.f32 %v2229, %v2588
    %v2590 = vpop.f32.mrf.mxu0
    %v2591 = vpop.f32.mrf.mxu0
    %2592 = vdwg.mxu0
    %2593 = vmatprep.subr.bf16.mxu0 %v2471
    %2594 = vmatpush1.bf16.msra.mxu0 %v2470
    %2595 = vmatprep.subr.bf16.mxu0 %v2469
    %2596 = vmatpush1.bf16.msra.mxu0 %v2468
    %2597 = vmatprep.subr.bf16.mxu0 %v2467
    %2598 = vmatpush1.bf16.msra.mxu0 %v2466
    %2599 = vmatprep.subr.bf16.mxu0 %v2465
    %2600 = vmatpush1.bf16.msra.mxu0 %v2464
    %2601 = vmatprep.subr.bf16.mxu0 %v2463
    %2602 = vmatpush1.bf16.msra.mxu0 %v2462
    %2603 = vmatprep.subr.bf16.mxu0 %v2461
    %2604 = vmatpush1.bf16.msra.mxu0 %v2460
    %2605 = vmatprep.subr.bf16.mxu0 %v2459
    %2606 = vmatpush1.bf16.msra.mxu0 %v2458
    %2607 = vmatprep.subr.bf16.mxu0 %v2457
    %2608 = vmatpush1.bf16.msra.mxu0 %v2456
    %2609 = vmatprep.subr.bf16.mxu0 %v2487
    %2610 = vmatpush2.bf16.msra.mxu0 %v2486
    %2611 = vmatprep.subr.bf16.mxu0 %v2485
    %2612 = vmatpush2.bf16.msra.mxu0 %v2484
    %2613 = vmatprep.subr.bf16.mxu0 %v2483
    %2614 = vmatpush2.bf16.msra.mxu0 %v2482
    %2615 = vmatprep.subr.bf16.mxu0 %v2481
    %2616 = vmatpush2.bf16.msra.mxu0 %v2480
    %2617 = vmatprep.subr.bf16.mxu0 %v2479
    %2618 = vmatpush2.bf16.msra.mxu0 %v2478
    %2619 = vmatprep.subr.bf16.mxu0 %v2477
    %2620 = vmatpush2.bf16.msra.mxu0 %v2476
    %2621 = vmatprep.subr.bf16.mxu0 %v2475
    %2622 = vmatpush2.bf16.msra.mxu0 %v2474
    %2623 = vmatprep.subr.bf16.mxu0 %v2473
    %2624 = vmatpush2.bf16.msra.mxu0 %v2472
    %2625 = vmatprep.mubr.bf16.mxu0 %v2155
    %2626 = vmatmul.mubr.bf16.gmra.mxu0 %v2154
    %v2627 = vpop.f32.mrf.mxu0
    %v2628 = vadd.f32 %v2587, %v2627
    %v2629 = vpop.f32.mrf.mxu0
    %v2630 = vadd.f32 %v2589, %v2629
    %v2631 = vpop.f32.mrf.mxu0
    %v2632 = vpop.f32.mrf.mxu0
    %2633 = vdwg.mxu0
    %v2634 = vmax.f32 %v2628, 0.0
    %v2635 = vmax.f32 %v2630, 0.0
    %v2636 = vpack.c.bf16 %v2634, %v2634
    %v2637 = vpack.c.bf16 %v2635, %v2635
    %v2638 = vld [vmem:[#allocation11] sm:$0xf]
    %v2639 = vld [vmem:[#allocation11 + $0x4] sm:$0xf]
    %v2640 = vld [vmem:[#allocation11 + $0x8] sm:$0xf]
    %v2641 = vld [vmem:[#allocation11 + $0xc] sm:$0xf]
    %v2642 = vld [vmem:[#allocation11 + $0x10] sm:$0xf]
    %v2643 = vld [vmem:[#allocation11 + $0x14] sm:$0xf]
    %v2644 = vld [vmem:[#allocation11 + $0x18] sm:$0xf]
    %v2645 = vld [vmem:[#allocation11 + $0x1c] sm:$0xf]
    %v2646 = vld [vmem:[#allocation11 + $0x20] sm:$0xf]
    %v2647 = vld [vmem:[#allocation11 + $0x24] sm:$0xf]
    %v2648 = vld [vmem:[#allocation11 + $0x28] sm:$0xf]
    %v2649 = vld [vmem:[#allocation11 + $0x2c] sm:$0xf]
    %v2650 = vld [vmem:[#allocation11 + $0x30] sm:$0xf]
    %v2651 = vld [vmem:[#allocation11 + $0x34] sm:$0xf]
    %v2652 = vld [vmem:[#allocation11 + $0x38] sm:$0xf]
    %v2653 = vld [vmem:[#allocation11 + $0x3c] sm:$0xf]
    %v2654 = vld [vmem:[#allocation11 + $0x40] sm:$0xf]
    %v2655 = vld [vmem:[#allocation11 + $0x44] sm:$0xf]
    %v2656 = vld [vmem:[#allocation11 + $0x48] sm:$0xf]
    %v2657 = vld [vmem:[#allocation11 + $0x4c] sm:$0xf]
    %v2658 = vld [vmem:[#allocation11 + $0x50] sm:$0xf]
    %v2659 = vld [vmem:[#allocation11 + $0x54] sm:$0xf]
    %v2660 = vld [vmem:[#allocation11 + $0x58] sm:$0xf]
    %v2661 = vld [vmem:[#allocation11 + $0x5c] sm:$0xf]
    %v2662 = vld [vmem:[#allocation11 + $0x60] sm:$0xf]
    %v2663 = vld [vmem:[#allocation11 + $0x64] sm:$0xf]
    %v2664 = vld [vmem:[#allocation11 + $0x68] sm:$0xf]
    %v2665 = vld [vmem:[#allocation11 + $0x6c] sm:$0xf]
    %v2666 = vld [vmem:[#allocation11 + $0x70] sm:$0xf]
    %v2667 = vld [vmem:[#allocation11 + $0x74] sm:$0xf]
    %v2668 = vld [vmem:[#allocation11 + $0x78] sm:$0xf]
    %v2669 = vld [vmem:[#allocation11 + $0x7c] sm:$0xf]
    %v2670 = vld [vmem:[#allocation13] sm:$0x1]
    %v2672 = vlaneseq
    %v2673 = vshrl.u32 %v2672, 7
    %v2674 = vsub.s32 0, %v2673
    %v2675 = vrot.slane %v2670, %v2674
    %v2709 = vunpack.c.l.b16 %v2638
    %v2710 = vunpack.c.l.b16 %v2639
    %v2711 = vunpack.c.l.b16 %v2640
    %v2712 = vunpack.c.l.b16 %v2641
    %v2713 = vunpack.c.l.b16 %v2642
    %v2714 = vunpack.c.l.b16 %v2643
    %v2715 = vunpack.c.l.b16 %v2644
    %v2716 = vunpack.c.l.b16 %v2645
    %v2717 = vunpack.c.l.b16 %v2646
    %v2718 = vunpack.c.l.b16 %v2647
    %v2719 = vunpack.c.l.b16 %v2648
    %v2720 = vunpack.c.l.b16 %v2649
    %v2721 = vunpack.c.l.b16 %v2650
    %v2722 = vunpack.c.l.b16 %v2651
    %v2723 = vunpack.c.l.b16 %v2652
    %v2724 = vunpack.c.l.b16 %v2653
    %v2725 = vunpack.c.l.b16 %v2654
    %v2726 = vunpack.c.l.b16 %v2655
    %v2727 = vunpack.c.l.b16 %v2656
    %v2728 = vunpack.c.l.b16 %v2657
    %v2729 = vunpack.c.l.b16 %v2658
    %v2730 = vunpack.c.l.b16 %v2659
    %v2731 = vunpack.c.l.b16 %v2660
    %v2732 = vunpack.c.l.b16 %v2661
    %v2733 = vunpack.c.l.b16 %v2662
    %v2734 = vunpack.c.l.b16 %v2663
    %v2735 = vunpack.c.l.b16 %v2664
    %v2736 = vunpack.c.l.b16 %v2665
    %v2737 = vunpack.c.l.b16 %v2666
    %v2738 = vunpack.c.l.b16 %v2667
    %v2739 = vunpack.c.l.b16 %v2668
    %v2740 = vunpack.c.l.b16 %v2669
    %v2741 = vpack.c.b16 %v2710, %v2709
    %v2742 = vpack.c.b16 %v2712, %v2711
    %v2743 = vpack.c.b16 %v2714, %v2713
    %v2744 = vpack.c.b16 %v2716, %v2715
    %v2745 = vpack.c.b16 %v2718, %v2717
    %v2746 = vpack.c.b16 %v2720, %v2719
    %v2747 = vpack.c.b16 %v2722, %v2721
    %v2748 = vpack.c.b16 %v2724, %v2723
    %v2749 = vpack.c.b16 %v2726, %v2725
    %v2750 = vpack.c.b16 %v2728, %v2727
    %v2751 = vpack.c.b16 %v2730, %v2729
    %v2752 = vpack.c.b16 %v2732, %v2731
    %v2753 = vpack.c.b16 %v2734, %v2733
    %v2754 = vpack.c.b16 %v2736, %v2735
    %v2755 = vpack.c.b16 %v2738, %v2737
    %v2756 = vpack.c.b16 %v2740, %v2739
    %2773 = vmatprep.subr.bf16.mxu0 0
    %2774 = vmatpush1.bf16.msra.mxu0 %v2748
    %2775 = vmatprep.subr.bf16.mxu0 0
    %2776 = vmatpush1.bf16.msra.mxu0 %v2747
    %2777 = vmatprep.subr.bf16.mxu0 0
    %2778 = vmatpush1.bf16.msra.mxu0 %v2746
    %2779 = vmatprep.subr.bf16.mxu0 0
    %2780 = vmatpush1.bf16.msra.mxu0 %v2745
    %2781 = vmatprep.subr.bf16.mxu0 0
    %2782 = vmatpush1.bf16.msra.mxu0 %v2744
    %2783 = vmatprep.subr.bf16.mxu0 0
    %2784 = vmatpush1.bf16.msra.mxu0 %v2743
    %2785 = vmatprep.subr.bf16.mxu0 0
    %2786 = vmatpush1.bf16.msra.mxu0 %v2742
    %2787 = vmatprep.subr.bf16.mxu0 0
    %2788 = vmatpush1.bf16.msra.mxu0 %v2741
    %2789 = vmatprep.subr.bf16.mxu0 0
    %2790 = vmatpush2.bf16.msra.mxu0 %v2756
    %2791 = vmatprep.subr.bf16.mxu0 0
    %2792 = vmatpush2.bf16.msra.mxu0 %v2755
    %2793 = vmatprep.subr.bf16.mxu0 0
    %2794 = vmatpush2.bf16.msra.mxu0 %v2754
    %2795 = vmatprep.subr.bf16.mxu0 0
    %2796 = vmatpush2.bf16.msra.mxu0 %v2753
    %2797 = vmatprep.subr.bf16.mxu0 0
    %2798 = vmatpush2.bf16.msra.mxu0 %v2752
    %2799 = vmatprep.subr.bf16.mxu0 0
    %2800 = vmatpush2.bf16.msra.mxu0 %v2751
    %2801 = vmatprep.subr.bf16.mxu0 0
    %2802 = vmatpush2.bf16.msra.mxu0 %v2750
    %2803 = vmatprep.subr.bf16.mxu0 0
    %2804 = vmatpush2.bf16.msra.mxu0 %v2749
    %2805 = vmatprep.mubr.bf16.mxu0 %v2637
    %2806 = vmatmul.mubr.bf16.gmra.mxu0 %v2636
    %v2807 = vpop.f32.mrf.mxu0
    %v2808 = vadd.f32 %v2675, %v2807
    %v2809 = vpop.f32.mrf.mxu0
    %v2810 = vpop.f32.mrf.mxu0
    %v2811 = vpop.f32.mrf.mxu0
    %2812 = vdwg.mxu0
    %v2813 = vmax.f32 %v2808, 0.0
    %v2814 = vpack.c.bf16 %v2813, %v2813
    %v2815 = vld [vmem:[#allocation14] sm:$0xff]
    %v2816 = vld [vmem:[#allocation14 + $0x8] sm:$0xff]
    %v2817 = vld [vmem:[#allocation14 + $0x10] sm:$0xff]
    %v2818 = vld [vmem:[#allocation14 + $0x18] sm:$0xff]
    %v2819 = vld [vmem:[#allocation14 + $0x20] sm:$0xff]
    %v2820 = vld [vmem:[#allocation14 + $0x28] sm:$0xff]
    %v2821 = vld [vmem:[#allocation14 + $0x30] sm:$0xff]
    %v2822 = vld [vmem:[#allocation14 + $0x38] sm:$0xff]
    %v2823 = vld [vmem:[#allocation14 + $0x40] sm:$0xff]
    %v2824 = vld [vmem:[#allocation14 + $0x48] sm:$0xff]
    %v2825 = vld [vmem:[#allocation14 + $0x50] sm:$0xff]
    %v2826 = vld [vmem:[#allocation14 + $0x58] sm:$0xff]
    %v2827 = vld [vmem:[#allocation14 + $0x60] sm:$0xff]
    %v2828 = vld [vmem:[#allocation14 + $0x68] sm:$0xff]
    %v2829 = vld [vmem:[#allocation14 + $0x70] sm:$0xff]
    %v2830 = vld [vmem:[#allocation14 + $0x78] sm:$0xff]
    %v2831 = vld [vmem:[#allocation16] sm:$0x3]
    %v2833 = vlaneseq
    %v2834 = vshrl.u32 %v2833, 7
    %v2835 = vsub.s32 0, %v2834
    %v2836 = vrot.slane %v2831, %v2835
    %v2837 = vlaneseq
    %v2838 = vshrl.u32 %v2837, 7
    %v2839 = vsub.s32 1, %v2838
    %v2840 = vrot.slane %v2831, %v2839
    %v2859 = vunpack.c.l.b16 %v2815
    %v2860 = vunpack.c.h.b16 %v2815
    %v2861 = vunpack.c.l.b16 %v2816
    %v2862 = vunpack.c.h.b16 %v2816
    %v2863 = vunpack.c.l.b16 %v2817
    %v2864 = vunpack.c.h.b16 %v2817
    %v2865 = vunpack.c.l.b16 %v2818
    %v2866 = vunpack.c.h.b16 %v2818
    %v2867 = vunpack.c.l.b16 %v2819
    %v2868 = vunpack.c.h.b16 %v2819
    %v2869 = vunpack.c.l.b16 %v2820
    %v2870 = vunpack.c.h.b16 %v2820
    %v2871 = vunpack.c.l.b16 %v2821
    %v2872 = vunpack.c.h.b16 %v2821
    %v2873 = vunpack.c.l.b16 %v2822
    %v2874 = vunpack.c.h.b16 %v2822
    %v2875 = vunpack.c.l.b16 %v2823
    %v2876 = vunpack.c.h.b16 %v2823
    %v2877 = vunpack.c.l.b16 %v2824
    %v2878 = vunpack.c.h.b16 %v2824
    %v2879 = vunpack.c.l.b16 %v2825
    %v2880 = vunpack.c.h.b16 %v2825
    %v2881 = vunpack.c.l.b16 %v2826
    %v2882 = vunpack.c.h.b16 %v2826
    %v2883 = vunpack.c.l.b16 %v2827
    %v2884 = vunpack.c.h.b16 %v2827
    %v2885 = vunpack.c.l.b16 %v2828
    %v2886 = vunpack.c.h.b16 %v2828
    %v2887 = vunpack.c.l.b16 %v2829
    %v2888 = vunpack.c.h.b16 %v2829
    %v2889 = vunpack.c.l.b16 %v2830
    %v2890 = vunpack.c.h.b16 %v2830
    %v2891 = vpack.c.b16 %v2861, %v2859
    %v2892 = vpack.c.b16 %v2862, %v2860
    %v2893 = vpack.c.b16 %v2865, %v2863
    %v2894 = vpack.c.b16 %v2866, %v2864
    %v2895 = vpack.c.b16 %v2869, %v2867
    %v2896 = vpack.c.b16 %v2870, %v2868
    %v2897 = vpack.c.b16 %v2873, %v2871
    %v2898 = vpack.c.b16 %v2874, %v2872
    %v2899 = vpack.c.b16 %v2877, %v2875
    %v2900 = vpack.c.b16 %v2878, %v2876
    %v2901 = vpack.c.b16 %v2881, %v2879
    %v2902 = vpack.c.b16 %v2882, %v2880
    %v2903 = vpack.c.b16 %v2885, %v2883
    %v2904 = vpack.c.b16 %v2886, %v2884
    %v2905 = vpack.c.b16 %v2889, %v2887
    %v2906 = vpack.c.b16 %v2890, %v2888
    %2923 = vmatprep.subr.bf16.mxu0 %v2906
    %2924 = vmatpush1.bf16.msra.mxu0 %v2905
    %2925 = vmatprep.subr.bf16.mxu0 %v2904
    %2926 = vmatpush1.bf16.msra.mxu0 %v2903
    %2927 = vmatprep.subr.bf16.mxu0 %v2902
    %2928 = vmatpush1.bf16.msra.mxu0 %v2901
    %2929 = vmatprep.subr.bf16.mxu0 %v2900
    %2930 = vmatpush1.bf16.msra.mxu0 %v2899
    %2931 = vmatprep.subr.bf16.mxu0 %v2898
    %2932 = vmatpush1.bf16.msra.mxu0 %v2897
    %2933 = vmatprep.subr.bf16.mxu0 %v2896
    %2934 = vmatpush1.bf16.msra.mxu0 %v2895
    %2935 = vmatprep.subr.bf16.mxu0 %v2894
    %2936 = vmatpush1.bf16.msra.mxu0 %v2893
    %2937 = vmatprep.subr.bf16.mxu0 %v2892
    %2938 = vmatpush1.bf16.msra.mxu0 %v2891
    %2939 = vmatprep.subr.bf16.mxu0 0
    %2940 = vmatpush2.bf16.msra.mxu0 0
    %2941 = vmatprep.subr.bf16.mxu0 0
    %2942 = vmatpush2.bf16.msra.mxu0 0
    %2943 = vmatprep.subr.bf16.mxu0 0
    %2944 = vmatpush2.bf16.msra.mxu0 0
    %2945 = vmatprep.subr.bf16.mxu0 0
    %2946 = vmatpush2.bf16.msra.mxu0 0
    %2947 = vmatprep.subr.bf16.mxu0 0
    %2948 = vmatpush2.bf16.msra.mxu0 0
    %2949 = vmatprep.subr.bf16.mxu0 0
    %2950 = vmatpush2.bf16.msra.mxu0 0
    %2951 = vmatprep.subr.bf16.mxu0 0
    %2952 = vmatpush2.bf16.msra.mxu0 0
    %2953 = vmatprep.subr.bf16.mxu0 0
    %2954 = vmatpush2.bf16.msra.mxu0 0
    %2955 = vmatprep.mubr.bf16.mxu0 0
    %2956 = vmatmul.mubr.bf16.gmra.mxu0 %v2814
    %v2957 = vpop.f32.mrf.mxu0
    %v2958 = vadd.f32 %v2836, %v2957
    %v2959 = vpop.f32.mrf.mxu0
    %v2960 = vadd.f32 %v2840, %v2959
    %v2961 = vpop.f32.mrf.mxu0
    %v2962 = vpop.f32.mrf.mxu0
    %2963 = vdwg.mxu0
    %2964 = vst [vmem:[#allocation24] sm:$0xff] %v2958
    %2965 = vst [vmem:[#allocation24 + $0x8] sm:$0xff] %v2960
    %v2966 = vld [vmem:[#allocation5] sm:$0xff]
    %v2967 = vmul.f32 %v2960, 0.5
    %v2968 = vmul.f32 %v2967, 1.442695
    %v2969 = vpow.pop %v2968
    %v2970 = vmul.f32 %v2966, %v2969
    %v2971 = vadd.f32 %v2958, %v2970
    %v2972 = vpack.c.bf16 %v2971, %v2971
    %v2973 = vld [vmem:[#allocation17] sm:$0xf]
    %v2974 = vld [vmem:[#allocation17 + $0x4] sm:$0xf]
    %v2975 = vld [vmem:[#allocation17 + $0x8] sm:$0xf]
    %v2976 = vld [vmem:[#allocation17 + $0xc] sm:$0xf]
    %v2977 = vld [vmem:[#allocation17 + $0x10] sm:$0xf]
    %v2978 = vld [vmem:[#allocation17 + $0x14] sm:$0xf]
    %v2979 = vld [vmem:[#allocation17 + $0x18] sm:$0xf]
    %v2980 = vld [vmem:[#allocation17 + $0x1c] sm:$0xf]
    %v2981 = vld [vmem:[#allocation17 + $0x20] sm:$0xf]
    %v2982 = vld [vmem:[#allocation17 + $0x24] sm:$0xf]
    %v2983 = vld [vmem:[#allocation17 + $0x28] sm:$0xf]
    %v2984 = vld [vmem:[#allocation17 + $0x2c] sm:$0xf]
    %v2985 = vld [vmem:[#allocation17 + $0x30] sm:$0xf]
    %v2986 = vld [vmem:[#allocation17 + $0x34] sm:$0xf]
    %v2987 = vld [vmem:[#allocation17 + $0x38] sm:$0xf]
    %v2988 = vld [vmem:[#allocation17 + $0x3c] sm:$0xf]
    %v2989 = vld [vmem:[%s11] sm:$0x1]
    %v2991 = vlaneseq
    %v2992 = vshrl.u32 %v2991, 7
    %v2993 = vsub.s32 0, %v2992
    %v2994 = vrot.slane %v2989, %v2993
    %v3012 = vunpack.c.l.b16 %v2973
    %v3013 = vunpack.c.l.b16 %v2974
    %v3014 = vunpack.c.l.b16 %v2975
    %v3015 = vunpack.c.l.b16 %v2976
    %v3016 = vunpack.c.l.b16 %v2977
    %v3017 = vunpack.c.l.b16 %v2978
    %v3018 = vunpack.c.l.b16 %v2979
    %v3019 = vunpack.c.l.b16 %v2980
    %v3020 = vunpack.c.l.b16 %v2981
    %v3021 = vunpack.c.l.b16 %v2982
    %v3022 = vunpack.c.l.b16 %v2983
    %v3023 = vunpack.c.l.b16 %v2984
    %v3024 = vunpack.c.l.b16 %v2985
    %v3025 = vunpack.c.l.b16 %v2986
    %v3026 = vunpack.c.l.b16 %v2987
    %v3027 = vunpack.c.l.b16 %v2988
    %v3028 = vpack.c.b16 %v3013, %v3012
    %v3029 = vpack.c.b16 %v3015, %v3014
    %v3030 = vpack.c.b16 %v3017, %v3016
    %v3031 = vpack.c.b16 %v3019, %v3018
    %v3032 = vpack.c.b16 %v3021, %v3020
    %v3033 = vpack.c.b16 %v3023, %v3022
    %v3034 = vpack.c.b16 %v3025, %v3024
    %v3035 = vpack.c.b16 %v3027, %v3026
    %3044 = vmatprep.subr.bf16.mxu0 0
    %3045 = vmatpush1.bf16.msra.mxu0 %v3035
    %3046 = vmatprep.subr.bf16.mxu0 0
    %3047 = vmatpush1.bf16.msra.mxu0 %v3034
    %3048 = vmatprep.subr.bf16.mxu0 0
    %3049 = vmatpush1.bf16.msra.mxu0 %v3033
    %3050 = vmatprep.subr.bf16.mxu0 0
    %3051 = vmatpush1.bf16.msra.mxu0 %v3032
    %3052 = vmatprep.subr.bf16.mxu0 0
    %3053 = vmatpush1.bf16.msra.mxu0 %v3031
    %3054 = vmatprep.subr.bf16.mxu0 0
    %3055 = vmatpush1.bf16.msra.mxu0 %v3030
    %3056 = vmatprep.subr.bf16.mxu0 0
    %3057 = vmatpush1.bf16.msra.mxu0 %v3029
    %3058 = vmatprep.subr.bf16.mxu0 0
    %3059 = vmatpush1.bf16.msra.mxu0 %v3028
    %3060 = vmatprep.subr.bf16.mxu0 0
    %3061 = vmatpush2.bf16.msra.mxu0 0
    %3062 = vmatprep.subr.bf16.mxu0 0
    %3063 = vmatpush2.bf16.msra.mxu0 0
    %3064 = vmatprep.subr.bf16.mxu0 0
    %3065 = vmatpush2.bf16.msra.mxu0 0
    %3066 = vmatprep.subr.bf16.mxu0 0
    %3067 = vmatpush2.bf16.msra.mxu0 0
    %3068 = vmatprep.subr.bf16.mxu0 0
    %3069 = vmatpush2.bf16.msra.mxu0 0
    %3070 = vmatprep.subr.bf16.mxu0 0
    %3071 = vmatpush2.bf16.msra.mxu0 0
    %3072 = vmatprep.subr.bf16.mxu0 0
    %3073 = vmatpush2.bf16.msra.mxu0 0
    %3074 = vmatprep.subr.bf16.mxu0 0
    %3075 = vmatpush2.bf16.msra.mxu0 0
    %3076 = vmatprep.mubr.bf16.mxu0 0
    %3077 = vmatmul.mubr.bf16.gmra.mxu0 %v2972
    %v3078 = vpop.f32.mrf.mxu0
    %v3079 = vadd.f32 %v2994, %v3078
    %v3080 = vpop.f32.mrf.mxu0
    %v3081 = vpop.f32.mrf.mxu0
    %v3082 = vpop.f32.mrf.mxu0
    %3083 = vdwg.mxu0
    %v3084 = vmax.f32 %v3079, 0.0
    %v3085 = vpack.c.bf16 %v3084, %v3084
    %v3086 = vld [vmem:[#allocation19] sm:$0xff]
    %v3087 = vld [vmem:[#allocation19 + $0x8] sm:$0xff]
    %v3088 = vld [vmem:[#allocation19 + $0x10] sm:$0xff]
    %v3089 = vld [vmem:[#allocation19 + $0x18] sm:$0xff]
    %v3090 = vld [vmem:[#allocation19 + $0x20] sm:$0xff]
    %v3091 = vld [vmem:[#allocation19 + $0x28] sm:$0xff]
    %v3092 = vld [vmem:[#allocation19 + $0x30] sm:$0xff]
    %v3093 = vld [vmem:[#allocation19 + $0x38] sm:$0xff]
    %v3094 = vld [vmem:[#allocation19 + $0x40] sm:$0xff]
    %v3095 = vld [vmem:[#allocation19 + $0x48] sm:$0xff]
    %v3096 = vld [vmem:[#allocation19 + $0x50] sm:$0xff]
    %v3097 = vld [vmem:[#allocation19 + $0x58] sm:$0xff]
    %v3098 = vld [vmem:[#allocation19 + $0x60] sm:$0xff]
    %v3099 = vld [vmem:[#allocation19 + $0x68] sm:$0xff]
    %v3100 = vld [vmem:[#allocation19 + $0x70] sm:$0xff]
    %v3101 = vld [vmem:[#allocation19 + $0x78] sm:$0xff]
    %v3102 = vld [vmem:[%s13] sm:$0x3]
    %v3104 = vlaneseq
    %v3105 = vshrl.u32 %v3104, 7
    %v3106 = vsub.s32 0, %v3105
    %v3107 = vrot.slane %v3102, %v3106
    %v3108 = vlaneseq
    %v3109 = vshrl.u32 %v3108, 7
    %v3110 = vsub.s32 1, %v3109
    %v3111 = vrot.slane %v3102, %v3110
    %v3130 = vunpack.c.l.b16 %v3086
    %v3131 = vunpack.c.h.b16 %v3086
    %v3132 = vunpack.c.l.b16 %v3087
    %v3133 = vunpack.c.h.b16 %v3087
    %v3134 = vunpack.c.l.b16 %v3088
    %v3135 = vunpack.c.h.b16 %v3088
    %v3136 = vunpack.c.l.b16 %v3089
    %v3137 = vunpack.c.h.b16 %v3089
    %v3138 = vunpack.c.l.b16 %v3090
    %v3139 = vunpack.c.h.b16 %v3090
    %v3140 = vunpack.c.l.b16 %v3091
    %v3141 = vunpack.c.h.b16 %v3091
    %v3142 = vunpack.c.l.b16 %v3092
    %v3143 = vunpack.c.h.b16 %v3092
    %v3144 = vunpack.c.l.b16 %v3093
    %v3145 = vunpack.c.h.b16 %v3093
    %v3146 = vunpack.c.l.b16 %v3094
    %v3147 = vunpack.c.h.b16 %v3094
    %v3148 = vunpack.c.l.b16 %v3095
    %v3149 = vunpack.c.h.b16 %v3095
    %v3150 = vunpack.c.l.b16 %v3096
    %v3151 = vunpack.c.h.b16 %v3096
    %v3152 = vunpack.c.l.b16 %v3097
    %v3153 = vunpack.c.h.b16 %v3097
    %v3154 = vunpack.c.l.b16 %v3098
    %v3155 = vunpack.c.h.b16 %v3098
    %v3156 = vunpack.c.l.b16 %v3099
    %v3157 = vunpack.c.h.b16 %v3099
    %v3158 = vunpack.c.l.b16 %v3100
    %v3159 = vunpack.c.h.b16 %v3100
    %v3160 = vunpack.c.l.b16 %v3101
    %v3161 = vunpack.c.h.b16 %v3101
    %v3162 = vpack.c.b16 %v3132, %v3130
    %v3163 = vpack.c.b16 %v3133, %v3131
    %v3164 = vpack.c.b16 %v3136, %v3134
    %v3165 = vpack.c.b16 %v3137, %v3135
    %v3166 = vpack.c.b16 %v3140, %v3138
    %v3167 = vpack.c.b16 %v3141, %v3139
    %v3168 = vpack.c.b16 %v3144, %v3142
    %v3169 = vpack.c.b16 %v3145, %v3143
    %v3170 = vpack.c.b16 %v3148, %v3146
    %v3171 = vpack.c.b16 %v3149, %v3147
    %v3172 = vpack.c.b16 %v3152, %v3150
    %v3173 = vpack.c.b16 %v3153, %v3151
    %v3174 = vpack.c.b16 %v3156, %v3154
    %v3175 = vpack.c.b16 %v3157, %v3155
    %v3176 = vpack.c.b16 %v3160, %v3158
    %v3177 = vpack.c.b16 %v3161, %v3159
    %3194 = vmatprep.subr.bf16.mxu0 %v3177
    %3195 = vmatpush1.bf16.msra.mxu0 %v3176
    %3196 = vmatprep.subr.bf16.mxu0 %v3175
    %3197 = vmatpush1.bf16.msra.mxu0 %v3174
    %3198 = vmatprep.subr.bf16.mxu0 %v3173
    %3199 = vmatpush1.bf16.msra.mxu0 %v3172
    %3200 = vmatprep.subr.bf16.mxu0 %v3171
    %3201 = vmatpush1.bf16.msra.mxu0 %v3170
    %3202 = vmatprep.subr.bf16.mxu0 %v3169
    %3203 = vmatpush1.bf16.msra.mxu0 %v3168
    %3204 = vmatprep.subr.bf16.mxu0 %v3167
    %3205 = vmatpush1.bf16.msra.mxu0 %v3166
    %3206 = vmatprep.subr.bf16.mxu0 %v3165
    %3207 = vmatpush1.bf16.msra.mxu0 %v3164
    %3208 = vmatprep.subr.bf16.mxu0 %v3163
    %3209 = vmatpush1.bf16.msra.mxu0 %v3162
    %3210 = vmatprep.subr.bf16.mxu0 0
    %3211 = vmatpush2.bf16.msra.mxu0 0
    %3212 = vmatprep.subr.bf16.mxu0 0
    %3213 = vmatpush2.bf16.msra.mxu0 0
    %3214 = vmatprep.subr.bf16.mxu0 0
    %3215 = vmatpush2.bf16.msra.mxu0 0
    %3216 = vmatprep.subr.bf16.mxu0 0
    %3217 = vmatpush2.bf16.msra.mxu0 0
    %3218 = vmatprep.subr.bf16.mxu0 0
    %3219 = vmatpush2.bf16.msra.mxu0 0
    %3220 = vmatprep.subr.bf16.mxu0 0
    %3221 = vmatpush2.bf16.msra.mxu0 0
    %3222 = vmatprep.subr.bf16.mxu0 0
    %3223 = vmatpush2.bf16.msra.mxu0 0
    %3224 = vmatprep.subr.bf16.mxu0 0
    %3225 = vmatpush2.bf16.msra.mxu0 0
    %3226 = vmatprep.mubr.bf16.mxu0 0
    %3227 = vmatmul.mubr.bf16.gmra.mxu0 %v3085
    %v3228 = vpop.f32.mrf.mxu0
    %v3229 = vadd.f32 %v3107, %v3228
    %v3230 = vpop.f32.mrf.mxu0
    %v3231 = vadd.f32 %v3111, %v3230
    %v3232 = vpop.f32.mrf.mxu0
    %v3233 = vpop.f32.mrf.mxu0
    %3234 = vdwg.mxu0
    %v3235 = vmax.f32 %v3229, 0.0
    %v3236 = vmax.f32 %v3231, 0.0
    %v3237 = vpack.c.bf16 %v3235, %v3235
    %v3238 = vpack.c.bf16 %v3236, %v3236
    %v3239 = vld [vmem:[#allocation20] sm:$0xff]
    %v3240 = vld [vmem:[#allocation20 + $0x8] sm:$0xff]
    %v3241 = vld [vmem:[#allocation20 + $0x10] sm:$0xff]
    %v3242 = vld [vmem:[#allocation20 + $0x18] sm:$0xff]
    %v3243 = vld [vmem:[#allocation20 + $0x20] sm:$0xff]
    %v3244 = vld [vmem:[#allocation20 + $0x28] sm:$0xff]
    %v3245 = vld [vmem:[#allocation20 + $0x30] sm:$0xff]
    %v3246 = vld [vmem:[#allocation20 + $0x38] sm:$0xff]
    %v3247 = vld [vmem:[#allocation20 + $0x40] sm:$0xff]
    %v3248 = vld [vmem:[#allocation20 + $0x48] sm:$0xff]
    %v3249 = vld [vmem:[#allocation20 + $0x50] sm:$0xff]
    %v3250 = vld [vmem:[#allocation20 + $0x58] sm:$0xff]
    %v3251 = vld [vmem:[#allocation20 + $0x60] sm:$0xff]
    %v3252 = vld [vmem:[#allocation20 + $0x68] sm:$0xff]
    %v3253 = vld [vmem:[#allocation20 + $0x70] sm:$0xff]
    %v3254 = vld [vmem:[#allocation20 + $0x78] sm:$0xff]
    %v3255 = vld [vmem:[#allocation20 + $0x80] sm:$0xff]
    %v3256 = vld [vmem:[#allocation20 + $0x88] sm:$0xff]
    %v3257 = vld [vmem:[#allocation20 + $0x90] sm:$0xff]
    %v3258 = vld [vmem:[#allocation20 + $0x98] sm:$0xff]
    %v3259 = vld [vmem:[#allocation20 + $0xa0] sm:$0xff]
    %v3260 = vld [vmem:[#allocation20 + $0xa8] sm:$0xff]
    %v3261 = vld [vmem:[#allocation20 + $0xb0] sm:$0xff]
    %v3262 = vld [vmem:[#allocation20 + $0xb8] sm:$0xff]
    %v3263 = vld [vmem:[#allocation20 + $0xc0] sm:$0xff]
    %v3264 = vld [vmem:[#allocation20 + $0xc8] sm:$0xff]
    %v3265 = vld [vmem:[#allocation20 + $0xd0] sm:$0xff]
    %v3266 = vld [vmem:[#allocation20 + $0xd8] sm:$0xff]
    %v3267 = vld [vmem:[#allocation20 + $0xe0] sm:$0xff]
    %v3268 = vld [vmem:[#allocation20 + $0xe8] sm:$0xff]
    %v3269 = vld [vmem:[#allocation20 + $0xf0] sm:$0xff]
    %v3270 = vld [vmem:[#allocation20 + $0xf8] sm:$0xff]
    %v3271 = vld [vmem:[#allocation20 + $0x100] sm:$0xff]
    %v3272 = vld [vmem:[#allocation20 + $0x108] sm:$0xff]
    %v3273 = vld [vmem:[#allocation20 + $0x110] sm:$0xff]
    %v3274 = vld [vmem:[#allocation20 + $0x118] sm:$0xff]
    %v3275 = vld [vmem:[#allocation20 + $0x120] sm:$0xff]
    %v3276 = vld [vmem:[#allocation20 + $0x128] sm:$0xff]
    %v3277 = vld [vmem:[#allocation20 + $0x130] sm:$0xff]
    %v3278 = vld [vmem:[#allocation20 + $0x138] sm:$0xff]
    %v3279 = vld [vmem:[#allocation20 + $0x140] sm:$0xff]
    %v3280 = vld [vmem:[#allocation20 + $0x148] sm:$0xff]
    %v3281 = vld [vmem:[#allocation20 + $0x150] sm:$0xff]
    %v3282 = vld [vmem:[#allocation20 + $0x158] sm:$0xff]
    %v3283 = vld [vmem:[#allocation20 + $0x160] sm:$0xff]
    %v3284 = vld [vmem:[#allocation20 + $0x168] sm:$0xff]
    %v3285 = vld [vmem:[#allocation20 + $0x170] sm:$0xff]
    %v3286 = vld [vmem:[#allocation20 + $0x178] sm:$0xff]
    %v3287 = vld [vmem:[#allocation20 + $0x180] sm:$0xff]
    %v3288 = vld [vmem:[#allocation20 + $0x188] sm:$0xff]
    %v3289 = vld [vmem:[#allocation20 + $0x190] sm:$0xff]
    %v3290 = vld [vmem:[#allocation20 + $0x198] sm:$0xff]
    %v3291 = vld [vmem:[#allocation20 + $0x1a0] sm:$0xff]
    %v3292 = vld [vmem:[#allocation20 + $0x1a8] sm:$0xff]
    %v3293 = vld [vmem:[#allocation20 + $0x1b0] sm:$0xff]
    %v3294 = vld [vmem:[#allocation20 + $0x1b8] sm:$0xff]
    %v3295 = vld [vmem:[#allocation20 + $0x1c0] sm:$0xff]
    %v3296 = vld [vmem:[#allocation20 + $0x1c8] sm:$0xff]
    %v3297 = vld [vmem:[#allocation20 + $0x1d0] sm:$0xff]
    %v3298 = vld [vmem:[#allocation20 + $0x1d8] sm:$0xff]
    %v3299 = vld [vmem:[#allocation20 + $0x1e0] sm:$0xff]
    %v3300 = vld [vmem:[#allocation20 + $0x1e8] sm:$0xff]
    %v3301 = vld [vmem:[#allocation20 + $0x1f0] sm:$0xff]
    %v3302 = vld [vmem:[#allocation20 + $0x1f8] sm:$0xff]
    %v3303 = vld [vmem:[%s15] sm:$0xf]
    %v3305 = vlaneseq
    %v3306 = vshrl.u32 %v3305, 7
    %v3307 = vsub.s32 0, %v3306
    %v3308 = vrot.slane %v3303, %v3307
    %v3309 = vlaneseq
    %v3310 = vshrl.u32 %v3309, 7
    %v3311 = vsub.s32 1, %v3310
    %v3312 = vrot.slane %v3303, %v3311
    %v3313 = vlaneseq
    %v3314 = vshrl.u32 %v3313, 7
    %v3315 = vsub.s32 2, %v3314
    %v3316 = vrot.slane %v3303, %v3315
    %v3317 = vlaneseq
    %v3318 = vshrl.u32 %v3317, 7
    %v3319 = vsub.s32 3, %v3318
    %v3320 = vrot.slane %v3303, %v3319
    %v3389 = vunpack.c.l.b16 %v3239
    %v3390 = vunpack.c.h.b16 %v3239
    %v3391 = vunpack.c.l.b16 %v3240
    %v3392 = vunpack.c.h.b16 %v3240
    %v3393 = vunpack.c.l.b16 %v3241
    %v3394 = vunpack.c.h.b16 %v3241
    %v3395 = vunpack.c.l.b16 %v3242
    %v3396 = vunpack.c.h.b16 %v3242
    %v3397 = vunpack.c.l.b16 %v3243
    %v3398 = vunpack.c.h.b16 %v3243
    %v3399 = vunpack.c.l.b16 %v3244
    %v3400 = vunpack.c.h.b16 %v3244
    %v3401 = vunpack.c.l.b16 %v3245
    %v3402 = vunpack.c.h.b16 %v3245
    %v3403 = vunpack.c.l.b16 %v3246
    %v3404 = vunpack.c.h.b16 %v3246
    %v3405 = vunpack.c.l.b16 %v3247
    %v3406 = vunpack.c.h.b16 %v3247
    %v3407 = vunpack.c.l.b16 %v3248
    %v3408 = vunpack.c.h.b16 %v3248
    %v3409 = vunpack.c.l.b16 %v3249
    %v3410 = vunpack.c.h.b16 %v3249
    %v3411 = vunpack.c.l.b16 %v3250
    %v3412 = vunpack.c.h.b16 %v3250
    %v3413 = vunpack.c.l.b16 %v3251
    %v3414 = vunpack.c.h.b16 %v3251
    %v3415 = vunpack.c.l.b16 %v3252
    %v3416 = vunpack.c.h.b16 %v3252
    %v3417 = vunpack.c.l.b16 %v3253
    %v3418 = vunpack.c.h.b16 %v3253
    %v3419 = vunpack.c.l.b16 %v3254
    %v3420 = vunpack.c.h.b16 %v3254
    %v3421 = vunpack.c.l.b16 %v3255
    %v3422 = vunpack.c.h.b16 %v3255
    %v3423 = vunpack.c.l.b16 %v3256
    %v3424 = vunpack.c.h.b16 %v3256
    %v3425 = vunpack.c.l.b16 %v3257
    %v3426 = vunpack.c.h.b16 %v3257
    %v3427 = vunpack.c.l.b16 %v3258
    %v3428 = vunpack.c.h.b16 %v3258
    %v3429 = vunpack.c.l.b16 %v3259
    %v3430 = vunpack.c.h.b16 %v3259
    %v3431 = vunpack.c.l.b16 %v3260
    %v3432 = vunpack.c.h.b16 %v3260
    %v3433 = vunpack.c.l.b16 %v3261
    %v3434 = vunpack.c.h.b16 %v3261
    %v3435 = vunpack.c.l.b16 %v3262
    %v3436 = vunpack.c.h.b16 %v3262
    %v3437 = vunpack.c.l.b16 %v3263
    %v3438 = vunpack.c.h.b16 %v3263
    %v3439 = vunpack.c.l.b16 %v3264
    %v3440 = vunpack.c.h.b16 %v3264
    %v3441 = vunpack.c.l.b16 %v3265
    %v3442 = vunpack.c.h.b16 %v3265
    %v3443 = vunpack.c.l.b16 %v3266
    %v3444 = vunpack.c.h.b16 %v3266
    %v3445 = vunpack.c.l.b16 %v3267
    %v3446 = vunpack.c.h.b16 %v3267
    %v3447 = vunpack.c.l.b16 %v3268
    %v3448 = vunpack.c.h.b16 %v3268
    %v3449 = vunpack.c.l.b16 %v3269
    %v3450 = vunpack.c.h.b16 %v3269
    %v3451 = vunpack.c.l.b16 %v3270
    %v3452 = vunpack.c.h.b16 %v3270
    %v3453 = vunpack.c.l.b16 %v3271
    %v3454 = vunpack.c.h.b16 %v3271
    %v3455 = vunpack.c.l.b16 %v3272
    %v3456 = vunpack.c.h.b16 %v3272
    %v3457 = vunpack.c.l.b16 %v3273
    %v3458 = vunpack.c.h.b16 %v3273
    %v3459 = vunpack.c.l.b16 %v3274
    %v3460 = vunpack.c.h.b16 %v3274
    %v3461 = vunpack.c.l.b16 %v3275
    %v3462 = vunpack.c.h.b16 %v3275
    %v3463 = vunpack.c.l.b16 %v3276
    %v3464 = vunpack.c.h.b16 %v3276
    %v3465 = vunpack.c.l.b16 %v3277
    %v3466 = vunpack.c.h.b16 %v3277
    %v3467 = vunpack.c.l.b16 %v3278
    %v3468 = vunpack.c.h.b16 %v3278
    %v3469 = vunpack.c.l.b16 %v3279
    %v3470 = vunpack.c.h.b16 %v3279
    %v3471 = vunpack.c.l.b16 %v3280
    %v3472 = vunpack.c.h.b16 %v3280
    %v3473 = vunpack.c.l.b16 %v3281
    %v3474 = vunpack.c.h.b16 %v3281
    %v3475 = vunpack.c.l.b16 %v3282
    %v3476 = vunpack.c.h.b16 %v3282
    %v3477 = vunpack.c.l.b16 %v3283
    %v3478 = vunpack.c.h.b16 %v3283
    %v3479 = vunpack.c.l.b16 %v3284
    %v3480 = vunpack.c.h.b16 %v3284
    %v3481 = vunpack.c.l.b16 %v3285
    %v3482 = vunpack.c.h.b16 %v3285
    %v3483 = vunpack.c.l.b16 %v3286
    %v3484 = vunpack.c.h.b16 %v3286
    %v3485 = vunpack.c.l.b16 %v3287
    %v3486 = vunpack.c.h.b16 %v3287
    %v3487 = vunpack.c.l.b16 %v3288
    %v3488 = vunpack.c.h.b16 %v3288
    %v3489 = vunpack.c.l.b16 %v3289
    %v3490 = vunpack.c.h.b16 %v3289
    %v3491 = vunpack.c.l.b16 %v3290
    %v3492 = vunpack.c.h.b16 %v3290
    %v3493 = vunpack.c.l.b16 %v3291
    %v3494 = vunpack.c.h.b16 %v3291
    %v3495 = vunpack.c.l.b16 %v3292
    %v3496 = vunpack.c.h.b16 %v3292
    %v3497 = vunpack.c.l.b16 %v3293
    %v3498 = vunpack.c.h.b16 %v3293
    %v3499 = vunpack.c.l.b16 %v3294
    %v3500 = vunpack.c.h.b16 %v3294
    %v3501 = vunpack.c.l.b16 %v3295
    %v3502 = vunpack.c.h.b16 %v3295
    %v3503 = vunpack.c.l.b16 %v3296
    %v3504 = vunpack.c.h.b16 %v3296
    %v3505 = vunpack.c.l.b16 %v3297
    %v3506 = vunpack.c.h.b16 %v3297
    %v3507 = vunpack.c.l.b16 %v3298
    %v3508 = vunpack.c.h.b16 %v3298
    %v3509 = vunpack.c.l.b16 %v3299
    %v3510 = vunpack.c.h.b16 %v3299
    %v3511 = vunpack.c.l.b16 %v3300
    %v3512 = vunpack.c.h.b16 %v3300
    %v3513 = vunpack.c.l.b16 %v3301
    %v3514 = vunpack.c.h.b16 %v3301
    %v3515 = vunpack.c.l.b16 %v3302
    %v3516 = vunpack.c.h.b16 %v3302
    %v3517 = vpack.c.b16 %v3393, %v3389
    %v3518 = vpack.c.b16 %v3394, %v3390
    %v3519 = vpack.c.b16 %v3395, %v3391
    %v3520 = vpack.c.b16 %v3396, %v3392
    %v3521 = vpack.c.b16 %v3401, %v3397
    %v3522 = vpack.c.b16 %v3402, %v3398
    %v3523 = vpack.c.b16 %v3403, %v3399
    %v3524 = vpack.c.b16 %v3404, %v3400
    %v3525 = vpack.c.b16 %v3409, %v3405
    %v3526 = vpack.c.b16 %v3410, %v3406
    %v3527 = vpack.c.b16 %v3411, %v3407
    %v3528 = vpack.c.b16 %v3412, %v3408
    %v3529 = vpack.c.b16 %v3417, %v3413
    %v3530 = vpack.c.b16 %v3418, %v3414
    %v3531 = vpack.c.b16 %v3419, %v3415
    %v3532 = vpack.c.b16 %v3420, %v3416
    %v3533 = vpack.c.b16 %v3425, %v3421
    %v3534 = vpack.c.b16 %v3426, %v3422
    %v3535 = vpack.c.b16 %v3427, %v3423
    %v3536 = vpack.c.b16 %v3428, %v3424
    %v3537 = vpack.c.b16 %v3433, %v3429
    %v3538 = vpack.c.b16 %v3434, %v3430
    %v3539 = vpack.c.b16 %v3435, %v3431
    %v3540 = vpack.c.b16 %v3436, %v3432
    %v3541 = vpack.c.b16 %v3441, %v3437
    %v3542 = vpack.c.b16 %v3442, %v3438
    %v3543 = vpack.c.b16 %v3443, %v3439
    %v3544 = vpack.c.b16 %v3444, %v3440
    %v3545 = vpack.c.b16 %v3449, %v3445
    %v3546 = vpack.c.b16 %v3450, %v3446
    %v3547 = vpack.c.b16 %v3451, %v3447
    %v3548 = vpack.c.b16 %v3452, %v3448
    %v3549 = vpack.c.b16 %v3457, %v3453
    %v3550 = vpack.c.b16 %v3458, %v3454
    %v3551 = vpack.c.b16 %v3459, %v3455
    %v3552 = vpack.c.b16 %v3460, %v3456
    %v3553 = vpack.c.b16 %v3465, %v3461
    %v3554 = vpack.c.b16 %v3466, %v3462
    %v3555 = vpack.c.b16 %v3467, %v3463
    %v3556 = vpack.c.b16 %v3468, %v3464
    %v3557 = vpack.c.b16 %v3473, %v3469
    %v3558 = vpack.c.b16 %v3474, %v3470
    %v3559 = vpack.c.b16 %v3475, %v3471
    %v3560 = vpack.c.b16 %v3476, %v3472
    %v3561 = vpack.c.b16 %v3481, %v3477
    %v3562 = vpack.c.b16 %v3482, %v3478
    %v3563 = vpack.c.b16 %v3483, %v3479
    %v3564 = vpack.c.b16 %v3484, %v3480
    %v3565 = vpack.c.b16 %v3489, %v3485
    %v3566 = vpack.c.b16 %v3490, %v3486
    %v3567 = vpack.c.b16 %v3491, %v3487
    %v3568 = vpack.c.b16 %v3492, %v3488
    %v3569 = vpack.c.b16 %v3497, %v3493
    %v3570 = vpack.c.b16 %v3498, %v3494
    %v3571 = vpack.c.b16 %v3499, %v3495
    %v3572 = vpack.c.b16 %v3500, %v3496
    %v3573 = vpack.c.b16 %v3505, %v3501
    %v3574 = vpack.c.b16 %v3506, %v3502
    %v3575 = vpack.c.b16 %v3507, %v3503
    %v3576 = vpack.c.b16 %v3508, %v3504
    %v3577 = vpack.c.b16 %v3513, %v3509
    %v3578 = vpack.c.b16 %v3514, %v3510
    %v3579 = vpack.c.b16 %v3515, %v3511
    %v3580 = vpack.c.b16 %v3516, %v3512
    %3645 = vmatprep.subr.bf16.mxu0 %v3546
    %3646 = vmatpush1.bf16.msra.mxu0 %v3545
    %3647 = vmatprep.subr.bf16.mxu0 %v3542
    %3648 = vmatpush1.bf16.msra.mxu0 %v3541
    %3649 = vmatprep.subr.bf16.mxu0 %v3538
    %3650 = vmatpush1.bf16.msra.mxu0 %v3537
    %3651 = vmatprep.subr.bf16.mxu0 %v3534
    %3652 = vmatpush1.bf16.msra.mxu0 %v3533
    %3653 = vmatprep.subr.bf16.mxu0 %v3530
    %3654 = vmatpush1.bf16.msra.mxu0 %v3529
    %3655 = vmatprep.subr.bf16.mxu0 %v3526
    %3656 = vmatpush1.bf16.msra.mxu0 %v3525
    %3657 = vmatprep.subr.bf16.mxu0 %v3522
    %3658 = vmatpush1.bf16.msra.mxu0 %v3521
    %3659 = vmatprep.subr.bf16.mxu0 %v3518
    %3660 = vmatpush1.bf16.msra.mxu0 %v3517
    %3661 = vmatprep.subr.bf16.mxu0 %v3578
    %3662 = vmatpush2.bf16.msra.mxu0 %v3577
    %3663 = vmatprep.subr.bf16.mxu0 %v3574
    %3664 = vmatpush2.bf16.msra.mxu0 %v3573
    %3665 = vmatprep.subr.bf16.mxu0 %v3570
    %3666 = vmatpush2.bf16.msra.mxu0 %v3569
    %3667 = vmatprep.subr.bf16.mxu0 %v3566
    %3668 = vmatpush2.bf16.msra.mxu0 %v3565
    %3669 = vmatprep.subr.bf16.mxu0 %v3562
    %3670 = vmatpush2.bf16.msra.mxu0 %v3561
    %3671 = vmatprep.subr.bf16.mxu0 %v3558
    %3672 = vmatpush2.bf16.msra.mxu0 %v3557
    %3673 = vmatprep.subr.bf16.mxu0 %v3554
    %3674 = vmatpush2.bf16.msra.mxu0 %v3553
    %3675 = vmatprep.subr.bf16.mxu0 %v3550
    %3676 = vmatpush2.bf16.msra.mxu0 %v3549
    %3677 = vmatprep.mubr.bf16.mxu0 %v3238
    %3678 = vmatmul.mubr.bf16.gmra.mxu0 %v3237
    %v3679 = vpop.f32.mrf.mxu0
    %v3680 = vadd.f32 %v3308, %v3679
    %v3681 = vpop.f32.mrf.mxu0
    %v3682 = vadd.f32 %v3312, %v3681
    %v3683 = vpop.f32.mrf.mxu0
    %v3684 = vpop.f32.mrf.mxu0
    %3685 = vdwg.mxu0
    %3686 = vmatprep.subr.bf16.mxu0 %v3548
    %3687 = vmatpush1.bf16.msra.mxu0 %v3547
    %3688 = vmatprep.subr.bf16.mxu0 %v3544
    %3689 = vmatpush1.bf16.msra.mxu0 %v3543
    %3690 = vmatprep.subr.bf16.mxu0 %v3540
    %3691 = vmatpush1.bf16.msra.mxu0 %v3539
    %3692 = vmatprep.subr.bf16.mxu0 %v3536
    %3693 = vmatpush1.bf16.msra.mxu0 %v3535
    %3694 = vmatprep.subr.bf16.mxu0 %v3532
    %3695 = vmatpush1.bf16.msra.mxu0 %v3531
    %3696 = vmatprep.subr.bf16.mxu0 %v3528
    %3697 = vmatpush1.bf16.msra.mxu0 %v3527
    %3698 = vmatprep.subr.bf16.mxu0 %v3524
    %3699 = vmatpush1.bf16.msra.mxu0 %v3523
    %3700 = vmatprep.subr.bf16.mxu0 %v3520
    %3701 = vmatpush1.bf16.msra.mxu0 %v3519
    %3702 = vmatprep.subr.bf16.mxu0 %v3580
    %3703 = vmatpush2.bf16.msra.mxu0 %v3579
    %3704 = vmatprep.subr.bf16.mxu0 %v3576
    %3705 = vmatpush2.bf16.msra.mxu0 %v3575
    %3706 = vmatprep.subr.bf16.mxu0 %v3572
    %3707 = vmatpush2.bf16.msra.mxu0 %v3571
    %3708 = vmatprep.subr.bf16.mxu0 %v3568
    %3709 = vmatpush2.bf16.msra.mxu0 %v3567
    %3710 = vmatprep.subr.bf16.mxu0 %v3564
    %3711 = vmatpush2.bf16.msra.mxu0 %v3563
    %3712 = vmatprep.subr.bf16.mxu0 %v3560
    %3713 = vmatpush2.bf16.msra.mxu0 %v3559
    %3714 = vmatprep.subr.bf16.mxu0 %v3556
    %3715 = vmatpush2.bf16.msra.mxu0 %v3555
    %3716 = vmatprep.subr.bf16.mxu0 %v3552
    %3717 = vmatpush2.bf16.msra.mxu0 %v3551
    %3718 = vmatprep.mubr.bf16.mxu0 %v3238
    %3719 = vmatmul.mubr.bf16.gmra.mxu0 %v3237
    %v3720 = vpop.f32.mrf.mxu0
    %v3721 = vadd.f32 %v3316, %v3720
    %v3722 = vpop.f32.mrf.mxu0
    %v3723 = vadd.f32 %v3320, %v3722
    %v3724 = vpop.f32.mrf.mxu0
    %v3725 = vpop.f32.mrf.mxu0
    %3726 = vdwg.mxu0
    %v3727 = vmax.f32 %v3680, 0.0
    %v3728 = vmax.f32 %v3682, 0.0
    %v3729 = vmax.f32 %v3721, 0.0
    %v3730 = vmax.f32 %v3723, 0.0
    %v3731 = vpack.c.bf16 %v3727, %v3727
    %v3732 = vpack.c.bf16 %v3728, %v3728
    %v3733 = vpack.c.bf16 %v3729, %v3729
    %v3734 = vpack.c.bf16 %v3730, %v3730
    %v3735 = vld [vmem:[#allocation22] sm:$0xff]
    %v3736 = vld [vmem:[#allocation22 + $0x8] sm:$0xff]
    %v3737 = vld [vmem:[#allocation22 + $0x10] sm:$0xff]
    %v3738 = vld [vmem:[#allocation22 + $0x18] sm:$0xff]
    %v3739 = vld [vmem:[#allocation22 + $0x20] sm:$0xff]
    %v3740 = vld [vmem:[#allocation22 + $0x28] sm:$0xff]
    %v3741 = vld [vmem:[#allocation22 + $0x30] sm:$0xff]
    %v3742 = vld [vmem:[#allocation22 + $0x38] sm:$0xff]
    %v3743 = vld [vmem:[#allocation22 + $0x40] sm:$0xff]
    %v3744 = vld [vmem:[#allocation22 + $0x48] sm:$0xff]
    %v3745 = vld [vmem:[#allocation22 + $0x50] sm:$0xff]
    %v3746 = vld [vmem:[#allocation22 + $0x58] sm:$0xff]
    %v3747 = vld [vmem:[#allocation22 + $0x60] sm:$0xff]
    %v3748 = vld [vmem:[#allocation22 + $0x68] sm:$0xff]
    %v3749 = vld [vmem:[#allocation22 + $0x70] sm:$0xff]
    %v3750 = vld [vmem:[#allocation22 + $0x78] sm:$0xff]
    %v3751 = vld [vmem:[#allocation22 + $0x80] sm:$0xff]
    %v3752 = vld [vmem:[#allocation22 + $0x88] sm:$0xff]
    %v3753 = vld [vmem:[#allocation22 + $0x90] sm:$0xff]
    %v3754 = vld [vmem:[#allocation22 + $0x98] sm:$0xff]
    %v3755 = vld [vmem:[#allocation22 + $0xa0] sm:$0xff]
    %v3756 = vld [vmem:[#allocation22 + $0xa8] sm:$0xff]
    %v3757 = vld [vmem:[#allocation22 + $0xb0] sm:$0xff]
    %v3758 = vld [vmem:[#allocation22 + $0xb8] sm:$0xff]
    %v3759 = vld [vmem:[#allocation22 + $0xc0] sm:$0xff]
    %v3760 = vld [vmem:[#allocation22 + $0xc8] sm:$0xff]
    %v3761 = vld [vmem:[#allocation22 + $0xd0] sm:$0xff]
    %v3762 = vld [vmem:[#allocation22 + $0xd8] sm:$0xff]
    %v3763 = vld [vmem:[#allocation22 + $0xe0] sm:$0xff]
    %v3764 = vld [vmem:[#allocation22 + $0xe8] sm:$0xff]
    %v3765 = vld [vmem:[#allocation22 + $0xf0] sm:$0xff]
    %v3766 = vld [vmem:[#allocation22 + $0xf8] sm:$0xff]
    %v3767 = vld [vmem:[#allocation22 + $0x100] sm:$0xff]
    %v3768 = vld [vmem:[#allocation22 + $0x108] sm:$0xff]
    %v3769 = vld [vmem:[#allocation22 + $0x110] sm:$0xff]
    %v3770 = vld [vmem:[#allocation22 + $0x118] sm:$0xff]
    %v3771 = vld [vmem:[#allocation22 + $0x120] sm:$0xff]
    %v3772 = vld [vmem:[#allocation22 + $0x128] sm:$0xff]
    %v3773 = vld [vmem:[#allocation22 + $0x130] sm:$0xff]
    %v3774 = vld [vmem:[#allocation22 + $0x138] sm:$0xff]
    %v3775 = vld [vmem:[#allocation22 + $0x140] sm:$0xff]
    %v3776 = vld [vmem:[#allocation22 + $0x148] sm:$0xff]
    %v3777 = vld [vmem:[#allocation22 + $0x150] sm:$0xff]
    %v3778 = vld [vmem:[#allocation22 + $0x158] sm:$0xff]
    %v3779 = vld [vmem:[#allocation22 + $0x160] sm:$0xff]
    %v3780 = vld [vmem:[#allocation22 + $0x168] sm:$0xff]
    %v3781 = vld [vmem:[#allocation22 + $0x170] sm:$0xff]
    %v3782 = vld [vmem:[#allocation22 + $0x178] sm:$0xff]
    %v3783 = vld [vmem:[#allocation22 + $0x180] sm:$0xff]
    %v3784 = vld [vmem:[#allocation22 + $0x188] sm:$0xff]
    %v3785 = vld [vmem:[#allocation22 + $0x190] sm:$0xff]
    %v3786 = vld [vmem:[#allocation22 + $0x198] sm:$0xff]
    %v3787 = vld [vmem:[#allocation22 + $0x1a0] sm:$0xff]
    %v3788 = vld [vmem:[#allocation22 + $0x1a8] sm:$0xff]
    %v3789 = vld [vmem:[#allocation22 + $0x1b0] sm:$0xff]
    %v3790 = vld [vmem:[#allocation22 + $0x1b8] sm:$0xff]
    %v3791 = vld [vmem:[#allocation22 + $0x1c0] sm:$0xff]
    %v3792 = vld [vmem:[#allocation22 + $0x1c8] sm:$0xff]
    %v3793 = vld [vmem:[#allocation22 + $0x1d0] sm:$0xff]
    %v3794 = vld [vmem:[#allocation22 + $0x1d8] sm:$0xff]
    %v3795 = vld [vmem:[#allocation22 + $0x1e0] sm:$0xff]
    %v3796 = vld [vmem:[#allocation22 + $0x1e8] sm:$0xff]
    %v3797 = vld [vmem:[#allocation22 + $0x1f0] sm:$0xff]
    %v3798 = vld [vmem:[#allocation22 + $0x1f8] sm:$0xff]
    %v3799 = vld [vmem:[#allocation22 + $0x200] sm:$0xff]
    %v3800 = vld [vmem:[#allocation22 + $0x208] sm:$0xff]
    %v3801 = vld [vmem:[#allocation22 + $0x210] sm:$0xff]
    %v3802 = vld [vmem:[#allocation22 + $0x218] sm:$0xff]
    %v3803 = vld [vmem:[#allocation22 + $0x220] sm:$0xff]
    %v3804 = vld [vmem:[#allocation22 + $0x228] sm:$0xff]
    %v3805 = vld [vmem:[#allocation22 + $0x230] sm:$0xff]
    %v3806 = vld [vmem:[#allocation22 + $0x238] sm:$0xff]
    %v3807 = vld [vmem:[#allocation22 + $0x240] sm:$0xff]
    %v3808 = vld [vmem:[#allocation22 + $0x248] sm:$0xff]
    %v3809 = vld [vmem:[#allocation22 + $0x250] sm:$0xff]
    %v3810 = vld [vmem:[#allocation22 + $0x258] sm:$0xff]
    %v3811 = vld [vmem:[#allocation22 + $0x260] sm:$0xff]
    %v3812 = vld [vmem:[#allocation22 + $0x268] sm:$0xff]
    %v3813 = vld [vmem:[#allocation22 + $0x270] sm:$0xff]
    %v3814 = vld [vmem:[#allocation22 + $0x278] sm:$0xff]
    %v3815 = vld [vmem:[#allocation22 + $0x280] sm:$0xff]
    %v3816 = vld [vmem:[#allocation22 + $0x288] sm:$0xff]
    %v3817 = vld [vmem:[#allocation22 + $0x290] sm:$0xff]
    %v3818 = vld [vmem:[#allocation22 + $0x298] sm:$0xff]
    %v3819 = vld [vmem:[#allocation22 + $0x2a0] sm:$0xff]
    %v3820 = vld [vmem:[#allocation22 + $0x2a8] sm:$0xff]
    %v3821 = vld [vmem:[#allocation22 + $0x2b0] sm:$0xff]
    %v3822 = vld [vmem:[#allocation22 + $0x2b8] sm:$0xff]
    %v3823 = vld [vmem:[#allocation22 + $0x2c0] sm:$0xff]
    %v3824 = vld [vmem:[#allocation22 + $0x2c8] sm:$0xff]
    %v3825 = vld [vmem:[#allocation22 + $0x2d0] sm:$0xff]
    %v3826 = vld [vmem:[#allocation22 + $0x2d8] sm:$0xff]
    %v3827 = vld [vmem:[#allocation22 + $0x2e0] sm:$0xff]
    %v3828 = vld [vmem:[#allocation22 + $0x2e8] sm:$0xff]
    %v3829 = vld [vmem:[#allocation22 + $0x2f0] sm:$0xff]
    %v3830 = vld [vmem:[#allocation22 + $0x2f8] sm:$0xff]
    %v3831 = vld [vmem:[#allocation22 + $0x300] sm:$0xff]
    %v3832 = vld [vmem:[#allocation22 + $0x308] sm:$0xff]
    %v3833 = vld [vmem:[#allocation22 + $0x310] sm:$0xff]
    %v3834 = vld [vmem:[#allocation22 + $0x318] sm:$0xff]
    %v3835 = vld [vmem:[#allocation22 + $0x320] sm:$0xff]
    %v3836 = vld [vmem:[#allocation22 + $0x328] sm:$0xff]
    %v3837 = vld [vmem:[#allocation22 + $0x330] sm:$0xff]
    %v3838 = vld [vmem:[#allocation22 + $0x338] sm:$0xff]
    %v3839 = vld [vmem:[#allocation22 + $0x340] sm:$0xff]
    %v3840 = vld [vmem:[#allocation22 + $0x348] sm:$0xff]
    %v3841 = vld [vmem:[#allocation22 + $0x350] sm:$0xff]
    %v3842 = vld [vmem:[#allocation22 + $0x358] sm:$0xff]
    %v3843 = vld [vmem:[#allocation22 + $0x360] sm:$0xff]
    %v3844 = vld [vmem:[#allocation22 + $0x368] sm:$0xff]
    %v3845 = vld [vmem:[#allocation22 + $0x370] sm:$0xff]
    %v3846 = vld [vmem:[#allocation22 + $0x378] sm:$0xff]
    %v3847 = vld [vmem:[#allocation22 + $0x380] sm:$0xff]
    %v3848 = vld [vmem:[#allocation22 + $0x388] sm:$0xff]
    %v3849 = vld [vmem:[#allocation22 + $0x390] sm:$0xff]
    %v3850 = vld [vmem:[#allocation22 + $0x398] sm:$0xff]
    %v3851 = vld [vmem:[#allocation22 + $0x3a0] sm:$0xff]
    %v3852 = vld [vmem:[#allocation22 + $0x3a8] sm:$0xff]
    %v3853 = vld [vmem:[#allocation22 + $0x3b0] sm:$0xff]
    %v3854 = vld [vmem:[#allocation22 + $0x3b8] sm:$0xff]
    %v3855 = vld [vmem:[#allocation22 + $0x3c0] sm:$0xff]
    %v3856 = vld [vmem:[#allocation22 + $0x3c8] sm:$0xff]
    %v3857 = vld [vmem:[#allocation22 + $0x3d0] sm:$0xff]
    %v3858 = vld [vmem:[#allocation22 + $0x3d8] sm:$0xff]
    %v3859 = vld [vmem:[#allocation22 + $0x3e0] sm:$0xff]
    %v3860 = vld [vmem:[#allocation22 + $0x3e8] sm:$0xff]
    %v3861 = vld [vmem:[#allocation22 + $0x3f0] sm:$0xff]
    %v3862 = vld [vmem:[#allocation22 + $0x3f8] sm:$0xff]
    %v3863 = vld [vmem:[#allocation22 + $0x400] sm:$0xff]
    %v3864 = vld [vmem:[#allocation22 + $0x408] sm:$0xff]
    %v3865 = vld [vmem:[#allocation22 + $0x410] sm:$0xff]
    %v3866 = vld [vmem:[#allocation22 + $0x418] sm:$0xff]
    %v3867 = vld [vmem:[#allocation22 + $0x420] sm:$0xff]
    %v3868 = vld [vmem:[#allocation22 + $0x428] sm:$0xff]
    %v3869 = vld [vmem:[#allocation22 + $0x430] sm:$0xff]
    %v3870 = vld [vmem:[#allocation22 + $0x438] sm:$0xff]
    %v3871 = vld [vmem:[#allocation22 + $0x440] sm:$0xff]
    %v3872 = vld [vmem:[#allocation22 + $0x448] sm:$0xff]
    %v3873 = vld [vmem:[#allocation22 + $0x450] sm:$0xff]
    %v3874 = vld [vmem:[#allocation22 + $0x458] sm:$0xff]
    %v3875 = vld [vmem:[#allocation22 + $0x460] sm:$0xff]
    %v3876 = vld [vmem:[#allocation22 + $0x468] sm:$0xff]
    %v3877 = vld [vmem:[#allocation22 + $0x470] sm:$0xff]
    %v3878 = vld [vmem:[#allocation22 + $0x478] sm:$0xff]
    %v3879 = vld [vmem:[#allocation22 + $0x480] sm:$0xff]
    %v3880 = vld [vmem:[#allocation22 + $0x488] sm:$0xff]
    %v3881 = vld [vmem:[#allocation22 + $0x490] sm:$0xff]
    %v3882 = vld [vmem:[#allocation22 + $0x498] sm:$0xff]
    %v3883 = vld [vmem:[#allocation22 + $0x4a0] sm:$0xff]
    %v3884 = vld [vmem:[#allocation22 + $0x4a8] sm:$0xff]
    %v3885 = vld [vmem:[#allocation22 + $0x4b0] sm:$0xff]
    %v3886 = vld [vmem:[#allocation22 + $0x4b8] sm:$0xff]
    %v3887 = vld [vmem:[#allocation22 + $0x4c0] sm:$0xff]
    %v3888 = vld [vmem:[#allocation22 + $0x4c8] sm:$0xff]
    %v3889 = vld [vmem:[#allocation22 + $0x4d0] sm:$0xff]
    %v3890 = vld [vmem:[#allocation22 + $0x4d8] sm:$0xff]
    %v3891 = vld [vmem:[#allocation22 + $0x4e0] sm:$0xff]
    %v3892 = vld [vmem:[#allocation22 + $0x4e8] sm:$0xff]
    %v3893 = vld [vmem:[#allocation22 + $0x4f0] sm:$0xff]
    %v3894 = vld [vmem:[#allocation22 + $0x4f8] sm:$0xff]
    %v3895 = vld [vmem:[#allocation22 + $0x500] sm:$0xff]
    %v3896 = vld [vmem:[#allocation22 + $0x508] sm:$0xff]
    %v3897 = vld [vmem:[#allocation22 + $0x510] sm:$0xff]
    %v3898 = vld [vmem:[#allocation22 + $0x518] sm:$0xff]
    %v3899 = vld [vmem:[#allocation22 + $0x520] sm:$0xff]
    %v3900 = vld [vmem:[#allocation22 + $0x528] sm:$0xff]
    %v3901 = vld [vmem:[#allocation22 + $0x530] sm:$0xff]
    %v3902 = vld [vmem:[#allocation22 + $0x538] sm:$0xff]
    %v3903 = vld [vmem:[#allocation22 + $0x540] sm:$0xff]
    %v3904 = vld [vmem:[#allocation22 + $0x548] sm:$0xff]
    %v3905 = vld [vmem:[#allocation22 + $0x550] sm:$0xff]
    %v3906 = vld [vmem:[#allocation22 + $0x558] sm:$0xff]
    %v3907 = vld [vmem:[#allocation22 + $0x560] sm:$0xff]
    %v3908 = vld [vmem:[#allocation22 + $0x568] sm:$0xff]
    %v3909 = vld [vmem:[#allocation22 + $0x570] sm:$0xff]
    %v3910 = vld [vmem:[#allocation22 + $0x578] sm:$0xff]
    %v3911 = vld [vmem:[#allocation22 + $0x580] sm:$0xff]
    %v3912 = vld [vmem:[#allocation22 + $0x588] sm:$0xff]
    %v3913 = vld [vmem:[#allocation22 + $0x590] sm:$0xff]
    %v3914 = vld [vmem:[#allocation22 + $0x598] sm:$0xff]
    %v3915 = vld [vmem:[#allocation22 + $0x5a0] sm:$0xff]
    %v3916 = vld [vmem:[#allocation22 + $0x5a8] sm:$0xff]
    %v3917 = vld [vmem:[#allocation22 + $0x5b0] sm:$0xff]
    %v3918 = vld [vmem:[#allocation22 + $0x5b8] sm:$0xff]
    %v3919 = vld [vmem:[#allocation22 + $0x5c0] sm:$0xff]
    %v3920 = vld [vmem:[#allocation22 + $0x5c8] sm:$0xff]
    %v3921 = vld [vmem:[#allocation22 + $0x5d0] sm:$0xff]
    %v3922 = vld [vmem:[#allocation22 + $0x5d8] sm:$0xff]
    %v3923 = vld [vmem:[#allocation22 + $0x5e0] sm:$0xff]
    %v3924 = vld [vmem:[#allocation22 + $0x5e8] sm:$0xff]
    %v3925 = vld [vmem:[#allocation22 + $0x5f0] sm:$0xff]
    %v3926 = vld [vmem:[#allocation22 + $0x5f8] sm:$0xff]
    %v3927 = vld [vmem:[#allocation22 + $0x600] sm:$0xff]
    %v3928 = vld [vmem:[#allocation22 + $0x608] sm:$0xff]
    %v3929 = vld [vmem:[#allocation22 + $0x610] sm:$0xff]
    %v3930 = vld [vmem:[#allocation22 + $0x618] sm:$0xff]
    %v3931 = vld [vmem:[#allocation22 + $0x620] sm:$0xff]
    %v3932 = vld [vmem:[#allocation22 + $0x628] sm:$0xff]
    %v3933 = vld [vmem:[#allocation22 + $0x630] sm:$0xff]
    %v3934 = vld [vmem:[#allocation22 + $0x638] sm:$0xff]
    %v3935 = vld [vmem:[#allocation22 + $0x640] sm:$0xff]
    %v3936 = vld [vmem:[#allocation22 + $0x648] sm:$0xff]
    %v3937 = vld [vmem:[#allocation22 + $0x650] sm:$0xff]
    %v3938 = vld [vmem:[#allocation22 + $0x658] sm:$0xff]
    %v3939 = vld [vmem:[#allocation22 + $0x660] sm:$0xff]
    %v3940 = vld [vmem:[#allocation22 + $0x668] sm:$0xff]
    %v3941 = vld [vmem:[#allocation22 + $0x670] sm:$0xff]
    %v3942 = vld [vmem:[#allocation22 + $0x678] sm:$0xff]
    %v3943 = vld [vmem:[#allocation22 + $0x680] sm:$0xff]
    %v3944 = vld [vmem:[#allocation22 + $0x688] sm:$0xff]
    %v3945 = vld [vmem:[#allocation22 + $0x690] sm:$0xff]
    %v3946 = vld [vmem:[#allocation22 + $0x698] sm:$0xff]
    %v3947 = vld [vmem:[#allocation22 + $0x6a0] sm:$0xff]
    %v3948 = vld [vmem:[#allocation22 + $0x6a8] sm:$0xff]
    %v3949 = vld [vmem:[#allocation22 + $0x6b0] sm:$0xff]
    %v3950 = vld [vmem:[#allocation22 + $0x6b8] sm:$0xff]
    %v3951 = vld [vmem:[#allocation22 + $0x6c0] sm:$0xff]
    %v3952 = vld [vmem:[#allocation22 + $0x6c8] sm:$0xff]
    %v3953 = vld [vmem:[#allocation22 + $0x6d0] sm:$0xff]
    %v3954 = vld [vmem:[#allocation22 + $0x6d8] sm:$0xff]
    %v3955 = vld [vmem:[#allocation22 + $0x6e0] sm:$0xff]
    %v3956 = vld [vmem:[#allocation22 + $0x6e8] sm:$0xff]
    %v3957 = vld [vmem:[#allocation22 + $0x6f0] sm:$0xff]
    %v3958 = vld [vmem:[#allocation22 + $0x6f8] sm:$0xff]
    %v3959 = vld [vmem:[#allocation22 + $0x700] sm:$0xff]
    %v3960 = vld [vmem:[#allocation22 + $0x708] sm:$0xff]
    %v3961 = vld [vmem:[#allocation22 + $0x710] sm:$0xff]
    %v3962 = vld [vmem:[#allocation22 + $0x718] sm:$0xff]
    %v3963 = vld [vmem:[#allocation22 + $0x720] sm:$0xff]
    %v3964 = vld [vmem:[#allocation22 + $0x728] sm:$0xff]
    %v3965 = vld [vmem:[#allocation22 + $0x730] sm:$0xff]
    %v3966 = vld [vmem:[#allocation22 + $0x738] sm:$0xff]
    %v3967 = vld [vmem:[#allocation22 + $0x740] sm:$0xff]
    %v3968 = vld [vmem:[#allocation22 + $0x748] sm:$0xff]
    %v3969 = vld [vmem:[#allocation22 + $0x750] sm:$0xff]
    %v3970 = vld [vmem:[#allocation22 + $0x758] sm:$0xff]
    %v3971 = vld [vmem:[#allocation22 + $0x760] sm:$0xff]
    %v3972 = vld [vmem:[#allocation22 + $0x768] sm:$0xff]
    %v3973 = vld [vmem:[#allocation22 + $0x770] sm:$0xff]
    %v3974 = vld [vmem:[#allocation22 + $0x778] sm:$0xff]
    %v3975 = vld [vmem:[#allocation22 + $0x780] sm:$0xff]
    %v3976 = vld [vmem:[#allocation22 + $0x788] sm:$0xff]
    %v3977 = vld [vmem:[#allocation22 + $0x790] sm:$0xff]
    %v3978 = vld [vmem:[#allocation22 + $0x798] sm:$0xff]
    %v3979 = vld [vmem:[#allocation22 + $0x7a0] sm:$0xff]
    %v3980 = vld [vmem:[#allocation22 + $0x7a8] sm:$0xff]
    %v3981 = vld [vmem:[#allocation22 + $0x7b0] sm:$0xff]
    %v3982 = vld [vmem:[#allocation22 + $0x7b8] sm:$0xff]
    %v3983 = vld [vmem:[#allocation22 + $0x7c0] sm:$0xff]
    %v3984 = vld [vmem:[#allocation22 + $0x7c8] sm:$0xff]
    %v3985 = vld [vmem:[#allocation22 + $0x7d0] sm:$0xff]
    %v3986 = vld [vmem:[#allocation22 + $0x7d8] sm:$0xff]
    %v3987 = vld [vmem:[#allocation22 + $0x7e0] sm:$0xff]
    %v3988 = vld [vmem:[#allocation22 + $0x7e8] sm:$0xff]
    %v3989 = vld [vmem:[#allocation22 + $0x7f0] sm:$0xff]
    %v3990 = vld [vmem:[#allocation22 + $0x7f8] sm:$0xff]
    %v3991 = vld [vmem:[%s17] sm:$0xff]
    %v3993 = vlaneseq
    %v3994 = vshrl.u32 %v3993, 7
    %v3995 = vsub.s32 0, %v3994
    %v3996 = vrot.slane %v3991, %v3995
    %v3997 = vlaneseq
    %v3998 = vshrl.u32 %v3997, 7
    %v3999 = vsub.s32 1, %v3998
    %v4000 = vrot.slane %v3991, %v3999
    %v4001 = vlaneseq
    %v4002 = vshrl.u32 %v4001, 7
    %v4003 = vsub.s32 2, %v4002
    %v4004 = vrot.slane %v3991, %v4003
    %v4005 = vlaneseq
    %v4006 = vshrl.u32 %v4005, 7
    %v4007 = vsub.s32 3, %v4006
    %v4008 = vrot.slane %v3991, %v4007
    %v4009 = vlaneseq
    %v4010 = vshrl.u32 %v4009, 7
    %v4011 = vsub.s32 4, %v4010
    %v4012 = vrot.slane %v3991, %v4011
    %v4013 = vlaneseq
    %v4014 = vshrl.u32 %v4013, 7
    %v4015 = vsub.s32 5, %v4014
    %v4016 = vrot.slane %v3991, %v4015
    %v4017 = vlaneseq
    %v4018 = vshrl.u32 %v4017, 7
    %v4019 = vsub.s32 6, %v4018
    %v4020 = vrot.slane %v3991, %v4019
    %v4021 = vlaneseq
    %v4022 = vshrl.u32 %v4021, 7
    %v4023 = vsub.s32 7, %v4022
    %v4024 = vrot.slane %v3991, %v4023
    %v4289 = vunpack.c.l.b16 %v3735
    %v4290 = vunpack.c.h.b16 %v3735
    %v4291 = vunpack.c.l.b16 %v3736
    %v4292 = vunpack.c.h.b16 %v3736
    %v4293 = vunpack.c.l.b16 %v3737
    %v4294 = vunpack.c.h.b16 %v3737
    %v4295 = vunpack.c.l.b16 %v3738
    %v4296 = vunpack.c.h.b16 %v3738
    %v4297 = vunpack.c.l.b16 %v3739
    %v4298 = vunpack.c.h.b16 %v3739
    %v4299 = vunpack.c.l.b16 %v3740
    %v4300 = vunpack.c.h.b16 %v3740
    %v4301 = vunpack.c.l.b16 %v3741
    %v4302 = vunpack.c.h.b16 %v3741
    %v4303 = vunpack.c.l.b16 %v3742
    %v4304 = vunpack.c.h.b16 %v3742
    %v4305 = vunpack.c.l.b16 %v3743
    %v4306 = vunpack.c.h.b16 %v3743
    %v4307 = vunpack.c.l.b16 %v3744
    %v4308 = vunpack.c.h.b16 %v3744
    %v4309 = vunpack.c.l.b16 %v3745
    %v4310 = vunpack.c.h.b16 %v3745
    %v4311 = vunpack.c.l.b16 %v3746
    %v4312 = vunpack.c.h.b16 %v3746
    %v4313 = vunpack.c.l.b16 %v3747
    %v4314 = vunpack.c.h.b16 %v3747
    %v4315 = vunpack.c.l.b16 %v3748
    %v4316 = vunpack.c.h.b16 %v3748
    %v4317 = vunpack.c.l.b16 %v3749
    %v4318 = vunpack.c.h.b16 %v3749
    %v4319 = vunpack.c.l.b16 %v3750
    %v4320 = vunpack.c.h.b16 %v3750
    %v4321 = vunpack.c.l.b16 %v3751
    %v4322 = vunpack.c.h.b16 %v3751
    %v4323 = vunpack.c.l.b16 %v3752
    %v4324 = vunpack.c.h.b16 %v3752
    %v4325 = vunpack.c.l.b16 %v3753
    %v4326 = vunpack.c.h.b16 %v3753
    %v4327 = vunpack.c.l.b16 %v3754
    %v4328 = vunpack.c.h.b16 %v3754
    %v4329 = vunpack.c.l.b16 %v3755
    %v4330 = vunpack.c.h.b16 %v3755
    %v4331 = vunpack.c.l.b16 %v3756
    %v4332 = vunpack.c.h.b16 %v3756
    %v4333 = vunpack.c.l.b16 %v3757
    %v4334 = vunpack.c.h.b16 %v3757
    %v4335 = vunpack.c.l.b16 %v3758
    %v4336 = vunpack.c.h.b16 %v3758
    %v4337 = vunpack.c.l.b16 %v3759
    %v4338 = vunpack.c.h.b16 %v3759
    %v4339 = vunpack.c.l.b16 %v3760
    %v4340 = vunpack.c.h.b16 %v3760
    %v4341 = vunpack.c.l.b16 %v3761
    %v4342 = vunpack.c.h.b16 %v3761
    %v4343 = vunpack.c.l.b16 %v3762
    %v4344 = vunpack.c.h.b16 %v3762
    %v4345 = vunpack.c.l.b16 %v3763
    %v4346 = vunpack.c.h.b16 %v3763
    %v4347 = vunpack.c.l.b16 %v3764
    %v4348 = vunpack.c.h.b16 %v3764
    %v4349 = vunpack.c.l.b16 %v3765
    %v4350 = vunpack.c.h.b16 %v3765
    %v4351 = vunpack.c.l.b16 %v3766
    %v4352 = vunpack.c.h.b16 %v3766
    %v4353 = vunpack.c.l.b16 %v3767
    %v4354 = vunpack.c.h.b16 %v3767
    %v4355 = vunpack.c.l.b16 %v3768
    %v4356 = vunpack.c.h.b16 %v3768
    %v4357 = vunpack.c.l.b16 %v3769
    %v4358 = vunpack.c.h.b16 %v3769
    %v4359 = vunpack.c.l.b16 %v3770
    %v4360 = vunpack.c.h.b16 %v3770
    %v4361 = vunpack.c.l.b16 %v3771
    %v4362 = vunpack.c.h.b16 %v3771
    %v4363 = vunpack.c.l.b16 %v3772
    %v4364 = vunpack.c.h.b16 %v3772
    %v4365 = vunpack.c.l.b16 %v3773
    %v4366 = vunpack.c.h.b16 %v3773
    %v4367 = vunpack.c.l.b16 %v3774
    %v4368 = vunpack.c.h.b16 %v3774
    %v4369 = vunpack.c.l.b16 %v3775
    %v4370 = vunpack.c.h.b16 %v3775
    %v4371 = vunpack.c.l.b16 %v3776
    %v4372 = vunpack.c.h.b16 %v3776
    %v4373 = vunpack.c.l.b16 %v3777
    %v4374 = vunpack.c.h.b16 %v3777
    %v4375 = vunpack.c.l.b16 %v3778
    %v4376 = vunpack.c.h.b16 %v3778
    %v4377 = vunpack.c.l.b16 %v3779
    %v4378 = vunpack.c.h.b16 %v3779
    %v4379 = vunpack.c.l.b16 %v3780
    %v4380 = vunpack.c.h.b16 %v3780
    %v4381 = vunpack.c.l.b16 %v3781
    %v4382 = vunpack.c.h.b16 %v3781
    %v4383 = vunpack.c.l.b16 %v3782
    %v4384 = vunpack.c.h.b16 %v3782
    %v4385 = vunpack.c.l.b16 %v3783
    %v4386 = vunpack.c.h.b16 %v3783
    %v4387 = vunpack.c.l.b16 %v3784
    %v4388 = vunpack.c.h.b16 %v3784
    %v4389 = vunpack.c.l.b16 %v3785
    %v4390 = vunpack.c.h.b16 %v3785
    %v4391 = vunpack.c.l.b16 %v3786
    %v4392 = vunpack.c.h.b16 %v3786
    %v4393 = vunpack.c.l.b16 %v3787
    %v4394 = vunpack.c.h.b16 %v3787
    %v4395 = vunpack.c.l.b16 %v3788
    %v4396 = vunpack.c.h.b16 %v3788
    %v4397 = vunpack.c.l.b16 %v3789
    %v4398 = vunpack.c.h.b16 %v3789
    %v4399 = vunpack.c.l.b16 %v3790
    %v4400 = vunpack.c.h.b16 %v3790
    %v4401 = vunpack.c.l.b16 %v3791
    %v4402 = vunpack.c.h.b16 %v3791
    %v4403 = vunpack.c.l.b16 %v3792
    %v4404 = vunpack.c.h.b16 %v3792
    %v4405 = vunpack.c.l.b16 %v3793
    %v4406 = vunpack.c.h.b16 %v3793
    %v4407 = vunpack.c.l.b16 %v3794
    %v4408 = vunpack.c.h.b16 %v3794
    %v4409 = vunpack.c.l.b16 %v3795
    %v4410 = vunpack.c.h.b16 %v3795
    %v4411 = vunpack.c.l.b16 %v3796
    %v4412 = vunpack.c.h.b16 %v3796
    %v4413 = vunpack.c.l.b16 %v3797
    %v4414 = vunpack.c.h.b16 %v3797
    %v4415 = vunpack.c.l.b16 %v3798
    %v4416 = vunpack.c.h.b16 %v3798
    %v4417 = vunpack.c.l.b16 %v3799
    %v4418 = vunpack.c.h.b16 %v3799
    %v4419 = vunpack.c.l.b16 %v3800
    %v4420 = vunpack.c.h.b16 %v3800
    %v4421 = vunpack.c.l.b16 %v3801
    %v4422 = vunpack.c.h.b16 %v3801
    %v4423 = vunpack.c.l.b16 %v3802
    %v4424 = vunpack.c.h.b16 %v3802
    %v4425 = vunpack.c.l.b16 %v3803
    %v4426 = vunpack.c.h.b16 %v3803
    %v4427 = vunpack.c.l.b16 %v3804
    %v4428 = vunpack.c.h.b16 %v3804
    %v4429 = vunpack.c.l.b16 %v3805
    %v4430 = vunpack.c.h.b16 %v3805
    %v4431 = vunpack.c.l.b16 %v3806
    %v4432 = vunpack.c.h.b16 %v3806
    %v4433 = vunpack.c.l.b16 %v3807
    %v4434 = vunpack.c.h.b16 %v3807
    %v4435 = vunpack.c.l.b16 %v3808
    %v4436 = vunpack.c.h.b16 %v3808
    %v4437 = vunpack.c.l.b16 %v3809
    %v4438 = vunpack.c.h.b16 %v3809
    %v4439 = vunpack.c.l.b16 %v3810
    %v4440 = vunpack.c.h.b16 %v3810
    %v4441 = vunpack.c.l.b16 %v3811
    %v4442 = vunpack.c.h.b16 %v3811
    %v4443 = vunpack.c.l.b16 %v3812
    %v4444 = vunpack.c.h.b16 %v3812
    %v4445 = vunpack.c.l.b16 %v3813
    %v4446 = vunpack.c.h.b16 %v3813
    %v4447 = vunpack.c.l.b16 %v3814
    %v4448 = vunpack.c.h.b16 %v3814
    %v4449 = vunpack.c.l.b16 %v3815
    %v4450 = vunpack.c.h.b16 %v3815
    %v4451 = vunpack.c.l.b16 %v3816
    %v4452 = vunpack.c.h.b16 %v3816
    %v4453 = vunpack.c.l.b16 %v3817
    %v4454 = vunpack.c.h.b16 %v3817
    %v4455 = vunpack.c.l.b16 %v3818
    %v4456 = vunpack.c.h.b16 %v3818
    %v4457 = vunpack.c.l.b16 %v3819
    %v4458 = vunpack.c.h.b16 %v3819
    %v4459 = vunpack.c.l.b16 %v3820
    %v4460 = vunpack.c.h.b16 %v3820
    %v4461 = vunpack.c.l.b16 %v3821
    %v4462 = vunpack.c.h.b16 %v3821
    %v4463 = vunpack.c.l.b16 %v3822
    %v4464 = vunpack.c.h.b16 %v3822
    %v4465 = vunpack.c.l.b16 %v3823
    %v4466 = vunpack.c.h.b16 %v3823
    %v4467 = vunpack.c.l.b16 %v3824
    %v4468 = vunpack.c.h.b16 %v3824
    %v4469 = vunpack.c.l.b16 %v3825
    %v4470 = vunpack.c.h.b16 %v3825
    %v4471 = vunpack.c.l.b16 %v3826
    %v4472 = vunpack.c.h.b16 %v3826
    %v4473 = vunpack.c.l.b16 %v3827
    %v4474 = vunpack.c.h.b16 %v3827
    %v4475 = vunpack.c.l.b16 %v3828
    %v4476 = vunpack.c.h.b16 %v3828
    %v4477 = vunpack.c.l.b16 %v3829
    %v4478 = vunpack.c.h.b16 %v3829
    %v4479 = vunpack.c.l.b16 %v3830
    %v4480 = vunpack.c.h.b16 %v3830
    %v4481 = vunpack.c.l.b16 %v3831
    %v4482 = vunpack.c.h.b16 %v3831
    %v4483 = vunpack.c.l.b16 %v3832
    %v4484 = vunpack.c.h.b16 %v3832
    %v4485 = vunpack.c.l.b16 %v3833
    %v4486 = vunpack.c.h.b16 %v3833
    %v4487 = vunpack.c.l.b16 %v3834
    %v4488 = vunpack.c.h.b16 %v3834
    %v4489 = vunpack.c.l.b16 %v3835
    %v4490 = vunpack.c.h.b16 %v3835
    %v4491 = vunpack.c.l.b16 %v3836
    %v4492 = vunpack.c.h.b16 %v3836
    %v4493 = vunpack.c.l.b16 %v3837
    %v4494 = vunpack.c.h.b16 %v3837
    %v4495 = vunpack.c.l.b16 %v3838
    %v4496 = vunpack.c.h.b16 %v3838
    %v4497 = vunpack.c.l.b16 %v3839
    %v4498 = vunpack.c.h.b16 %v3839
    %v4499 = vunpack.c.l.b16 %v3840
    %v4500 = vunpack.c.h.b16 %v3840
    %v4501 = vunpack.c.l.b16 %v3841
    %v4502 = vunpack.c.h.b16 %v3841
    %v4503 = vunpack.c.l.b16 %v3842
    %v4504 = vunpack.c.h.b16 %v3842
    %v4505 = vunpack.c.l.b16 %v3843
    %v4506 = vunpack.c.h.b16 %v3843
    %v4507 = vunpack.c.l.b16 %v3844
    %v4508 = vunpack.c.h.b16 %v3844
    %v4509 = vunpack.c.l.b16 %v3845
    %v4510 = vunpack.c.h.b16 %v3845
    %v4511 = vunpack.c.l.b16 %v3846
    %v4512 = vunpack.c.h.b16 %v3846
    %v4513 = vunpack.c.l.b16 %v3847
    %v4514 = vunpack.c.h.b16 %v3847
    %v4515 = vunpack.c.l.b16 %v3848
    %v4516 = vunpack.c.h.b16 %v3848
    %v4517 = vunpack.c.l.b16 %v3849
    %v4518 = vunpack.c.h.b16 %v3849
    %v4519 = vunpack.c.l.b16 %v3850
    %v4520 = vunpack.c.h.b16 %v3850
    %v4521 = vunpack.c.l.b16 %v3851
    %v4522 = vunpack.c.h.b16 %v3851
    %v4523 = vunpack.c.l.b16 %v3852
    %v4524 = vunpack.c.h.b16 %v3852
    %v4525 = vunpack.c.l.b16 %v3853
    %v4526 = vunpack.c.h.b16 %v3853
    %v4527 = vunpack.c.l.b16 %v3854
    %v4528 = vunpack.c.h.b16 %v3854
    %v4529 = vunpack.c.l.b16 %v3855
    %v4530 = vunpack.c.h.b16 %v3855
    %v4531 = vunpack.c.l.b16 %v3856
    %v4532 = vunpack.c.h.b16 %v3856
    %v4533 = vunpack.c.l.b16 %v3857
    %v4534 = vunpack.c.h.b16 %v3857
    %v4535 = vunpack.c.l.b16 %v3858
    %v4536 = vunpack.c.h.b16 %v3858
    %v4537 = vunpack.c.l.b16 %v3859
    %v4538 = vunpack.c.h.b16 %v3859
    %v4539 = vunpack.c.l.b16 %v3860
    %v4540 = vunpack.c.h.b16 %v3860
    %v4541 = vunpack.c.l.b16 %v3861
    %v4542 = vunpack.c.h.b16 %v3861
    %v4543 = vunpack.c.l.b16 %v3862
    %v4544 = vunpack.c.h.b16 %v3862
    %v4545 = vunpack.c.l.b16 %v3863
    %v4546 = vunpack.c.h.b16 %v3863
    %v4547 = vunpack.c.l.b16 %v3864
    %v4548 = vunpack.c.h.b16 %v3864
    %v4549 = vunpack.c.l.b16 %v3865
    %v4550 = vunpack.c.h.b16 %v3865
    %v4551 = vunpack.c.l.b16 %v3866
    %v4552 = vunpack.c.h.b16 %v3866
    %v4553 = vunpack.c.l.b16 %v3867
    %v4554 = vunpack.c.h.b16 %v3867
    %v4555 = vunpack.c.l.b16 %v3868
    %v4556 = vunpack.c.h.b16 %v3868
    %v4557 = vunpack.c.l.b16 %v3869
    %v4558 = vunpack.c.h.b16 %v3869
    %v4559 = vunpack.c.l.b16 %v3870
    %v4560 = vunpack.c.h.b16 %v3870
    %v4561 = vunpack.c.l.b16 %v3871
    %v4562 = vunpack.c.h.b16 %v3871
    %v4563 = vunpack.c.l.b16 %v3872
    %v4564 = vunpack.c.h.b16 %v3872
    %v4565 = vunpack.c.l.b16 %v3873
    %v4566 = vunpack.c.h.b16 %v3873
    %v4567 = vunpack.c.l.b16 %v3874
    %v4568 = vunpack.c.h.b16 %v3874
    %v4569 = vunpack.c.l.b16 %v3875
    %v4570 = vunpack.c.h.b16 %v3875
    %v4571 = vunpack.c.l.b16 %v3876
    %v4572 = vunpack.c.h.b16 %v3876
    %v4573 = vunpack.c.l.b16 %v3877
    %v4574 = vunpack.c.h.b16 %v3877
    %v4575 = vunpack.c.l.b16 %v3878
    %v4576 = vunpack.c.h.b16 %v3878
    %v4577 = vunpack.c.l.b16 %v3879
    %v4578 = vunpack.c.h.b16 %v3879
    %v4579 = vunpack.c.l.b16 %v3880
    %v4580 = vunpack.c.h.b16 %v3880
    %v4581 = vunpack.c.l.b16 %v3881
    %v4582 = vunpack.c.h.b16 %v3881
    %v4583 = vunpack.c.l.b16 %v3882
    %v4584 = vunpack.c.h.b16 %v3882
    %v4585 = vunpack.c.l.b16 %v3883
    %v4586 = vunpack.c.h.b16 %v3883
    %v4587 = vunpack.c.l.b16 %v3884
    %v4588 = vunpack.c.h.b16 %v3884
    %v4589 = vunpack.c.l.b16 %v3885
    %v4590 = vunpack.c.h.b16 %v3885
    %v4591 = vunpack.c.l.b16 %v3886
    %v4592 = vunpack.c.h.b16 %v3886
    %v4593 = vunpack.c.l.b16 %v3887
    %v4594 = vunpack.c.h.b16 %v3887
    %v4595 = vunpack.c.l.b16 %v3888
    %v4596 = vunpack.c.h.b16 %v3888
    %v4597 = vunpack.c.l.b16 %v3889
    %v4598 = vunpack.c.h.b16 %v3889
    %v4599 = vunpack.c.l.b16 %v3890
    %v4600 = vunpack.c.h.b16 %v3890
    %v4601 = vunpack.c.l.b16 %v3891
    %v4602 = vunpack.c.h.b16 %v3891
    %v4603 = vunpack.c.l.b16 %v3892
    %v4604 = vunpack.c.h.b16 %v3892
    %v4605 = vunpack.c.l.b16 %v3893
    %v4606 = vunpack.c.h.b16 %v3893
    %v4607 = vunpack.c.l.b16 %v3894
    %v4608 = vunpack.c.h.b16 %v3894
    %v4609 = vunpack.c.l.b16 %v3895
    %v4610 = vunpack.c.h.b16 %v3895
    %v4611 = vunpack.c.l.b16 %v3896
    %v4612 = vunpack.c.h.b16 %v3896
    %v4613 = vunpack.c.l.b16 %v3897
    %v4614 = vunpack.c.h.b16 %v3897
    %v4615 = vunpack.c.l.b16 %v3898
    %v4616 = vunpack.c.h.b16 %v3898
    %v4617 = vunpack.c.l.b16 %v3899
    %v4618 = vunpack.c.h.b16 %v3899
    %v4619 = vunpack.c.l.b16 %v3900
    %v4620 = vunpack.c.h.b16 %v3900
    %v4621 = vunpack.c.l.b16 %v3901
    %v4622 = vunpack.c.h.b16 %v3901
    %v4623 = vunpack.c.l.b16 %v3902
    %v4624 = vunpack.c.h.b16 %v3902
    %v4625 = vunpack.c.l.b16 %v3903
    %v4626 = vunpack.c.h.b16 %v3903
    %v4627 = vunpack.c.l.b16 %v3904
    %v4628 = vunpack.c.h.b16 %v3904
    %v4629 = vunpack.c.l.b16 %v3905
    %v4630 = vunpack.c.h.b16 %v3905
    %v4631 = vunpack.c.l.b16 %v3906
    %v4632 = vunpack.c.h.b16 %v3906
    %v4633 = vunpack.c.l.b16 %v3907
    %v4634 = vunpack.c.h.b16 %v3907
    %v4635 = vunpack.c.l.b16 %v3908
    %v4636 = vunpack.c.h.b16 %v3908
    %v4637 = vunpack.c.l.b16 %v3909
    %v4638 = vunpack.c.h.b16 %v3909
    %v4639 = vunpack.c.l.b16 %v3910
    %v4640 = vunpack.c.h.b16 %v3910
    %v4641 = vunpack.c.l.b16 %v3911
    %v4642 = vunpack.c.h.b16 %v3911
    %v4643 = vunpack.c.l.b16 %v3912
    %v4644 = vunpack.c.h.b16 %v3912
    %v4645 = vunpack.c.l.b16 %v3913
    %v4646 = vunpack.c.h.b16 %v3913
    %v4647 = vunpack.c.l.b16 %v3914
    %v4648 = vunpack.c.h.b16 %v3914
    %v4649 = vunpack.c.l.b16 %v3915
    %v4650 = vunpack.c.h.b16 %v3915
    %v4651 = vunpack.c.l.b16 %v3916
    %v4652 = vunpack.c.h.b16 %v3916
    %v4653 = vunpack.c.l.b16 %v3917
    %v4654 = vunpack.c.h.b16 %v3917
    %v4655 = vunpack.c.l.b16 %v3918
    %v4656 = vunpack.c.h.b16 %v3918
    %v4657 = vunpack.c.l.b16 %v3919
    %v4658 = vunpack.c.h.b16 %v3919
    %v4659 = vunpack.c.l.b16 %v3920
    %v4660 = vunpack.c.h.b16 %v3920
    %v4661 = vunpack.c.l.b16 %v3921
    %v4662 = vunpack.c.h.b16 %v3921
    %v4663 = vunpack.c.l.b16 %v3922
    %v4664 = vunpack.c.h.b16 %v3922
    %v4665 = vunpack.c.l.b16 %v3923
    %v4666 = vunpack.c.h.b16 %v3923
    %v4667 = vunpack.c.l.b16 %v3924
    %v4668 = vunpack.c.h.b16 %v3924
    %v4669 = vunpack.c.l.b16 %v3925
    %v4670 = vunpack.c.h.b16 %v3925
    %v4671 = vunpack.c.l.b16 %v3926
    %v4672 = vunpack.c.h.b16 %v3926
    %v4673 = vunpack.c.l.b16 %v3927
    %v4674 = vunpack.c.h.b16 %v3927
    %v4675 = vunpack.c.l.b16 %v3928
    %v4676 = vunpack.c.h.b16 %v3928
    %v4677 = vunpack.c.l.b16 %v3929
    %v4678 = vunpack.c.h.b16 %v3929
    %v4679 = vunpack.c.l.b16 %v3930
    %v4680 = vunpack.c.h.b16 %v3930
    %v4681 = vunpack.c.l.b16 %v3931
    %v4682 = vunpack.c.h.b16 %v3931
    %v4683 = vunpack.c.l.b16 %v3932
    %v4684 = vunpack.c.h.b16 %v3932
    %v4685 = vunpack.c.l.b16 %v3933
    %v4686 = vunpack.c.h.b16 %v3933
    %v4687 = vunpack.c.l.b16 %v3934
    %v4688 = vunpack.c.h.b16 %v3934
    %v4689 = vunpack.c.l.b16 %v3935
    %v4690 = vunpack.c.h.b16 %v3935
    %v4691 = vunpack.c.l.b16 %v3936
    %v4692 = vunpack.c.h.b16 %v3936
    %v4693 = vunpack.c.l.b16 %v3937
    %v4694 = vunpack.c.h.b16 %v3937
    %v4695 = vunpack.c.l.b16 %v3938
    %v4696 = vunpack.c.h.b16 %v3938
    %v4697 = vunpack.c.l.b16 %v3939
    %v4698 = vunpack.c.h.b16 %v3939
    %v4699 = vunpack.c.l.b16 %v3940
    %v4700 = vunpack.c.h.b16 %v3940
    %v4701 = vunpack.c.l.b16 %v3941
    %v4702 = vunpack.c.h.b16 %v3941
    %v4703 = vunpack.c.l.b16 %v3942
    %v4704 = vunpack.c.h.b16 %v3942
    %v4705 = vunpack.c.l.b16 %v3943
    %v4706 = vunpack.c.h.b16 %v3943
    %v4707 = vunpack.c.l.b16 %v3944
    %v4708 = vunpack.c.h.b16 %v3944
    %v4709 = vunpack.c.l.b16 %v3945
    %v4710 = vunpack.c.h.b16 %v3945
    %v4711 = vunpack.c.l.b16 %v3946
    %v4712 = vunpack.c.h.b16 %v3946
    %v4713 = vunpack.c.l.b16 %v3947
    %v4714 = vunpack.c.h.b16 %v3947
    %v4715 = vunpack.c.l.b16 %v3948
    %v4716 = vunpack.c.h.b16 %v3948
    %v4717 = vunpack.c.l.b16 %v3949
    %v4718 = vunpack.c.h.b16 %v3949
    %v4719 = vunpack.c.l.b16 %v3950
    %v4720 = vunpack.c.h.b16 %v3950
    %v4721 = vunpack.c.l.b16 %v3951
    %v4722 = vunpack.c.h.b16 %v3951
    %v4723 = vunpack.c.l.b16 %v3952
    %v4724 = vunpack.c.h.b16 %v3952
    %v4725 = vunpack.c.l.b16 %v3953
    %v4726 = vunpack.c.h.b16 %v3953
    %v4727 = vunpack.c.l.b16 %v3954
    %v4728 = vunpack.c.h.b16 %v3954
    %v4729 = vunpack.c.l.b16 %v3955
    %v4730 = vunpack.c.h.b16 %v3955
    %v4731 = vunpack.c.l.b16 %v3956
    %v4732 = vunpack.c.h.b16 %v3956
    %v4733 = vunpack.c.l.b16 %v3957
    %v4734 = vunpack.c.h.b16 %v3957
    %v4735 = vunpack.c.l.b16 %v3958
    %v4736 = vunpack.c.h.b16 %v3958
    %v4737 = vunpack.c.l.b16 %v3959
    %v4738 = vunpack.c.h.b16 %v3959
    %v4739 = vunpack.c.l.b16 %v3960
    %v4740 = vunpack.c.h.b16 %v3960
    %v4741 = vunpack.c.l.b16 %v3961
    %v4742 = vunpack.c.h.b16 %v3961
    %v4743 = vunpack.c.l.b16 %v3962
    %v4744 = vunpack.c.h.b16 %v3962
    %v4745 = vunpack.c.l.b16 %v3963
    %v4746 = vunpack.c.h.b16 %v3963
    %v4747 = vunpack.c.l.b16 %v3964
    %v4748 = vunpack.c.h.b16 %v3964
    %v4749 = vunpack.c.l.b16 %v3965
    %v4750 = vunpack.c.h.b16 %v3965
    %v4751 = vunpack.c.l.b16 %v3966
    %v4752 = vunpack.c.h.b16 %v3966
    %v4753 = vunpack.c.l.b16 %v3967
    %v4754 = vunpack.c.h.b16 %v3967
    %v4755 = vunpack.c.l.b16 %v3968
    %v4756 = vunpack.c.h.b16 %v3968
    %v4757 = vunpack.c.l.b16 %v3969
    %v4758 = vunpack.c.h.b16 %v3969
    %v4759 = vunpack.c.l.b16 %v3970
    %v4760 = vunpack.c.h.b16 %v3970
    %v4761 = vunpack.c.l.b16 %v3971
    %v4762 = vunpack.c.h.b16 %v3971
    %v4763 = vunpack.c.l.b16 %v3972
    %v4764 = vunpack.c.h.b16 %v3972
    %v4765 = vunpack.c.l.b16 %v3973
    %v4766 = vunpack.c.h.b16 %v3973
    %v4767 = vunpack.c.l.b16 %v3974
    %v4768 = vunpack.c.h.b16 %v3974
    %v4769 = vunpack.c.l.b16 %v3975
    %v4770 = vunpack.c.h.b16 %v3975
    %v4771 = vunpack.c.l.b16 %v3976
    %v4772 = vunpack.c.h.b16 %v3976
    %v4773 = vunpack.c.l.b16 %v3977
    %v4774 = vunpack.c.h.b16 %v3977
    %v4775 = vunpack.c.l.b16 %v3978
    %v4776 = vunpack.c.h.b16 %v3978
    %v4777 = vunpack.c.l.b16 %v3979
    %v4778 = vunpack.c.h.b16 %v3979
    %v4779 = vunpack.c.l.b16 %v3980
    %v4780 = vunpack.c.h.b16 %v3980
    %v4781 = vunpack.c.l.b16 %v3981
    %v4782 = vunpack.c.h.b16 %v3981
    %v4783 = vunpack.c.l.b16 %v3982
    %v4784 = vunpack.c.h.b16 %v3982
    %v4785 = vunpack.c.l.b16 %v3983
    %v4786 = vunpack.c.h.b16 %v3983
    %v4787 = vunpack.c.l.b16 %v3984
    %v4788 = vunpack.c.h.b16 %v3984
    %v4789 = vunpack.c.l.b16 %v3985
    %v4790 = vunpack.c.h.b16 %v3985
    %v4791 = vunpack.c.l.b16 %v3986
    %v4792 = vunpack.c.h.b16 %v3986
    %v4793 = vunpack.c.l.b16 %v3987
    %v4794 = vunpack.c.h.b16 %v3987
    %v4795 = vunpack.c.l.b16 %v3988
    %v4796 = vunpack.c.h.b16 %v3988
    %v4797 = vunpack.c.l.b16 %v3989
    %v4798 = vunpack.c.h.b16 %v3989
    %v4799 = vunpack.c.l.b16 %v3990
    %v4800 = vunpack.c.h.b16 %v3990
    %v4801 = vpack.c.b16 %v4297, %v4289
    %v4802 = vpack.c.b16 %v4298, %v4290
    %v4803 = vpack.c.b16 %v4299, %v4291
    %v4804 = vpack.c.b16 %v4300, %v4292
    %v4805 = vpack.c.b16 %v4301, %v4293
    %v4806 = vpack.c.b16 %v4302, %v4294
    %v4807 = vpack.c.b16 %v4303, %v4295
    %v4808 = vpack.c.b16 %v4304, %v4296
    %v4809 = vpack.c.b16 %v4313, %v4305
    %v4810 = vpack.c.b16 %v4314, %v4306
    %v4811 = vpack.c.b16 %v4315, %v4307
    %v4812 = vpack.c.b16 %v4316, %v4308
    %v4813 = vpack.c.b16 %v4317, %v4309
    %v4814 = vpack.c.b16 %v4318, %v4310
    %v4815 = vpack.c.b16 %v4319, %v4311
    %v4816 = vpack.c.b16 %v4320, %v4312
    %v4817 = vpack.c.b16 %v4329, %v4321
    %v4818 = vpack.c.b16 %v4330, %v4322
    %v4819 = vpack.c.b16 %v4331, %v4323
    %v4820 = vpack.c.b16 %v4332, %v4324
    %v4821 = vpack.c.b16 %v4333, %v4325
    %v4822 = vpack.c.b16 %v4334, %v4326
    %v4823 = vpack.c.b16 %v4335, %v4327
    %v4824 = vpack.c.b16 %v4336, %v4328
    %v4825 = vpack.c.b16 %v4345, %v4337
    %v4826 = vpack.c.b16 %v4346, %v4338
    %v4827 = vpack.c.b16 %v4347, %v4339
    %v4828 = vpack.c.b16 %v4348, %v4340
    %v4829 = vpack.c.b16 %v4349, %v4341
    %v4830 = vpack.c.b16 %v4350, %v4342
    %v4831 = vpack.c.b16 %v4351, %v4343
    %v4832 = vpack.c.b16 %v4352, %v4344
    %v4833 = vpack.c.b16 %v4361, %v4353
    %v4834 = vpack.c.b16 %v4362, %v4354
    %v4835 = vpack.c.b16 %v4363, %v4355
    %v4836 = vpack.c.b16 %v4364, %v4356
    %v4837 = vpack.c.b16 %v4365, %v4357
    %v4838 = vpack.c.b16 %v4366, %v4358
    %v4839 = vpack.c.b16 %v4367, %v4359
    %v4840 = vpack.c.b16 %v4368, %v4360
    %v4841 = vpack.c.b16 %v4377, %v4369
    %v4842 = vpack.c.b16 %v4378, %v4370
    %v4843 = vpack.c.b16 %v4379, %v4371
    %v4844 = vpack.c.b16 %v4380, %v4372
    %v4845 = vpack.c.b16 %v4381, %v4373
    %v4846 = vpack.c.b16 %v4382, %v4374
    %v4847 = vpack.c.b16 %v4383, %v4375
    %v4848 = vpack.c.b16 %v4384, %v4376
    %v4849 = vpack.c.b16 %v4393, %v4385
    %v4850 = vpack.c.b16 %v4394, %v4386
    %v4851 = vpack.c.b16 %v4395, %v4387
    %v4852 = vpack.c.b16 %v4396, %v4388
    %v4853 = vpack.c.b16 %v4397, %v4389
    %v4854 = vpack.c.b16 %v4398, %v4390
    %v4855 = vpack.c.b16 %v4399, %v4391
    %v4856 = vpack.c.b16 %v4400, %v4392
    %v4857 = vpack.c.b16 %v4409, %v4401
    %v4858 = vpack.c.b16 %v4410, %v4402
    %v4859 = vpack.c.b16 %v4411, %v4403
    %v4860 = vpack.c.b16 %v4412, %v4404
    %v4861 = vpack.c.b16 %v4413, %v4405
    %v4862 = vpack.c.b16 %v4414, %v4406
    %v4863 = vpack.c.b16 %v4415, %v4407
    %v4864 = vpack.c.b16 %v4416, %v4408
    %v4865 = vpack.c.b16 %v4425, %v4417
    %v4866 = vpack.c.b16 %v4426, %v4418
    %v4867 = vpack.c.b16 %v4427, %v4419
    %v4868 = vpack.c.b16 %v4428, %v4420
    %v4869 = vpack.c.b16 %v4429, %v4421
    %v4870 = vpack.c.b16 %v4430, %v4422
    %v4871 = vpack.c.b16 %v4431, %v4423
    %v4872 = vpack.c.b16 %v4432, %v4424
    %v4873 = vpack.c.b16 %v4441, %v4433
    %v4874 = vpack.c.b16 %v4442, %v4434
    %v4875 = vpack.c.b16 %v4443, %v4435
    %v4876 = vpack.c.b16 %v4444, %v4436
    %v4877 = vpack.c.b16 %v4445, %v4437
    %v4878 = vpack.c.b16 %v4446, %v4438
    %v4879 = vpack.c.b16 %v4447, %v4439
    %v4880 = vpack.c.b16 %v4448, %v4440
    %v4881 = vpack.c.b16 %v4457, %v4449
    %v4882 = vpack.c.b16 %v4458, %v4450
    %v4883 = vpack.c.b16 %v4459, %v4451
    %v4884 = vpack.c.b16 %v4460, %v4452
    %v4885 = vpack.c.b16 %v4461, %v4453
    %v4886 = vpack.c.b16 %v4462, %v4454
    %v4887 = vpack.c.b16 %v4463, %v4455
    %v4888 = vpack.c.b16 %v4464, %v4456
    %v4889 = vpack.c.b16 %v4473, %v4465
    %v4890 = vpack.c.b16 %v4474, %v4466
    %v4891 = vpack.c.b16 %v4475, %v4467
    %v4892 = vpack.c.b16 %v4476, %v4468
    %v4893 = vpack.c.b16 %v4477, %v4469
    %v4894 = vpack.c.b16 %v4478, %v4470
    %v4895 = vpack.c.b16 %v4479, %v4471
    %v4896 = vpack.c.b16 %v4480, %v4472
    %v4897 = vpack.c.b16 %v4489, %v4481
    %v4898 = vpack.c.b16 %v4490, %v4482
    %v4899 = vpack.c.b16 %v4491, %v4483
    %v4900 = vpack.c.b16 %v4492, %v4484
    %v4901 = vpack.c.b16 %v4493, %v4485
    %v4902 = vpack.c.b16 %v4494, %v4486
    %v4903 = vpack.c.b16 %v4495, %v4487
    %v4904 = vpack.c.b16 %v4496, %v4488
    %v4905 = vpack.c.b16 %v4505, %v4497
    %v4906 = vpack.c.b16 %v4506, %v4498
    %v4907 = vpack.c.b16 %v4507, %v4499
    %v4908 = vpack.c.b16 %v4508, %v4500
    %v4909 = vpack.c.b16 %v4509, %v4501
    %v4910 = vpack.c.b16 %v4510, %v4502
    %v4911 = vpack.c.b16 %v4511, %v4503
    %v4912 = vpack.c.b16 %v4512, %v4504
    %v4913 = vpack.c.b16 %v4521, %v4513
    %v4914 = vpack.c.b16 %v4522, %v4514
    %v4915 = vpack.c.b16 %v4523, %v4515
    %v4916 = vpack.c.b16 %v4524, %v4516
    %v4917 = vpack.c.b16 %v4525, %v4517
    %v4918 = vpack.c.b16 %v4526, %v4518
    %v4919 = vpack.c.b16 %v4527, %v4519
    %v4920 = vpack.c.b16 %v4528, %v4520
    %v4921 = vpack.c.b16 %v4537, %v4529
    %v4922 = vpack.c.b16 %v4538, %v4530
    %v4923 = vpack.c.b16 %v4539, %v4531
    %v4924 = vpack.c.b16 %v4540, %v4532
    %v4925 = vpack.c.b16 %v4541, %v4533
    %v4926 = vpack.c.b16 %v4542, %v4534
    %v4927 = vpack.c.b16 %v4543, %v4535
    %v4928 = vpack.c.b16 %v4544, %v4536
    %v4929 = vpack.c.b16 %v4553, %v4545
    %v4930 = vpack.c.b16 %v4554, %v4546
    %v4931 = vpack.c.b16 %v4555, %v4547
    %v4932 = vpack.c.b16 %v4556, %v4548
    %v4933 = vpack.c.b16 %v4557, %v4549
    %v4934 = vpack.c.b16 %v4558, %v4550
    %v4935 = vpack.c.b16 %v4559, %v4551
    %v4936 = vpack.c.b16 %v4560, %v4552
    %v4937 = vpack.c.b16 %v4569, %v4561
    %v4938 = vpack.c.b16 %v4570, %v4562
    %v4939 = vpack.c.b16 %v4571, %v4563
    %v4940 = vpack.c.b16 %v4572, %v4564
    %v4941 = vpack.c.b16 %v4573, %v4565
    %v4942 = vpack.c.b16 %v4574, %v4566
    %v4943 = vpack.c.b16 %v4575, %v4567
    %v4944 = vpack.c.b16 %v4576, %v4568
    %v4945 = vpack.c.b16 %v4585, %v4577
    %v4946 = vpack.c.b16 %v4586, %v4578
    %v4947 = vpack.c.b16 %v4587, %v4579
    %v4948 = vpack.c.b16 %v4588, %v4580
    %v4949 = vpack.c.b16 %v4589, %v4581
    %v4950 = vpack.c.b16 %v4590, %v4582
    %v4951 = vpack.c.b16 %v4591, %v4583
    %v4952 = vpack.c.b16 %v4592, %v4584
    %v4953 = vpack.c.b16 %v4601, %v4593
    %v4954 = vpack.c.b16 %v4602, %v4594
    %v4955 = vpack.c.b16 %v4603, %v4595
    %v4956 = vpack.c.b16 %v4604, %v4596
    %v4957 = vpack.c.b16 %v4605, %v4597
    %v4958 = vpack.c.b16 %v4606, %v4598
    %v4959 = vpack.c.b16 %v4607, %v4599
    %v4960 = vpack.c.b16 %v4608, %v4600
    %v4961 = vpack.c.b16 %v4617, %v4609
    %v4962 = vpack.c.b16 %v4618, %v4610
    %v4963 = vpack.c.b16 %v4619, %v4611
    %v4964 = vpack.c.b16 %v4620, %v4612
    %v4965 = vpack.c.b16 %v4621, %v4613
    %v4966 = vpack.c.b16 %v4622, %v4614
    %v4967 = vpack.c.b16 %v4623, %v4615
    %v4968 = vpack.c.b16 %v4624, %v4616
    %v4969 = vpack.c.b16 %v4633, %v4625
    %v4970 = vpack.c.b16 %v4634, %v4626
    %v4971 = vpack.c.b16 %v4635, %v4627
    %v4972 = vpack.c.b16 %v4636, %v4628
    %v4973 = vpack.c.b16 %v4637, %v4629
    %v4974 = vpack.c.b16 %v4638, %v4630
    %v4975 = vpack.c.b16 %v4639, %v4631
    %v4976 = vpack.c.b16 %v4640, %v4632
    %v4977 = vpack.c.b16 %v4649, %v4641
    %v4978 = vpack.c.b16 %v4650, %v4642
    %v4979 = vpack.c.b16 %v4651, %v4643
    %v4980 = vpack.c.b16 %v4652, %v4644
    %v4981 = vpack.c.b16 %v4653, %v4645
    %v4982 = vpack.c.b16 %v4654, %v4646
    %v4983 = vpack.c.b16 %v4655, %v4647
    %v4984 = vpack.c.b16 %v4656, %v4648
    %v4985 = vpack.c.b16 %v4665, %v4657
    %v4986 = vpack.c.b16 %v4666, %v4658
    %v4987 = vpack.c.b16 %v4667, %v4659
    %v4988 = vpack.c.b16 %v4668, %v4660
    %v4989 = vpack.c.b16 %v4669, %v4661
    %v4990 = vpack.c.b16 %v4670, %v4662
    %v4991 = vpack.c.b16 %v4671, %v4663
    %v4992 = vpack.c.b16 %v4672, %v4664
    %v4993 = vpack.c.b16 %v4681, %v4673
    %v4994 = vpack.c.b16 %v4682, %v4674
    %v4995 = vpack.c.b16 %v4683, %v4675
    %v4996 = vpack.c.b16 %v4684, %v4676
    %v4997 = vpack.c.b16 %v4685, %v4677
    %v4998 = vpack.c.b16 %v4686, %v4678
    %v4999 = vpack.c.b16 %v4687, %v4679
    %v5000 = vpack.c.b16 %v4688, %v4680
    %v5001 = vpack.c.b16 %v4697, %v4689
    %v5002 = vpack.c.b16 %v4698, %v4690
    %v5003 = vpack.c.b16 %v4699, %v4691
    %v5004 = vpack.c.b16 %v4700, %v4692
    %v5005 = vpack.c.b16 %v4701, %v4693
    %v5006 = vpack.c.b16 %v4702, %v4694
    %v5007 = vpack.c.b16 %v4703, %v4695
    %v5008 = vpack.c.b16 %v4704, %v4696
    %v5009 = vpack.c.b16 %v4713, %v4705
    %v5010 = vpack.c.b16 %v4714, %v4706
    %v5011 = vpack.c.b16 %v4715, %v4707
    %v5012 = vpack.c.b16 %v4716, %v4708
    %v5013 = vpack.c.b16 %v4717, %v4709
    %v5014 = vpack.c.b16 %v4718, %v4710
    %v5015 = vpack.c.b16 %v4719, %v4711
    %v5016 = vpack.c.b16 %v4720, %v4712
    %v5017 = vpack.c.b16 %v4729, %v4721
    %v5018 = vpack.c.b16 %v4730, %v4722
    %v5019 = vpack.c.b16 %v4731, %v4723
    %v5020 = vpack.c.b16 %v4732, %v4724
    %v5021 = vpack.c.b16 %v4733, %v4725
    %v5022 = vpack.c.b16 %v4734, %v4726
    %v5023 = vpack.c.b16 %v4735, %v4727
    %v5024 = vpack.c.b16 %v4736, %v4728
    %v5025 = vpack.c.b16 %v4745, %v4737
    %v5026 = vpack.c.b16 %v4746, %v4738
    %v5027 = vpack.c.b16 %v4747, %v4739
    %v5028 = vpack.c.b16 %v4748, %v4740
    %v5029 = vpack.c.b16 %v4749, %v4741
    %v5030 = vpack.c.b16 %v4750, %v4742
    %v5031 = vpack.c.b16 %v4751, %v4743
    %v5032 = vpack.c.b16 %v4752, %v4744
    %v5033 = vpack.c.b16 %v4761, %v4753
    %v5034 = vpack.c.b16 %v4762, %v4754
    %v5035 = vpack.c.b16 %v4763, %v4755
    %v5036 = vpack.c.b16 %v4764, %v4756
    %v5037 = vpack.c.b16 %v4765, %v4757
    %v5038 = vpack.c.b16 %v4766, %v4758
    %v5039 = vpack.c.b16 %v4767, %v4759
    %v5040 = vpack.c.b16 %v4768, %v4760
    %v5041 = vpack.c.b16 %v4777, %v4769
    %v5042 = vpack.c.b16 %v4778, %v4770
    %v5043 = vpack.c.b16 %v4779, %v4771
    %v5044 = vpack.c.b16 %v4780, %v4772
    %v5045 = vpack.c.b16 %v4781, %v4773
    %v5046 = vpack.c.b16 %v4782, %v4774
    %v5047 = vpack.c.b16 %v4783, %v4775
    %v5048 = vpack.c.b16 %v4784, %v4776
    %v5049 = vpack.c.b16 %v4793, %v4785
    %v5050 = vpack.c.b16 %v4794, %v4786
    %v5051 = vpack.c.b16 %v4795, %v4787
    %v5052 = vpack.c.b16 %v4796, %v4788
    %v5053 = vpack.c.b16 %v4797, %v4789
    %v5054 = vpack.c.b16 %v4798, %v4790
    %v5055 = vpack.c.b16 %v4799, %v4791
    %v5056 = vpack.c.b16 %v4800, %v4792
    %5313 = vmatprep.subr.bf16.mxu0 %v4858
    %5314 = vmatpush1.bf16.msra.mxu0 %v4857
    %5315 = vmatprep.subr.bf16.mxu0 %v4850
    %5316 = vmatpush1.bf16.msra.mxu0 %v4849
    %5317 = vmatprep.subr.bf16.mxu0 %v4842
    %5318 = vmatpush1.bf16.msra.mxu0 %v4841
    %5319 = vmatprep.subr.bf16.mxu0 %v4834
    %5320 = vmatpush1.bf16.msra.mxu0 %v4833
    %5321 = vmatprep.subr.bf16.mxu0 %v4826
    %5322 = vmatpush1.bf16.msra.mxu0 %v4825
    %5323 = vmatprep.subr.bf16.mxu0 %v4818
    %5324 = vmatpush1.bf16.msra.mxu0 %v4817
    %5325 = vmatprep.subr.bf16.mxu0 %v4810
    %5326 = vmatpush1.bf16.msra.mxu0 %v4809
    %5327 = vmatprep.subr.bf16.mxu0 %v4802
    %5328 = vmatpush1.bf16.msra.mxu0 %v4801
    %5329 = vmatprep.subr.bf16.mxu0 %v4922
    %5330 = vmatpush2.bf16.msra.mxu0 %v4921
    %5331 = vmatprep.subr.bf16.mxu0 %v4914
    %5332 = vmatpush2.bf16.msra.mxu0 %v4913
    %5333 = vmatprep.subr.bf16.mxu0 %v4906
    %5334 = vmatpush2.bf16.msra.mxu0 %v4905
    %5335 = vmatprep.subr.bf16.mxu0 %v4898
    %5336 = vmatpush2.bf16.msra.mxu0 %v4897
    %5337 = vmatprep.subr.bf16.mxu0 %v4890
    %5338 = vmatpush2.bf16.msra.mxu0 %v4889
    %5339 = vmatprep.subr.bf16.mxu0 %v4882
    %5340 = vmatpush2.bf16.msra.mxu0 %v4881
    %5341 = vmatprep.subr.bf16.mxu0 %v4874
    %5342 = vmatpush2.bf16.msra.mxu0 %v4873
    %5343 = vmatprep.subr.bf16.mxu0 %v4866
    %5344 = vmatpush2.bf16.msra.mxu0 %v4865
    %5345 = vmatprep.mubr.bf16.mxu0 %v3732
    %5346 = vmatmul.mubr.bf16.gmra.mxu0 %v3731
    %v5347 = vpop.f32.mrf.mxu0
    %v5348 = vadd.f32 %v3996, %v5347
    %v5349 = vpop.f32.mrf.mxu0
    %v5350 = vadd.f32 %v4000, %v5349
    %v5351 = vpop.f32.mrf.mxu0
    %v5352 = vpop.f32.mrf.mxu0
    %5353 = vdwg.mxu0
    %5354 = vmatprep.subr.bf16.mxu0 %v4986
    %5355 = vmatpush1.bf16.msra.mxu0 %v4985
    %5356 = vmatprep.subr.bf16.mxu0 %v4978
    %5357 = vmatpush1.bf16.msra.mxu0 %v4977
    %5358 = vmatprep.subr.bf16.mxu0 %v4970
    %5359 = vmatpush1.bf16.msra.mxu0 %v4969
    %5360 = vmatprep.subr.bf16.mxu0 %v4962
    %5361 = vmatpush1.bf16.msra.mxu0 %v4961
    %5362 = vmatprep.subr.bf16.mxu0 %v4954
    %5363 = vmatpush1.bf16.msra.mxu0 %v4953
    %5364 = vmatprep.subr.bf16.mxu0 %v4946
    %5365 = vmatpush1.bf16.msra.mxu0 %v4945
    %5366 = vmatprep.subr.bf16.mxu0 %v4938
    %5367 = vmatpush1.bf16.msra.mxu0 %v4937
    %5368 = vmatprep.subr.bf16.mxu0 %v4930
    %5369 = vmatpush1.bf16.msra.mxu0 %v4929
    %5370 = vmatprep.subr.bf16.mxu0 %v5050
    %5371 = vmatpush2.bf16.msra.mxu0 %v5049
    %5372 = vmatprep.subr.bf16.mxu0 %v5042
    %5373 = vmatpush2.bf16.msra.mxu0 %v5041
    %5374 = vmatprep.subr.bf16.mxu0 %v5034
    %5375 = vmatpush2.bf16.msra.mxu0 %v5033
    %5376 = vmatprep.subr.bf16.mxu0 %v5026
    %5377 = vmatpush2.bf16.msra.mxu0 %v5025
    %5378 = vmatprep.subr.bf16.mxu0 %v5018
    %5379 = vmatpush2.bf16.msra.mxu0 %v5017
    %5380 = vmatprep.subr.bf16.mxu0 %v5010
    %5381 = vmatpush2.bf16.msra.mxu0 %v5009
    %5382 = vmatprep.subr.bf16.mxu0 %v5002
    %5383 = vmatpush2.bf16.msra.mxu0 %v5001
    %5384 = vmatprep.subr.bf16.mxu0 %v4994
    %5385 = vmatpush2.bf16.msra.mxu0 %v4993
    %5386 = vmatprep.mubr.bf16.mxu0 %v3734
    %5387 = vmatmul.mubr.bf16.gmra.mxu0 %v3733
    %v5388 = vpop.f32.mrf.mxu0
    %v5389 = vadd.f32 %v5348, %v5388
    %v5390 = vpop.f32.mrf.mxu0
    %v5391 = vadd.f32 %v5350, %v5390
    %v5392 = vpop.f32.mrf.mxu0
    %v5393 = vpop.f32.mrf.mxu0
    %5394 = vdwg.mxu0
    %5395 = vmatprep.subr.bf16.mxu0 %v4860
    %5396 = vmatpush1.bf16.msra.mxu0 %v4859
    %5397 = vmatprep.subr.bf16.mxu0 %v4852
    %5398 = vmatpush1.bf16.msra.mxu0 %v4851
    %5399 = vmatprep.subr.bf16.mxu0 %v4844
    %5400 = vmatpush1.bf16.msra.mxu0 %v4843
    %5401 = vmatprep.subr.bf16.mxu0 %v4836
    %5402 = vmatpush1.bf16.msra.mxu0 %v4835
    %5403 = vmatprep.subr.bf16.mxu0 %v4828
    %5404 = vmatpush1.bf16.msra.mxu0 %v4827
    %5405 = vmatprep.subr.bf16.mxu0 %v4820
    %5406 = vmatpush1.bf16.msra.mxu0 %v4819
    %5407 = vmatprep.subr.bf16.mxu0 %v4812
    %5408 = vmatpush1.bf16.msra.mxu0 %v4811
    %5409 = vmatprep.subr.bf16.mxu0 %v4804
    %5410 = vmatpush1.bf16.msra.mxu0 %v4803
    %5411 = vmatprep.subr.bf16.mxu0 %v4924
    %5412 = vmatpush2.bf16.msra.mxu0 %v4923
    %5413 = vmatprep.subr.bf16.mxu0 %v4916
    %5414 = vmatpush2.bf16.msra.mxu0 %v4915
    %5415 = vmatprep.subr.bf16.mxu0 %v4908
    %5416 = vmatpush2.bf16.msra.mxu0 %v4907
    %5417 = vmatprep.subr.bf16.mxu0 %v4900
    %5418 = vmatpush2.bf16.msra.mxu0 %v4899
    %5419 = vmatprep.subr.bf16.mxu0 %v4892
    %5420 = vmatpush2.bf16.msra.mxu0 %v4891
    %5421 = vmatprep.subr.bf16.mxu0 %v4884
    %5422 = vmatpush2.bf16.msra.mxu0 %v4883
    %5423 = vmatprep.subr.bf16.mxu0 %v4876
    %5424 = vmatpush2.bf16.msra.mxu0 %v4875
    %5425 = vmatprep.subr.bf16.mxu0 %v4868
    %5426 = vmatpush2.bf16.msra.mxu0 %v4867
    %5427 = vmatprep.mubr.bf16.mxu0 %v3732
    %5428 = vmatmul.mubr.bf16.gmra.mxu0 %v3731
    %v5429 = vpop.f32.mrf.mxu0
    %v5430 = vadd.f32 %v4004, %v5429
    %v5431 = vpop.f32.mrf.mxu0
    %v5432 = vadd.f32 %v4008, %v5431
    %v5433 = vpop.f32.mrf.mxu0
    %v5434 = vpop.f32.mrf.mxu0
    %5435 = vdwg.mxu0
    %5436 = vmatprep.subr.bf16.mxu0 %v4988
    %5437 = vmatpush1.bf16.msra.mxu0 %v4987
    %5438 = vmatprep.subr.bf16.mxu0 %v4980
    %5439 = vmatpush1.bf16.msra.mxu0 %v4979
    %5440 = vmatprep.subr.bf16.mxu0 %v4972
    %5441 = vmatpush1.bf16.msra.mxu0 %v4971
    %5442 = vmatprep.subr.bf16.mxu0 %v4964
    %5443 = vmatpush1.bf16.msra.mxu0 %v4963
    %5444 = vmatprep.subr.bf16.mxu0 %v4956
    %5445 = vmatpush1.bf16.msra.mxu0 %v4955
    %5446 = vmatprep.subr.bf16.mxu0 %v4948
    %5447 = vmatpush1.bf16.msra.mxu0 %v4947
    %5448 = vmatprep.subr.bf16.mxu0 %v4940
    %5449 = vmatpush1.bf16.msra.mxu0 %v4939
    %5450 = vmatprep.subr.bf16.mxu0 %v4932
    %5451 = vmatpush1.bf16.msra.mxu0 %v4931
    %5452 = vmatprep.subr.bf16.mxu0 %v5052
    %5453 = vmatpush2.bf16.msra.mxu0 %v5051
    %5454 = vmatprep.subr.bf16.mxu0 %v5044
    %5455 = vmatpush2.bf16.msra.mxu0 %v5043
    %5456 = vmatprep.subr.bf16.mxu0 %v5036
    %5457 = vmatpush2.bf16.msra.mxu0 %v5035
    %5458 = vmatprep.subr.bf16.mxu0 %v5028
    %5459 = vmatpush2.bf16.msra.mxu0 %v5027
    %5460 = vmatprep.subr.bf16.mxu0 %v5020
    %5461 = vmatpush2.bf16.msra.mxu0 %v5019
    %5462 = vmatprep.subr.bf16.mxu0 %v5012
    %5463 = vmatpush2.bf16.msra.mxu0 %v5011
    %5464 = vmatprep.subr.bf16.mxu0 %v5004
    %5465 = vmatpush2.bf16.msra.mxu0 %v5003
    %5466 = vmatprep.subr.bf16.mxu0 %v4996
    %5467 = vmatpush2.bf16.msra.mxu0 %v4995
    %5468 = vmatprep.mubr.bf16.mxu0 %v3734
    %5469 = vmatmul.mubr.bf16.gmra.mxu0 %v3733
    %v5470 = vpop.f32.mrf.mxu0
    %v5471 = vadd.f32 %v5430, %v5470
    %v5472 = vpop.f32.mrf.mxu0
    %v5473 = vadd.f32 %v5432, %v5472
    %v5474 = vpop.f32.mrf.mxu0
    %v5475 = vpop.f32.mrf.mxu0
    %5476 = vdwg.mxu0
    %5477 = vmatprep.subr.bf16.mxu0 %v4862
    %5478 = vmatpush1.bf16.msra.mxu0 %v4861
    %5479 = vmatprep.subr.bf16.mxu0 %v4854
    %5480 = vmatpush1.bf16.msra.mxu0 %v4853
    %5481 = vmatprep.subr.bf16.mxu0 %v4846
    %5482 = vmatpush1.bf16.msra.mxu0 %v4845
    %5483 = vmatprep.subr.bf16.mxu0 %v4838
    %5484 = vmatpush1.bf16.msra.mxu0 %v4837
    %5485 = vmatprep.subr.bf16.mxu0 %v4830
    %5486 = vmatpush1.bf16.msra.mxu0 %v4829
    %5487 = vmatprep.subr.bf16.mxu0 %v4822
    %5488 = vmatpush1.bf16.msra.mxu0 %v4821
    %5489 = vmatprep.subr.bf16.mxu0 %v4814
    %5490 = vmatpush1.bf16.msra.mxu0 %v4813
    %5491 = vmatprep.subr.bf16.mxu0 %v4806
    %5492 = vmatpush1.bf16.msra.mxu0 %v4805
    %5493 = vmatprep.subr.bf16.mxu0 %v4926
    %5494 = vmatpush2.bf16.msra.mxu0 %v4925
    %5495 = vmatprep.subr.bf16.mxu0 %v4918
    %5496 = vmatpush2.bf16.msra.mxu0 %v4917
    %5497 = vmatprep.subr.bf16.mxu0 %v4910
    %5498 = vmatpush2.bf16.msra.mxu0 %v4909
    %5499 = vmatprep.subr.bf16.mxu0 %v4902
    %5500 = vmatpush2.bf16.msra.mxu0 %v4901
    %5501 = vmatprep.subr.bf16.mxu0 %v4894
    %5502 = vmatpush2.bf16.msra.mxu0 %v4893
    %5503 = vmatprep.subr.bf16.mxu0 %v4886
    %5504 = vmatpush2.bf16.msra.mxu0 %v4885
    %5505 = vmatprep.subr.bf16.mxu0 %v4878
    %5506 = vmatpush2.bf16.msra.mxu0 %v4877
    %5507 = vmatprep.subr.bf16.mxu0 %v4870
    %5508 = vmatpush2.bf16.msra.mxu0 %v4869
    %5509 = vmatprep.mubr.bf16.mxu0 %v3732
    %5510 = vmatmul.mubr.bf16.gmra.mxu0 %v3731
    %v5511 = vpop.f32.mrf.mxu0
    %v5512 = vadd.f32 %v4012, %v5511
    %v5513 = vpop.f32.mrf.mxu0
    %v5514 = vadd.f32 %v4016, %v5513
    %v5515 = vpop.f32.mrf.mxu0
    %v5516 = vpop.f32.mrf.mxu0
    %5517 = vdwg.mxu0
    %5518 = vmatprep.subr.bf16.mxu0 %v4990
    %5519 = vmatpush1.bf16.msra.mxu0 %v4989
    %5520 = vmatprep.subr.bf16.mxu0 %v4982
    %5521 = vmatpush1.bf16.msra.mxu0 %v4981
    %5522 = vmatprep.subr.bf16.mxu0 %v4974
    %5523 = vmatpush1.bf16.msra.mxu0 %v4973
    %5524 = vmatprep.subr.bf16.mxu0 %v4966
    %5525 = vmatpush1.bf16.msra.mxu0 %v4965
    %5526 = vmatprep.subr.bf16.mxu0 %v4958
    %5527 = vmatpush1.bf16.msra.mxu0 %v4957
    %5528 = vmatprep.subr.bf16.mxu0 %v4950
    %5529 = vmatpush1.bf16.msra.mxu0 %v4949
    %5530 = vmatprep.subr.bf16.mxu0 %v4942
    %5531 = vmatpush1.bf16.msra.mxu0 %v4941
    %5532 = vmatprep.subr.bf16.mxu0 %v4934
    %5533 = vmatpush1.bf16.msra.mxu0 %v4933
    %5534 = vmatprep.subr.bf16.mxu0 %v5054
    %5535 = vmatpush2.bf16.msra.mxu0 %v5053
    %5536 = vmatprep.subr.bf16.mxu0 %v5046
    %5537 = vmatpush2.bf16.msra.mxu0 %v5045
    %5538 = vmatprep.subr.bf16.mxu0 %v5038
    %5539 = vmatpush2.bf16.msra.mxu0 %v5037
    %5540 = vmatprep.subr.bf16.mxu0 %v5030
    %5541 = vmatpush2.bf16.msra.mxu0 %v5029
    %5542 = vmatprep.subr.bf16.mxu0 %v5022
    %5543 = vmatpush2.bf16.msra.mxu0 %v5021
    %5544 = vmatprep.subr.bf16.mxu0 %v5014
    %5545 = vmatpush2.bf16.msra.mxu0 %v5013
    %5546 = vmatprep.subr.bf16.mxu0 %v5006
    %5547 = vmatpush2.bf16.msra.mxu0 %v5005
    %5548 = vmatprep.subr.bf16.mxu0 %v4998
    %5549 = vmatpush2.bf16.msra.mxu0 %v4997
    %5550 = vmatprep.mubr.bf16.mxu0 %v3734
    %5551 = vmatmul.mubr.bf16.gmra.mxu0 %v3733
    %v5552 = vpop.f32.mrf.mxu0
    %v5553 = vadd.f32 %v5512, %v5552
    %v5554 = vpop.f32.mrf.mxu0
    %v5555 = vadd.f32 %v5514, %v5554
    %v5556 = vpop.f32.mrf.mxu0
    %v5557 = vpop.f32.mrf.mxu0
    %5558 = vdwg.mxu0
    %5559 = vmatprep.subr.bf16.mxu0 %v4864
    %5560 = vmatpush1.bf16.msra.mxu0 %v4863
    %5561 = vmatprep.subr.bf16.mxu0 %v4856
    %5562 = vmatpush1.bf16.msra.mxu0 %v4855
    %5563 = vmatprep.subr.bf16.mxu0 %v4848
    %5564 = vmatpush1.bf16.msra.mxu0 %v4847
    %5565 = vmatprep.subr.bf16.mxu0 %v4840
    %5566 = vmatpush1.bf16.msra.mxu0 %v4839
    %5567 = vmatprep.subr.bf16.mxu0 %v4832
    %5568 = vmatpush1.bf16.msra.mxu0 %v4831
    %5569 = vmatprep.subr.bf16.mxu0 %v4824
    %5570 = vmatpush1.bf16.msra.mxu0 %v4823
    %5571 = vmatprep.subr.bf16.mxu0 %v4816
    %5572 = vmatpush1.bf16.msra.mxu0 %v4815
    %5573 = vmatprep.subr.bf16.mxu0 %v4808
    %5574 = vmatpush1.bf16.msra.mxu0 %v4807
    %5575 = vmatprep.subr.bf16.mxu0 %v4928
    %5576 = vmatpush2.bf16.msra.mxu0 %v4927
    %5577 = vmatprep.subr.bf16.mxu0 %v4920
    %5578 = vmatpush2.bf16.msra.mxu0 %v4919
    %5579 = vmatprep.subr.bf16.mxu0 %v4912
    %5580 = vmatpush2.bf16.msra.mxu0 %v4911
    %5581 = vmatprep.subr.bf16.mxu0 %v4904
    %5582 = vmatpush2.bf16.msra.mxu0 %v4903
    %5583 = vmatprep.subr.bf16.mxu0 %v4896
    %5584 = vmatpush2.bf16.msra.mxu0 %v4895
    %5585 = vmatprep.subr.bf16.mxu0 %v4888
    %5586 = vmatpush2.bf16.msra.mxu0 %v4887
    %5587 = vmatprep.subr.bf16.mxu0 %v4880
    %5588 = vmatpush2.bf16.msra.mxu0 %v4879
    %5589 = vmatprep.subr.bf16.mxu0 %v4872
    %5590 = vmatpush2.bf16.msra.mxu0 %v4871
    %5591 = vmatprep.mubr.bf16.mxu0 %v3732
    %5592 = vmatmul.mubr.bf16.gmra.mxu0 %v3731
    %v5593 = vpop.f32.mrf.mxu0
    %v5594 = vadd.f32 %v4020, %v5593
    %v5595 = vpop.f32.mrf.mxu0
    %v5596 = vadd.f32 %v4024, %v5595
    %v5597 = vpop.f32.mrf.mxu0
    %v5598 = vpop.f32.mrf.mxu0
    %5599 = vdwg.mxu0
    %5600 = vmatprep.subr.bf16.mxu0 %v4992
    %5601 = vmatpush1.bf16.msra.mxu0 %v4991
    %5602 = vmatprep.subr.bf16.mxu0 %v4984
    %5603 = vmatpush1.bf16.msra.mxu0 %v4983
    %5604 = vmatprep.subr.bf16.mxu0 %v4976
    %5605 = vmatpush1.bf16.msra.mxu0 %v4975
    %5606 = vmatprep.subr.bf16.mxu0 %v4968
    %5607 = vmatpush1.bf16.msra.mxu0 %v4967
    %5608 = vmatprep.subr.bf16.mxu0 %v4960
    %5609 = vmatpush1.bf16.msra.mxu0 %v4959
    %5610 = vmatprep.subr.bf16.mxu0 %v4952
    %5611 = vmatpush1.bf16.msra.mxu0 %v4951
    %5612 = vmatprep.subr.bf16.mxu0 %v4944
    %5613 = vmatpush1.bf16.msra.mxu0 %v4943
    %5614 = vmatprep.subr.bf16.mxu0 %v4936
    %5615 = vmatpush1.bf16.msra.mxu0 %v4935
    %5616 = vmatprep.subr.bf16.mxu0 %v5056
    %5617 = vmatpush2.bf16.msra.mxu0 %v5055
    %5618 = vmatprep.subr.bf16.mxu0 %v5048
    %5619 = vmatpush2.bf16.msra.mxu0 %v5047
    %5620 = vmatprep.subr.bf16.mxu0 %v5040
    %5621 = vmatpush2.bf16.msra.mxu0 %v5039
    %5622 = vmatprep.subr.bf16.mxu0 %v5032
    %5623 = vmatpush2.bf16.msra.mxu0 %v5031
    %5624 = vmatprep.subr.bf16.mxu0 %v5024
    %5625 = vmatpush2.bf16.msra.mxu0 %v5023
    %5626 = vmatprep.subr.bf16.mxu0 %v5016
    %5627 = vmatpush2.bf16.msra.mxu0 %v5015
    %5628 = vmatprep.subr.bf16.mxu0 %v5008
    %5629 = vmatpush2.bf16.msra.mxu0 %v5007
    %5630 = vmatprep.subr.bf16.mxu0 %v5000
    %5631 = vmatpush2.bf16.msra.mxu0 %v4999
    %5632 = vmatprep.mubr.bf16.mxu0 %v3734
    %5633 = vmatmul.mubr.bf16.gmra.mxu0 %v3733
    %v5634 = vpop.f32.mrf.mxu0
    %v5635 = vadd.f32 %v5594, %v5634
    %v5636 = vpop.f32.mrf.mxu0
    %v5637 = vadd.f32 %v5596, %v5636
    %v5638 = vpop.f32.mrf.mxu0
    %v5639 = vpop.f32.mrf.mxu0
    %5640 = vdwg.mxu0
    %v5641 = vmul.f32 %v5389, 0.5
    %v5642 = vmul.f32 %v5391, 0.5
    %v5643 = vmul.f32 %v5471, 0.5
    %v5644 = vmul.f32 %v5473, 0.5
    %v5645 = vmul.f32 %v5553, 0.5
    %v5646 = vmul.f32 %v5555, 0.5
    %v5647 = vmul.f32 %v5635, 0.5
    %v5648 = vmul.f32 %v5637, 0.5
    %v5649 = vtanh.pop %v5641
    %v5650 = vtanh.pop %v5642
    %v5651 = vtanh.pop %v5643
    %v5652 = vtanh.pop %v5644
    %v5653 = vtanh.pop %v5645
    %v5654 = vtanh.pop %v5646
    %v5655 = vtanh.pop %v5647
    %v5656 = vtanh.pop %v5648
    %v5657 = vmul.f32 %v5649, 0.5
    %v5658 = vmul.f32 %v5650, 0.5
    %v5659 = vmul.f32 %v5651, 0.5
    %v5660 = vmul.f32 %v5652, 0.5
    %v5661 = vmul.f32 %v5653, 0.5
    %v5662 = vmul.f32 %v5654, 0.5
    %v5663 = vmul.f32 %v5655, 0.5
    %v5664 = vmul.f32 %v5656, 0.5
    %v5665 = vadd.f32 %v5657, 0.5
    %v5666 = vadd.f32 %v5658, 0.5
    %v5667 = vadd.f32 %v5659, 0.5
    %v5668 = vadd.f32 %v5660, 0.5
    %v5669 = vadd.f32 %v5661, 0.5
    %v5670 = vadd.f32 %v5662, 0.5
    %v5671 = vadd.f32 %v5663, 0.5
    %v5672 = vadd.f32 %v5664, 0.5
    %v5673 = vpack.c.bf16 %v5665, %v5665
    %v5674 = vpack.c.bf16 %v5666, %v5666
    %v5675 = vpack.c.bf16 %v5667, %v5667
    %v5676 = vpack.c.bf16 %v5668, %v5668
    %v5677 = vpack.c.bf16 %v5669, %v5669
    %v5678 = vpack.c.bf16 %v5670, %v5670
    %v5679 = vpack.c.bf16 %v5671, %v5671
    %v5680 = vpack.c.bf16 %v5672, %v5672
    %v5689 = vunpack.c.l.b16 %v5673
    %v5690 = vunpack.c.l.b16 %v5674
    %v5691 = vunpack.c.l.b16 %v5675
    %v5692 = vunpack.c.l.b16 %v5676
    %v5693 = vunpack.c.l.b16 %v5677
    %v5694 = vunpack.c.l.b16 %v5678
    %v5695 = vunpack.c.l.b16 %v5679
    %v5696 = vunpack.c.l.b16 %v5680
    %v5697 = vpack.c.b16 %v5690, %v5689
    %v5698 = vpack.c.b16 %v5692, %v5691
    %v5699 = vpack.c.b16 %v5694, %v5693
    %v5700 = vpack.c.b16 %v5696, %v5695
    %5705 = vst [vmem:[#allocation23] sm:$0xff] %v5697
    %5706 = vst [vmem:[#allocation23 + $0x8] sm:$0xff] %v5698
    %5707 = vst [vmem:[#allocation23 + $0x10] sm:$0xff] %v5699
    %5708 = vst [vmem:[#allocation23 + $0x18] sm:$0xff] %v5700
    // Predicated region
    $region126: #{tpu_custom_call.1} parent=1 // pred_check
      _
    $region127: #{tpu_custom_call.1} parent=1 // pred_check_branch
      %5710 = sbr.rel (0) target = $region129
    $region128: #{tpu_custom_call.1} parent=1 // pred_region
      %s5712 = ssub.s32 512, 512
      %5713 = vsyncadd [#allocation4], %s5712
      %s5715 = sshll.u32 [#allocation23], 4
      %s5716 = int_to_ptr.vmem [resolvable:$true] %s5715
      %5718 = dma.vmem_to_hbm [thread:$0]  %s5716, 512, %s18, [#allocation4]
    $region129: #{tpu_custom_call.1} parent=1 // pred_fallthru
      _
    // Predicated region
    $region130: #{tpu_custom_call.1} parent=1 // pred_check
      _
    $region131: #{tpu_custom_call.1} parent=1 // pred_check_branch
      %5720 = sbr.rel (0) target = $region133
    $region132: #{tpu_custom_call.1} parent=1 // pred_region
      %s5722 = ssub.s32 256, 256
      %5723 = vsyncadd [#allocation25], %s5722
      %s5725 = sshll.u32 [#allocation24], 4
      %s5726 = int_to_ptr.vmem [resolvable:$true] %s5725
      %5728 = dma.vmem_to_hbm [thread:$0]  %s5726, 256, %s19, [#allocation25]
    $region133: #{tpu_custom_call.1} parent=1 // pred_fallthru
      _
    // Predicated region
    $region134: #{tpu_custom_call.1} parent=1 // pred_check
      _
    $region135: #{tpu_custom_call.1} parent=1 // pred_check_branch
      %5730 = sbr.rel (0) target = $region137
    $region136: #{tpu_custom_call.1} parent=1 // pred_region
      %5731 = dma.done [#allocation4], 512
    $region137: #{tpu_custom_call.1} parent=1 // pred_fallthru
      _
    // Predicated region
    $region138: #{tpu_custom_call.1} parent=1 // pred_check
      _
    $region139: #{tpu_custom_call.1} parent=1 // pred_check_branch
      %5733 = sbr.rel (0) target = $region141
    $region140: #{tpu_custom_call.1} parent=1 // pred_region
      %5734 = dma.done [#allocation25], 256
    $region141: #{tpu_custom_call.1} parent=1 // pred_fallthru
      _
    %5735 = vsyncpa [#allocation3], 1
    %5736 = vsyncpa [#allocation6], 1
    %5737 = vsyncpa [#allocation9], 1
    %5738 = vsyncpa [#allocation12], 1
    %5739 = vsyncpa [#allocation15], 1
    %5740 = vsyncpa [#allocation18], 1
    %5741 = vsyncpa [#allocation21], 1
    %5742 = vsyncpa [#allocation4], 1
    %5743 = vsyncpa [#allocation25], 1

// kernel: tpu_custom_call.1
$region0: #{tpu_custom_call.1}
  #allocation0 [shape = 'u32[]', space=smem, size = 0x4, offset = 0x4, fixed_abs, tag = 'smem constant byte address 0x4 - core index']
  #allocation1 [shape = 'u32[144,128]{1,0:T(1,128)}', space=vmem, size = 0x12000, scoped, tag = 'internal scratch']
  %s0 = inlined_call_operand.hbm [shape: bf16[8,1024], index: 0, kind: input, shape index: {}]
  %s1 = inlined_call_operand.hbm [shape: f32[8,128], index: 1, kind: input, shape index: {}]
  %s2 = inlined_call_operand.hbm [shape: bf16[1024,512], index: 2, kind: input, shape index: {}]
  %s3 = inlined_call_operand.vmem [shape: f32[1,512], index: 3, kind: input, shape index: {}]
  %s4 = inlined_call_operand.hbm [shape: bf16[512,256], index: 4, kind: input, shape index: {}]
  %s5 = inlined_call_operand.hbm [shape: f32[1,256], index: 5, kind: input, shape index: {}]
  %s6 = inlined_call_operand.hbm [shape: bf16[256,128], index: 6, kind: input, shape index: {}]
  %s7 = inlined_call_operand.hbm [shape: f32[1,128], index: 7, kind: input, shape index: {}]
  %s8 = inlined_call_operand.hbm [shape: bf16[128,256], index: 8, kind: input, shape index: {}]
  %s9 = inlined_call_operand.hbm [shape: f32[1,256], index: 9, kind: input, shape index: {}]
  %s10 = inlined_call_operand.hbm [shape: bf16[128,128], index: 10, kind: input, shape index: {}]
  %s11 = inlined_call_operand.vmem [shape: f32[1,128], index: 11, kind: input, shape index: {}]
  %s12 = inlined_call_operand.hbm [shape: bf16[128,256], index: 12, kind: input, shape index: {}]
  %s13 = inlined_call_operand.vmem [shape: f32[1,256], index: 13, kind: input, shape index: {}]
  %s14 = inlined_call_operand.hbm [shape: bf16[256,512], index: 14, kind: input, shape index: {}]
  %s15 = inlined_call_operand.vmem [shape: f32[1,512], index: 15, kind: input, shape index: {}]
  %s16 = inlined_call_operand.hbm [shape: bf16[512,1024], index: 16, kind: input, shape index: {}]
  %s17 = inlined_call_operand.vmem [shape: f32[1,1024], index: 17, kind: input, shape index: {}]
  %s18 = inlined_call_operand.hbm [shape: bf16[8,1024], index: 18, kind: output, shape index: {0}]
  %s19 = inlined_call_operand.hbm [shape: f32[8,256], index: 19, kind: output, shape index: {1}]
  %20 = xla_tuple %s18, %s19
  %s21 = sld [smem:[#allocation0]]
  $region142: #{tpu_custom_call.1} parent=0
    _
  %s23 = ssub.s32 1, %s21
  %s24 = scalar_select 0, %s23, %s21
  $region1: #{tpu_custom_call.1} parent=0
    #allocation2 [shape = 'u8[16384]{0}', space=vmem, size = 0x4000, scoped, tag = 'input window, operand 0, single buffered']
    #allocation3 [shape = 's32[1]{0}', space=sflag, size = 0x4, scoped, tag = 'scoped memory for tpu_custom_call.1']
    #allocation4 [shape = 's32[1]{0}', space=sflag, size = 0x4, scoped, tag = 'scoped memory for tpu_custom_call.1']
    #allocation5 [shape = 'u8[4096]{0}', space=vmem, size = 0x1000, scoped, tag = 'input window, operand 1, single buffered']
    #allocation6 [shape = 's32[1]{0}', space=sflag, size = 0x4, scoped, tag = 'scoped memory for tpu_custom_call.1']
    #allocation7 [shape = 'u8[1048576]{0}', space=vmem, size = 0x100000, scoped, tag = 'input window, operand 2, single buffered']
    #allocation8 [shape = 'u8[262144]{0}', space=vmem, size = 0x40000, scoped, tag = 'input window, operand 4, single buffered']
    #allocation9 [shape = 's32[1]{0}', space=sflag, size = 0x4, scoped, tag = 'scoped memory for tpu_custom_call.1']
    #allocation10 [shape = 'u8[1024]{0}', space=vmem, size = 0x400, scoped, tag = 'input window, operand 5, single buffered']
    #allocation11 [shape = 'u8[65536]{0}', space=vmem, size = 0x10000, scoped, tag = 'input window, operand 6, single buffered']
    #allocation12 [shape = 's32[1]{0}', space=sflag, size = 0x4, scoped, tag = 'scoped memory for tpu_custom_call.1']
    #allocation13 [shape = 'u8[512]{0}', space=vmem, size = 0x400, scoped, tag = 'input window, operand 7, single buffered']
    #allocation14 [shape = 'u8[65536]{0}', space=vmem, size = 0x10000, scoped, tag = 'input window, operand 8, single buffered']
    #allocation15 [shape = 's32[1]{0}', space=sflag, size = 0x4, scoped, tag = 'scoped memory for tpu_custom_call.1']
    #allocation16 [shape = 'u8[1024]{0}', space=vmem, size = 0x400, scoped, tag = 'input window, operand 9, single buffered']
    #allocation17 [shape = 'u8[32768]{0}', space=vmem, size = 0x8000, scoped, tag = 'input window, operand 10, single buffered']
    #allocation18 [shape = 's32[1]{0}', space=sflag, size = 0x4, scoped, tag = 'scoped memory for tpu_custom_call.1']
    #allocation19 [shape = 'u8[65536]{0}', space=vmem, size = 0x10000, scoped, tag = 'input window, operand 12, single buffered']
    #allocation20 [shape = 'u8[262144]{0}', space=vmem, size = 0x40000, scoped, tag = 'input window, operand 14, single buffered']
    #allocation21 [shape = 's32[1]{0}', space=sflag, size = 0x4, scoped, tag = 'scoped memory for tpu_custom_call.1']
    #allocation22 [shape = 'u8[1048576]{0}', space=vmem, size = 0x100000, scoped, tag = 'input window, operand 16, single buffered']
    #allocation23 [shape = 'u8[16384]{0}', space=vmem, size = 0x4000, scoped, tag = 'output window, operand 0, single buffered']
    #allocation24 [shape = 'u8[8192]{0}', space=vmem, size = 0x2000, scoped, tag = 'output window, operand 1, single buffered']
    #allocation25 [shape = 's32[1]{0}', space=sflag, size = 0x4, scoped, tag = 'scoped memory for tpu_custom_call.1']
    %25 = vsyncpa [#allocation3], 0
    %26 = vsyncpa [#allocation6], 0
    %27 = vsyncpa [#allocation9], 0
    %28 = vsyncpa [#allocation12], 0
    %29 = vsyncpa [#allocation15], 0
    %30 = vsyncpa [#allocation18], 0
    %31 = vsyncpa [#allocation21], 0
    %32 = vsyncpa [#allocation4], 0
    %33 = vsyncpa [#allocation25], 0
    // Predicated region
    $region2: #{tpu_custom_call.1} parent=1 // pred_check
      _
    $region3: #{tpu_custom_call.1} parent=1 // pred_check_branch
      %35 = sbr.rel (0) target = $region5
    $region4: #{tpu_custom_call.1} parent=1 // pred_region
      %s37 = ssub.s32 512, 512
      %38 = vsyncadd [#allocation3], %s37
      %s40 = sshll.u32 [#allocation2], 4
      %s41 = int_to_ptr.vmem [resolvable:$true] %s40
      %43 = dma.hbm_to_vmem [thread:$0]  %s0, 512, %s41, [#allocation3]
    $region5: #{tpu_custom_call.1} parent=1 // pred_fallthru
      _
    // Predicated region
    $region6: #{tpu_custom_call.1} parent=1 // pred_check
      _
    $region7: #{tpu_custom_call.1} parent=1 // pred_check_branch
      %45 = sbr.rel (0) target = $region9
    $region8: #{tpu_custom_call.1} parent=1 // pred_region
      %s47 = ssub.s32 128, 128
      %48 = vsyncadd [#allocation6], %s47
      %s50 = sshll.u32 [#allocation5], 4
      %s51 = int_to_ptr.vmem [resolvable:$true] %s50
      %53 = dma.hbm_to_vmem [thread:$0]  %s1, 128, %s51, [#allocation6]
    $region9: #{tpu_custom_call.1} parent=1 // pred_fallthru
      _
    // Predicated region
    $region10: #{tpu_custom_call.1} parent=1 // pred_check
      _
    $region11: #{tpu_custom_call.1} parent=1 // pred_check_branch
      %55 = sbr.rel (0) target = $region13
    $region12: #{tpu_custom_call.1} parent=1 // pred_region
      %s57 = ssub.s32 32768, 32768
      %58 = vsyncadd [#allocation6], %s57
      %s59 = sshll.u32 [#allocation7], 4
      %s60 = int_to_ptr.vmem [resolvable:$true] %s59
      %65 = dma.hbm_to_vmem [thread:$0]  %s2, 32768, %s60, [#allocation6], 256, 256, 16
    $region13: #{tpu_custom_call.1} parent=1 // pred_fallthru
      _
    // Predicated region
    $region14: #{tpu_custom_call.1} parent=1 // pred_check
      _
    $region15: #{tpu_custom_call.1} parent=1 // pred_check_branch
      %67 = sbr.rel (0) target = $region17
    $region16: #{tpu_custom_call.1} parent=1 // pred_region
      _
    $region17: #{tpu_custom_call.1} parent=1 // pred_fallthru
      _
    // Predicated region
    $region18: #{tpu_custom_call.1} parent=1 // pred_check
      _
    $region19: #{tpu_custom_call.1} parent=1 // pred_check_branch
      %69 = sbr.rel (0) target = $region21
    $region20: #{tpu_custom_call.1} parent=1 // pred_region
      %s71 = ssub.s32 8192, 8192
      %72 = vsyncadd [#allocation9], %s71
      %s73 = sshll.u32 [#allocation8], 4
      %s74 = int_to_ptr.vmem [resolvable:$true] %s73
      %79 = dma.hbm_to_vmem [thread:$0]  %s4, 8192, %s74, [#allocation9], 128, 128, 8
    $region21: #{tpu_custom_call.1} parent=1 // pred_fallthru
      _
    // Predicated region
    $region22: #{tpu_custom_call.1} parent=1 // pred_check
      _
    $region23: #{tpu_custom_call.1} parent=1 // pred_check_branch
      %81 = sbr.rel (0) target = $region25
    $region24: #{tpu_custom_call.1} parent=1 // pred_region
      %s83 = ssub.s32 32, 32
      %84 = vsyncadd [#allocation9], %s83
      %s86 = sshll.u32 [#allocation10], 4
      %s87 = int_to_ptr.vmem [resolvable:$true] %s86
      %89 = dma.hbm_to_vmem [thread:$0]  %s5, 32, %s87, [#allocation9]
    $region25: #{tpu_custom_call.1} parent=1 // pred_fallthru
      _
    // Predicated region
    $region26: #{tpu_custom_call.1} parent=1 // pred_check
      _
    $region27: #{tpu_custom_call.1} parent=1 // pred_check_branch
      %91 = sbr.rel (0) target = $region29
    $region28: #{tpu_custom_call.1} parent=1 // pred_region
      %s93 = ssub.s32 2048, 2048
      %94 = vsyncadd [#allocation12], %s93
      %s95 = sshll.u32 [#allocation11], 4
      %s96 = int_to_ptr.vmem [resolvable:$true] %s95
      %101 = dma.hbm_to_vmem [thread:$0]  %s6, 2048, %s96, [#allocation12], 64, 64, 4
    $region29: #{tpu_custom_call.1} parent=1 // pred_fallthru
      _
    // Predicated region
    $region30: #{tpu_custom_call.1} parent=1 // pred_check
      _
    $region31: #{tpu_custom_call.1} parent=1 // pred_check_branch
      %103 = sbr.rel (0) target = $region33
    $region32: #{tpu_custom_call.1} parent=1 // pred_region
      %s105 = ssub.s32 16, 16
      %106 = vsyncadd [#allocation12], %s105
      %s108 = sshll.u32 [#allocation13], 4
      %s109 = int_to_ptr.vmem [resolvable:$true] %s108
      %111 = dma.hbm_to_vmem [thread:$0]  %s7, 16, %s109, [#allocation12]
    $region33: #{tpu_custom_call.1} parent=1 // pred_fallthru
      _
    // Predicated region
    $region34: #{tpu_custom_call.1} parent=1 // pred_check
      _
    $region35: #{tpu_custom_call.1} parent=1 // pred_check_branch
      %113 = sbr.rel (0) target = $region37
    $region36: #{tpu_custom_call.1} parent=1 // pred_region
      %s115 = ssub.s32 2048, 2048
      %116 = vsyncadd [#allocation15], %s115
      %s117 = sshll.u32 [#allocation14], 4
      %s118 = int_to_ptr.vmem [resolvable:$true] %s117
      %123 = dma.hbm_to_vmem [thread:$0]  %s8, 2048, %s118, [#allocation15], 128, 128, 8
    $region37: #{tpu_custom_call.1} parent=1 // pred_fallthru
      _
    // Predicated region
    $region38: #{tpu_custom_call.1} parent=1 // pred_check
      _
    $region39: #{tpu_custom_call.1} parent=1 // pred_check_branch
      %125 = sbr.rel (0) target = $region41
    $region40: #{tpu_custom_call.1} parent=1 // pred_region
      %s127 = ssub.s32 32, 32
      %128 = vsyncadd [#allocation15], %s127
      %s130 = sshll.u32 [#allocation16], 4
      %s131 = int_to_ptr.vmem [resolvable:$true] %s130
      %133 = dma.hbm_to_vmem [thread:$0]  %s9, 32, %s131, [#allocation15]
    $region41: #{tpu_custom_call.1} parent=1 // pred_fallthru
      _
    // Predicated region
    $region42: #{tpu_custom_call.1} parent=1 // pred_check
      _
    $region43: #{tpu_custom_call.1} parent=1 // pred_check_branch
      %135 = sbr.rel (0) target = $region45
    $region44: #{tpu_custom_call.1} parent=1 // pred_region
      %s137 = ssub.s32 1024, 1024
      %138 = vsyncadd [#allocation18], %s137
      %s139 = sshll.u32 [#allocation17], 4
      %s140 = int_to_ptr.vmem [resolvable:$true] %s139
      %145 = dma.hbm_to_vmem [thread:$0]  %s10, 1024, %s140, [#allocation18], 64, 64, 4
    $region45: #{tpu_custom_call.1} parent=1 // pred_fallthru
      _
    // Predicated region
    $region46: #{tpu_custom_call.1} parent=1 // pred_check
      _
    $region47: #{tpu_custom_call.1} parent=1 // pred_check_branch
      %147 = sbr.rel (0) target = $region49
    $region48: #{tpu_custom_call.1} parent=1 // pred_region
      _
    $region49: #{tpu_custom_call.1} parent=1 // pred_fallthru
      _
    // Predicated region
    $region50: #{tpu_custom_call.1} parent=1 // pred_check
      _
    $region51: #{tpu_custom_call.1} parent=1 // pred_check_branch
      %149 = sbr.rel (0) target = $region53
    $region52: #{tpu_custom_call.1} parent=1 // pred_region
      %s151 = ssub.s32 2048, 2048
      %152 = vsyncadd [#allocation18], %s151
      %s153 = sshll.u32 [#allocation19], 4
      %s154 = int_to_ptr.vmem [resolvable:$true] %s153
      %159 = dma.hbm_to_vmem [thread:$0]  %s12, 2048, %s154, [#allocation18], 128, 128, 8
    $region53: #{tpu_custom_call.1} parent=1 // pred_fallthru
      _
    // Predicated region
    $region54: #{tpu_custom_call.1} parent=1 // pred_check
      _
    $region55: #{tpu_custom_call.1} parent=1 // pred_check_branch
      %161 = sbr.rel (0) target = $region57
    $region56: #{tpu_custom_call.1} parent=1 // pred_region
      _
    $region57: #{tpu_custom_call.1} parent=1 // pred_fallthru
      _
    // Predicated region
    $region58: #{tpu_custom_call.1} parent=1 // pred_check
      _
    $region59: #{tpu_custom_call.1} parent=1 // pred_check_branch
      %163 = sbr.rel (0) target = $region61
    $region60: #{tpu_custom_call.1} parent=1 // pred_region
      %s165 = ssub.s32 8192, 8192
      %166 = vsyncadd [#allocation21], %s165
      %s167 = sshll.u32 [#allocation20], 4
      %s168 = int_to_ptr.vmem [resolvable:$true] %s167
      %173 = dma.hbm_to_vmem [thread:$0]  %s14, 8192, %s168, [#allocation21], 256, 256, 16
    $region61: #{tpu_custom_call.1} parent=1 // pred_fallthru
      _
    // Predicated region
    $region62: #{tpu_custom_call.1} parent=1 // pred_check
      _
    $region63: #{tpu_custom_call.1} parent=1 // pred_check_branch
      %175 = sbr.rel (0) target = $region65
    $region64: #{tpu_custom_call.1} parent=1 // pred_region
      _
    $region65: #{tpu_custom_call.1} parent=1 // pred_fallthru
      _
    // Predicated region
    $region66: #{tpu_custom_call.1} parent=1 // pred_check
      _
    $region67: #{tpu_custom_call.1} parent=1 // pred_check_branch
      %177 = sbr.rel (0) target = $region69
    $region68: #{tpu_custom_call.1} parent=1 // pred_region
      %s179 = ssub.s32 32768, 32768
      %180 = vsyncadd [#allocation21], %s179
      %s181 = sshll.u32 [#allocation22], 4
      %s182 = int_to_ptr.vmem [resolvable:$true] %s181
      %187 = dma.hbm_to_vmem [thread:$0]  %s16, 32768, %s182, [#allocation21], 512, 512, 32
    $region69: #{tpu_custom_call.1} parent=1 // pred_fallthru
      _
    // Predicated region
    $region70: #{tpu_custom_call.1} parent=1 // pred_check
      _
    $region71: #{tpu_custom_call.1} parent=1 // pred_check_branch
      %189 = sbr.rel (0) target = $region73
    $region72: #{tpu_custom_call.1} parent=1 // pred_region
      _
    $region73: #{tpu_custom_call.1} parent=1 // pred_fallthru
      _
    // Predicated region
    $region74: #{tpu_custom_call.1} parent=1 // pred_check
      _
    $region75: #{tpu_custom_call.1} parent=1 // pred_check_branch
      %191 = sbr.rel (0) target = $region77
    $region76: #{tpu_custom_call.1} parent=1 // pred_region
      %192 = dma.done [#allocation3], 512
    $region77: #{tpu_custom_call.1} parent=1 // pred_fallthru
      _
    // Predicated region
    $region78: #{tpu_custom_call.1} parent=1 // pred_check
      _
    $region79: #{tpu_custom_call.1} parent=1 // pred_check_branch
      %194 = sbr.rel (0) target = $region81
    $region80: #{tpu_custom_call.1} parent=1 // pred_region
      %195 = dma.done [#allocation6], 128
    $region81: #{tpu_custom_call.1} parent=1 // pred_fallthru
      _
    // Predicated region
    $region82: #{tpu_custom_call.1} parent=1 // pred_check
      _
    $region83: #{tpu_custom_call.1} parent=1 // pred_check_branch
      %197 = sbr.rel (0) target = $region85
    $region84: #{tpu_custom_call.1} parent=1 // pred_region
      %198 = dma.done [#allocation6], 32768
    $region85: #{tpu_custom_call.1} parent=1 // pred_fallthru
      _
    // Predicated region
    $region86: #{tpu_custom_call.1} parent=1 // pred_check
      _
    $region87: #{tpu_custom_call.1} parent=1 // pred_check_branch
      %200 = sbr.rel (0) target = $region89
    $region88: #{tpu_custom_call.1} parent=1 // pred_region
      %201 = dma.done [#allocation9], 8192
    $region89: #{tpu_custom_call.1} parent=1 // pred_fallthru
      _
    // Predicated region
    $region90: #{tpu_custom_call.1} parent=1 // pred_check
      _
    $region91: #{tpu_custom_call.1} parent=1 // pred_check_branch
      %203 = sbr.rel (0) target = $region93
    $region92: #{tpu_custom_call.1} parent=1 // pred_region
      %204 = dma.done [#allocation9], 32
    $region93: #{tpu_custom_call.1} parent=1 // pred_fallthru
      _
    // Predicated region
    $region94: #{tpu_custom_call.1} parent=1 // pred_check
      _
    $region95: #{tpu_custom_call.1} parent=1 // pred_check_branch
      %206 = sbr.rel (0) target = $region97
    $region96: #{tpu_custom_call.1} parent=1 // pred_region
      %207 = dma.done [#allocation12], 2048
    $region97: #{tpu_custom_call.1} parent=1 // pred_fallthru
      _
    // Predicated region
    $region98: #{tpu_custom_call.1} parent=1 // pred_check
      _
    $region99: #{tpu_custom_call.1} parent=1 // pred_check_branch
      %209 = sbr.rel (0) target = $region101
    $region100: #{tpu_custom_call.1} parent=1 // pred_region
      %210 = dma.done [#allocation12], 16
    $region101: #{tpu_custom_call.1} parent=1 // pred_fallthru
      _
    // Predicated region
    $region102: #{tpu_custom_call.1} parent=1 // pred_check
      _
    $region103: #{tpu_custom_call.1} parent=1 // pred_check_branch
      %212 = sbr.rel (0) target = $region105
    $region104: #{tpu_custom_call.1} parent=1 // pred_region
      %213 = dma.done [#allocation15], 2048
    $region105: #{tpu_custom_call.1} parent=1 // pred_fallthru
      _
    // Predicated region
    $region106: #{tpu_custom_call.1} parent=1 // pred_check
      _
    $region107: #{tpu_custom_call.1} parent=1 // pred_check_branch
      %215 = sbr.rel (0) target = $region109
    $region108: #{tpu_custom_call.1} parent=1 // pred_region
      %216 = dma.done [#allocation15], 32
    $region109: #{tpu_custom_call.1} parent=1 // pred_fallthru
      _
    // Predicated region
    $region110: #{tpu_custom_call.1} parent=1 // pred_check
      _
    $region111: #{tpu_custom_call.1} parent=1 // pred_check_branch
      %218 = sbr.rel (0) target = $region113
    $region112: #{tpu_custom_call.1} parent=1 // pred_region
      %219 = dma.done [#allocation18], 1024
    $region113: #{tpu_custom_call.1} parent=1 // pred_fallthru
      _
    // Predicated region
    $region114: #{tpu_custom_call.1} parent=1 // pred_check
      _
    $region115: #{tpu_custom_call.1} parent=1 // pred_check_branch
      %221 = sbr.rel (0) target = $region117
    $region116: #{tpu_custom_call.1} parent=1 // pred_region
      %222 = dma.done [#allocation18], 2048
    $region117: #{tpu_custom_call.1} parent=1 // pred_fallthru
      _
    // Predicated region
    $region118: #{tpu_custom_call.1} parent=1 // pred_check
      _
    $region119: #{tpu_custom_call.1} parent=1 // pred_check_branch
      %224 = sbr.rel (0) target = $region121
    $region120: #{tpu_custom_call.1} parent=1 // pred_region
      %225 = dma.done [#allocation21], 8192
    $region121: #{tpu_custom_call.1} parent=1 // pred_fallthru
      _
    // Predicated region
    $region122: #{tpu_custom_call.1} parent=1 // pred_check
      _
    $region123: #{tpu_custom_call.1} parent=1 // pred_check_branch
      %227 = sbr.rel (0) target = $region125
    $region124: #{tpu_custom_call.1} parent=1 // pred_region
      %228 = dma.done [#allocation21], 32768
    $region125: #{tpu_custom_call.1} parent=1 // pred_fallthru
      _
    %v230 = vld [vmem:[#allocation2] sm:$0xff]
    %v231 = vld [vmem:[#allocation2 + $0x8] sm:$0xff]
    %v232 = vld [vmem:[#allocation2 + $0x10] sm:$0xff]
    %v233 = vld [vmem:[#allocation2 + $0x18] sm:$0xff]
    %v234 = vld [vmem:[#allocation7] sm:$0xff]
    %v235 = vld [vmem:[#allocation7 + $0x8] sm:$0xff]
    %v236 = vld [vmem:[#allocation7 + $0x10] sm:$0xff]
    %v237 = vld [vmem:[#allocation7 + $0x18] sm:$0xff]
    %v238 = vld [vmem:[#allocation7 + $0x20] sm:$0xff]
    %v239 = vld [vmem:[#allocation7 + $0x28] sm:$0xff]
    %v240 = vld [vmem:[#allocation7 + $0x30] sm:$0xff]
    %v241 = vld [vmem:[#allocation7 + $0x38] sm:$0xff]
    %v242 = vld [vmem:[#allocation7 + $0x40] sm:$0xff]
    %v243 = vld [vmem:[#allocation7 + $0x48] sm:$0xff]
    %v244 = vld [vmem:[#allocation7 + $0x50] sm:$0xff]
    %v245 = vld [vmem:[#allocation7 + $0x58] sm:$0xff]
    %v246 = vld [vmem:[#allocation7 + $0x60] sm:$0xff]
    %v247 = vld [vmem:[#allocation7 + $0x68] sm:$0xff]
    %v248 = vld [vmem:[#allocation7 + $0x70] sm:$0xff]
    %v249 = vld [vmem:[#allocation7 + $0x78] sm:$0xff]
    %v250 = vld [vmem:[#allocation7 + $0x80] sm:$0xff]
    %v251 = vld [vmem:[#allocation7 + $0x88] sm:$0xff]
    %v252 = vld [vmem:[#allocation7 + $0x90] sm:$0xff]
    %v253 = vld [vmem:[#allocation7 + $0x98] sm:$0xff]
    %v254 = vld [vmem:[#allocation7 + $0xa0] sm:$0xff]
    %v255 = vld [vmem:[#allocation7 + $0xa8] sm:$0xff]
    %v256 = vld [vmem:[#allocation7 + $0xb0] sm:$0xff]
    %v257 = vld [vmem:[#allocation7 + $0xb8] sm:$0xff]
    %v258 = vld [vmem:[#allocation7 + $0xc0] sm:$0xff]
    %v259 = vld [vmem:[#allocation7 + $0xc8] sm:$0xff]
    %v260 = vld [vmem:[#allocation7 + $0xd0] sm:$0xff]
    %v261 = vld [vmem:[#allocation7 + $0xd8] sm:$0xff]
    %v262 = vld [vmem:[#allocation7 + $0xe0] sm:$0xff]
    %v263 = vld [vmem:[#allocation7 + $0xe8] sm:$0xff]
    %v264 = vld [vmem:[#allocation7 + $0xf0] sm:$0xff]
    %v265 = vld [vmem:[#allocation7 + $0xf8] sm:$0xff]
    %v266 = vld [vmem:[#allocation7 + $0x100] sm:$0xff]
    %v267 = vld [vmem:[#allocation7 + $0x108] sm:$0xff]
    %v268 = vld [vmem:[#allocation7 + $0x110] sm:$0xff]
    %v269 = vld [vmem:[#allocation7 + $0x118] sm:$0xff]
    %v270 = vld [vmem:[#allocation7 + $0x120] sm:$0xff]
    %v271 = vld [vmem:[#allocation7 + $0x128] sm:$0xff]
    %v272 = vld [vmem:[#allocation7 + $0x130] sm:$0xff]
    %v273 = vld [vmem:[#allocation7 + $0x138] sm:$0xff]
    %v274 = vld [vmem:[#allocation7 + $0x140] sm:$0xff]
    %v275 = vld [vmem:[#allocation7 + $0x148] sm:$0xff]
    %v276 = vld [vmem:[#allocation7 + $0x150] sm:$0xff]
    %v277 = vld [vmem:[#allocation7 + $0x158] sm:$0xff]
    %v278 = vld [vmem:[#allocation7 + $0x160] sm:$0xff]
    %v279 = vld [vmem:[#allocation7 + $0x168] sm:$0xff]
    %v280 = vld [vmem:[#allocation7 + $0x170] sm:$0xff]
    %v281 = vld [vmem:[#allocation7 + $0x178] sm:$0xff]
    %v282 = vld [vmem:[#allocation7 + $0x180] sm:$0xff]
    %v283 = vld [vmem:[#allocation7 + $0x188] sm:$0xff]
    %v284 = vld [vmem:[#allocation7 + $0x190] sm:$0xff]
    %v285 = vld [vmem:[#allocation7 + $0x198] sm:$0xff]
    %v286 = vld [vmem:[#allocation7 + $0x1a0] sm:$0xff]
    %v287 = vld [vmem:[#allocation7 + $0x1a8] sm:$0xff]
    %v288 = vld [vmem:[#allocation7 + $0x1b0] sm:$0xff]
    %v289 = vld [vmem:[#allocation7 + $0x1b8] sm:$0xff]
    %v290 = vld [vmem:[#allocation7 + $0x1c0] sm:$0xff]
    %v291 = vld [vmem:[#allocation7 + $0x1c8] sm:$0xff]
    %v292 = vld [vmem:[#allocation7 + $0x1d0] sm:$0xff]
    %v293 = vld [vmem:[#allocation7 + $0x1d8] sm:$0xff]
    %v294 = vld [vmem:[#allocation7 + $0x1e0] sm:$0xff]
    %v295 = vld [vmem:[#allocation7 + $0x1e8] sm:$0xff]
    %v296 = vld [vmem:[#allocation7 + $0x1f0] sm:$0xff]
    %v297 = vld [vmem:[#allocation7 + $0x1f8] sm:$0xff]
    %v298 = vld [vmem:[#allocation7 + $0x200] sm:$0xff]
    %v299 = vld [vmem:[#allocation7 + $0x208] sm:$0xff]
    %v300 = vld [vmem:[#allocation7 + $0x210] sm:$0xff]
    %v301 = vld [vmem:[#allocation7 + $0x218] sm:$0xff]
    %v302 = vld [vmem:[#allocation7 + $0x220] sm:$0xff]
    %v303 = vld [vmem:[#allocation7 + $0x228] sm:$0xff]
    %v304 = vld [vmem:[#allocation7 + $0x230] sm:$0xff]
    %v305 = vld [vmem:[#allocation7 + $0x238] sm:$0xff]
    %v306 = vld [vmem:[#allocation7 + $0x240] sm:$0xff]
    %v307 = vld [vmem:[#allocation7 + $0x248] sm:$0xff]
    %v308 = vld [vmem:[#allocation7 + $0x250] sm:$0xff]
    %v309 = vld [vmem:[#allocation7 + $0x258] sm:$0xff]
    %v310 = vld [vmem:[#allocation7 + $0x260] sm:$0xff]
    %v311 = vld [vmem:[#allocation7 + $0x268] sm:$0xff]
    %v312 = vld [vmem:[#allocation7 + $0x270] sm:$0xff]
    %v313 = vld [vmem:[#allocation7 + $0x278] sm:$0xff]
    %v314 = vld [vmem:[#allocation7 + $0x280] sm:$0xff]
    %v315 = vld [vmem:[#allocation7 + $0x288] sm:$0xff]
    %v316 = vld [vmem:[#allocation7 + $0x290] sm:$0xff]
    %v317 = vld [vmem:[#allocation7 + $0x298] sm:$0xff]
    %v318 = vld [vmem:[#allocation7 + $0x2a0] sm:$0xff]
    %v319 = vld [vmem:[#allocation7 + $0x2a8] sm:$0xff]
    %v320 = vld [vmem:[#allocation7 + $0x2b0] sm:$0xff]
    %v321 = vld [vmem:[#allocation7 + $0x2b8] sm:$0xff]
    %v322 = vld [vmem:[#allocation7 + $0x2c0] sm:$0xff]
    %v323 = vld [vmem:[#allocation7 + $0x2c8] sm:$0xff]
    %v324 = vld [vmem:[#allocation7 + $0x2d0] sm:$0xff]
    %v325 = vld [vmem:[#allocation7 + $0x2d8] sm:$0xff]
    %v326 = vld [vmem:[#allocation7 + $0x2e0] sm:$0xff]
    %v327 = vld [vmem:[#allocation7 + $0x2e8] sm:$0xff]
    %v328 = vld [vmem:[#allocation7 + $0x2f0] sm:$0xff]
    %v329 = vld [vmem:[#allocation7 + $0x2f8] sm:$0xff]
    %v330 = vld [vmem:[#allocation7 + $0x300] sm:$0xff]
    %v331 = vld [vmem:[#allocation7 + $0x308] sm:$0xff]
    %v332 = vld [vmem:[#allocation7 + $0x310] sm:$0xff]
    %v333 = vld [vmem:[#allocation7 + $0x318] sm:$0xff]
    %v334 = vld [vmem:[#allocation7 + $0x320] sm:$0xff]
    %v335 = vld [vmem:[#allocation7 + $0x328] sm:$0xff]
    %v336 = vld [vmem:[#allocation7 + $0x330] sm:$0xff]
    %v337 = vld [vmem:[#allocation7 + $0x338] sm:$0xff]
    %v338 = vld [vmem:[#allocation7 + $0x340] sm:$0xff]
    %v339 = vld [vmem:[#allocation7 + $0x348] sm:$0xff]
    %v340 = vld [vmem:[#allocation7 + $0x350] sm:$0xff]
    %v341 = vld [vmem:[#allocation7 + $0x358] sm:$0xff]
    %v342 = vld [vmem:[#allocation7 + $0x360] sm:$0xff]
    %v343 = vld [vmem:[#allocation7 + $0x368] sm:$0xff]
    %v344 = vld [vmem:[#allocation7 + $0x370] sm:$0xff]
    %v345 = vld [vmem:[#allocation7 + $0x378] sm:$0xff]
    %v346 = vld [vmem:[#allocation7 + $0x380] sm:$0xff]
    %v347 = vld [vmem:[#allocation7 + $0x388] sm:$0xff]
    %v348 = vld [vmem:[#allocation7 + $0x390] sm:$0xff]
    %v349 = vld [vmem:[#allocation7 + $0x398] sm:$0xff]
    %v350 = vld [vmem:[#allocation7 + $0x3a0] sm:$0xff]
    %v351 = vld [vmem:[#allocation7 + $0x3a8] sm:$0xff]
    %v352 = vld [vmem:[#allocation7 + $0x3b0] sm:$0xff]
    %v353 = vld [vmem:[#allocation7 + $0x3b8] sm:$0xff]
    %v354 = vld [vmem:[#allocation7 + $0x3c0] sm:$0xff]
    %v355 = vld [vmem:[#allocation7 + $0x3c8] sm:$0xff]
    %v356 = vld [vmem:[#allocation7 + $0x3d0] sm:$0xff]
    %v357 = vld [vmem:[#allocation7 + $0x3d8] sm:$0xff]
    %v358 = vld [vmem:[#allocation7 + $0x3e0] sm:$0xff]
    %v359 = vld [vmem:[#allocation7 + $0x3e8] sm:$0xff]
    %v360 = vld [vmem:[#allocation7 + $0x3f0] sm:$0xff]
    %v361 = vld [vmem:[#allocation7 + $0x3f8] sm:$0xff]
    %v362 = vld [vmem:[#allocation7 + $0x400] sm:$0xff]
    %v363 = vld [vmem:[#allocation7 + $0x408] sm:$0xff]
    %v364 = vld [vmem:[#allocation7 + $0x410] sm:$0xff]
    %v365 = vld [vmem:[#allocation7 + $0x418] sm:$0xff]
    %v366 = vld [vmem:[#allocation7 + $0x420] sm:$0xff]
    %v367 = vld [vmem:[#allocation7 + $0x428] sm:$0xff]
    %v368 = vld [vmem:[#allocation7 + $0x430] sm:$0xff]
    %v369 = vld [vmem:[#allocation7 + $0x438] sm:$0xff]
    %v370 = vld [vmem:[#allocation7 + $0x440] sm:$0xff]
    %v371 = vld [vmem:[#allocation7 + $0x448] sm:$0xff]
    %v372 = vld [vmem:[#allocation7 + $0x450] sm:$0xff]
    %v373 = vld [vmem:[#allocation7 + $0x458] sm:$0xff]
    %v374 = vld [vmem:[#allocation7 + $0x460] sm:$0xff]
    %v375 = vld [vmem:[#allocation7 + $0x468] sm:$0xff]
    %v376 = vld [vmem:[#allocation7 + $0x470] sm:$0xff]
    %v377 = vld [vmem:[#allocation7 + $0x478] sm:$0xff]
    %v378 = vld [vmem:[#allocation7 + $0x480] sm:$0xff]
    %v379 = vld [vmem:[#allocation7 + $0x488] sm:$0xff]
    %v380 = vld [vmem:[#allocation7 + $0x490] sm:$0xff]
    %v381 = vld [vmem:[#allocation7 + $0x498] sm:$0xff]
    %v382 = vld [vmem:[#allocation7 + $0x4a0] sm:$0xff]
    %v383 = vld [vmem:[#allocation7 + $0x4a8] sm:$0xff]
    %v384 = vld [vmem:[#allocation7 + $0x4b0] sm:$0xff]
    %v385 = vld [vmem:[#allocation7 + $0x4b8] sm:$0xff]
    %v386 = vld [vmem:[#allocation7 + $0x4c0] sm:$0xff]
    %v387 = vld [vmem:[#allocation7 + $0x4c8] sm:$0xff]
    %v388 = vld [vmem:[#allocation7 + $0x4d0] sm:$0xff]
    %v389 = vld [vmem:[#allocation7 + $0x4d8] sm:$0xff]
    %v390 = vld [vmem:[#allocation7 + $0x4e0] sm:$0xff]
    %v391 = vld [vmem:[#allocation7 + $0x4e8] sm:$0xff]
    %v392 = vld [vmem:[#allocation7 + $0x4f0] sm:$0xff]
    %v393 = vld [vmem:[#allocation7 + $0x4f8] sm:$0xff]
    %v394 = vld [vmem:[#allocation7 + $0x500] sm:$0xff]
    %v395 = vld [vmem:[#allocation7 + $0x508] sm:$0xff]
    %v396 = vld [vmem:[#allocation7 + $0x510] sm:$0xff]
    %v397 = vld [vmem:[#allocation7 + $0x518] sm:$0xff]
    %v398 = vld [vmem:[#allocation7 + $0x520] sm:$0xff]
    %v399 = vld [vmem:[#allocation7 + $0x528] sm:$0xff]
    %v400 = vld [vmem:[#allocation7 + $0x530] sm:$0xff]
    %v401 = vld [vmem:[#allocation7 + $0x538] sm:$0xff]
    %v402 = vld [vmem:[#allocation7 + $0x540] sm:$0xff]
    %v403 = vld [vmem:[#allocation7 + $0x548] sm:$0xff]
    %v404 = vld [vmem:[#allocation7 + $0x550] sm:$0xff]
    %v405 = vld [vmem:[#allocation7 + $0x558] sm:$0xff]
    %v406 = vld [vmem:[#allocation7 + $0x560] sm:$0xff]
    %v407 = vld [vmem:[#allocation7 + $0x568] sm:$0xff]
    %v408 = vld [vmem:[#allocation7 + $0x570] sm:$0xff]
    %v409 = vld [vmem:[#allocation7 + $0x578] sm:$0xff]
    %v410 = vld [vmem:[#allocation7 + $0x580] sm:$0xff]
    %v411 = vld [vmem:[#allocation7 + $0x588] sm:$0xff]
    %v412 = vld [vmem:[#allocation7 + $0x590] sm:$0xff]
    %v413 = vld [vmem:[#allocation7 + $0x598] sm:$0xff]
    %v414 = vld [vmem:[#allocation7 + $0x5a0] sm:$0xff]
    %v415 = vld [vmem:[#allocation7 + $0x5a8] sm:$0xff]
    %v416 = vld [vmem:[#allocation7 + $0x5b0] sm:$0xff]
    %v417 = vld [vmem:[#allocation7 + $0x5b8] sm:$0xff]
    %v418 = vld [vmem:[#allocation7 + $0x5c0] sm:$0xff]
    %v419 = vld [vmem:[#allocation7 + $0x5c8] sm:$0xff]
    %v420 = vld [vmem:[#allocation7 + $0x5d0] sm:$0xff]
    %v421 = vld [vmem:[#allocation7 + $0x5d8] sm:$0xff]
    %v422 = vld [vmem:[#allocation7 + $0x5e0] sm:$0xff]
    %v423 = vld [vmem:[#allocation7 + $0x5e8] sm:$0xff]
    %v424 = vld [vmem:[#allocation7 + $0x5f0] sm:$0xff]
    %v425 = vld [vmem:[#allocation7 + $0x5f8] sm:$0xff]
    %v426 = vld [vmem:[#allocation7 + $0x600] sm:$0xff]
    %v427 = vld [vmem:[#allocation7 + $0x608] sm:$0xff]
    %v428 = vld [vmem:[#allocation7 + $0x610] sm:$0xff]
    %v429 = vld [vmem:[#allocation7 + $0x618] sm:$0xff]
    %v430 = vld [vmem:[#allocation7 + $0x620] sm:$0xff]
    %v431 = vld [vmem:[#allocation7 + $0x628] sm:$0xff]
    %v432 = vld [vmem:[#allocation7 + $0x630] sm:$0xff]
    %v433 = vld [vmem:[#allocation7 + $0x638] sm:$0xff]
    %v434 = vld [vmem:[#allocation7 + $0x640] sm:$0xff]
    %v435 = vld [vmem:[#allocation7 + $0x648] sm:$0xff]
    %v436 = vld [vmem:[#allocation7 + $0x650] sm:$0xff]
    %v437 = vld [vmem:[#allocation7 + $0x658] sm:$0xff]
    %v438 = vld [vmem:[#allocation7 + $0x660] sm:$0xff]
    %v439 = vld [vmem:[#allocation7 + $0x668] sm:$0xff]
    %v440 = vld [vmem:[#allocation7 + $0x670] sm:$0xff]
    %v441 = vld [vmem:[#allocation7 + $0x678] sm:$0xff]
    %v442 = vld [vmem:[#allocation7 + $0x680] sm:$0xff]
    %v443 = vld [vmem:[#allocation7 + $0x688] sm:$0xff]
    %v444 = vld [vmem:[#allocation7 + $0x690] sm:$0xff]
    %v445 = vld [vmem:[#allocation7 + $0x698] sm:$0xff]
    %v446 = vld [vmem:[#allocation7 + $0x6a0] sm:$0xff]
    %v447 = vld [vmem:[#allocation7 + $0x6a8] sm:$0xff]
    %v448 = vld [vmem:[#allocation7 + $0x6b0] sm:$0xff]
    %v449 = vld [vmem:[#allocation7 + $0x6b8] sm:$0xff]
    %v450 = vld [vmem:[#allocation7 + $0x6c0] sm:$0xff]
    %v451 = vld [vmem:[#allocation7 + $0x6c8] sm:$0xff]
    %v452 = vld [vmem:[#allocation7 + $0x6d0] sm:$0xff]
    %v453 = vld [vmem:[#allocation7 + $0x6d8] sm:$0xff]
    %v454 = vld [vmem:[#allocation7 + $0x6e0] sm:$0xff]
    %v455 = vld [vmem:[#allocation7 + $0x6e8] sm:$0xff]
    %v456 = vld [vmem:[#allocation7 + $0x6f0] sm:$0xff]
    %v457 = vld [vmem:[#allocation7 + $0x6f8] sm:$0xff]
    %v458 = vld [vmem:[#allocation7 + $0x700] sm:$0xff]
    %v459 = vld [vmem:[#allocation7 + $0x708] sm:$0xff]
    %v460 = vld [vmem:[#allocation7 + $0x710] sm:$0xff]
    %v461 = vld [vmem:[#allocation7 + $0x718] sm:$0xff]
    %v462 = vld [vmem:[#allocation7 + $0x720] sm:$0xff]
    %v463 = vld [vmem:[#allocation7 + $0x728] sm:$0xff]
    %v464 = vld [vmem:[#allocation7 + $0x730] sm:$0xff]
    %v465 = vld [vmem:[#allocation7 + $0x738] sm:$0xff]
    %v466 = vld [vmem:[#allocation7 + $0x740] sm:$0xff]
    %v467 = vld [vmem:[#allocation7 + $0x748] sm:$0xff]
    %v468 = vld [vmem:[#allocation7 + $0x750] sm:$0xff]
    %v469 = vld [vmem:[#allocation7 + $0x758] sm:$0xff]
    %v470 = vld [vmem:[#allocation7 + $0x760] sm:$0xff]
    %v471 = vld [vmem:[#allocation7 + $0x768] sm:$0xff]
    %v472 = vld [vmem:[#allocation7 + $0x770] sm:$0xff]
    %v473 = vld [vmem:[#allocation7 + $0x778] sm:$0xff]
    %v474 = vld [vmem:[#allocation7 + $0x780] sm:$0xff]
    %v475 = vld [vmem:[#allocation7 + $0x788] sm:$0xff]
    %v476 = vld [vmem:[#allocation7 + $0x790] sm:$0xff]
    %v477 = vld [vmem:[#allocation7 + $0x798] sm:$0xff]
    %v478 = vld [vmem:[#allocation7 + $0x7a0] sm:$0xff]
    %v479 = vld [vmem:[#allocation7 + $0x7a8] sm:$0xff]
    %v480 = vld [vmem:[#allocation7 + $0x7b0] sm:$0xff]
    %v481 = vld [vmem:[#allocation7 + $0x7b8] sm:$0xff]
    %v482 = vld [vmem:[#allocation7 + $0x7c0] sm:$0xff]
    %v483 = vld [vmem:[#allocation7 + $0x7c8] sm:$0xff]
    %v484 = vld [vmem:[#allocation7 + $0x7d0] sm:$0xff]
    %v485 = vld [vmem:[#allocation7 + $0x7d8] sm:$0xff]
    %v486 = vld [vmem:[#allocation7 + $0x7e0] sm:$0xff]
    %v487 = vld [vmem:[#allocation7 + $0x7e8] sm:$0xff]
    %v488 = vld [vmem:[#allocation7 + $0x7f0] sm:$0xff]
    %v489 = vld [vmem:[#allocation7 + $0x7f8] sm:$0xff]
    %v490 = vld [vmem:[%s3] sm:$0xf]
    %v492 = vlaneseq
    %v493 = vshrl.u32 %v492, 7
    %v494 = vsub.s32 0, %v493
    %v495 = vrot.slane %v490, %v494
    %v496 = vlaneseq
    %v497 = vshrl.u32 %v496, 7
    %v498 = vsub.s32 1, %v497
    %v499 = vrot.slane %v490, %v498
    %v500 = vlaneseq
    %v501 = vshrl.u32 %v500, 7
    %v502 = vsub.s32 2, %v501
    %v503 = vrot.slane %v490, %v502
    %v504 = vlaneseq
    %v505 = vshrl.u32 %v504, 7
    %v506 = vsub.s32 3, %v505
    %v507 = vrot.slane %v490, %v506
    %v516 = vunpack.c.l.b16 %v230
    %v517 = vunpack.c.h.b16 %v230
    %v518 = vunpack.c.l.b16 %v231
    %v519 = vunpack.c.h.b16 %v231
    %v520 = vunpack.c.l.b16 %v232
    %v521 = vunpack.c.h.b16 %v232
    %v522 = vunpack.c.l.b16 %v233
    %v523 = vunpack.c.h.b16 %v233
    %v524 = vpack.c.b16 %v516, %v516
    %v525 = vpack.c.b16 %v517, %v517
    %v526 = vpack.c.b16 %v518, %v518
    %v527 = vpack.c.b16 %v519, %v519
    %v528 = vpack.c.b16 %v520, %v520
    %v529 = vpack.c.b16 %v521, %v521
    %v530 = vpack.c.b16 %v522, %v522
    %v531 = vpack.c.b16 %v523, %v523
    %v796 = vunpack.c.l.b16 %v234
    %v797 = vunpack.c.h.b16 %v234
    %v798 = vunpack.c.l.b16 %v235
    %v799 = vunpack.c.h.b16 %v235
    %v800 = vunpack.c.l.b16 %v236
    %v801 = vunpack.c.h.b16 %v236
    %v802 = vunpack.c.l.b16 %v237
    %v803 = vunpack.c.h.b16 %v237
    %v804 = vunpack.c.l.b16 %v238
    %v805 = vunpack.c.h.b16 %v238
    %v806 = vunpack.c.l.b16 %v239
    %v807 = vunpack.c.h.b16 %v239
    %v808 = vunpack.c.l.b16 %v240
    %v809 = vunpack.c.h.b16 %v240
    %v810 = vunpack.c.l.b16 %v241
    %v811 = vunpack.c.h.b16 %v241
    %v812 = vunpack.c.l.b16 %v242
    %v813 = vunpack.c.h.b16 %v242
    %v814 = vunpack.c.l.b16 %v243
    %v815 = vunpack.c.h.b16 %v243
    %v816 = vunpack.c.l.b16 %v244
    %v817 = vunpack.c.h.b16 %v244
    %v818 = vunpack.c.l.b16 %v245
    %v819 = vunpack.c.h.b16 %v245
    %v820 = vunpack.c.l.b16 %v246
    %v821 = vunpack.c.h.b16 %v246
    %v822 = vunpack.c.l.b16 %v247
    %v823 = vunpack.c.h.b16 %v247
    %v824 = vunpack.c.l.b16 %v248
    %v825 = vunpack.c.h.b16 %v248
    %v826 = vunpack.c.l.b16 %v249
    %v827 = vunpack.c.h.b16 %v249
    %v828 = vunpack.c.l.b16 %v250
    %v829 = vunpack.c.h.b16 %v250
    %v830 = vunpack.c.l.b16 %v251
    %v831 = vunpack.c.h.b16 %v251
    %v832 = vunpack.c.l.b16 %v252
    %v833 = vunpack.c.h.b16 %v252
    %v834 = vunpack.c.l.b16 %v253
    %v835 = vunpack.c.h.b16 %v253
    %v836 = vunpack.c.l.b16 %v254
    %v837 = vunpack.c.h.b16 %v254
    %v838 = vunpack.c.l.b16 %v255
    %v839 = vunpack.c.h.b16 %v255
    %v840 = vunpack.c.l.b16 %v256
    %v841 = vunpack.c.h.b16 %v256
    %v842 = vunpack.c.l.b16 %v257
    %v843 = vunpack.c.h.b16 %v257
    %v844 = vunpack.c.l.b16 %v258
    %v845 = vunpack.c.h.b16 %v258
    %v846 = vunpack.c.l.b16 %v259
    %v847 = vunpack.c.h.b16 %v259
    %v848 = vunpack.c.l.b16 %v260
    %v849 = vunpack.c.h.b16 %v260
    %v850 = vunpack.c.l.b16 %v261
    %v851 = vunpack.c.h.b16 %v261
    %v852 = vunpack.c.l.b16 %v262
    %v853 = vunpack.c.h.b16 %v262
    %v854 = vunpack.c.l.b16 %v263
    %v855 = vunpack.c.h.b16 %v263
    %v856 = vunpack.c.l.b16 %v264
    %v857 = vunpack.c.h.b16 %v264
    %v858 = vunpack.c.l.b16 %v265
    %v859 = vunpack.c.h.b16 %v265
    %v860 = vunpack.c.l.b16 %v266
    %v861 = vunpack.c.h.b16 %v266
    %v862 = vunpack.c.l.b16 %v267
    %v863 = vunpack.c.h.b16 %v267
    %v864 = vunpack.c.l.b16 %v268
    %v865 = vunpack.c.h.b16 %v268
    %v866 = vunpack.c.l.b16 %v269
    %v867 = vunpack.c.h.b16 %v269
    %v868 = vunpack.c.l.b16 %v270
    %v869 = vunpack.c.h.b16 %v270
    %v870 = vunpack.c.l.b16 %v271
    %v871 = vunpack.c.h.b16 %v271
    %v872 = vunpack.c.l.b16 %v272
    %v873 = vunpack.c.h.b16 %v272
    %v874 = vunpack.c.l.b16 %v273
    %v875 = vunpack.c.h.b16 %v273
    %v876 = vunpack.c.l.b16 %v274
    %v877 = vunpack.c.h.b16 %v274
    %v878 = vunpack.c.l.b16 %v275
    %v879 = vunpack.c.h.b16 %v275
    %v880 = vunpack.c.l.b16 %v276
    %v881 = vunpack.c.h.b16 %v276
    %v882 = vunpack.c.l.b16 %v277
    %v883 = vunpack.c.h.b16 %v277
    %v884 = vunpack.c.l.b16 %v278
    %v885 = vunpack.c.h.b16 %v278
    %v886 = vunpack.c.l.b16 %v279
    %v887 = vunpack.c.h.b16 %v279
    %v888 = vunpack.c.l.b16 %v280
    %v889 = vunpack.c.h.b16 %v280
    %v890 = vunpack.c.l.b16 %v281
    %v891 = vunpack.c.h.b16 %v281
    %v892 = vunpack.c.l.b16 %v282
    %v893 = vunpack.c.h.b16 %v282
    %v894 = vunpack.c.l.b16 %v283
    %v895 = vunpack.c.h.b16 %v283
    %v896 = vunpack.c.l.b16 %v284
    %v897 = vunpack.c.h.b16 %v284
    %v898 = vunpack.c.l.b16 %v285
    %v899 = vunpack.c.h.b16 %v285
    %v900 = vunpack.c.l.b16 %v286
    %v901 = vunpack.c.h.b16 %v286
    %v902 = vunpack.c.l.b16 %v287
    %v903 = vunpack.c.h.b16 %v287
    %v904 = vunpack.c.l.b16 %v288
    %v905 = vunpack.c.h.b16 %v288
    %v906 = vunpack.c.l.b16 %v289
    %v907 = vunpack.c.h.b16 %v289
    %v908 = vunpack.c.l.b16 %v290
    %v909 = vunpack.c.h.b16 %v290
    %v910 = vunpack.c.l.b16 %v291
    %v911 = vunpack.c.h.b16 %v291
    %v912 = vunpack.c.l.b16 %v292
    %v913 = vunpack.c.h.b16 %v292
    %v914 = vunpack.c.l.b16 %v293
    %v915 = vunpack.c.h.b16 %v293
    %v916 = vunpack.c.l.b16 %v294
    %v917 = vunpack.c.h.b16 %v294
    %v918 = vunpack.c.l.b16 %v295
    %v919 = vunpack.c.h.b16 %v295
    %v920 = vunpack.c.l.b16 %v296
    %v921 = vunpack.c.h.b16 %v296
    %v922 = vunpack.c.l.b16 %v297
    %v923 = vunpack.c.h.b16 %v297
    %v924 = vunpack.c.l.b16 %v298
    %v925 = vunpack.c.h.b16 %v298
    %v926 = vunpack.c.l.b16 %v299
    %v927 = vunpack.c.h.b16 %v299
    %v928 = vunpack.c.l.b16 %v300
    %v929 = vunpack.c.h.b16 %v300
    %v930 = vunpack.c.l.b16 %v301
    %v931 = vunpack.c.h.b16 %v301
    %v932 = vunpack.c.l.b16 %v302
    %v933 = vunpack.c.h.b16 %v302
    %v934 = vunpack.c.l.b16 %v303
    %v935 = vunpack.c.h.b16 %v303
    %v936 = vunpack.c.l.b16 %v304
    %v937 = vunpack.c.h.b16 %v304
    %v938 = vunpack.c.l.b16 %v305
    %v939 = vunpack.c.h.b16 %v305
    %v940 = vunpack.c.l.b16 %v306
    %v941 = vunpack.c.h.b16 %v306
    %v942 = vunpack.c.l.b16 %v307
    %v943 = vunpack.c.h.b16 %v307
    %v944 = vunpack.c.l.b16 %v308
    %v945 = vunpack.c.h.b16 %v308
    %v946 = vunpack.c.l.b16 %v309
    %v947 = vunpack.c.h.b16 %v309
    %v948 = vunpack.c.l.b16 %v310
    %v949 = vunpack.c.h.b16 %v310
    %v950 = vunpack.c.l.b16 %v311
    %v951 = vunpack.c.h.b16 %v311
    %v952 = vunpack.c.l.b16 %v312
    %v953 = vunpack.c.h.b16 %v312
    %v954 = vunpack.c.l.b16 %v313
    %v955 = vunpack.c.h.b16 %v313
    %v956 = vunpack.c.l.b16 %v314
    %v957 = vunpack.c.h.b16 %v314
    %v958 = vunpack.c.l.b16 %v315
    %v959 = vunpack.c.h.b16 %v315
    %v960 = vunpack.c.l.b16 %v316
    %v961 = vunpack.c.h.b16 %v316
    %v962 = vunpack.c.l.b16 %v317
    %v963 = vunpack.c.h.b16 %v317
    %v964 = vunpack.c.l.b16 %v318
    %v965 = vunpack.c.h.b16 %v318
    %v966 = vunpack.c.l.b16 %v319
    %v967 = vunpack.c.h.b16 %v319
    %v968 = vunpack.c.l.b16 %v320
    %v969 = vunpack.c.h.b16 %v320
    %v970 = vunpack.c.l.b16 %v321
    %v971 = vunpack.c.h.b16 %v321
    %v972 = vunpack.c.l.b16 %v322
    %v973 = vunpack.c.h.b16 %v322
    %v974 = vunpack.c.l.b16 %v323
    %v975 = vunpack.c.h.b16 %v323
    %v976 = vunpack.c.l.b16 %v324
    %v977 = vunpack.c.h.b16 %v324
    %v978 = vunpack.c.l.b16 %v325
    %v979 = vunpack.c.h.b16 %v325
    %v980 = vunpack.c.l.b16 %v326
    %v981 = vunpack.c.h.b16 %v326
    %v982 = vunpack.c.l.b16 %v327
    %v983 = vunpack.c.h.b16 %v327
    %v984 = vunpack.c.l.b16 %v328
    %v985 = vunpack.c.h.b16 %v328
    %v986 = vunpack.c.l.b16 %v329
    %v987 = vunpack.c.h.b16 %v329
    %v988 = vunpack.c.l.b16 %v330
    %v989 = vunpack.c.h.b16 %v330
    %v990 = vunpack.c.l.b16 %v331
    %v991 = vunpack.c.h.b16 %v331
    %v992 = vunpack.c.l.b16 %v332
    %v993 = vunpack.c.h.b16 %v332
    %v994 = vunpack.c.l.b16 %v333
    %v995 = vunpack.c.h.b16 %v333
    %v996 = vunpack.c.l.b16 %v334
    %v997 = vunpack.c.h.b16 %v334
    %v998 = vunpack.c.l.b16 %v335
    %v999 = vunpack.c.h.b16 %v335
    %v1000 = vunpack.c.l.b16 %v336
    %v1001 = vunpack.c.h.b16 %v336
    %v1002 = vunpack.c.l.b16 %v337
    %v1003 = vunpack.c.h.b16 %v337
    %v1004 = vunpack.c.l.b16 %v338
    %v1005 = vunpack.c.h.b16 %v338
    %v1006 = vunpack.c.l.b16 %v339
    %v1007 = vunpack.c.h.b16 %v339
    %v1008 = vunpack.c.l.b16 %v340
    %v1009 = vunpack.c.h.b16 %v340
    %v1010 = vunpack.c.l.b16 %v341
    %v1011 = vunpack.c.h.b16 %v341
    %v1012 = vunpack.c.l.b16 %v342
    %v1013 = vunpack.c.h.b16 %v342
    %v1014 = vunpack.c.l.b16 %v343
    %v1015 = vunpack.c.h.b16 %v343
    %v1016 = vunpack.c.l.b16 %v344
    %v1017 = vunpack.c.h.b16 %v344
    %v1018 = vunpack.c.l.b16 %v345
    %v1019 = vunpack.c.h.b16 %v345
    %v1020 = vunpack.c.l.b16 %v346
    %v1021 = vunpack.c.h.b16 %v346
    %v1022 = vunpack.c.l.b16 %v347
    %v1023 = vunpack.c.h.b16 %v347
    %v1024 = vunpack.c.l.b16 %v348
    %v1025 = vunpack.c.h.b16 %v348
    %v1026 = vunpack.c.l.b16 %v349
    %v1027 = vunpack.c.h.b16 %v349
    %v1028 = vunpack.c.l.b16 %v350
    %v1029 = vunpack.c.h.b16 %v350
    %v1030 = vunpack.c.l.b16 %v351
    %v1031 = vunpack.c.h.b16 %v351
    %v1032 = vunpack.c.l.b16 %v352
    %v1033 = vunpack.c.h.b16 %v352
    %v1034 = vunpack.c.l.b16 %v353
    %v1035 = vunpack.c.h.b16 %v353
    %v1036 = vunpack.c.l.b16 %v354
    %v1037 = vunpack.c.h.b16 %v354
    %v1038 = vunpack.c.l.b16 %v355
    %v1039 = vunpack.c.h.b16 %v355
    %v1040 = vunpack.c.l.b16 %v356
    %v1041 = vunpack.c.h.b16 %v356
    %v1042 = vunpack.c.l.b16 %v357
    %v1043 = vunpack.c.h.b16 %v357
    %v1044 = vunpack.c.l.b16 %v358
    %v1045 = vunpack.c.h.b16 %v358
    %v1046 = vunpack.c.l.b16 %v359
    %v1047 = vunpack.c.h.b16 %v359
    %v1048 = vunpack.c.l.b16 %v360
    %v1049 = vunpack.c.h.b16 %v360
    %v1050 = vunpack.c.l.b16 %v361
    %v1051 = vunpack.c.h.b16 %v361
    %v1052 = vunpack.c.l.b16 %v362
    %v1053 = vunpack.c.h.b16 %v362
    %v1054 = vunpack.c.l.b16 %v363
    %v1055 = vunpack.c.h.b16 %v363
    %v1056 = vunpack.c.l.b16 %v364
    %v1057 = vunpack.c.h.b16 %v364
    %v1058 = vunpack.c.l.b16 %v365
    %v1059 = vunpack.c.h.b16 %v365
    %v1060 = vunpack.c.l.b16 %v366
    %v1061 = vunpack.c.h.b16 %v366
    %v1062 = vunpack.c.l.b16 %v367
    %v1063 = vunpack.c.h.b16 %v367
    %v1064 = vunpack.c.l.b16 %v368
    %v1065 = vunpack.c.h.b16 %v368
    %v1066 = vunpack.c.l.b16 %v369
    %v1067 = vunpack.c.h.b16 %v369
    %v1068 = vunpack.c.l.b16 %v370
    %v1069 = vunpack.c.h.b16 %v370
    %v1070 = vunpack.c.l.b16 %v371
    %v1071 = vunpack.c.h.b16 %v371
    %v1072 = vunpack.c.l.b16 %v372
    %v1073 = vunpack.c.h.b16 %v372
    %v1074 = vunpack.c.l.b16 %v373
    %v1075 = vunpack.c.h.b16 %v373
    %v1076 = vunpack.c.l.b16 %v374
    %v1077 = vunpack.c.h.b16 %v374
    %v1078 = vunpack.c.l.b16 %v375
    %v1079 = vunpack.c.h.b16 %v375
    %v1080 = vunpack.c.l.b16 %v376
    %v1081 = vunpack.c.h.b16 %v376
    %v1082 = vunpack.c.l.b16 %v377
    %v1083 = vunpack.c.h.b16 %v377
    %v1084 = vunpack.c.l.b16 %v378
    %v1085 = vunpack.c.h.b16 %v378
    %v1086 = vunpack.c.l.b16 %v379
    %v1087 = vunpack.c.h.b16 %v379
    %v1088 = vunpack.c.l.b16 %v380
    %v1089 = vunpack.c.h.b16 %v380
    %v1090 = vunpack.c.l.b16 %v381
    %v1091 = vunpack.c.h.b16 %v381
    %v1092 = vunpack.c.l.b16 %v382
    %v1093 = vunpack.c.h.b16 %v382
    %v1094 = vunpack.c.l.b16 %v383
    %v1095 = vunpack.c.h.b16 %v383
    %v1096 = vunpack.c.l.b16 %v384
    %v1097 = vunpack.c.h.b16 %v384
    %v1098 = vunpack.c.l.b16 %v385
    %v1099 = vunpack.c.h.b16 %v385
    %v1100 = vunpack.c.l.b16 %v386
    %v1101 = vunpack.c.h.b16 %v386
    %v1102 = vunpack.c.l.b16 %v387
    %v1103 = vunpack.c.h.b16 %v387
    %v1104 = vunpack.c.l.b16 %v388
    %v1105 = vunpack.c.h.b16 %v388
    %v1106 = vunpack.c.l.b16 %v389
    %v1107 = vunpack.c.h.b16 %v389
    %v1108 = vunpack.c.l.b16 %v390
    %v1109 = vunpack.c.h.b16 %v390
    %v1110 = vunpack.c.l.b16 %v391
    %v1111 = vunpack.c.h.b16 %v391
    %v1112 = vunpack.c.l.b16 %v392
    %v1113 = vunpack.c.h.b16 %v392
    %v1114 = vunpack.c.l.b16 %v393
    %v1115 = vunpack.c.h.b16 %v393
    %v1116 = vunpack.c.l.b16 %v394
    %v1117 = vunpack.c.h.b16 %v394
    %v1118 = vunpack.c.l.b16 %v395
    %v1119 = vunpack.c.h.b16 %v395
    %v1120 = vunpack.c.l.b16 %v396
    %v1121 = vunpack.c.h.b16 %v396
    %v1122 = vunpack.c.l.b16 %v397
    %v1123 = vunpack.c.h.b16 %v397
    %v1124 = vunpack.c.l.b16 %v398
    %v1125 = vunpack.c.h.b16 %v398
    %v1126 = vunpack.c.l.b16 %v399
    %v1127 = vunpack.c.h.b16 %v399
    %v1128 = vunpack.c.l.b16 %v400
    %v1129 = vunpack.c.h.b16 %v400
    %v1130 = vunpack.c.l.b16 %v401
    %v1131 = vunpack.c.h.b16 %v401
    %v1132 = vunpack.c.l.b16 %v402
    %v1133 = vunpack.c.h.b16 %v402
    %v1134 = vunpack.c.l.b16 %v403
    %v1135 = vunpack.c.h.b16 %v403
    %v1136 = vunpack.c.l.b16 %v404
    %v1137 = vunpack.c.h.b16 %v404
    %v1138 = vunpack.c.l.b16 %v405
    %v1139 = vunpack.c.h.b16 %v405
    %v1140 = vunpack.c.l.b16 %v406
    %v1141 = vunpack.c.h.b16 %v406
    %v1142 = vunpack.c.l.b16 %v407
    %v1143 = vunpack.c.h.b16 %v407
    %v1144 = vunpack.c.l.b16 %v408
    %v1145 = vunpack.c.h.b16 %v408
    %v1146 = vunpack.c.l.b16 %v409
    %v1147 = vunpack.c.h.b16 %v409
    %v1148 = vunpack.c.l.b16 %v410
    %v1149 = vunpack.c.h.b16 %v410
    %v1150 = vunpack.c.l.b16 %v411
    %v1151 = vunpack.c.h.b16 %v411
    %v1152 = vunpack.c.l.b16 %v412
    %v1153 = vunpack.c.h.b16 %v412
    %v1154 = vunpack.c.l.b16 %v413
    %v1155 = vunpack.c.h.b16 %v413
    %v1156 = vunpack.c.l.b16 %v414
    %v1157 = vunpack.c.h.b16 %v414
    %v1158 = vunpack.c.l.b16 %v415
    %v1159 = vunpack.c.h.b16 %v415
    %v1160 = vunpack.c.l.b16 %v416
    %v1161 = vunpack.c.h.b16 %v416
    %v1162 = vunpack.c.l.b16 %v417
    %v1163 = vunpack.c.h.b16 %v417
    %v1164 = vunpack.c.l.b16 %v418
    %v1165 = vunpack.c.h.b16 %v418
    %v1166 = vunpack.c.l.b16 %v419
    %v1167 = vunpack.c.h.b16 %v419
    %v1168 = vunpack.c.l.b16 %v420
    %v1169 = vunpack.c.h.b16 %v420
    %v1170 = vunpack.c.l.b16 %v421
    %v1171 = vunpack.c.h.b16 %v421
    %v1172 = vunpack.c.l.b16 %v422
    %v1173 = vunpack.c.h.b16 %v422
    %v1174 = vunpack.c.l.b16 %v423
    %v1175 = vunpack.c.h.b16 %v423
    %v1176 = vunpack.c.l.b16 %v424
    %v1177 = vunpack.c.h.b16 %v424
    %v1178 = vunpack.c.l.b16 %v425
    %v1179 = vunpack.c.h.b16 %v425
    %v1180 = vunpack.c.l.b16 %v426
    %v1181 = vunpack.c.h.b16 %v426
    %v1182 = vunpack.c.l.b16 %v427
    %v1183 = vunpack.c.h.b16 %v427
    %v1184 = vunpack.c.l.b16 %v428
    %v1185 = vunpack.c.h.b16 %v428
    %v1186 = vunpack.c.l.b16 %v429
    %v1187 = vunpack.c.h.b16 %v429
    %v1188 = vunpack.c.l.b16 %v430
    %v1189 = vunpack.c.h.b16 %v430
    %v1190 = vunpack.c.l.b16 %v431
    %v1191 = vunpack.c.h.b16 %v431
    %v1192 = vunpack.c.l.b16 %v432
    %v1193 = vunpack.c.h.b16 %v432
    %v1194 = vunpack.c.l.b16 %v433
    %v1195 = vunpack.c.h.b16 %v433
    %v1196 = vunpack.c.l.b16 %v434
    %v1197 = vunpack.c.h.b16 %v434
    %v1198 = vunpack.c.l.b16 %v435
    %v1199 = vunpack.c.h.b16 %v435
    %v1200 = vunpack.c.l.b16 %v436
    %v1201 = vunpack.c.h.b16 %v436
    %v1202 = vunpack.c.l.b16 %v437
    %v1203 = vunpack.c.h.b16 %v437
    %v1204 = vunpack.c.l.b16 %v438
    %v1205 = vunpack.c.h.b16 %v438
    %v1206 = vunpack.c.l.b16 %v439
    %v1207 = vunpack.c.h.b16 %v439
    %v1208 = vunpack.c.l.b16 %v440
    %v1209 = vunpack.c.h.b16 %v440
    %v1210 = vunpack.c.l.b16 %v441
    %v1211 = vunpack.c.h.b16 %v441
    %v1212 = vunpack.c.l.b16 %v442
    %v1213 = vunpack.c.h.b16 %v442
    %v1214 = vunpack.c.l.b16 %v443
    %v1215 = vunpack.c.h.b16 %v443
    %v1216 = vunpack.c.l.b16 %v444
    %v1217 = vunpack.c.h.b16 %v444
    %v1218 = vunpack.c.l.b16 %v445
    %v1219 = vunpack.c.h.b16 %v445
    %v1220 = vunpack.c.l.b16 %v446
    %v1221 = vunpack.c.h.b16 %v446
    %v1222 = vunpack.c.l.b16 %v447
    %v1223 = vunpack.c.h.b16 %v447
    %v1224 = vunpack.c.l.b16 %v448
    %v1225 = vunpack.c.h.b16 %v448
    %v1226 = vunpack.c.l.b16 %v449
    %v1227 = vunpack.c.h.b16 %v449
    %v1228 = vunpack.c.l.b16 %v450
    %v1229 = vunpack.c.h.b16 %v450
    %v1230 = vunpack.c.l.b16 %v451
    %v1231 = vunpack.c.h.b16 %v451
    %v1232 = vunpack.c.l.b16 %v452
    %v1233 = vunpack.c.h.b16 %v452
    %v1234 = vunpack.c.l.b16 %v453
    %v1235 = vunpack.c.h.b16 %v453
    %v1236 = vunpack.c.l.b16 %v454
    %v1237 = vunpack.c.h.b16 %v454
    %v1238 = vunpack.c.l.b16 %v455
    %v1239 = vunpack.c.h.b16 %v455
    %v1240 = vunpack.c.l.b16 %v456
    %v1241 = vunpack.c.h.b16 %v456
    %v1242 = vunpack.c.l.b16 %v457
    %v1243 = vunpack.c.h.b16 %v457
    %v1244 = vunpack.c.l.b16 %v458
    %v1245 = vunpack.c.h.b16 %v458
    %v1246 = vunpack.c.l.b16 %v459
    %v1247 = vunpack.c.h.b16 %v459
    %v1248 = vunpack.c.l.b16 %v460
    %v1249 = vunpack.c.h.b16 %v460
    %v1250 = vunpack.c.l.b16 %v461
    %v1251 = vunpack.c.h.b16 %v461
    %v1252 = vunpack.c.l.b16 %v462
    %v1253 = vunpack.c.h.b16 %v462
    %v1254 = vunpack.c.l.b16 %v463
    %v1255 = vunpack.c.h.b16 %v463
    %v1256 = vunpack.c.l.b16 %v464
    %v1257 = vunpack.c.h.b16 %v464
    %v1258 = vunpack.c.l.b16 %v465
    %v1259 = vunpack.c.h.b16 %v465
    %v1260 = vunpack.c.l.b16 %v466
    %v1261 = vunpack.c.h.b16 %v466
    %v1262 = vunpack.c.l.b16 %v467
    %v1263 = vunpack.c.h.b16 %v467
    %v1264 = vunpack.c.l.b16 %v468
    %v1265 = vunpack.c.h.b16 %v468
    %v1266 = vunpack.c.l.b16 %v469
    %v1267 = vunpack.c.h.b16 %v469
    %v1268 = vunpack.c.l.b16 %v470
    %v1269 = vunpack.c.h.b16 %v470
    %v1270 = vunpack.c.l.b16 %v471
    %v1271 = vunpack.c.h.b16 %v471
    %v1272 = vunpack.c.l.b16 %v472
    %v1273 = vunpack.c.h.b16 %v472
    %v1274 = vunpack.c.l.b16 %v473
    %v1275 = vunpack.c.h.b16 %v473
    %v1276 = vunpack.c.l.b16 %v474
    %v1277 = vunpack.c.h.b16 %v474
    %v1278 = vunpack.c.l.b16 %v475
    %v1279 = vunpack.c.h.b16 %v475
    %v1280 = vunpack.c.l.b16 %v476
    %v1281 = vunpack.c.h.b16 %v476
    %v1282 = vunpack.c.l.b16 %v477
    %v1283 = vunpack.c.h.b16 %v477
    %v1284 = vunpack.c.l.b16 %v478
    %v1285 = vunpack.c.h.b16 %v478
    %v1286 = vunpack.c.l.b16 %v479
    %v1287 = vunpack.c.h.b16 %v479
    %v1288 = vunpack.c.l.b16 %v480
    %v1289 = vunpack.c.h.b16 %v480
    %v1290 = vunpack.c.l.b16 %v481
    %v1291 = vunpack.c.h.b16 %v481
    %v1292 = vunpack.c.l.b16 %v482
    %v1293 = vunpack.c.h.b16 %v482
    %v1294 = vunpack.c.l.b16 %v483
    %v1295 = vunpack.c.h.b16 %v483
    %v1296 = vunpack.c.l.b16 %v484
    %v1297 = vunpack.c.h.b16 %v484
    %v1298 = vunpack.c.l.b16 %v485
    %v1299 = vunpack.c.h.b16 %v485
    %v1300 = vunpack.c.l.b16 %v486
    %v1301 = vunpack.c.h.b16 %v486
    %v1302 = vunpack.c.l.b16 %v487
    %v1303 = vunpack.c.h.b16 %v487
    %v1304 = vunpack.c.l.b16 %v488
    %v1305 = vunpack.c.h.b16 %v488
    %v1306 = vunpack.c.l.b16 %v489
    %v1307 = vunpack.c.h.b16 %v489
    %v1308 = vpack.c.b16 %v800, %v796
    %v1309 = vpack.c.b16 %v801, %v797
    %v1310 = vpack.c.b16 %v802, %v798
    %v1311 = vpack.c.b16 %v803, %v799
    %v1312 = vpack.c.b16 %v808, %v804
    %v1313 = vpack.c.b16 %v809, %v805
    %v1314 = vpack.c.b16 %v810, %v806
    %v1315 = vpack.c.b16 %v811, %v807
    %v1316 = vpack.c.b16 %v816, %v812
    %v1317 = vpack.c.b16 %v817, %v813
    %v1318 = vpack.c.b16 %v818, %v814
    %v1319 = vpack.c.b16 %v819, %v815
    %v1320 = vpack.c.b16 %v824, %v820
    %v1321 = vpack.c.b16 %v825, %v821
    %v1322 = vpack.c.b16 %v826, %v822
    %v1323 = vpack.c.b16 %v827, %v823
    %v1324 = vpack.c.b16 %v832, %v828
    %v1325 = vpack.c.b16 %v833, %v829
    %v1326 = vpack.c.b16 %v834, %v830
    %v1327 = vpack.c.b16 %v835, %v831
    %v1328 = vpack.c.b16 %v840, %v836
    %v1329 = vpack.c.b16 %v841, %v837
    %v1330 = vpack.c.b16 %v842, %v838
    %v1331 = vpack.c.b16 %v843, %v839
    %v1332 = vpack.c.b16 %v848, %v844
    %v1333 = vpack.c.b16 %v849, %v845
    %v1334 = vpack.c.b16 %v850, %v846
    %v1335 = vpack.c.b16 %v851, %v847
    %v1336 = vpack.c.b16 %v856, %v852
    %v1337 = vpack.c.b16 %v857, %v853
    %v1338 = vpack.c.b16 %v858, %v854
    %v1339 = vpack.c.b16 %v859, %v855
    %v1340 = vpack.c.b16 %v864, %v860
    %v1341 = vpack.c.b16 %v865, %v861
    %v1342 = vpack.c.b16 %v866, %v862
    %v1343 = vpack.c.b16 %v867, %v863
    %v1344 = vpack.c.b16 %v872, %v868
    %v1345 = vpack.c.b16 %v873, %v869
    %v1346 = vpack.c.b16 %v874, %v870
    %v1347 = vpack.c.b16 %v875, %v871
    %v1348 = vpack.c.b16 %v880, %v876
    %v1349 = vpack.c.b16 %v881, %v877
    %v1350 = vpack.c.b16 %v882, %v878
    %v1351 = vpack.c.b16 %v883, %v879
    %v1352 = vpack.c.b16 %v888, %v884
    %v1353 = vpack.c.b16 %v889, %v885
    %v1354 = vpack.c.b16 %v890, %v886
    %v1355 = vpack.c.b16 %v891, %v887
    %v1356 = vpack.c.b16 %v896, %v892
    %v1357 = vpack.c.b16 %v897, %v893
    %v1358 = vpack.c.b16 %v898, %v894
    %v1359 = vpack.c.b16 %v899, %v895
    %v1360 = vpack.c.b16 %v904, %v900
    %v1361 = vpack.c.b16 %v905, %v901
    %v1362 = vpack.c.b16 %v906, %v902
    %v1363 = vpack.c.b16 %v907, %v903
    %v1364 = vpack.c.b16 %v912, %v908
    %v1365 = vpack.c.b16 %v913, %v909
    %v1366 = vpack.c.b16 %v914, %v910
    %v1367 = vpack.c.b16 %v915, %v911
    %v1368 = vpack.c.b16 %v920, %v916
    %v1369 = vpack.c.b16 %v921, %v917
    %v1370 = vpack.c.b16 %v922, %v918
    %v1371 = vpack.c.b16 %v923, %v919
    %v1372 = vpack.c.b16 %v928, %v924
    %v1373 = vpack.c.b16 %v929, %v925
    %v1374 = vpack.c.b16 %v930, %v926
    %v1375 = vpack.c.b16 %v931, %v927
    %v1376 = vpack.c.b16 %v936, %v932
    %v1377 = vpack.c.b16 %v937, %v933
    %v1378 = vpack.c.b16 %v938, %v934
    %v1379 = vpack.c.b16 %v939, %v935
    %v1380 = vpack.c.b16 %v944, %v940
    %v1381 = vpack.c.b16 %v945, %v941
    %v1382 = vpack.c.b16 %v946, %v942
    %v1383 = vpack.c.b16 %v947, %v943
    %v1384 = vpack.c.b16 %v952, %v948
    %v1385 = vpack.c.b16 %v953, %v949
    %v1386 = vpack.c.b16 %v954, %v950
    %v1387 = vpack.c.b16 %v955, %v951
    %v1388 = vpack.c.b16 %v960, %v956
    %v1389 = vpack.c.b16 %v961, %v957
    %v1390 = vpack.c.b16 %v962, %v958
    %v1391 = vpack.c.b16 %v963, %v959
    %v1392 = vpack.c.b16 %v968, %v964
    %v1393 = vpack.c.b16 %v969, %v965
    %v1394 = vpack.c.b16 %v970, %v966
    %v1395 = vpack.c.b16 %v971, %v967
    %v1396 = vpack.c.b16 %v976, %v972
    %v1397 = vpack.c.b16 %v977, %v973
    %v1398 = vpack.c.b16 %v978, %v974
    %v1399 = vpack.c.b16 %v979, %v975
    %v1400 = vpack.c.b16 %v984, %v980
    %v1401 = vpack.c.b16 %v985, %v981
    %v1402 = vpack.c.b16 %v986, %v982
    %v1403 = vpack.c.b16 %v987, %v983
    %v1404 = vpack.c.b16 %v992, %v988
    %v1405 = vpack.c.b16 %v993, %v989
    %v1406 = vpack.c.b16 %v994, %v990
    %v1407 = vpack.c.b16 %v995, %v991
    %v1408 = vpack.c.b16 %v1000, %v996
    %v1409 = vpack.c.b16 %v1001, %v997
    %v1410 = vpack.c.b16 %v1002, %v998
    %v1411 = vpack.c.b16 %v1003, %v999
    %v1412 = vpack.c.b16 %v1008, %v1004
    %v1413 = vpack.c.b16 %v1009, %v1005
    %v1414 = vpack.c.b16 %v1010, %v1006
    %v1415 = vpack.c.b16 %v1011, %v1007
    %v1416 = vpack.c.b16 %v1016, %v1012
    %v1417 = vpack.c.b16 %v1017, %v1013
    %v1418 = vpack.c.b16 %v1018, %v1014
    %v1419 = vpack.c.b16 %v1019, %v1015
    %v1420 = vpack.c.b16 %v1024, %v1020
    %v1421 = vpack.c.b16 %v1025, %v1021
    %v1422 = vpack.c.b16 %v1026, %v1022
    %v1423 = vpack.c.b16 %v1027, %v1023
    %v1424 = vpack.c.b16 %v1032, %v1028
    %v1425 = vpack.c.b16 %v1033, %v1029
    %v1426 = vpack.c.b16 %v1034, %v1030
    %v1427 = vpack.c.b16 %v1035, %v1031
    %v1428 = vpack.c.b16 %v1040, %v1036
    %v1429 = vpack.c.b16 %v1041, %v1037
    %v1430 = vpack.c.b16 %v1042, %v1038
    %v1431 = vpack.c.b16 %v1043, %v1039
    %v1432 = vpack.c.b16 %v1048, %v1044
    %v1433 = vpack.c.b16 %v1049, %v1045
    %v1434 = vpack.c.b16 %v1050, %v1046
    %v1435 = vpack.c.b16 %v1051, %v1047
    %v1436 = vpack.c.b16 %v1056, %v1052
    %v1437 = vpack.c.b16 %v1057, %v1053
    %v1438 = vpack.c.b16 %v1058, %v1054
    %v1439 = vpack.c.b16 %v1059, %v1055
    %v1440 = vpack.c.b16 %v1064, %v1060
    %v1441 = vpack.c.b16 %v1065, %v1061
    %v1442 = vpack.c.b16 %v1066, %v1062
    %v1443 = vpack.c.b16 %v1067, %v1063
    %v1444 = vpack.c.b16 %v1072, %v1068
    %v1445 = vpack.c.b16 %v1073, %v1069
    %v1446 = vpack.c.b16 %v1074, %v1070
    %v1447 = vpack.c.b16 %v1075, %v1071
    %v1448 = vpack.c.b16 %v1080, %v1076
    %v1449 = vpack.c.b16 %v1081, %v1077
    %v1450 = vpack.c.b16 %v1082, %v1078
    %v1451 = vpack.c.b16 %v1083, %v1079
    %v1452 = vpack.c.b16 %v1088, %v1084
    %v1453 = vpack.c.b16 %v1089, %v1085
    %v1454 = vpack.c.b16 %v1090, %v1086
    %v1455 = vpack.c.b16 %v1091, %v1087
    %v1456 = vpack.c.b16 %v1096, %v1092
    %v1457 = vpack.c.b16 %v1097, %v1093
    %v1458 = vpack.c.b16 %v1098, %v1094
    %v1459 = vpack.c.b16 %v1099, %v1095
    %v1460 = vpack.c.b16 %v1104, %v1100
    %v1461 = vpack.c.b16 %v1105, %v1101
    %v1462 = vpack.c.b16 %v1106, %v1102
    %v1463 = vpack.c.b16 %v1107, %v1103
    %v1464 = vpack.c.b16 %v1112, %v1108
    %v1465 = vpack.c.b16 %v1113, %v1109
    %v1466 = vpack.c.b16 %v1114, %v1110
    %v1467 = vpack.c.b16 %v1115, %v1111
    %v1468 = vpack.c.b16 %v1120, %v1116
    %v1469 = vpack.c.b16 %v1121, %v1117
    %v1470 = vpack.c.b16 %v1122, %v1118
    %v1471 = vpack.c.b16 %v1123, %v1119
    %v1472 = vpack.c.b16 %v1128, %v1124
    %v1473 = vpack.c.b16 %v1129, %v1125
    %v1474 = vpack.c.b16 %v1130, %v1126
    %v1475 = vpack.c.b16 %v1131, %v1127
    %v1476 = vpack.c.b16 %v1136, %v1132
    %v1477 = vpack.c.b16 %v1137, %v1133
    %v1478 = vpack.c.b16 %v1138, %v1134
    %v1479 = vpack.c.b16 %v1139, %v1135
    %v1480 = vpack.c.b16 %v1144, %v1140
    %v1481 = vpack.c.b16 %v1145, %v1141
    %v1482 = vpack.c.b16 %v1146, %v1142
    %v1483 = vpack.c.b16 %v1147, %v1143
    %v1484 = vpack.c.b16 %v1152, %v1148
    %v1485 = vpack.c.b16 %v1153, %v1149
    %v1486 = vpack.c.b16 %v1154, %v1150
    %v1487 = vpack.c.b16 %v1155, %v1151
    %v1488 = vpack.c.b16 %v1160, %v1156
    %v1489 = vpack.c.b16 %v1161, %v1157
    %v1490 = vpack.c.b16 %v1162, %v1158
    %v1491 = vpack.c.b16 %v1163, %v1159
    %v1492 = vpack.c.b16 %v1168, %v1164
    %v1493 = vpack.c.b16 %v1169, %v1165
    %v1494 = vpack.c.b16 %v1170, %v1166
    %v1495 = vpack.c.b16 %v1171, %v1167
    %v1496 = vpack.c.b16 %v1176, %v1172
    %v1497 = vpack.c.b16 %v1177, %v1173
    %v1498 = vpack.c.b16 %v1178, %v1174
    %v1499 = vpack.c.b16 %v1179, %v1175
    %v1500 = vpack.c.b16 %v1184, %v1180
    %v1501 = vpack.c.b16 %v1185, %v1181
    %v1502 = vpack.c.b16 %v1186, %v1182
    %v1503 = vpack.c.b16 %v1187, %v1183
    %v1504 = vpack.c.b16 %v1192, %v1188
    %v1505 = vpack.c.b16 %v1193, %v1189
    %v1506 = vpack.c.b16 %v1194, %v1190
    %v1507 = vpack.c.b16 %v1195, %v1191
    %v1508 = vpack.c.b16 %v1200, %v1196
    %v1509 = vpack.c.b16 %v1201, %v1197
    %v1510 = vpack.c.b16 %v1202, %v1198
    %v1511 = vpack.c.b16 %v1203, %v1199
    %v1512 = vpack.c.b16 %v1208, %v1204
    %v1513 = vpack.c.b16 %v1209, %v1205
    %v1514 = vpack.c.b16 %v1210, %v1206
    %v1515 = vpack.c.b16 %v1211, %v1207
    %v1516 = vpack.c.b16 %v1216, %v1212
    %v1517 = vpack.c.b16 %v1217, %v1213
    %v1518 = vpack.c.b16 %v1218, %v1214
    %v1519 = vpack.c.b16 %v1219, %v1215
    %v1520 = vpack.c.b16 %v1224, %v1220
    %v1521 = vpack.c.b16 %v1225, %v1221
    %v1522 = vpack.c.b16 %v1226, %v1222
    %v1523 = vpack.c.b16 %v1227, %v1223
    %v1524 = vpack.c.b16 %v1232, %v1228
    %v1525 = vpack.c.b16 %v1233, %v1229
    %v1526 = vpack.c.b16 %v1234, %v1230
    %v1527 = vpack.c.b16 %v1235, %v1231
    %v1528 = vpack.c.b16 %v1240, %v1236
    %v1529 = vpack.c.b16 %v1241, %v1237
    %v1530 = vpack.c.b16 %v1242, %v1238
    %v1531 = vpack.c.b16 %v1243, %v1239
    %v1532 = vpack.c.b16 %v1248, %v1244
    %v1533 = vpack.c.b16 %v1249, %v1245
    %v1534 = vpack.c.b16 %v1250, %v1246
    %v1535 = vpack.c.b16 %v1251, %v1247
    %v1536 = vpack.c.b16 %v1256, %v1252
    %v1537 = vpack.c.b16 %v1257, %v1253
    %v1538 = vpack.c.b16 %v1258, %v1254
    %v1539 = vpack.c.b16 %v1259, %v1255
    %v1540 = vpack.c.b16 %v1264, %v1260
    %v1541 = vpack.c.b16 %v1265, %v1261
    %v1542 = vpack.c.b16 %v1266, %v1262
    %v1543 = vpack.c.b16 %v1267, %v1263
    %v1544 = vpack.c.b16 %v1272, %v1268
    %v1545 = vpack.c.b16 %v1273, %v1269
    %v1546 = vpack.c.b16 %v1274, %v1270
    %v1547 = vpack.c.b16 %v1275, %v1271
    %v1548 = vpack.c.b16 %v1280, %v1276
    %v1549 = vpack.c.b16 %v1281, %v1277
    %v1550 = vpack.c.b16 %v1282, %v1278
    %v1551 = vpack.c.b16 %v1283, %v1279
    %v1552 = vpack.c.b16 %v1288, %v1284
    %v1553 = vpack.c.b16 %v1289, %v1285
    %v1554 = vpack.c.b16 %v1290, %v1286
    %v1555 = vpack.c.b16 %v1291, %v1287
    %v1556 = vpack.c.b16 %v1296, %v1292
    %v1557 = vpack.c.b16 %v1297, %v1293
    %v1558 = vpack.c.b16 %v1298, %v1294
    %v1559 = vpack.c.b16 %v1299, %v1295
    %v1560 = vpack.c.b16 %v1304, %v1300
    %v1561 = vpack.c.b16 %v1305, %v1301
    %v1562 = vpack.c.b16 %v1306, %v1302
    %v1563 = vpack.c.b16 %v1307, %v1303
    %1820 = vmatprep.subr.bf16.mxu0 %v1337
    %1821 = vmatpush1.bf16.msra.mxu0 %v1336
    %1822 = vmatprep.subr.bf16.mxu0 %v1333
    %1823 = vmatpush1.bf16.msra.mxu0 %v1332
    %1824 = vmatprep.subr.bf16.mxu0 %v1329
    %1825 = vmatpush1.bf16.msra.mxu0 %v1328
    %1826 = vmatprep.subr.bf16.mxu0 %v1325
    %1827 = vmatpush1.bf16.msra.mxu0 %v1324
    %1828 = vmatprep.subr.bf16.mxu0 %v1321
    %1829 = vmatpush1.bf16.msra.mxu0 %v1320
    %1830 = vmatprep.subr.bf16.mxu0 %v1317
    %1831 = vmatpush1.bf16.msra.mxu0 %v1316
    %1832 = vmatprep.subr.bf16.mxu0 %v1313
    %1833 = vmatpush1.bf16.msra.mxu0 %v1312
    %1834 = vmatprep.subr.bf16.mxu0 %v1309
    %1835 = vmatpush1.bf16.msra.mxu0 %v1308
    %1836 = vmatprep.subr.bf16.mxu0 %v1369
    %1837 = vmatpush2.bf16.msra.mxu0 %v1368
    %1838 = vmatprep.subr.bf16.mxu0 %v1365
    %1839 = vmatpush2.bf16.msra.mxu0 %v1364
    %1840 = vmatprep.subr.bf16.mxu0 %v1361
    %1841 = vmatpush2.bf16.msra.mxu0 %v1360
    %1842 = vmatprep.subr.bf16.mxu0 %v1357
    %1843 = vmatpush2.bf16.msra.mxu0 %v1356
    %1844 = vmatprep.subr.bf16.mxu0 %v1353
    %1845 = vmatpush2.bf16.msra.mxu0 %v1352
    %1846 = vmatprep.subr.bf16.mxu0 %v1349
    %1847 = vmatpush2.bf16.msra.mxu0 %v1348
    %1848 = vmatprep.subr.bf16.mxu0 %v1345
    %1849 = vmatpush2.bf16.msra.mxu0 %v1344
    %1850 = vmatprep.subr.bf16.mxu0 %v1341
    %1851 = vmatpush2.bf16.msra.mxu0 %v1340
    %1852 = vmatprep.mubr.bf16.mxu0 %v525
    %1853 = vmatmul.mubr.bf16.gmra.mxu0 %v524
    %v1854 = vpop.f32.mrf.mxu0
    %v1855 = vadd.f32 %v495, %v1854
    %v1856 = vpop.f32.mrf.mxu0
    %v1857 = vadd.f32 %v499, %v1856
    %v1858 = vpop.f32.mrf.mxu0
    %v1859 = vpop.f32.mrf.mxu0
    %1860 = vdwg.mxu0
    %1861 = vmatprep.subr.bf16.mxu0 %v1401
    %1862 = vmatpush1.bf16.msra.mxu0 %v1400
    %1863 = vmatprep.subr.bf16.mxu0 %v1397
    %1864 = vmatpush1.bf16.msra.mxu0 %v1396
    %1865 = vmatprep.subr.bf16.mxu0 %v1393
    %1866 = vmatpush1.bf16.msra.mxu0 %v1392
    %1867 = vmatprep.subr.bf16.mxu0 %v1389
    %1868 = vmatpush1.bf16.msra.mxu0 %v1388
    %1869 = vmatprep.subr.bf16.mxu0 %v1385
    %1870 = vmatpush1.bf16.msra.mxu0 %v1384
    %1871 = vmatprep.subr.bf16.mxu0 %v1381
    %1872 = vmatpush1.bf16.msra.mxu0 %v1380
    %1873 = vmatprep.subr.bf16.mxu0 %v1377
    %1874 = vmatpush1.bf16.msra.mxu0 %v1376
    %1875 = vmatprep.subr.bf16.mxu0 %v1373
    %1876 = vmatpush1.bf16.msra.mxu0 %v1372
    %1877 = vmatprep.subr.bf16.mxu0 %v1433
    %1878 = vmatpush2.bf16.msra.mxu0 %v1432
    %1879 = vmatprep.subr.bf16.mxu0 %v1429
    %1880 = vmatpush2.bf16.msra.mxu0 %v1428
    %1881 = vmatprep.subr.bf16.mxu0 %v1425
    %1882 = vmatpush2.bf16.msra.mxu0 %v1424
    %1883 = vmatprep.subr.bf16.mxu0 %v1421
    %1884 = vmatpush2.bf16.msra.mxu0 %v1420
    %1885 = vmatprep.subr.bf16.mxu0 %v1417
    %1886 = vmatpush2.bf16.msra.mxu0 %v1416
    %1887 = vmatprep.subr.bf16.mxu0 %v1413
    %1888 = vmatpush2.bf16.msra.mxu0 %v1412
    %1889 = vmatprep.subr.bf16.mxu0 %v1409
    %1890 = vmatpush2.bf16.msra.mxu0 %v1408
    %1891 = vmatprep.subr.bf16.mxu0 %v1405
    %1892 = vmatpush2.bf16.msra.mxu0 %v1404
    %1893 = vmatprep.mubr.bf16.mxu0 %v527
    %1894 = vmatmul.mubr.bf16.gmra.mxu0 %v526
    %v1895 = vpop.f32.mrf.mxu0
    %v1896 = vadd.f32 %v1855, %v1895
    %v1897 = vpop.f32.mrf.mxu0
    %v1898 = vadd.f32 %v1857, %v1897
    %v1899 = vpop.f32.mrf.mxu0
    %v1900 = vpop.f32.mrf.mxu0
    %1901 = vdwg.mxu0
    %1902 = vmatprep.subr.bf16.mxu0 %v1465
    %1903 = vmatpush1.bf16.msra.mxu0 %v1464
    %1904 = vmatprep.subr.bf16.mxu0 %v1461
    %1905 = vmatpush1.bf16.msra.mxu0 %v1460
    %1906 = vmatprep.subr.bf16.mxu0 %v1457
    %1907 = vmatpush1.bf16.msra.mxu0 %v1456
    %1908 = vmatprep.subr.bf16.mxu0 %v1453
    %1909 = vmatpush1.bf16.msra.mxu0 %v1452
    %1910 = vmatprep.subr.bf16.mxu0 %v1449
    %1911 = vmatpush1.bf16.msra.mxu0 %v1448
    %1912 = vmatprep.subr.bf16.mxu0 %v1445
    %1913 = vmatpush1.bf16.msra.mxu0 %v1444
    %1914 = vmatprep.subr.bf16.mxu0 %v1441
    %1915 = vmatpush1.bf16.msra.mxu0 %v1440
    %1916 = vmatprep.subr.bf16.mxu0 %v1437
    %1917 = vmatpush1.bf16.msra.mxu0 %v1436
    %1918 = vmatprep.subr.bf16.mxu0 %v1497
    %1919 = vmatpush2.bf16.msra.mxu0 %v1496
    %1920 = vmatprep.subr.bf16.mxu0 %v1493
    %1921 = vmatpush2.bf16.msra.mxu0 %v1492
    %1922 = vmatprep.subr.bf16.mxu0 %v1489
    %1923 = vmatpush2.bf16.msra.mxu0 %v1488
    %1924 = vmatprep.subr.bf16.mxu0 %v1485
    %1925 = vmatpush2.bf16.msra.mxu0 %v1484
    %1926 = vmatprep.subr.bf16.mxu0 %v1481
    %1927 = vmatpush2.bf16.msra.mxu0 %v1480
    %1928 = vmatprep.subr.bf16.mxu0 %v1477
    %1929 = vmatpush2.bf16.msra.mxu0 %v1476
    %1930 = vmatprep.subr.bf16.mxu0 %v1473
    %1931 = vmatpush2.bf16.msra.mxu0 %v1472
    %1932 = vmatprep.subr.bf16.mxu0 %v1469
    %1933 = vmatpush2.bf16.msra.mxu0 %v1468
    %1934 = vmatprep.mubr.bf16.mxu0 %v529
    %1935 = vmatmul.mubr.bf16.gmra.mxu0 %v528
    %v1936 = vpop.f32.mrf.mxu0
    %v1937 = vadd.f32 %v1896, %v1936
    %v1938 = vpop.f32.mrf.mxu0
    %v1939 = vadd.f32 %v1898, %v1938
    %v1940 = vpop.f32.mrf.mxu0
    %v1941 = vpop.f32.mrf.mxu0
    %1942 = vdwg.mxu0
    %1943 = vmatprep.subr.bf16.mxu0 %v1529
    %1944 = vmatpush1.bf16.msra.mxu0 %v1528
    %1945 = vmatprep.subr.bf16.mxu0 %v1525
    %1946 = vmatpush1.bf16.msra.mxu0 %v1524
    %1947 = vmatprep.subr.bf16.mxu0 %v1521
    %1948 = vmatpush1.bf16.msra.mxu0 %v1520
    %1949 = vmatprep.subr.bf16.mxu0 %v1517
    %1950 = vmatpush1.bf16.msra.mxu0 %v1516
    %1951 = vmatprep.subr.bf16.mxu0 %v1513
    %1952 = vmatpush1.bf16.msra.mxu0 %v1512
    %1953 = vmatprep.subr.bf16.mxu0 %v1509
    %1954 = vmatpush1.bf16.msra.mxu0 %v1508
    %1955 = vmatprep.subr.bf16.mxu0 %v1505
    %1956 = vmatpush1.bf16.msra.mxu0 %v1504
    %1957 = vmatprep.subr.bf16.mxu0 %v1501
    %1958 = vmatpush1.bf16.msra.mxu0 %v1500
    %1959 = vmatprep.subr.bf16.mxu0 %v1561
    %1960 = vmatpush2.bf16.msra.mxu0 %v1560
    %1961 = vmatprep.subr.bf16.mxu0 %v1557
    %1962 = vmatpush2.bf16.msra.mxu0 %v1556
    %1963 = vmatprep.subr.bf16.mxu0 %v1553
    %1964 = vmatpush2.bf16.msra.mxu0 %v1552
    %1965 = vmatprep.subr.bf16.mxu0 %v1549
    %1966 = vmatpush2.bf16.msra.mxu0 %v1548
    %1967 = vmatprep.subr.bf16.mxu0 %v1545
    %1968 = vmatpush2.bf16.msra.mxu0 %v1544
    %1969 = vmatprep.subr.bf16.mxu0 %v1541
    %1970 = vmatpush2.bf16.msra.mxu0 %v1540
    %1971 = vmatprep.subr.bf16.mxu0 %v1537
    %1972 = vmatpush2.bf16.msra.mxu0 %v1536
    %1973 = vmatprep.subr.bf16.mxu0 %v1533
    %1974 = vmatpush2.bf16.msra.mxu0 %v1532
    %1975 = vmatprep.mubr.bf16.mxu0 %v531
    %1976 = vmatmul.mubr.bf16.gmra.mxu0 %v530
    %v1977 = vpop.f32.mrf.mxu0
    %v1978 = vadd.f32 %v1937, %v1977
    %v1979 = vpop.f32.mrf.mxu0
    %v1980 = vadd.f32 %v1939, %v1979
    %v1981 = vpop.f32.mrf.mxu0
    %v1982 = vpop.f32.mrf.mxu0
    %1983 = vdwg.mxu0
    %1984 = vmatprep.subr.bf16.mxu0 %v1339
    %1985 = vmatpush1.bf16.msra.mxu0 %v1338
    %1986 = vmatprep.subr.bf16.mxu0 %v1335
    %1987 = vmatpush1.bf16.msra.mxu0 %v1334
    %1988 = vmatprep.subr.bf16.mxu0 %v1331
    %1989 = vmatpush1.bf16.msra.mxu0 %v1330
    %1990 = vmatprep.subr.bf16.mxu0 %v1327
    %1991 = vmatpush1.bf16.msra.mxu0 %v1326
    %1992 = vmatprep.subr.bf16.mxu0 %v1323
    %1993 = vmatpush1.bf16.msra.mxu0 %v1322
    %1994 = vmatprep.subr.bf16.mxu0 %v1319
    %1995 = vmatpush1.bf16.msra.mxu0 %v1318
    %1996 = vmatprep.subr.bf16.mxu0 %v1315
    %1997 = vmatpush1.bf16.msra.mxu0 %v1314
    %1998 = vmatprep.subr.bf16.mxu0 %v1311
    %1999 = vmatpush1.bf16.msra.mxu0 %v1310
    %2000 = vmatprep.subr.bf16.mxu0 %v1371
    %2001 = vmatpush2.bf16.msra.mxu0 %v1370
    %2002 = vmatprep.subr.bf16.mxu0 %v1367
    %2003 = vmatpush2.bf16.msra.mxu0 %v1366
    %2004 = vmatprep.subr.bf16.mxu0 %v1363
    %2005 = vmatpush2.bf16.msra.mxu0 %v1362
    %2006 = vmatprep.subr.bf16.mxu0 %v1359
    %2007 = vmatpush2.bf16.msra.mxu0 %v1358
    %2008 = vmatprep.subr.bf16.mxu0 %v1355
    %2009 = vmatpush2.bf16.msra.mxu0 %v1354
    %2010 = vmatprep.subr.bf16.mxu0 %v1351
    %2011 = vmatpush2.bf16.msra.mxu0 %v1350
    %2012 = vmatprep.subr.bf16.mxu0 %v1347
    %2013 = vmatpush2.bf16.msra.mxu0 %v1346
    %2014 = vmatprep.subr.bf16.mxu0 %v1343
    %2015 = vmatpush2.bf16.msra.mxu0 %v1342
    %2016 = vmatprep.mubr.bf16.mxu0 %v525
    %2017 = vmatmul.mubr.bf16.gmra.mxu0 %v524
    %v2018 = vpop.f32.mrf.mxu0
    %v2019 = vadd.f32 %v503, %v2018
    %v2020 = vpop.f32.mrf.mxu0
    %v2021 = vadd.f32 %v507, %v2020
    %v2022 = vpop.f32.mrf.mxu0
    %v2023 = vpop.f32.mrf.mxu0
    %2024 = vdwg.mxu0
    %2025 = vmatprep.subr.bf16.mxu0 %v1403
    %2026 = vmatpush1.bf16.msra.mxu0 %v1402
    %2027 = vmatprep.subr.bf16.mxu0 %v1399
    %2028 = vmatpush1.bf16.msra.mxu0 %v1398
    %2029 = vmatprep.subr.bf16.mxu0 %v1395
    %2030 = vmatpush1.bf16.msra.mxu0 %v1394
    %2031 = vmatprep.subr.bf16.mxu0 %v1391
    %2032 = vmatpush1.bf16.msra.mxu0 %v1390
    %2033 = vmatprep.subr.bf16.mxu0 %v1387
    %2034 = vmatpush1.bf16.msra.mxu0 %v1386
    %2035 = vmatprep.subr.bf16.mxu0 %v1383
    %2036 = vmatpush1.bf16.msra.mxu0 %v1382
    %2037 = vmatprep.subr.bf16.mxu0 %v1379
    %2038 = vmatpush1.bf16.msra.mxu0 %v1378
    %2039 = vmatprep.subr.bf16.mxu0 %v1375
    %2040 = vmatpush1.bf16.msra.mxu0 %v1374
    %2041 = vmatprep.subr.bf16.mxu0 %v1435
    %2042 = vmatpush2.bf16.msra.mxu0 %v1434
    %2043 = vmatprep.subr.bf16.mxu0 %v1431
    %2044 = vmatpush2.bf16.msra.mxu0 %v1430
    %2045 = vmatprep.subr.bf16.mxu0 %v1427
    %2046 = vmatpush2.bf16.msra.mxu0 %v1426
    %2047 = vmatprep.subr.bf16.mxu0 %v1423
    %2048 = vmatpush2.bf16.msra.mxu0 %v1422
    %2049 = vmatprep.subr.bf16.mxu0 %v1419
    %2050 = vmatpush2.bf16.msra.mxu0 %v1418
    %2051 = vmatprep.subr.bf16.mxu0 %v1415
    %2052 = vmatpush2.bf16.msra.mxu0 %v1414
    %2053 = vmatprep.subr.bf16.mxu0 %v1411
    %2054 = vmatpush2.bf16.msra.mxu0 %v1410
    %2055 = vmatprep.subr.bf16.mxu0 %v1407
    %2056 = vmatpush2.bf16.msra.mxu0 %v1406
    %2057 = vmatprep.mubr.bf16.mxu0 %v527
    %2058 = vmatmul.mubr.bf16.gmra.mxu0 %v526
    %v2059 = vpop.f32.mrf.mxu0
    %v2060 = vadd.f32 %v2019, %v2059
    %v2061 = vpop.f32.mrf.mxu0
    %v2062 = vadd.f32 %v2021, %v2061
    %v2063 = vpop.f32.mrf.mxu0
    %v2064 = vpop.f32.mrf.mxu0
    %2065 = vdwg.mxu0
    %2066 = vmatprep.subr.bf16.mxu0 %v1467
    %2067 = vmatpush1.bf16.msra.mxu0 %v1466
    %2068 = vmatprep.subr.bf16.mxu0 %v1463
    %2069 = vmatpush1.bf16.msra.mxu0 %v1462
    %2070 = vmatprep.subr.bf16.mxu0 %v1459
    %2071 = vmatpush1.bf16.msra.mxu0 %v1458
    %2072 = vmatprep.subr.bf16.mxu0 %v1455
    %2073 = vmatpush1.bf16.msra.mxu0 %v1454
    %2074 = vmatprep.subr.bf16.mxu0 %v1451
    %2075 = vmatpush1.bf16.msra.mxu0 %v1450
    %2076 = vmatprep.subr.bf16.mxu0 %v1447
    %2077 = vmatpush1.bf16.msra.mxu0 %v1446
    %2078 = vmatprep.subr.bf16.mxu0 %v1443
    %2079 = vmatpush1.bf16.msra.mxu0 %v1442
    %2080 = vmatprep.subr.bf16.mxu0 %v1439
    %2081 = vmatpush1.bf16.msra.mxu0 %v1438
    %2082 = vmatprep.subr.bf16.mxu0 %v1499
    %2083 = vmatpush2.bf16.msra.mxu0 %v1498
    %2084 = vmatprep.subr.bf16.mxu0 %v1495
    %2085 = vmatpush2.bf16.msra.mxu0 %v1494
    %2086 = vmatprep.subr.bf16.mxu0 %v1491
    %2087 = vmatpush2.bf16.msra.mxu0 %v1490
    %2088 = vmatprep.subr.bf16.mxu0 %v1487
    %2089 = vmatpush2.bf16.msra.mxu0 %v1486
    %2090 = vmatprep.subr.bf16.mxu0 %v1483
    %2091 = vmatpush2.bf16.msra.mxu0 %v1482
    %2092 = vmatprep.subr.bf16.mxu0 %v1479
    %2093 = vmatpush2.bf16.msra.mxu0 %v1478
    %2094 = vmatprep.subr.bf16.mxu0 %v1475
    %2095 = vmatpush2.bf16.msra.mxu0 %v1474
    %2096 = vmatprep.subr.bf16.mxu0 %v1471
    %2097 = vmatpush2.bf16.msra.mxu0 %v1470
    %2098 = vmatprep.mubr.bf16.mxu0 %v529
    %2099 = vmatmul.mubr.bf16.gmra.mxu0 %v528
    %v2100 = vpop.f32.mrf.mxu0
    %v2101 = vadd.f32 %v2060, %v2100
    %v2102 = vpop.f32.mrf.mxu0
    %v2103 = vadd.f32 %v2062, %v2102
    %v2104 = vpop.f32.mrf.mxu0
    %v2105 = vpop.f32.mrf.mxu0
    %2106 = vdwg.mxu0
    %2107 = vmatprep.subr.bf16.mxu0 %v1531
    %2108 = vmatpush1.bf16.msra.mxu0 %v1530
    %2109 = vmatprep.subr.bf16.mxu0 %v1527
    %2110 = vmatpush1.bf16.msra.mxu0 %v1526
    %2111 = vmatprep.subr.bf16.mxu0 %v1523
    %2112 = vmatpush1.bf16.msra.mxu0 %v1522
    %2113 = vmatprep.subr.bf16.mxu0 %v1519
    %2114 = vmatpush1.bf16.msra.mxu0 %v1518
    %2115 = vmatprep.subr.bf16.mxu0 %v1515
    %2116 = vmatpush1.bf16.msra.mxu0 %v1514
    %2117 = vmatprep.subr.bf16.mxu0 %v1511
    %2118 = vmatpush1.bf16.msra.mxu0 %v1510
    %2119 = vmatprep.subr.bf16.mxu0 %v1507
    %2120 = vmatpush1.bf16.msra.mxu0 %v1506
    %2121 = vmatprep.subr.bf16.mxu0 %v1503
    %2122 = vmatpush1.bf16.msra.mxu0 %v1502
    %2123 = vmatprep.subr.bf16.mxu0 %v1563
    %2124 = vmatpush2.bf16.msra.mxu0 %v1562
    %2125 = vmatprep.subr.bf16.mxu0 %v1559
    %2126 = vmatpush2.bf16.msra.mxu0 %v1558
    %2127 = vmatprep.subr.bf16.mxu0 %v1555
    %2128 = vmatpush2.bf16.msra.mxu0 %v1554
    %2129 = vmatprep.subr.bf16.mxu0 %v1551
    %2130 = vmatpush2.bf16.msra.mxu0 %v1550
    %2131 = vmatprep.subr.bf16.mxu0 %v1547
    %2132 = vmatpush2.bf16.msra.mxu0 %v1546
    %2133 = vmatprep.subr.bf16.mxu0 %v1543
    %2134 = vmatpush2.bf16.msra.mxu0 %v1542
    %2135 = vmatprep.subr.bf16.mxu0 %v1539
    %2136 = vmatpush2.bf16.msra.mxu0 %v1538
    %2137 = vmatprep.subr.bf16.mxu0 %v1535
    %2138 = vmatpush2.bf16.msra.mxu0 %v1534
    %2139 = vmatprep.mubr.bf16.mxu0 %v531
    %2140 = vmatmul.mubr.bf16.gmra.mxu0 %v530
    %v2141 = vpop.f32.mrf.mxu0
    %v2142 = vadd.f32 %v2101, %v2141
    %v2143 = vpop.f32.mrf.mxu0
    %v2144 = vadd.f32 %v2103, %v2143
    %v2145 = vpop.f32.mrf.mxu0
    %v2146 = vpop.f32.mrf.mxu0
    %2147 = vdwg.mxu0
    %v2148 = vmax.f32 %v1978, 0.0
    %v2149 = vmax.f32 %v1980, 0.0
    %v2150 = vmax.f32 %v2142, 0.0
    %v2151 = vmax.f32 %v2144, 0.0
    %v2152 = vpack.c.bf16 %v2148, %v2148
    %v2153 = vpack.c.bf16 %v2149, %v2149
    %v2154 = vpack.c.bf16 %v2150, %v2150
    %v2155 = vpack.c.bf16 %v2151, %v2151
    %v2156 = vld [vmem:[#allocation8] sm:$0xff]
    %v2157 = vld [vmem:[#allocation8 + $0x8] sm:$0xff]
    %v2158 = vld [vmem:[#allocation8 + $0x10] sm:$0xff]
    %v2159 = vld [vmem:[#allocation8 + $0x18] sm:$0xff]
    %v2160 = vld [vmem:[#allocation8 + $0x20] sm:$0xff]
    %v2161 = vld [vmem:[#allocation8 + $0x28] sm:$0xff]
    %v2162 = vld [vmem:[#allocation8 + $0x30] sm:$0xff]
    %v2163 = vld [vmem:[#allocation8 + $0x38] sm:$0xff]
    %v2164 = vld [vmem:[#allocation8 + $0x40] sm:$0xff]
    %v2165 = vld [vmem:[#allocation8 + $0x48] sm:$0xff]
    %v2166 = vld [vmem:[#allocation8 + $0x50] sm:$0xff]
    %v2167 = vld [vmem:[#allocation8 + $0x58] sm:$0xff]
    %v2168 = vld [vmem:[#allocation8 + $0x60] sm:$0xff]
    %v2169 = vld [vmem:[#allocation8 + $0x68] sm:$0xff]
    %v2170 = vld [vmem:[#allocation8 + $0x70] sm:$0xff]
    %v2171 = vld [vmem:[#allocation8 + $0x78] sm:$0xff]
    %v2172 = vld [vmem:[#allocation8 + $0x80] sm:$0xff]
    %v2173 = vld [vmem:[#allocation8 + $0x88] sm:$0xff]
    %v2174 = vld [vmem:[#allocation8 + $0x90] sm:$0xff]
    %v2175 = vld [vmem:[#allocation8 + $0x98] sm:$0xff]
    %v2176 = vld [vmem:[#allocation8 + $0xa0] sm:$0xff]
    %v2177 = vld [vmem:[#allocation8 + $0xa8] sm:$0xff]
    %v2178 = vld [vmem:[#allocation8 + $0xb0] sm:$0xff]
    %v2179 = vld [vmem:[#allocation8 + $0xb8] sm:$0xff]
    %v2180 = vld [vmem:[#allocation8 + $0xc0] sm:$0xff]
    %v2181 = vld [vmem:[#allocation8 + $0xc8] sm:$0xff]
    %v2182 = vld [vmem:[#allocation8 + $0xd0] sm:$0xff]
    %v2183 = vld [vmem:[#allocation8 + $0xd8] sm:$0xff]
    %v2184 = vld [vmem:[#allocation8 + $0xe0] sm:$0xff]
    %v2185 = vld [vmem:[#allocation8 + $0xe8] sm:$0xff]
    %v2186 = vld [vmem:[#allocation8 + $0xf0] sm:$0xff]
    %v2187 = vld [vmem:[#allocation8 + $0xf8] sm:$0xff]
    %v2188 = vld [vmem:[#allocation8 + $0x100] sm:$0xff]
    %v2189 = vld [vmem:[#allocation8 + $0x108] sm:$0xff]
    %v2190 = vld [vmem:[#allocation8 + $0x110] sm:$0xff]
    %v2191 = vld [vmem:[#allocation8 + $0x118] sm:$0xff]
    %v2192 = vld [vmem:[#allocation8 + $0x120] sm:$0xff]
    %v2193 = vld [vmem:[#allocation8 + $0x128] sm:$0xff]
    %v2194 = vld [vmem:[#allocation8 + $0x130] sm:$0xff]
    %v2195 = vld [vmem:[#allocation8 + $0x138] sm:$0xff]
    %v2196 = vld [vmem:[#allocation8 + $0x140] sm:$0xff]
    %v2197 = vld [vmem:[#allocation8 + $0x148] sm:$0xff]
    %v2198 = vld [vmem:[#allocation8 + $0x150] sm:$0xff]
    %v2199 = vld [vmem:[#allocation8 + $0x158] sm:$0xff]
    %v2200 = vld [vmem:[#allocation8 + $0x160] sm:$0xff]
    %v2201 = vld [vmem:[#allocation8 + $0x168] sm:$0xff]
    %v2202 = vld [vmem:[#allocation8 + $0x170] sm:$0xff]
    %v2203 = vld [vmem:[#allocation8 + $0x178] sm:$0xff]
    %v2204 = vld [vmem:[#allocation8 + $0x180] sm:$0xff]
    %v2205 = vld [vmem:[#allocation8 + $0x188] sm:$0xff]
    %v2206 = vld [vmem:[#allocation8 + $0x190] sm:$0xff]
    %v2207 = vld [vmem:[#allocation8 + $0x198] sm:$0xff]
    %v2208 = vld [vmem:[#allocation8 + $0x1a0] sm:$0xff]
    %v2209 = vld [vmem:[#allocation8 + $0x1a8] sm:$0xff]
    %v2210 = vld [vmem:[#allocation8 + $0x1b0] sm:$0xff]
    %v2211 = vld [vmem:[#allocation8 + $0x1b8] sm:$0xff]
    %v2212 = vld [vmem:[#allocation8 + $0x1c0] sm:$0xff]
    %v2213 = vld [vmem:[#allocation8 + $0x1c8] sm:$0xff]
    %v2214 = vld [vmem:[#allocation8 + $0x1d0] sm:$0xff]
    %v2215 = vld [vmem:[#allocation8 + $0x1d8] sm:$0xff]
    %v2216 = vld [vmem:[#allocation8 + $0x1e0] sm:$0xff]
    %v2217 = vld [vmem:[#allocation8 + $0x1e8] sm:$0xff]
    %v2218 = vld [vmem:[#allocation8 + $0x1f0] sm:$0xff]
    %v2219 = vld [vmem:[#allocation8 + $0x1f8] sm:$0xff]
    %v2220 = vld [vmem:[#allocation10] sm:$0x3]
    %v2222 = vlaneseq
    %v2223 = vshrl.u32 %v2222, 7
    %v2224 = vsub.s32 0, %v2223
    %v2225 = vrot.slane %v2220, %v2224
    %v2226 = vlaneseq
    %v2227 = vshrl.u32 %v2226, 7
    %v2228 = vsub.s32 1, %v2227
    %v2229 = vrot.slane %v2220, %v2228
    %v2296 = vunpack.c.l.b16 %v2156
    %v2297 = vunpack.c.h.b16 %v2156
    %v2298 = vunpack.c.l.b16 %v2157
    %v2299 = vunpack.c.h.b16 %v2157
    %v2300 = vunpack.c.l.b16 %v2158
    %v2301 = vunpack.c.h.b16 %v2158
    %v2302 = vunpack.c.l.b16 %v2159
    %v2303 = vunpack.c.h.b16 %v2159
    %v2304 = vunpack.c.l.b16 %v2160
    %v2305 = vunpack.c.h.b16 %v2160
    %v2306 = vunpack.c.l.b16 %v2161
    %v2307 = vunpack.c.h.b16 %v2161
    %v2308 = vunpack.c.l.b16 %v2162
    %v2309 = vunpack.c.h.b16 %v2162
    %v2310 = vunpack.c.l.b16 %v2163
    %v2311 = vunpack.c.h.b16 %v2163
    %v2312 = vunpack.c.l.b16 %v2164
    %v2313 = vunpack.c.h.b16 %v2164
    %v2314 = vunpack.c.l.b16 %v2165
    %v2315 = vunpack.c.h.b16 %v2165
    %v2316 = vunpack.c.l.b16 %v2166
    %v2317 = vunpack.c.h.b16 %v2166
    %v2318 = vunpack.c.l.b16 %v2167
    %v2319 = vunpack.c.h.b16 %v2167
    %v2320 = vunpack.c.l.b16 %v2168
    %v2321 = vunpack.c.h.b16 %v2168
    %v2322 = vunpack.c.l.b16 %v2169
    %v2323 = vunpack.c.h.b16 %v2169
    %v2324 = vunpack.c.l.b16 %v2170
    %v2325 = vunpack.c.h.b16 %v2170
    %v2326 = vunpack.c.l.b16 %v2171
    %v2327 = vunpack.c.h.b16 %v2171
    %v2328 = vunpack.c.l.b16 %v2172
    %v2329 = vunpack.c.h.b16 %v2172
    %v2330 = vunpack.c.l.b16 %v2173
    %v2331 = vunpack.c.h.b16 %v2173
    %v2332 = vunpack.c.l.b16 %v2174
    %v2333 = vunpack.c.h.b16 %v2174
    %v2334 = vunpack.c.l.b16 %v2175
    %v2335 = vunpack.c.h.b16 %v2175
    %v2336 = vunpack.c.l.b16 %v2176
    %v2337 = vunpack.c.h.b16 %v2176
    %v2338 = vunpack.c.l.b16 %v2177
    %v2339 = vunpack.c.h.b16 %v2177
    %v2340 = vunpack.c.l.b16 %v2178
    %v2341 = vunpack.c.h.b16 %v2178
    %v2342 = vunpack.c.l.b16 %v2179
    %v2343 = vunpack.c.h.b16 %v2179
    %v2344 = vunpack.c.l.b16 %v2180
    %v2345 = vunpack.c.h.b16 %v2180
    %v2346 = vunpack.c.l.b16 %v2181
    %v2347 = vunpack.c.h.b16 %v2181
    %v2348 = vunpack.c.l.b16 %v2182
    %v2349 = vunpack.c.h.b16 %v2182
    %v2350 = vunpack.c.l.b16 %v2183
    %v2351 = vunpack.c.h.b16 %v2183
    %v2352 = vunpack.c.l.b16 %v2184
    %v2353 = vunpack.c.h.b16 %v2184
    %v2354 = vunpack.c.l.b16 %v2185
    %v2355 = vunpack.c.h.b16 %v2185
    %v2356 = vunpack.c.l.b16 %v2186
    %v2357 = vunpack.c.h.b16 %v2186
    %v2358 = vunpack.c.l.b16 %v2187
    %v2359 = vunpack.c.h.b16 %v2187
    %v2360 = vunpack.c.l.b16 %v2188
    %v2361 = vunpack.c.h.b16 %v2188
    %v2362 = vunpack.c.l.b16 %v2189
    %v2363 = vunpack.c.h.b16 %v2189
    %v2364 = vunpack.c.l.b16 %v2190
    %v2365 = vunpack.c.h.b16 %v2190
    %v2366 = vunpack.c.l.b16 %v2191
    %v2367 = vunpack.c.h.b16 %v2191
    %v2368 = vunpack.c.l.b16 %v2192
    %v2369 = vunpack.c.h.b16 %v2192
    %v2370 = vunpack.c.l.b16 %v2193
    %v2371 = vunpack.c.h.b16 %v2193
    %v2372 = vunpack.c.l.b16 %v2194
    %v2373 = vunpack.c.h.b16 %v2194
    %v2374 = vunpack.c.l.b16 %v2195
    %v2375 = vunpack.c.h.b16 %v2195
    %v2376 = vunpack.c.l.b16 %v2196
    %v2377 = vunpack.c.h.b16 %v2196
    %v2378 = vunpack.c.l.b16 %v2197
    %v2379 = vunpack.c.h.b16 %v2197
    %v2380 = vunpack.c.l.b16 %v2198
    %v2381 = vunpack.c.h.b16 %v2198
    %v2382 = vunpack.c.l.b16 %v2199
    %v2383 = vunpack.c.h.b16 %v2199
    %v2384 = vunpack.c.l.b16 %v2200
    %v2385 = vunpack.c.h.b16 %v2200
    %v2386 = vunpack.c.l.b16 %v2201
    %v2387 = vunpack.c.h.b16 %v2201
    %v2388 = vunpack.c.l.b16 %v2202
    %v2389 = vunpack.c.h.b16 %v2202
    %v2390 = vunpack.c.l.b16 %v2203
    %v2391 = vunpack.c.h.b16 %v2203
    %v2392 = vunpack.c.l.b16 %v2204
    %v2393 = vunpack.c.h.b16 %v2204
    %v2394 = vunpack.c.l.b16 %v2205
    %v2395 = vunpack.c.h.b16 %v2205
    %v2396 = vunpack.c.l.b16 %v2206
    %v2397 = vunpack.c.h.b16 %v2206
    %v2398 = vunpack.c.l.b16 %v2207
    %v2399 = vunpack.c.h.b16 %v2207
    %v2400 = vunpack.c.l.b16 %v2208
    %v2401 = vunpack.c.h.b16 %v2208
    %v2402 = vunpack.c.l.b16 %v2209
    %v2403 = vunpack.c.h.b16 %v2209
    %v2404 = vunpack.c.l.b16 %v2210
    %v2405 = vunpack.c.h.b16 %v2210
    %v2406 = vunpack.c.l.b16 %v2211
    %v2407 = vunpack.c.h.b16 %v2211
    %v2408 = vunpack.c.l.b16 %v2212
    %v2409 = vunpack.c.h.b16 %v2212
    %v2410 = vunpack.c.l.b16 %v2213
    %v2411 = vunpack.c.h.b16 %v2213
    %v2412 = vunpack.c.l.b16 %v2214
    %v2413 = vunpack.c.h.b16 %v2214
    %v2414 = vunpack.c.l.b16 %v2215
    %v2415 = vunpack.c.h.b16 %v2215
    %v2416 = vunpack.c.l.b16 %v2216
    %v2417 = vunpack.c.h.b16 %v2216
    %v2418 = vunpack.c.l.b16 %v2217
    %v2419 = vunpack.c.h.b16 %v2217
    %v2420 = vunpack.c.l.b16 %v2218
    %v2421 = vunpack.c.h.b16 %v2218
    %v2422 = vunpack.c.l.b16 %v2219
    %v2423 = vunpack.c.h.b16 %v2219
    %v2424 = vpack.c.b16 %v2298, %v2296
    %v2425 = vpack.c.b16 %v2299, %v2297
    %v2426 = vpack.c.b16 %v2302, %v2300
    %v2427 = vpack.c.b16 %v2303, %v2301
    %v2428 = vpack.c.b16 %v2306, %v2304
    %v2429 = vpack.c.b16 %v2307, %v2305
    %v2430 = vpack.c.b16 %v2310, %v2308
    %v2431 = vpack.c.b16 %v2311, %v2309
    %v2432 = vpack.c.b16 %v2314, %v2312
    %v2433 = vpack.c.b16 %v2315, %v2313
    %v2434 = vpack.c.b16 %v2318, %v2316
    %v2435 = vpack.c.b16 %v2319, %v2317
    %v2436 = vpack.c.b16 %v2322, %v2320
    %v2437 = vpack.c.b16 %v2323, %v2321
    %v2438 = vpack.c.b16 %v2326, %v2324
    %v2439 = vpack.c.b16 %v2327, %v2325
    %v2440 = vpack.c.b16 %v2330, %v2328
    %v2441 = vpack.c.b16 %v2331, %v2329
    %v2442 = vpack.c.b16 %v2334, %v2332
    %v2443 = vpack.c.b16 %v2335, %v2333
    %v2444 = vpack.c.b16 %v2338, %v2336
    %v2445 = vpack.c.b16 %v2339, %v2337
    %v2446 = vpack.c.b16 %v2342, %v2340
    %v2447 = vpack.c.b16 %v2343, %v2341
    %v2448 = vpack.c.b16 %v2346, %v2344
    %v2449 = vpack.c.b16 %v2347, %v2345
    %v2450 = vpack.c.b16 %v2350, %v2348
    %v2451 = vpack.c.b16 %v2351, %v2349
    %v2452 = vpack.c.b16 %v2354, %v2352
    %v2453 = vpack.c.b16 %v2355, %v2353
    %v2454 = vpack.c.b16 %v2358, %v2356
    %v2455 = vpack.c.b16 %v2359, %v2357
    %v2456 = vpack.c.b16 %v2362, %v2360
    %v2457 = vpack.c.b16 %v2363, %v2361
    %v2458 = vpack.c.b16 %v2366, %v2364
    %v2459 = vpack.c.b16 %v2367, %v2365
    %v2460 = vpack.c.b16 %v2370, %v2368
    %v2461 = vpack.c.b16 %v2371, %v2369
    %v2462 = vpack.c.b16 %v2374, %v2372
    %v2463 = vpack.c.b16 %v2375, %v2373
    %v2464 = vpack.c.b16 %v2378, %v2376
    %v2465 = vpack.c.b16 %v2379, %v2377
    %v2466 = vpack.c.b16 %v2382, %v2380
    %v2467 = vpack.c.b16 %v2383, %v2381
    %v2468 = vpack.c.b16 %v2386, %v2384
    %v2469 = vpack.c.b16 %v2387, %v2385
    %v2470 = vpack.c.b16 %v2390, %v2388
    %v2471 = vpack.c.b16 %v2391, %v2389
    %v2472 = vpack.c.b16 %v2394, %v2392
    %v2473 = vpack.c.b16 %v2395, %v2393
    %v2474 = vpack.c.b16 %v2398, %v2396
    %v2475 = vpack.c.b16 %v2399, %v2397
    %v2476 = vpack.c.b16 %v2402, %v2400
    %v2477 = vpack.c.b16 %v2403, %v2401
    %v2478 = vpack.c.b16 %v2406, %v2404
    %v2479 = vpack.c.b16 %v2407, %v2405
    %v2480 = vpack.c.b16 %v2410, %v2408
    %v2481 = vpack.c.b16 %v2411, %v2409
    %v2482 = vpack.c.b16 %v2414, %v2412
    %v2483 = vpack.c.b16 %v2415, %v2413
    %v2484 = vpack.c.b16 %v2418, %v2416
    %v2485 = vpack.c.b16 %v2419, %v2417
    %v2486 = vpack.c.b16 %v2422, %v2420
    %v2487 = vpack.c.b16 %v2423, %v2421
    %2552 = vmatprep.subr.bf16.mxu0 %v2439
    %2553 = vmatpush1.bf16.msra.mxu0 %v2438
    %2554 = vmatprep.subr.bf16.mxu0 %v2437
    %2555 = vmatpush1.bf16.msra.mxu0 %v2436
    %2556 = vmatprep.subr.bf16.mxu0 %v2435
    %2557 = vmatpush1.bf16.msra.mxu0 %v2434
    %2558 = vmatprep.subr.bf16.mxu0 %v2433
    %2559 = vmatpush1.bf16.msra.mxu0 %v2432
    %2560 = vmatprep.subr.bf16.mxu0 %v2431
    %2561 = vmatpush1.bf16.msra.mxu0 %v2430
    %2562 = vmatprep.subr.bf16.mxu0 %v2429
    %2563 = vmatpush1.bf16.msra.mxu0 %v2428
    %2564 = vmatprep.subr.bf16.mxu0 %v2427
    %2565 = vmatpush1.bf16.msra.mxu0 %v2426
    %2566 = vmatprep.subr.bf16.mxu0 %v2425
    %2567 = vmatpush1.bf16.msra.mxu0 %v2424
    %2568 = vmatprep.subr.bf16.mxu0 %v2455
    %2569 = vmatpush2.bf16.msra.mxu0 %v2454
    %2570 = vmatprep.subr.bf16.mxu0 %v2453
    %2571 = vmatpush2.bf16.msra.mxu0 %v2452
    %2572 = vmatprep.subr.bf16.mxu0 %v2451
    %2573 = vmatpush2.bf16.msra.mxu0 %v2450
    %2574 = vmatprep.subr.bf16.mxu0 %v2449
    %2575 = vmatpush2.bf16.msra.mxu0 %v2448
    %2576 = vmatprep.subr.bf16.mxu0 %v2447
    %2577 = vmatpush2.bf16.msra.mxu0 %v2446
    %2578 = vmatprep.subr.bf16.mxu0 %v2445
    %2579 = vmatpush2.bf16.msra.mxu0 %v2444
    %2580 = vmatprep.subr.bf16.mxu0 %v2443
    %2581 = vmatpush2.bf16.msra.mxu0 %v2442
    %2582 = vmatprep.subr.bf16.mxu0 %v2441
    %2583 = vmatpush2.bf16.msra.mxu0 %v2440
    %2584 = vmatprep.mubr.bf16.mxu0 %v2153
    %2585 = vmatmul.mubr.bf16.gmra.mxu0 %v2152
    %v2586 = vpop.f32.mrf.mxu0
    %v2587 = vadd.f32 %v2225, %v2586
    %v2588 = vpop.f32.mrf.mxu0
    %v2589 = vadd.f32 %v2229, %v2588
    %v2590 = vpop.f32.mrf.mxu0
    %v2591 = vpop.f32.mrf.mxu0
    %2592 = vdwg.mxu0
    %2593 = vmatprep.subr.bf16.mxu0 %v2471
    %2594 = vmatpush1.bf16.msra.mxu0 %v2470
    %2595 = vmatprep.subr.bf16.mxu0 %v2469
    %2596 = vmatpush1.bf16.msra.mxu0 %v2468
    %2597 = vmatprep.subr.bf16.mxu0 %v2467
    %2598 = vmatpush1.bf16.msra.mxu0 %v2466
    %2599 = vmatprep.subr.bf16.mxu0 %v2465
    %2600 = vmatpush1.bf16.msra.mxu0 %v2464
    %2601 = vmatprep.subr.bf16.mxu0 %v2463
    %2602 = vmatpush1.bf16.msra.mxu0 %v2462
    %2603 = vmatprep.subr.bf16.mxu0 %v2461
    %2604 = vmatpush1.bf16.msra.mxu0 %v2460
    %2605 = vmatprep.subr.bf16.mxu0 %v2459
    %2606 = vmatpush1.bf16.msra.mxu0 %v2458
    %2607 = vmatprep.subr.bf16.mxu0 %v2457
    %2608 = vmatpush1.bf16.msra.mxu0 %v2456
    %2609 = vmatprep.subr.bf16.mxu0 %v2487
    %2610 = vmatpush2.bf16.msra.mxu0 %v2486
    %2611 = vmatprep.subr.bf16.mxu0 %v2485
    %2612 = vmatpush2.bf16.msra.mxu0 %v2484
    %2613 = vmatprep.subr.bf16.mxu0 %v2483
    %2614 = vmatpush2.bf16.msra.mxu0 %v2482
    %2615 = vmatprep.subr.bf16.mxu0 %v2481
    %2616 = vmatpush2.bf16.msra.mxu0 %v2480
    %2617 = vmatprep.subr.bf16.mxu0 %v2479
    %2618 = vmatpush2.bf16.msra.mxu0 %v2478
    %2619 = vmatprep.subr.bf16.mxu0 %v2477
    %2620 = vmatpush2.bf16.msra.mxu0 %v2476
    %2621 = vmatprep.subr.bf16.mxu0 %v2475
    %2622 = vmatpush2.bf16.msra.mxu0 %v2474
    %2623 = vmatprep.subr.bf16.mxu0 %v2473
    %2624 = vmatpush2.bf16.msra.mxu0 %v2472
    %2625 = vmatprep.mubr.bf16.mxu0 %v2155
    %2626 = vmatmul.mubr.bf16.gmra.mxu0 %v2154
    %v2627 = vpop.f32.mrf.mxu0
    %v2628 = vadd.f32 %v2587, %v2627
    %v2629 = vpop.f32.mrf.mxu0
    %v2630 = vadd.f32 %v2589, %v2629
    %v2631 = vpop.f32.mrf.mxu0
    %v2632 = vpop.f32.mrf.mxu0
    %2633 = vdwg.mxu0
    %v2634 = vmax.f32 %v2628, 0.0
    %v2635 = vmax.f32 %v2630, 0.0
    %v2636 = vpack.c.bf16 %v2634, %v2634
    %v2637 = vpack.c.bf16 %v2635, %v2635
    %v2638 = vld [vmem:[#allocation11] sm:$0xf]
    %v2639 = vld [vmem:[#allocation11 + $0x4] sm:$0xf]
    %v2640 = vld [vmem:[#allocation11 + $0x8] sm:$0xf]
    %v2641 = vld [vmem:[#allocation11 + $0xc] sm:$0xf]
    %v2642 = vld [vmem:[#allocation11 + $0x10] sm:$0xf]
    %v2643 = vld [vmem:[#allocation11 + $0x14] sm:$0xf]
    %v2644 = vld [vmem:[#allocation11 + $0x18] sm:$0xf]
    %v2645 = vld [vmem:[#allocation11 + $0x1c] sm:$0xf]
    %v2646 = vld [vmem:[#allocation11 + $0x20] sm:$0xf]
    %v2647 = vld [vmem:[#allocation11 + $0x24] sm:$0xf]
    %v2648 = vld [vmem:[#allocation11 + $0x28] sm:$0xf]
    %v2649 = vld [vmem:[#allocation11 + $0x2c] sm:$0xf]
    %v2650 = vld [vmem:[#allocation11 + $0x30] sm:$0xf]
    %v2651 = vld [vmem:[#allocation11 + $0x34] sm:$0xf]
    %v2652 = vld [vmem:[#allocation11 + $0x38] sm:$0xf]
    %v2653 = vld [vmem:[#allocation11 + $0x3c] sm:$0xf]
    %v2654 = vld [vmem:[#allocation11 + $0x40] sm:$0xf]
    %v2655 = vld [vmem:[#allocation11 + $0x44] sm:$0xf]
    %v2656 = vld [vmem:[#allocation11 + $0x48] sm:$0xf]
    %v2657 = vld [vmem:[#allocation11 + $0x4c] sm:$0xf]
    %v2658 = vld [vmem:[#allocation11 + $0x50] sm:$0xf]
    %v2659 = vld [vmem:[#allocation11 + $0x54] sm:$0xf]
    %v2660 = vld [vmem:[#allocation11 + $0x58] sm:$0xf]
    %v2661 = vld [vmem:[#allocation11 + $0x5c] sm:$0xf]
    %v2662 = vld [vmem:[#allocation11 + $0x60] sm:$0xf]
    %v2663 = vld [vmem:[#allocation11 + $0x64] sm:$0xf]
    %v2664 = vld [vmem:[#allocation11 + $0x68] sm:$0xf]
    %v2665 = vld [vmem:[#allocation11 + $0x6c] sm:$0xf]
    %v2666 = vld [vmem:[#allocation11 + $0x70] sm:$0xf]
    %v2667 = vld [vmem:[#allocation11 + $0x74] sm:$0xf]
    %v2668 = vld [vmem:[#allocation11 + $0x78] sm:$0xf]
    %v2669 = vld [vmem:[#allocation11 + $0x7c] sm:$0xf]
    %v2670 = vld [vmem:[#allocation13] sm:$0x1]
    %v2672 = vlaneseq
    %v2673 = vshrl.u32 %v2672, 7
    %v2674 = vsub.s32 0, %v2673
    %v2675 = vrot.slane %v2670, %v2674
    %v2709 = vunpack.c.l.b16 %v2638
    %v2710 = vunpack.c.l.b16 %v2639
    %v2711 = vunpack.c.l.b16 %v2640
    %v2712 = vunpack.c.l.b16 %v2641
    %v2713 = vunpack.c.l.b16 %v2642
    %v2714 = vunpack.c.l.b16 %v2643
    %v2715 = vunpack.c.l.b16 %v2644
    %v2716 = vunpack.c.l.b16 %v2645
    %v2717 = vunpack.c.l.b16 %v2646
    %v2718 = vunpack.c.l.b16 %v2647
    %v2719 = vunpack.c.l.b16 %v2648
    %v2720 = vunpack.c.l.b16 %v2649
    %v2721 = vunpack.c.l.b16 %v2650
    %v2722 = vunpack.c.l.b16 %v2651
    %v2723 = vunpack.c.l.b16 %v2652
    %v2724 = vunpack.c.l.b16 %v2653
    %v2725 = vunpack.c.l.b16 %v2654
    %v2726 = vunpack.c.l.b16 %v2655
    %v2727 = vunpack.c.l.b16 %v2656
    %v2728 = vunpack.c.l.b16 %v2657
    %v2729 = vunpack.c.l.b16 %v2658
    %v2730 = vunpack.c.l.b16 %v2659
    %v2731 = vunpack.c.l.b16 %v2660
    %v2732 = vunpack.c.l.b16 %v2661
    %v2733 = vunpack.c.l.b16 %v2662
    %v2734 = vunpack.c.l.b16 %v2663
    %v2735 = vunpack.c.l.b16 %v2664
    %v2736 = vunpack.c.l.b16 %v2665
    %v2737 = vunpack.c.l.b16 %v2666
    %v2738 = vunpack.c.l.b16 %v2667
    %v2739 = vunpack.c.l.b16 %v2668
    %v2740 = vunpack.c.l.b16 %v2669
    %v2741 = vpack.c.b16 %v2710, %v2709
    %v2742 = vpack.c.b16 %v2712, %v2711
    %v2743 = vpack.c.b16 %v2714, %v2713
    %v2744 = vpack.c.b16 %v2716, %v2715
    %v2745 = vpack.c.b16 %v2718, %v2717
    %v2746 = vpack.c.b16 %v2720, %v2719
    %v2747 = vpack.c.b16 %v2722, %v2721
    %v2748 = vpack.c.b16 %v2724, %v2723
    %v2749 = vpack.c.b16 %v2726, %v2725
    %v2750 = vpack.c.b16 %v2728, %v2727
    %v2751 = vpack.c.b16 %v2730, %v2729
    %v2752 = vpack.c.b16 %v2732, %v2731
    %v2753 = vpack.c.b16 %v2734, %v2733
    %v2754 = vpack.c.b16 %v2736, %v2735
    %v2755 = vpack.c.b16 %v2738, %v2737
    %v2756 = vpack.c.b16 %v2740, %v2739
    %2773 = vmatprep.subr.bf16.mxu0 0
    %2774 = vmatpush1.bf16.msra.mxu0 %v2748
    %2775 = vmatprep.subr.bf16.mxu0 0
    %2776 = vmatpush1.bf16.msra.mxu0 %v2747
    %2777 = vmatprep.subr.bf16.mxu0 0
    %2778 = vmatpush1.bf16.msra.mxu0 %v2746
    %2779 = vmatprep.subr.bf16.mxu0 0
    %2780 = vmatpush1.bf16.msra.mxu0 %v2745
    %2781 = vmatprep.subr.bf16.mxu0 0
    %2782 = vmatpush1.bf16.msra.mxu0 %v2744
    %2783 = vmatprep.subr.bf16.mxu0 0
    %2784 = vmatpush1.bf16.msra.mxu0 %v2743
    %2785 = vmatprep.subr.bf16.mxu0 0
    %2786 = vmatpush1.bf16.msra.mxu0 %v2742
    %2787 = vmatprep.subr.bf16.mxu0 0
    %2788 = vmatpush1.bf16.msra.mxu0 %v2741
    %2789 = vmatprep.subr.bf16.mxu0 0
    %2790 = vmatpush2.bf16.msra.mxu0 %v2756
    %2791 = vmatprep.subr.bf16.mxu0 0
    %2792 = vmatpush2.bf16.msra.mxu0 %v2755
    %2793 = vmatprep.subr.bf16.mxu0 0
    %2794 = vmatpush2.bf16.msra.mxu0 %v2754
    %2795 = vmatprep.subr.bf16.mxu0 0
    %2796 = vmatpush2.bf16.msra.mxu0 %v2753
    %2797 = vmatprep.subr.bf16.mxu0 0
    %2798 = vmatpush2.bf16.msra.mxu0 %v2752
    %2799 = vmatprep.subr.bf16.mxu0 0
    %2800 = vmatpush2.bf16.msra.mxu0 %v2751
    %2801 = vmatprep.subr.bf16.mxu0 0
    %2802 = vmatpush2.bf16.msra.mxu0 %v2750
    %2803 = vmatprep.subr.bf16.mxu0 0
    %2804 = vmatpush2.bf16.msra.mxu0 %v2749
    %2805 = vmatprep.mubr.bf16.mxu0 %v2637
    %2806 = vmatmul.mubr.bf16.gmra.mxu0 %v2636
    %v2807 = vpop.f32.mrf.mxu0
    %v2808 = vadd.f32 %v2675, %v2807
    %v2809 = vpop.f32.mrf.mxu0
    %v2810 = vpop.f32.mrf.mxu0
    %v2811 = vpop.f32.mrf.mxu0
    %2812 = vdwg.mxu0
    %v2813 = vmax.f32 %v2808, 0.0
    %v2814 = vpack.c.bf16 %v2813, %v2813
    %v2815 = vld [vmem:[#allocation14] sm:$0xff]
    %v2816 = vld [vmem:[#allocation14 + $0x8] sm:$0xff]
    %v2817 = vld [vmem:[#allocation14 + $0x10] sm:$0xff]
    %v2818 = vld [vmem:[#allocation14 + $0x18] sm:$0xff]
    %v2819 = vld [vmem:[#allocation14 + $0x20] sm:$0xff]
    %v2820 = vld [vmem:[#allocation14 + $0x28] sm:$0xff]
    %v2821 = vld [vmem:[#allocation14 + $0x30] sm:$0xff]
    %v2822 = vld [vmem:[#allocation14 + $0x38] sm:$0xff]
    %v2823 = vld [vmem:[#allocation14 + $0x40] sm:$0xff]
    %v2824 = vld [vmem:[#allocation14 + $0x48] sm:$0xff]
    %v2825 = vld [vmem:[#allocation14 + $0x50] sm:$0xff]
    %v2826 = vld [vmem:[#allocation14 + $0x58] sm:$0xff]
    %v2827 = vld [vmem:[#allocation14 + $0x60] sm:$0xff]
    %v2828 = vld [vmem:[#allocation14 + $0x68] sm:$0xff]
    %v2829 = vld [vmem:[#allocation14 + $0x70] sm:$0xff]
    %v2830 = vld [vmem:[#allocation14 + $0x78] sm:$0xff]
    %v2831 = vld [vmem:[#allocation16] sm:$0x3]
    %v2833 = vlaneseq
    %v2834 = vshrl.u32 %v2833, 7
    %v2835 = vsub.s32 0, %v2834
    %v2836 = vrot.slane %v2831, %v2835
    %v2837 = vlaneseq
    %v2838 = vshrl.u32 %v2837, 7
    %v2839 = vsub.s32 1, %v2838
    %v2840 = vrot.slane %v2831, %v2839
    %v2859 = vunpack.c.l.b16 %v2815
    %v2860 = vunpack.c.h.b16 %v2815
    %v2861 = vunpack.c.l.b16 %v2816
    %v2862 = vunpack.c.h.b16 %v2816
    %v2863 = vunpack.c.l.b16 %v2817
    %v2864 = vunpack.c.h.b16 %v2817
    %v2865 = vunpack.c.l.b16 %v2818
    %v2866 = vunpack.c.h.b16 %v2818
    %v2867 = vunpack.c.l.b16 %v2819
    %v2868 = vunpack.c.h.b16 %v2819
    %v2869 = vunpack.c.l.b16 %v2820
    %v2870 = vunpack.c.h.b16 %v2820
    %v2871 = vunpack.c.l.b16 %v2821
    %v2872 = vunpack.c.h.b16 %v2821
    %v2873 = vunpack.c.l.b16 %v2822
    %v2874 = vunpack.c.h.b16 %v2822
    %v2875 = vunpack.c.l.b16 %v2823
    %v2876 = vunpack.c.h.b16 %v2823
    %v2877 = vunpack.c.l.b16 %v2824
    %v2878 = vunpack.c.h.b16 %v2824
    %v2879 = vunpack.c.l.b16 %v2825
    %v2880 = vunpack.c.h.b16 %v2825
    %v2881 = vunpack.c.l.b16 %v2826
    %v2882 = vunpack.c.h.b16 %v2826
    %v2883 = vunpack.c.l.b16 %v2827
    %v2884 = vunpack.c.h.b16 %v2827
    %v2885 = vunpack.c.l.b16 %v2828
    %v2886 = vunpack.c.h.b16 %v2828
    %v2887 = vunpack.c.l.b16 %v2829
    %v2888 = vunpack.c.h.b16 %v2829
    %v2889 = vunpack.c.l.b16 %v2830
    %v2890 = vunpack.c.h.b16 %v2830
    %v2891 = vpack.c.b16 %v2861, %v2859
    %v2892 = vpack.c.b16 %v2862, %v2860
    %v2893 = vpack.c.b16 %v2865, %v2863
    %v2894 = vpack.c.b16 %v2866, %v2864
    %v2895 = vpack.c.b16 %v2869, %v2867
    %v2896 = vpack.c.b16 %v2870, %v2868
    %v2897 = vpack.c.b16 %v2873, %v2871
    %v2898 = vpack.c.b16 %v2874, %v2872
    %v2899 = vpack.c.b16 %v2877, %v2875
    %v2900 = vpack.c.b16 %v2878, %v2876
    %v2901 = vpack.c.b16 %v2881, %v2879
    %v2902 = vpack.c.b16 %v2882, %v2880
    %v2903 = vpack.c.b16 %v2885, %v2883
    %v2904 = vpack.c.b16 %v2886, %v2884
    %v2905 = vpack.c.b16 %v2889, %v2887
    %v2906 = vpack.c.b16 %v2890, %v2888
    %2923 = vmatprep.subr.bf16.mxu0 %v2906
    %2924 = vmatpush1.bf16.msra.mxu0 %v2905
    %2925 = vmatprep.subr.bf16.mxu0 %v2904
    %2926 = vmatpush1.bf16.msra.mxu0 %v2903
    %2927 = vmatprep.subr.bf16.mxu0 %v2902
    %2928 = vmatpush1.bf16.msra.mxu0 %v2901
    %2929 = vmatprep.subr.bf16.mxu0 %v2900
    %2930 = vmatpush1.bf16.msra.mxu0 %v2899
    %2931 = vmatprep.subr.bf16.mxu0 %v2898
    %2932 = vmatpush1.bf16.msra.mxu0 %v2897
    %2933 = vmatprep.subr.bf16.mxu0 %v2896
    %2934 = vmatpush1.bf16.msra.mxu0 %v2895
    %2935 = vmatprep.subr.bf16.mxu0 %v2894
    %2936 = vmatpush1.bf16.msra.mxu0 %v2893
    %2937 = vmatprep.subr.bf16.mxu0 %v2892
    %2938 = vmatpush1.bf16.msra.mxu0 %v2891
    %2939 = vmatprep.subr.bf16.mxu0 0
    %2940 = vmatpush2.bf16.msra.mxu0 0
    %2941 = vmatprep.subr.bf16.mxu0 0
    %2942 = vmatpush2.bf16.msra.mxu0 0
    %2943 = vmatprep.subr.bf16.mxu0 0
    %2944 = vmatpush2.bf16.msra.mxu0 0
    %2945 = vmatprep.subr.bf16.mxu0 0
    %2946 = vmatpush2.bf16.msra.mxu0 0
    %2947 = vmatprep.subr.bf16.mxu0 0
    %2948 = vmatpush2.bf16.msra.mxu0 0
    %2949 = vmatprep.subr.bf16.mxu0 0
    %2950 = vmatpush2.bf16.msra.mxu0 0
    %2951 = vmatprep.subr.bf16.mxu0 0
    %2952 = vmatpush2.bf16.msra.mxu0 0
    %2953 = vmatprep.subr.bf16.mxu0 0
    %2954 = vmatpush2.bf16.msra.mxu0 0
    %2955 = vmatprep.mubr.bf16.mxu0 0
    %2956 = vmatmul.mubr.bf16.gmra.mxu0 %v2814
    %v2957 = vpop.f32.mrf.mxu0
    %v2958 = vadd.f32 %v2836, %v2957
    %v2959 = vpop.f32.mrf.mxu0
    %v2960 = vadd.f32 %v2840, %v2959
    %v2961 = vpop.f32.mrf.mxu0
    %v2962 = vpop.f32.mrf.mxu0
    %2963 = vdwg.mxu0
    %2964 = vst [vmem:[#allocation24] sm:$0xff] %v2958
    %2965 = vst [vmem:[#allocation24 + $0x8] sm:$0xff] %v2960
    %v2966 = vld [vmem:[#allocation5] sm:$0xff]
    %v2967 = vmul.f32 %v2960, 0.5
    %v2968 = vmul.f32 %v2967, 1.442695
    %v2969 = vpow.pop %v2968
    %v2970 = vmul.f32 %v2966, %v2969
    %v2971 = vadd.f32 %v2958, %v2970
    %v2972 = vpack.c.bf16 %v2971, %v2971
    %v2973 = vld [vmem:[#allocation17] sm:$0xf]
    %v2974 = vld [vmem:[#allocation17 + $0x4] sm:$0xf]
    %v2975 = vld [vmem:[#allocation17 + $0x8] sm:$0xf]
    %v2976 = vld [vmem:[#allocation17 + $0xc] sm:$0xf]
    %v2977 = vld [vmem:[#allocation17 + $0x10] sm:$0xf]
    %v2978 = vld [vmem:[#allocation17 + $0x14] sm:$0xf]
    %v2979 = vld [vmem:[#allocation17 + $0x18] sm:$0xf]
    %v2980 = vld [vmem:[#allocation17 + $0x1c] sm:$0xf]
    %v2981 = vld [vmem:[#allocation17 + $0x20] sm:$0xf]
    %v2982 = vld [vmem:[#allocation17 + $0x24] sm:$0xf]
    %v2983 = vld [vmem:[#allocation17 + $0x28] sm:$0xf]
    %v2984 = vld [vmem:[#allocation17 + $0x2c] sm:$0xf]
    %v2985 = vld [vmem:[#allocation17 + $0x30] sm:$0xf]
    %v2986 = vld [vmem:[#allocation17 + $0x34] sm:$0xf]
    %v2987 = vld [vmem:[#allocation17 + $0x38] sm:$0xf]
    %v2988 = vld [vmem:[#allocation17 + $0x3c] sm:$0xf]
    %v2989 = vld [vmem:[%s11] sm:$0x1]
    %v2991 = vlaneseq
    %v2992 = vshrl.u32 %v2991, 7
    %v2993 = vsub.s32 0, %v2992
    %v2994 = vrot.slane %v2989, %v2993
    %v3012 = vunpack.c.l.b16 %v2973
    %v3013 = vunpack.c.l.b16 %v2974
    %v3014 = vunpack.c.l.b16 %v2975
    %v3015 = vunpack.c.l.b16 %v2976
    %v3016 = vunpack.c.l.b16 %v2977
    %v3017 = vunpack.c.l.b16 %v2978
    %v3018 = vunpack.c.l.b16 %v2979
    %v3019 = vunpack.c.l.b16 %v2980
    %v3020 = vunpack.c.l.b16 %v2981
    %v3021 = vunpack.c.l.b16 %v2982
    %v3022 = vunpack.c.l.b16 %v2983
    %v3023 = vunpack.c.l.b16 %v2984
    %v3024 = vunpack.c.l.b16 %v2985
    %v3025 = vunpack.c.l.b16 %v2986
    %v3026 = vunpack.c.l.b16 %v2987
    %v3027 = vunpack.c.l.b16 %v2988
    %v3028 = vpack.c.b16 %v3013, %v3012
    %v3029 = vpack.c.b16 %v3015, %v3014
    %v3030 = vpack.c.b16 %v3017, %v3016
    %v3031 = vpack.c.b16 %v3019, %v3018
    %v3032 = vpack.c.b16 %v3021, %v3020
    %v3033 = vpack.c.b16 %v3023, %v3022
    %v3034 = vpack.c.b16 %v3025, %v3024
    %v3035 = vpack.c.b16 %v3027, %v3026
    %3044 = vmatprep.subr.bf16.mxu0 0
    %3045 = vmatpush1.bf16.msra.mxu0 %v3035
    %3046 = vmatprep.subr.bf16.mxu0 0
    %3047 = vmatpush1.bf16.msra.mxu0 %v3034
    %3048 = vmatprep.subr.bf16.mxu0 0
    %3049 = vmatpush1.bf16.msra.mxu0 %v3033
    %3050 = vmatprep.subr.bf16.mxu0 0
    %3051 = vmatpush1.bf16.msra.mxu0 %v3032
    %3052 = vmatprep.subr.bf16.mxu0 0
    %3053 = vmatpush1.bf16.msra.mxu0 %v3031
    %3054 = vmatprep.subr.bf16.mxu0 0
    %3055 = vmatpush1.bf16.msra.mxu0 %v3030
    %3056 = vmatprep.subr.bf16.mxu0 0
    %3057 = vmatpush1.bf16.msra.mxu0 %v3029
    %3058 = vmatprep.subr.bf16.mxu0 0
    %3059 = vmatpush1.bf16.msra.mxu0 %v3028
    %3060 = vmatprep.subr.bf16.mxu0 0
    %3061 = vmatpush2.bf16.msra.mxu0 0
    %3062 = vmatprep.subr.bf16.mxu0 0
    %3063 = vmatpush2.bf16.msra.mxu0 0
    %3064 = vmatprep.subr.bf16.mxu0 0
    %3065 = vmatpush2.bf16.msra.mxu0 0
    %3066 = vmatprep.subr.bf16.mxu0 0
    %3067 = vmatpush2.bf16.msra.mxu0 0
    %3068 = vmatprep.subr.bf16.mxu0 0
    %3069 = vmatpush2.bf16.msra.mxu0 0
    %3070 = vmatprep.subr.bf16.mxu0 0
    %3071 = vmatpush2.bf16.msra.mxu0 0
    %3072 = vmatprep.subr.bf16.mxu0 0
    %3073 = vmatpush2.bf16.msra.mxu0 0
    %3074 = vmatprep.subr.bf16.mxu0 0
    %3075 = vmatpush2.bf16.msra.mxu0 0
    %3076 = vmatprep.mubr.bf16.mxu0 0
    %3077 = vmatmul.mubr.bf16.gmra.mxu0 %v2972
    %v3078 = vpop.f32.mrf.mxu0
    %v3079 = vadd.f32 %v2994, %v3078
    %v3080 = vpop.f32.mrf.mxu0
    %v3081 = vpop.f32.mrf.mxu0
    %v3082 = vpop.f32.mrf.mxu0
    %3083 = vdwg.mxu0
    %v3084 = vmax.f32 %v3079, 0.0
    %v3085 = vpack.c.bf16 %v3084, %v3084
    %v3086 = vld [vmem:[#allocation19] sm:$0xff]
    %v3087 = vld [vmem:[#allocation19 + $0x8] sm:$0xff]
    %v3088 = vld [vmem:[#allocation19 + $0x10] sm:$0xff]
    %v3089 = vld [vmem:[#allocation19 + $0x18] sm:$0xff]
    %v3090 = vld [vmem:[#allocation19 + $0x20] sm:$0xff]
    %v3091 = vld [vmem:[#allocation19 + $0x28] sm:$0xff]
    %v3092 = vld [vmem:[#allocation19 + $0x30] sm:$0xff]
    %v3093 = vld [vmem:[#allocation19 + $0x38] sm:$0xff]
    %v3094 = vld [vmem:[#allocation19 + $0x40] sm:$0xff]
    %v3095 = vld [vmem:[#allocation19 + $0x48] sm:$0xff]
    %v3096 = vld [vmem:[#allocation19 + $0x50] sm:$0xff]
    %v3097 = vld [vmem:[#allocation19 + $0x58] sm:$0xff]
    %v3098 = vld [vmem:[#allocation19 + $0x60] sm:$0xff]
    %v3099 = vld [vmem:[#allocation19 + $0x68] sm:$0xff]
    %v3100 = vld [vmem:[#allocation19 + $0x70] sm:$0xff]
    %v3101 = vld [vmem:[#allocation19 + $0x78] sm:$0xff]
    %v3102 = vld [vmem:[%s13] sm:$0x3]
    %v3104 = vlaneseq
    %v3105 = vshrl.u32 %v3104, 7
    %v3106 = vsub.s32 0, %v3105
    %v3107 = vrot.slane %v3102, %v3106
    %v3108 = vlaneseq
    %v3109 = vshrl.u32 %v3108, 7
    %v3110 = vsub.s32 1, %v3109
    %v3111 = vrot.slane %v3102, %v3110
    %v3130 = vunpack.c.l.b16 %v3086
    %v3131 = vunpack.c.h.b16 %v3086
    %v3132 = vunpack.c.l.b16 %v3087
    %v3133 = vunpack.c.h.b16 %v3087
    %v3134 = vunpack.c.l.b16 %v3088
    %v3135 = vunpack.c.h.b16 %v3088
    %v3136 = vunpack.c.l.b16 %v3089
    %v3137 = vunpack.c.h.b16 %v3089
    %v3138 = vunpack.c.l.b16 %v3090
    %v3139 = vunpack.c.h.b16 %v3090
    %v3140 = vunpack.c.l.b16 %v3091
    %v3141 = vunpack.c.h.b16 %v3091
    %v3142 = vunpack.c.l.b16 %v3092
    %v3143 = vunpack.c.h.b16 %v3092
    %v3144 = vunpack.c.l.b16 %v3093
    %v3145 = vunpack.c.h.b16 %v3093
    %v3146 = vunpack.c.l.b16 %v3094
    %v3147 = vunpack.c.h.b16 %v3094
    %v3148 = vunpack.c.l.b16 %v3095
    %v3149 = vunpack.c.h.b16 %v3095
    %v3150 = vunpack.c.l.b16 %v3096
    %v3151 = vunpack.c.h.b16 %v3096
    %v3152 = vunpack.c.l.b16 %v3097
    %v3153 = vunpack.c.h.b16 %v3097
    %v3154 = vunpack.c.l.b16 %v3098
    %v3155 = vunpack.c.h.b16 %v3098
    %v3156 = vunpack.c.l.b16 %v3099
    %v3157 = vunpack.c.h.b16 %v3099
    %v3158 = vunpack.c.l.b16 %v3100
    %v3159 = vunpack.c.h.b16 %v3100
    %v3160 = vunpack.c.l.b16 %v3101
    %v3161 = vunpack.c.h.b16 %v3101
    %v3162 = vpack.c.b16 %v3132, %v3130
    %v3163 = vpack.c.b16 %v3133, %v3131
    %v3164 = vpack.c.b16 %v3136, %v3134
    %v3165 = vpack.c.b16 %v3137, %v3135
    %v3166 = vpack.c.b16 %v3140, %v3138
    %v3167 = vpack.c.b16 %v3141, %v3139
    %v3168 = vpack.c.b16 %v3144, %v3142
    %v3169 = vpack.c.b16 %v3145, %v3143
    %v3170 = vpack.c.b16 %v3148, %v3146
    %v3171 = vpack.c.b16 %v3149, %v3147
    %v3172 = vpack.c.b16 %v3152, %v3150
    %v3173 = vpack.c.b16 %v3153, %v3151
    %v3174 = vpack.c.b16 %v3156, %v3154
    %v3175 = vpack.c.b16 %v3157, %v3155
    %v3176 = vpack.c.b16 %v3160, %v3158
    %v3177 = vpack.c.b16 %v3161, %v3159
    %3194 = vmatprep.subr.bf16.mxu0 %v3177
    %3195 = vmatpush1.bf16.msra.mxu0 %v3176
    %3196 = vmatprep.subr.bf16.mxu0 %v3175
    %3197 = vmatpush1.bf16.msra.mxu0 %v3174
    %3198 = vmatprep.subr.bf16.mxu0 %v3173
    %3199 = vmatpush1.bf16.msra.mxu0 %v3172
    %3200 = vmatprep.subr.bf16.mxu0 %v3171
    %3201 = vmatpush1.bf16.msra.mxu0 %v3170
    %3202 = vmatprep.subr.bf16.mxu0 %v3169
    %3203 = vmatpush1.bf16.msra.mxu0 %v3168
    %3204 = vmatprep.subr.bf16.mxu0 %v3167
    %3205 = vmatpush1.bf16.msra.mxu0 %v3166
    %3206 = vmatprep.subr.bf16.mxu0 %v3165
    %3207 = vmatpush1.bf16.msra.mxu0 %v3164
    %3208 = vmatprep.subr.bf16.mxu0 %v3163
    %3209 = vmatpush1.bf16.msra.mxu0 %v3162
    %3210 = vmatprep.subr.bf16.mxu0 0
    %3211 = vmatpush2.bf16.msra.mxu0 0
    %3212 = vmatprep.subr.bf16.mxu0 0
    %3213 = vmatpush2.bf16.msra.mxu0 0
    %3214 = vmatprep.subr.bf16.mxu0 0
    %3215 = vmatpush2.bf16.msra.mxu0 0
    %3216 = vmatprep.subr.bf16.mxu0 0
    %3217 = vmatpush2.bf16.msra.mxu0 0
    %3218 = vmatprep.subr.bf16.mxu0 0
    %3219 = vmatpush2.bf16.msra.mxu0 0
    %3220 = vmatprep.subr.bf16.mxu0 0
    %3221 = vmatpush2.bf16.msra.mxu0 0
    %3222 = vmatprep.subr.bf16.mxu0 0
    %3223 = vmatpush2.bf16.msra.mxu0 0
    %3224 = vmatprep.subr.bf16.mxu0 0
    %3225 = vmatpush2.bf16.msra.mxu0 0
    %3226 = vmatprep.mubr.bf16.mxu0 0
    %3227 = vmatmul.mubr.bf16.gmra.mxu0 %v3085
    %v3228 = vpop.f32.mrf.mxu0
    %v3229 = vadd.f32 %v3107, %v3228
    %v3230 = vpop.f32.mrf.mxu0
    %v3231 = vadd.f32 %v3111, %v3230
    %v3232 = vpop.f32.mrf.mxu0
    %v3233 = vpop.f32.mrf.mxu0
    %3234 = vdwg.mxu0
    %v3235 = vmax.f32 %v3229, 0.0
    %v3236 = vmax.f32 %v3231, 0.0
    %v3237 = vpack.c.bf16 %v3235, %v3235
    %v3238 = vpack.c.bf16 %v3236, %v3236
    %v3239 = vld [vmem:[#allocation20] sm:$0xff]
    %v3240 = vld [vmem:[#allocation20 + $0x8] sm:$0xff]
    %v3241 = vld [vmem:[#allocation20 + $0x10] sm:$0xff]
    %v3242 = vld [vmem:[#allocation20 + $0x18] sm:$0xff]
    %v3243 = vld [vmem:[#allocation20 + $0x20] sm:$0xff]
    %v3244 = vld [vmem:[#allocation20 + $0x28] sm:$0xff]
    %v3245 = vld [vmem:[#allocation20 + $0x30] sm:$0xff]
    %v3246 = vld [vmem:[#allocation20 + $0x38] sm:$0xff]
    %v3247 = vld [vmem:[#allocation20 + $0x40] sm:$0xff]
    %v3248 = vld [vmem:[#allocation20 + $0x48] sm:$0xff]
    %v3249 = vld [vmem:[#allocation20 + $0x50] sm:$0xff]
    %v3250 = vld [vmem:[#allocation20 + $0x58] sm:$0xff]
    %v3251 = vld [vmem:[#allocation20 + $0x60] sm:$0xff]
    %v3252 = vld [vmem:[#allocation20 + $0x68] sm:$0xff]
    %v3253 = vld [vmem:[#allocation20 + $0x70] sm:$0xff]
    %v3254 = vld [vmem:[#allocation20 + $0x78] sm:$0xff]
    %v3255 = vld [vmem:[#allocation20 + $0x80] sm:$0xff]
    %v3256 = vld [vmem:[#allocation20 + $0x88] sm:$0xff]
    %v3257 = vld [vmem:[#allocation20 + $0x90] sm:$0xff]
    %v3258 = vld [vmem:[#allocation20 + $0x98] sm:$0xff]
    %v3259 = vld [vmem:[#allocation20 + $0xa0] sm:$0xff]
    %v3260 = vld [vmem:[#allocation20 + $0xa8] sm:$0xff]
    %v3261 = vld [vmem:[#allocation20 + $0xb0] sm:$0xff]
    %v3262 = vld [vmem:[#allocation20 + $0xb8] sm:$0xff]
    %v3263 = vld [vmem:[#allocation20 + $0xc0] sm:$0xff]
    %v3264 = vld [vmem:[#allocation20 + $0xc8] sm:$0xff]
    %v3265 = vld [vmem:[#allocation20 + $0xd0] sm:$0xff]
    %v3266 = vld [vmem:[#allocation20 + $0xd8] sm:$0xff]
    %v3267 = vld [vmem:[#allocation20 + $0xe0] sm:$0xff]
    %v3268 = vld [vmem:[#allocation20 + $0xe8] sm:$0xff]
    %v3269 = vld [vmem:[#allocation20 + $0xf0] sm:$0xff]
    %v3270 = vld [vmem:[#allocation20 + $0xf8] sm:$0xff]
    %v3271 = vld [vmem:[#allocation20 + $0x100] sm:$0xff]
    %v3272 = vld [vmem:[#allocation20 + $0x108] sm:$0xff]
    %v3273 = vld [vmem:[#allocation20 + $0x110] sm:$0xff]
    %v3274 = vld [vmem:[#allocation20 + $0x118] sm:$0xff]
    %v3275 = vld [vmem:[#allocation20 + $0x120] sm:$0xff]
    %v3276 = vld [vmem:[#allocation20 + $0x128] sm:$0xff]
    %v3277 = vld [vmem:[#allocation20 + $0x130] sm:$0xff]
    %v3278 = vld [vmem:[#allocation20 + $0x138] sm:$0xff]
    %v3279 = vld [vmem:[#allocation20 + $0x140] sm:$0xff]
    %v3280 = vld [vmem:[#allocation20 + $0x148] sm:$0xff]
    %v3281 = vld [vmem:[#allocation20 + $0x150] sm:$0xff]
    %v3282 = vld [vmem:[#allocation20 + $0x158] sm:$0xff]
    %v3283 = vld [vmem:[#allocation20 + $0x160] sm:$0xff]
    %v3284 = vld [vmem:[#allocation20 + $0x168] sm:$0xff]
    %v3285 = vld [vmem:[#allocation20 + $0x170] sm:$0xff]
    %v3286 = vld [vmem:[#allocation20 + $0x178] sm:$0xff]
    %v3287 = vld [vmem:[#allocation20 + $0x180] sm:$0xff]
    %v3288 = vld [vmem:[#allocation20 + $0x188] sm:$0xff]
    %v3289 = vld [vmem:[#allocation20 + $0x190] sm:$0xff]
    %v3290 = vld [vmem:[#allocation20 + $0x198] sm:$0xff]
    %v3291 = vld [vmem:[#allocation20 + $0x1a0] sm:$0xff]
    %v3292 = vld [vmem:[#allocation20 + $0x1a8] sm:$0xff]
    %v3293 = vld [vmem:[#allocation20 + $0x1b0] sm:$0xff]
    %v3294 = vld [vmem:[#allocation20 + $0x1b8] sm:$0xff]
    %v3295 = vld [vmem:[#allocation20 + $0x1c0] sm:$0xff]
    %v3296 = vld [vmem:[#allocation20 + $0x1c8] sm:$0xff]
    %v3297 = vld [vmem:[#allocation20 + $0x1d0] sm:$0xff]
    %v3298 = vld [vmem:[#allocation20 + $0x1d8] sm:$0xff]
    %v3299 = vld [vmem:[#allocation20 + $0x1e0] sm:$0xff]
    %v3300 = vld [vmem:[#allocation20 + $0x1e8] sm:$0xff]
    %v3301 = vld [vmem:[#allocation20 + $0x1f0] sm:$0xff]
    %v3302 = vld [vmem:[#allocation20 + $0x1f8] sm:$0xff]
    %v3303 = vld [vmem:[%s15] sm:$0xf]
    %v3305 = vlaneseq
    %v3306 = vshrl.u32 %v3305, 7
    %v3307 = vsub.s32 0, %v3306
    %v3308 = vrot.slane %v3303, %v3307
    %v3309 = vlaneseq
    %v3310 = vshrl.u32 %v3309, 7
    %v3311 = vsub.s32 1, %v3310
    %v3312 = vrot.slane %v3303, %v3311
    %v3313 = vlaneseq
    %v3314 = vshrl.u32 %v3313, 7
    %v3315 = vsub.s32 2, %v3314
    %v3316 = vrot.slane %v3303, %v3315
    %v3317 = vlaneseq
    %v3318 = vshrl.u32 %v3317, 7
    %v3319 = vsub.s32 3, %v3318
    %v3320 = vrot.slane %v3303, %v3319
    %v3389 = vunpack.c.l.b16 %v3239
    %v3390 = vunpack.c.h.b16 %v3239
    %v3391 = vunpack.c.l.b16 %v3240
    %v3392 = vunpack.c.h.b16 %v3240
    %v3393 = vunpack.c.l.b16 %v3241
    %v3394 = vunpack.c.h.b16 %v3241
    %v3395 = vunpack.c.l.b16 %v3242
    %v3396 = vunpack.c.h.b16 %v3242
    %v3397 = vunpack.c.l.b16 %v3243
    %v3398 = vunpack.c.h.b16 %v3243
    %v3399 = vunpack.c.l.b16 %v3244
    %v3400 = vunpack.c.h.b16 %v3244
    %v3401 = vunpack.c.l.b16 %v3245
    %v3402 = vunpack.c.h.b16 %v3245
    %v3403 = vunpack.c.l.b16 %v3246
    %v3404 = vunpack.c.h.b16 %v3246
    %v3405 = vunpack.c.l.b16 %v3247
    %v3406 = vunpack.c.h.b16 %v3247
    %v3407 = vunpack.c.l.b16 %v3248
    %v3408 = vunpack.c.h.b16 %v3248
    %v3409 = vunpack.c.l.b16 %v3249
    %v3410 = vunpack.c.h.b16 %v3249
    %v3411 = vunpack.c.l.b16 %v3250
    %v3412 = vunpack.c.h.b16 %v3250
    %v3413 = vunpack.c.l.b16 %v3251
    %v3414 = vunpack.c.h.b16 %v3251
    %v3415 = vunpack.c.l.b16 %v3252
    %v3416 = vunpack.c.h.b16 %v3252
    %v3417 = vunpack.c.l.b16 %v3253
    %v3418 = vunpack.c.h.b16 %v3253
    %v3419 = vunpack.c.l.b16 %v3254
    %v3420 = vunpack.c.h.b16 %v3254
    %v3421 = vunpack.c.l.b16 %v3255
    %v3422 = vunpack.c.h.b16 %v3255
    %v3423 = vunpack.c.l.b16 %v3256
    %v3424 = vunpack.c.h.b16 %v3256
    %v3425 = vunpack.c.l.b16 %v3257
    %v3426 = vunpack.c.h.b16 %v3257
    %v3427 = vunpack.c.l.b16 %v3258
    %v3428 = vunpack.c.h.b16 %v3258
    %v3429 = vunpack.c.l.b16 %v3259
    %v3430 = vunpack.c.h.b16 %v3259
    %v3431 = vunpack.c.l.b16 %v3260
    %v3432 = vunpack.c.h.b16 %v3260
    %v3433 = vunpack.c.l.b16 %v3261
    %v3434 = vunpack.c.h.b16 %v3261
    %v3435 = vunpack.c.l.b16 %v3262
    %v3436 = vunpack.c.h.b16 %v3262
    %v3437 = vunpack.c.l.b16 %v3263
    %v3438 = vunpack.c.h.b16 %v3263
    %v3439 = vunpack.c.l.b16 %v3264
    %v3440 = vunpack.c.h.b16 %v3264
    %v3441 = vunpack.c.l.b16 %v3265
    %v3442 = vunpack.c.h.b16 %v3265
    %v3443 = vunpack.c.l.b16 %v3266
    %v3444 = vunpack.c.h.b16 %v3266
    %v3445 = vunpack.c.l.b16 %v3267
    %v3446 = vunpack.c.h.b16 %v3267
    %v3447 = vunpack.c.l.b16 %v3268
    %v3448 = vunpack.c.h.b16 %v3268
    %v3449 = vunpack.c.l.b16 %v3269
    %v3450 = vunpack.c.h.b16 %v3269
    %v3451 = vunpack.c.l.b16 %v3270
    %v3452 = vunpack.c.h.b16 %v3270
    %v3453 = vunpack.c.l.b16 %v3271
    %v3454 = vunpack.c.h.b16 %v3271
    %v3455 = vunpack.c.l.b16 %v3272
    %v3456 = vunpack.c.h.b16 %v3272
    %v3457 = vunpack.c.l.b16 %v3273
    %v3458 = vunpack.c.h.b16 %v3273
    %v3459 = vunpack.c.l.b16 %v3274
    %v3460 = vunpack.c.h.b16 %v3274
    %v3461 = vunpack.c.l.b16 %v3275
    %v3462 = vunpack.c.h.b16 %v3275
    %v3463 = vunpack.c.l.b16 %v3276
    %v3464 = vunpack.c.h.b16 %v3276
    %v3465 = vunpack.c.l.b16 %v3277
    %v3466 = vunpack.c.h.b16 %v3277
    %v3467 = vunpack.c.l.b16 %v3278
    %v3468 = vunpack.c.h.b16 %v3278
    %v3469 = vunpack.c.l.b16 %v3279
    %v3470 = vunpack.c.h.b16 %v3279
    %v3471 = vunpack.c.l.b16 %v3280
    %v3472 = vunpack.c.h.b16 %v3280
    %v3473 = vunpack.c.l.b16 %v3281
    %v3474 = vunpack.c.h.b16 %v3281
    %v3475 = vunpack.c.l.b16 %v3282
    %v3476 = vunpack.c.h.b16 %v3282
    %v3477 = vunpack.c.l.b16 %v3283
    %v3478 = vunpack.c.h.b16 %v3283
    %v3479 = vunpack.c.l.b16 %v3284
    %v3480 = vunpack.c.h.b16 %v3284
    %v3481 = vunpack.c.l.b16 %v3285
    %v3482 = vunpack.c.h.b16 %v3285
    %v3483 = vunpack.c.l.b16 %v3286
    %v3484 = vunpack.c.h.b16 %v3286
    %v3485 = vunpack.c.l.b16 %v3287
    %v3486 = vunpack.c.h.b16 %v3287
    %v3487 = vunpack.c.l.b16 %v3288
    %v3488 = vunpack.c.h.b16 %v3288
    %v3489 = vunpack.c.l.b16 %v3289
    %v3490 = vunpack.c.h.b16 %v3289
    %v3491 = vunpack.c.l.b16 %v3290
    %v3492 = vunpack.c.h.b16 %v3290
    %v3493 = vunpack.c.l.b16 %v3291
    %v3494 = vunpack.c.h.b16 %v3291
    %v3495 = vunpack.c.l.b16 %v3292
    %v3496 = vunpack.c.h.b16 %v3292
    %v3497 = vunpack.c.l.b16 %v3293
    %v3498 = vunpack.c.h.b16 %v3293
    %v3499 = vunpack.c.l.b16 %v3294
    %v3500 = vunpack.c.h.b16 %v3294
    %v3501 = vunpack.c.l.b16 %v3295
    %v3502 = vunpack.c.h.b16 %v3295
    %v3503 = vunpack.c.l.b16 %v3296
    %v3504 = vunpack.c.h.b16 %v3296
    %v3505 = vunpack.c.l.b16 %v3297
    %v3506 = vunpack.c.h.b16 %v3297
    %v3507 = vunpack.c.l.b16 %v3298
    %v3508 = vunpack.c.h.b16 %v3298
    %v3509 = vunpack.c.l.b16 %v3299
    %v3510 = vunpack.c.h.b16 %v3299
    %v3511 = vunpack.c.l.b16 %v3300
    %v3512 = vunpack.c.h.b16 %v3300
    %v3513 = vunpack.c.l.b16 %v3301
    %v3514 = vunpack.c.h.b16 %v3301
    %v3515 = vunpack.c.l.b16 %v3302
    %v3516 = vunpack.c.h.b16 %v3302
    %v3517 = vpack.c.b16 %v3393, %v3389
    %v3518 = vpack.c.b16 %v3394, %v3390
    %v3519 = vpack.c.b16 %v3395, %v3391
    %v3520 = vpack.c.b16 %v3396, %v3392
    %v3521 = vpack.c.b16 %v3401, %v3397
    %v3522 = vpack.c.b16 %v3402, %v3398
    %v3523 = vpack.c.b16 %v3403, %v3399
    %v3524 = vpack.c.b16 %v3404, %v3400
    %v3525 = vpack.c.b16 %v3409, %v3405
    %v3526 = vpack.c.b16 %v3410, %v3406
    %v3527 = vpack.c.b16 %v3411, %v3407
    %v3528 = vpack.c.b16 %v3412, %v3408
    %v3529 = vpack.c.b16 %v3417, %v3413
    %v3530 = vpack.c.b16 %v3418, %v3414
    %v3531 = vpack.c.b16 %v3419, %v3415
    %v3532 = vpack.c.b16 %v3420, %v3416
    %v3533 = vpack.c.b16 %v3425, %v3421
    %v3534 = vpack.c.b16 %v3426, %v3422
    %v3535 = vpack.c.b16 %v3427, %v3423
    %v3536 = vpack.c.b16 %v3428, %v3424
    %v3537 = vpack.c.b16 %v3433, %v3429
    %v3538 = vpack.c.b16 %v3434, %v3430
    %v3539 = vpack.c.b16 %v3435, %v3431
    %v3540 = vpack.c.b16 %v3436, %v3432
    %v3541 = vpack.c.b16 %v3441, %v3437
    %v3542 = vpack.c.b16 %v3442, %v3438
    %v3543 = vpack.c.b16 %v3443, %v3439
    %v3544 = vpack.c.b16 %v3444, %v3440
    %v3545 = vpack.c.b16 %v3449, %v3445
    %v3546 = vpack.c.b16 %v3450, %v3446
    %v3547 = vpack.c.b16 %v3451, %v3447
    %v3548 = vpack.c.b16 %v3452, %v3448
    %v3549 = vpack.c.b16 %v3457, %v3453
    %v3550 = vpack.c.b16 %v3458, %v3454
    %v3551 = vpack.c.b16 %v3459, %v3455
    %v3552 = vpack.c.b16 %v3460, %v3456
    %v3553 = vpack.c.b16 %v3465, %v3461
    %v3554 = vpack.c.b16 %v3466, %v3462
    %v3555 = vpack.c.b16 %v3467, %v3463
    %v3556 = vpack.c.b16 %v3468, %v3464
    %v3557 = vpack.c.b16 %v3473, %v3469
    %v3558 = vpack.c.b16 %v3474, %v3470
    %v3559 = vpack.c.b16 %v3475, %v3471
    %v3560 = vpack.c.b16 %v3476, %v3472
    %v3561 = vpack.c.b16 %v3481, %v3477
    %v3562 = vpack.c.b16 %v3482, %v3478
    %v3563 = vpack.c.b16 %v3483, %v3479
    %v3564 = vpack.c.b16 %v3484, %v3480
    %v3565 = vpack.c.b16 %v3489, %v3485
    %v3566 = vpack.c.b16 %v3490, %v3486
    %v3567 = vpack.c.b16 %v3491, %v3487
    %v3568 = vpack.c.b16 %v3492, %v3488
    %v3569 = vpack.c.b16 %v3497, %v3493
    %v3570 = vpack.c.b16 %v3498, %v3494
    %v3571 = vpack.c.b16 %v3499, %v3495
    %v3572 = vpack.c.b16 %v3500, %v3496
    %v3573 = vpack.c.b16 %v3505, %v3501
    %v3574 = vpack.c.b16 %v3506, %v3502
    %v3575 = vpack.c.b16 %v3507, %v3503
    %v3576 = vpack.c.b16 %v3508, %v3504
    %v3577 = vpack.c.b16 %v3513, %v3509
    %v3578 = vpack.c.b16 %v3514, %v3510
    %v3579 = vpack.c.b16 %v3515, %v3511
    %v3580 = vpack.c.b16 %v3516, %v3512
    %3645 = vmatprep.subr.bf16.mxu0 %v3546
    %3646 = vmatpush1.bf16.msra.mxu0 %v3545
    %3647 = vmatprep.subr.bf16.mxu0 %v3542
    %3648 = vmatpush1.bf16.msra.mxu0 %v3541
    %3649 = vmatprep.subr.bf16.mxu0 %v3538
    %3650 = vmatpush1.bf16.msra.mxu0 %v3537
    %3651 = vmatprep.subr.bf16.mxu0 %v3534
    %3652 = vmatpush1.bf16.msra.mxu0 %v3533
    %3653 = vmatprep.subr.bf16.mxu0 %v3530
    %3654 = vmatpush1.bf16.msra.mxu0 %v3529
    %3655 = vmatprep.subr.bf16.mxu0 %v3526
    %3656 = vmatpush1.bf16.msra.mxu0 %v3525
    %3657 = vmatprep.subr.bf16.mxu0 %v3522
    %3658 = vmatpush1.bf16.msra.mxu0 %v3521
    %3659 = vmatprep.subr.bf16.mxu0 %v3518
    %3660 = vmatpush1.bf16.msra.mxu0 %v3517
    %3661 = vmatprep.subr.bf16.mxu0 %v3578
    %3662 = vmatpush2.bf16.msra.mxu0 %v3577
    %3663 = vmatprep.subr.bf16.mxu0 %v3574
    %3664 = vmatpush2.bf16.msra.mxu0 %v3573
    %3665 = vmatprep.subr.bf16.mxu0 %v3570
    %3666 = vmatpush2.bf16.msra.mxu0 %v3569
    %3667 = vmatprep.subr.bf16.mxu0 %v3566
    %3668 = vmatpush2.bf16.msra.mxu0 %v3565
    %3669 = vmatprep.subr.bf16.mxu0 %v3562
    %3670 = vmatpush2.bf16.msra.mxu0 %v3561
    %3671 = vmatprep.subr.bf16.mxu0 %v3558
    %3672 = vmatpush2.bf16.msra.mxu0 %v3557
    %3673 = vmatprep.subr.bf16.mxu0 %v3554
    %3674 = vmatpush2.bf16.msra.mxu0 %v3553
    %3675 = vmatprep.subr.bf16.mxu0 %v3550
    %3676 = vmatpush2.bf16.msra.mxu0 %v3549
    %3677 = vmatprep.mubr.bf16.mxu0 %v3238
    %3678 = vmatmul.mubr.bf16.gmra.mxu0 %v3237
    %v3679 = vpop.f32.mrf.mxu0
    %v3680 = vadd.f32 %v3308, %v3679
    %v3681 = vpop.f32.mrf.mxu0
    %v3682 = vadd.f32 %v3312, %v3681
    %v3683 = vpop.f32.mrf.mxu0
    %v3684 = vpop.f32.mrf.mxu0
    %3685 = vdwg.mxu0
    %3686 = vmatprep.subr.bf16.mxu0 %v3548
    %3687 = vmatpush1.bf16.msra.mxu0 %v3547
    %3688 = vmatprep.subr.bf16.mxu0 %v3544
    %3689 = vmatpush1.bf16.msra.mxu0 %v3543
    %3690 = vmatprep.subr.bf16.mxu0 %v3540
    %3691 = vmatpush1.bf16.msra.mxu0 %v3539
    %3692 = vmatprep.subr.bf16.mxu0 %v3536
    %3693 = vmatpush1.bf16.msra.mxu0 %v3535
    %3694 = vmatprep.subr.bf16.mxu0 %v3532
    %3695 = vmatpush1.bf16.msra.mxu0 %v3531
    %3696 = vmatprep.subr.bf16.mxu0 %v3528
    %3697 = vmatpush1.bf16.msra.mxu0 %v3527
    %3698 = vmatprep.subr.bf16.mxu0 %v3524
    %3699 = vmatpush1.bf16.msra.mxu0 %v3523
    %3700 = vmatprep.subr.bf16.mxu0 %v3520
    %3701 = vmatpush1.bf16.msra.mxu0 %v3519
    %3702 = vmatprep.subr.bf16.mxu0 %v3580
    %3703 = vmatpush2.bf16.msra.mxu0 %v3579
    %3704 = vmatprep.subr.bf16.mxu0 %v3576
    %3705 = vmatpush2.bf16.msra.mxu0 %v3575
    %3706 = vmatprep.subr.bf16.mxu0 %v3572
    %3707 = vmatpush2.bf16.msra.mxu0 %v3571
    %3708 = vmatprep.subr.bf16.mxu0 %v3568
    %3709 = vmatpush2.bf16.msra.mxu0 %v3567
    %3710 = vmatprep.subr.bf16.mxu0 %v3564
    %3711 = vmatpush2.bf16.msra.mxu0 %v3563
    %3712 = vmatprep.subr.bf16.mxu0 %v3560
    %3713 = vmatpush2.bf16.msra.mxu0 %v3559
    %3714 = vmatprep.subr.bf16.mxu0 %v3556
    %3715 = vmatpush2.bf16.msra.mxu0 %v3555
    %3716 = vmatprep.subr.bf16.mxu0 %v3552
    %3717 = vmatpush2.bf16.msra.mxu0 %v3551
    %3718 = vmatprep.mubr.bf16.mxu0 %v3238
    %3719 = vmatmul.mubr.bf16.gmra.mxu0 %v3237
    %v3720 = vpop.f32.mrf.mxu0
    %v3721 = vadd.f32 %v3316, %v3720
    %v3722 = vpop.f32.mrf.mxu0
    %v3723 = vadd.f32 %v3320, %v3722
    %v3724 = vpop.f32.mrf.mxu0
    %v3725 = vpop.f32.mrf.mxu0
    %3726 = vdwg.mxu0
    %v3727 = vmax.f32 %v3680, 0.0
    %v3728 = vmax.f32 %v3682, 0.0
    %v3729 = vmax.f32 %v3721, 0.0
    %v3730 = vmax.f32 %v3723, 0.0
    %v3731 = vpack.c.bf16 %v3727, %v3727
    %v3732 = vpack.c.bf16 %v3728, %v3728
    %v3733 = vpack.c.bf16 %v3729, %v3729
    %v3734 = vpack.c.bf16 %v3730, %v3730
    %v3735 = vld [vmem:[#allocation22] sm:$0xff]
    %v3736 = vld [vmem:[#allocation22 + $0x8] sm:$0xff]
    %v3737 = vld [vmem:[#allocation22 + $0x10] sm:$0xff]
    %v3738 = vld [vmem:[#allocation22 + $0x18] sm:$0xff]
    %v3739 = vld [vmem:[#allocation22 + $0x20] sm:$0xff]
    %v3740 = vld [vmem:[#allocation22 + $0x28] sm:$0xff]
    %v3741 = vld [vmem:[#allocation22 + $0x30] sm:$0xff]
    %v3742 = vld [vmem:[#allocation22 + $0x38] sm:$0xff]
    %v3743 = vld [vmem:[#allocation22 + $0x40] sm:$0xff]
    %v3744 = vld [vmem:[#allocation22 + $0x48] sm:$0xff]
    %v3745 = vld [vmem:[#allocation22 + $0x50] sm:$0xff]
    %v3746 = vld [vmem:[#allocation22 + $0x58] sm:$0xff]
    %v3747 = vld [vmem:[#allocation22 + $0x60] sm:$0xff]
    %v3748 = vld [vmem:[#allocation22 + $0x68] sm:$0xff]
    %v3749 = vld [vmem:[#allocation22 + $0x70] sm:$0xff]
    %v3750 = vld [vmem:[#allocation22 + $0x78] sm:$0xff]
    %v3751 = vld [vmem:[#allocation22 + $0x80] sm:$0xff]
    %v3752 = vld [vmem:[#allocation22 + $0x88] sm:$0xff]
    %v3753 = vld [vmem:[#allocation22 + $0x90] sm:$0xff]
    %v3754 = vld [vmem:[#allocation22 + $0x98] sm:$0xff]
    %v3755 = vld [vmem:[#allocation22 + $0xa0] sm:$0xff]
    %v3756 = vld [vmem:[#allocation22 + $0xa8] sm:$0xff]
    %v3757 = vld [vmem:[#allocation22 + $0xb0] sm:$0xff]
    %v3758 = vld [vmem:[#allocation22 + $0xb8] sm:$0xff]
    %v3759 = vld [vmem:[#allocation22 + $0xc0] sm:$0xff]
    %v3760 = vld [vmem:[#allocation22 + $0xc8] sm:$0xff]
    %v3761 = vld [vmem:[#allocation22 + $0xd0] sm:$0xff]
    %v3762 = vld [vmem:[#allocation22 + $0xd8] sm:$0xff]
    %v3763 = vld [vmem:[#allocation22 + $0xe0] sm:$0xff]
    %v3764 = vld [vmem:[#allocation22 + $0xe8] sm:$0xff]
    %v3765 = vld [vmem:[#allocation22 + $0xf0] sm:$0xff]
    %v3766 = vld [vmem:[#allocation22 + $0xf8] sm:$0xff]
    %v3767 = vld [vmem:[#allocation22 + $0x100] sm:$0xff]
    %v3768 = vld [vmem:[#allocation22 + $0x108] sm:$0xff]
    %v3769 = vld [vmem:[#allocation22 + $0x110] sm:$0xff]
    %v3770 = vld [vmem:[#allocation22 + $0x118] sm:$0xff]
    %v3771 = vld [vmem:[#allocation22 + $0x120] sm:$0xff]
    %v3772 = vld [vmem:[#allocation22 + $0x128] sm:$0xff]
    %v3773 = vld [vmem:[#allocation22 + $0x130] sm:$0xff]
    %v3774 = vld [vmem:[#allocation22 + $0x138] sm:$0xff]
    %v3775 = vld [vmem:[#allocation22 + $0x140] sm:$0xff]
    %v3776 = vld [vmem:[#allocation22 + $0x148] sm:$0xff]
    %v3777 = vld [vmem:[#allocation22 + $0x150] sm:$0xff]
    %v3778 = vld [vmem:[#allocation22 + $0x158] sm:$0xff]
    %v3779 = vld [vmem:[#allocation22 + $0x160] sm:$0xff]
    %v3780 = vld [vmem:[#allocation22 + $0x168] sm:$0xff]
    %v3781 = vld [vmem:[#allocation22 + $0x170] sm:$0xff]
    %v3782 = vld [vmem:[#allocation22 + $0x178] sm:$0xff]
    %v3783 = vld [vmem:[#allocation22 + $0x180] sm:$0xff]
    %v3784 = vld [vmem:[#allocation22 + $0x188] sm:$0xff]
    %v3785 = vld [vmem:[#allocation22 + $0x190] sm:$0xff]
    %v3786 = vld [vmem:[#allocation22 + $0x198] sm:$0xff]
    %v3787 = vld [vmem:[#allocation22 + $0x1a0] sm:$0xff]
    %v3788 = vld [vmem:[#allocation22 + $0x1a8] sm:$0xff]
    %v3789 = vld [vmem:[#allocation22 + $0x1b0] sm:$0xff]
    %v3790 = vld [vmem:[#allocation22 + $0x1b8] sm:$0xff]
    %v3791 = vld [vmem:[#allocation22 + $0x1c0] sm:$0xff]
    %v3792 = vld [vmem:[#allocation22 + $0x1c8] sm:$0xff]
    %v3793 = vld [vmem:[#allocation22 + $0x1d0] sm:$0xff]
    %v3794 = vld [vmem:[#allocation22 + $0x1d8] sm:$0xff]
    %v3795 = vld [vmem:[#allocation22 + $0x1e0] sm:$0xff]
    %v3796 = vld [vmem:[#allocation22 + $0x1e8] sm:$0xff]
    %v3797 = vld [vmem:[#allocation22 + $0x1f0] sm:$0xff]
    %v3798 = vld [vmem:[#allocation22 + $0x1f8] sm:$0xff]
    %v3799 = vld [vmem:[#allocation22 + $0x200] sm:$0xff]
    %v3800 = vld [vmem:[#allocation22 + $0x208] sm:$0xff]
    %v3801 = vld [vmem:[#allocation22 + $0x210] sm:$0xff]
    %v3802 = vld [vmem:[#allocation22 + $0x218] sm:$0xff]
    %v3803 = vld [vmem:[#allocation22 + $0x220] sm:$0xff]
    %v3804 = vld [vmem:[#allocation22 + $0x228] sm:$0xff]
    %v3805 = vld [vmem:[#allocation22 + $0x230] sm:$0xff]
    %v3806 = vld [vmem:[#allocation22 + $0x238] sm:$0xff]
    %v3807 = vld [vmem:[#allocation22 + $0x240] sm:$0xff]
    %v3808 = vld [vmem:[#allocation22 + $0x248] sm:$0xff]
    %v3809 = vld [vmem:[#allocation22 + $0x250] sm:$0xff]
    %v3810 = vld [vmem:[#allocation22 + $0x258] sm:$0xff]
    %v3811 = vld [vmem:[#allocation22 + $0x260] sm:$0xff]
    %v3812 = vld [vmem:[#allocation22 + $0x268] sm:$0xff]
    %v3813 = vld [vmem:[#allocation22 + $0x270] sm:$0xff]
    %v3814 = vld [vmem:[#allocation22 + $0x278] sm:$0xff]
    %v3815 = vld [vmem:[#allocation22 + $0x280] sm:$0xff]
    %v3816 = vld [vmem:[#allocation22 + $0x288] sm:$0xff]
    %v3817 = vld [vmem:[#allocation22 + $0x290] sm:$0xff]
    %v3818 = vld [vmem:[#allocation22 + $0x298] sm:$0xff]
    %v3819 = vld [vmem:[#allocation22 + $0x2a0] sm:$0xff]
    %v3820 = vld [vmem:[#allocation22 + $0x2a8] sm:$0xff]
    %v3821 = vld [vmem:[#allocation22 + $0x2b0] sm:$0xff]
    %v3822 = vld [vmem:[#allocation22 + $0x2b8] sm:$0xff]
    %v3823 = vld [vmem:[#allocation22 + $0x2c0] sm:$0xff]
    %v3824 = vld [vmem:[#allocation22 + $0x2c8] sm:$0xff]
    %v3825 = vld [vmem:[#allocation22 + $0x2d0] sm:$0xff]
    %v3826 = vld [vmem:[#allocation22 + $0x2d8] sm:$0xff]
    %v3827 = vld [vmem:[#allocation22 + $0x2e0] sm:$0xff]
    %v3828 = vld [vmem:[#allocation22 + $0x2e8] sm:$0xff]
    %v3829 = vld [vmem:[#allocation22 + $0x2f0] sm:$0xff]
    %v3830 = vld [vmem:[#allocation22 + $0x2f8] sm:$0xff]
    %v3831 = vld [vmem:[#allocation22 + $0x300] sm:$0xff]
    %v3832 = vld [vmem:[#allocation22 + $0x308] sm:$0xff]
    %v3833 = vld [vmem:[#allocation22 + $0x310] sm:$0xff]
    %v3834 = vld [vmem:[#allocation22 + $0x318] sm:$0xff]
    %v3835 = vld [vmem:[#allocation22 + $0x320] sm:$0xff]
    %v3836 = vld [vmem:[#allocation22 + $0x328] sm:$0xff]
    %v3837 = vld [vmem:[#allocation22 + $0x330] sm:$0xff]
    %v3838 = vld [vmem:[#allocation22 + $0x338] sm:$0xff]
    %v3839 = vld [vmem:[#allocation22 + $0x340] sm:$0xff]
    %v3840 = vld [vmem:[#allocation22 + $0x348] sm:$0xff]
    %v3841 = vld [vmem:[#allocation22 + $0x350] sm:$0xff]
    %v3842 = vld [vmem:[#allocation22 + $0x358] sm:$0xff]
    %v3843 = vld [vmem:[#allocation22 + $0x360] sm:$0xff]
    %v3844 = vld [vmem:[#allocation22 + $0x368] sm:$0xff]
    %v3845 = vld [vmem:[#allocation22 + $0x370] sm:$0xff]
    %v3846 = vld [vmem:[#allocation22 + $0x378] sm:$0xff]
    %v3847 = vld [vmem:[#allocation22 + $0x380] sm:$0xff]
    %v3848 = vld [vmem:[#allocation22 + $0x388] sm:$0xff]
    %v3849 = vld [vmem:[#allocation22 + $0x390] sm:$0xff]
    %v3850 = vld [vmem:[#allocation22 + $0x398] sm:$0xff]
    %v3851 = vld [vmem:[#allocation22 + $0x3a0] sm:$0xff]
    %v3852 = vld [vmem:[#allocation22 + $0x3a8] sm:$0xff]
    %v3853 = vld [vmem:[#allocation22 + $0x3b0] sm:$0xff]
    %v3854 = vld [vmem:[#allocation22 + $0x3b8] sm:$0xff]
    %v3855 = vld [vmem:[#allocation22 + $0x3c0] sm:$0xff]
    %v3856 = vld [vmem:[#allocation22 + $0x3c8] sm:$0xff]
    %v3857 = vld [vmem:[#allocation22 + $0x3d0] sm:$0xff]
    %v3858 = vld [vmem:[#allocation22 + $0x3d8] sm:$0xff]
    %v3859 = vld [vmem:[#allocation22 + $0x3e0] sm:$0xff]
    %v3860 = vld [vmem:[#allocation22 + $0x3e8] sm:$0xff]
    %v3861 = vld [vmem:[#allocation22 + $0x3f0] sm:$0xff]
    %v3862 = vld [vmem:[#allocation22 + $0x3f8] sm:$0xff]
    %v3863 = vld [vmem:[#allocation22 + $0x400] sm:$0xff]
    %v3864 = vld [vmem:[#allocation22 + $0x408] sm:$0xff]
    %v3865 = vld [vmem:[#allocation22 + $0x410] sm:$0xff]
    %v3866 = vld [vmem:[#allocation22 + $0x418] sm:$0xff]
    %v3867 = vld [vmem:[#allocation22 + $0x420] sm:$0xff]
    %v3868 = vld [vmem:[#allocation22 + $0x428] sm:$0xff]
    %v3869 = vld [vmem:[#allocation22 + $0x430] sm:$0xff]
    %v3870 = vld [vmem:[#allocation22 + $0x438] sm:$0xff]
    %v3871 = vld [vmem:[#allocation22 + $0x440] sm:$0xff]
    %v3872 = vld [vmem:[#allocation22 + $0x448] sm:$0xff]
    %v3873 = vld [vmem:[#allocation22 + $0x450] sm:$0xff]
    %v3874 = vld [vmem:[#allocation22 + $0x458] sm:$0xff]
    %v3875 = vld [vmem:[#allocation22 + $0x460] sm:$0xff]
    %v3876 = vld [vmem:[#allocation22 + $0x468] sm:$0xff]
    %v3877 = vld [vmem:[#allocation22 + $0x470] sm:$0xff]
    %v3878 = vld [vmem:[#allocation22 + $0x478] sm:$0xff]
    %v3879 = vld [vmem:[#allocation22 + $0x480] sm:$0xff]
    %v3880 = vld [vmem:[#allocation22 + $0x488] sm:$0xff]
    %v3881 = vld [vmem:[#allocation22 + $0x490] sm:$0xff]
    %v3882 = vld [vmem:[#allocation22 + $0x498] sm:$0xff]
    %v3883 = vld [vmem:[#allocation22 + $0x4a0] sm:$0xff]
    %v3884 = vld [vmem:[#allocation22 + $0x4a8] sm:$0xff]
    %v3885 = vld [vmem:[#allocation22 + $0x4b0] sm:$0xff]
    %v3886 = vld [vmem:[#allocation22 + $0x4b8] sm:$0xff]
    %v3887 = vld [vmem:[#allocation22 + $0x4c0] sm:$0xff]
    %v3888 = vld [vmem:[#allocation22 + $0x4c8] sm:$0xff]
    %v3889 = vld [vmem:[#allocation22 + $0x4d0] sm:$0xff]
    %v3890 = vld [vmem:[#allocation22 + $0x4d8] sm:$0xff]
    %v3891 = vld [vmem:[#allocation22 + $0x4e0] sm:$0xff]
    %v3892 = vld [vmem:[#allocation22 + $0x4e8] sm:$0xff]
    %v3893 = vld [vmem:[#allocation22 + $0x4f0] sm:$0xff]
    %v3894 = vld [vmem:[#allocation22 + $0x4f8] sm:$0xff]
    %v3895 = vld [vmem:[#allocation22 + $0x500] sm:$0xff]
    %v3896 = vld [vmem:[#allocation22 + $0x508] sm:$0xff]
    %v3897 = vld [vmem:[#allocation22 + $0x510] sm:$0xff]
    %v3898 = vld [vmem:[#allocation22 + $0x518] sm:$0xff]
    %v3899 = vld [vmem:[#allocation22 + $0x520] sm:$0xff]
    %v3900 = vld [vmem:[#allocation22 + $0x528] sm:$0xff]
    %v3901 = vld [vmem:[#allocation22 + $0x530] sm:$0xff]
    %v3902 = vld [vmem:[#allocation22 + $0x538] sm:$0xff]
    %v3903 = vld [vmem:[#allocation22 + $0x540] sm:$0xff]
    %v3904 = vld [vmem:[#allocation22 + $0x548] sm:$0xff]
    %v3905 = vld [vmem:[#allocation22 + $0x550] sm:$0xff]
    %v3906 = vld [vmem:[#allocation22 + $0x558] sm:$0xff]
    %v3907 = vld [vmem:[#allocation22 + $0x560] sm:$0xff]
    %v3908 = vld [vmem:[#allocation22 + $0x568] sm:$0xff]
    %v3909 = vld [vmem:[#allocation22 + $0x570] sm:$0xff]
    %v3910 = vld [vmem:[#allocation22 + $0x578] sm:$0xff]
    %v3911 = vld [vmem:[#allocation22 + $0x580] sm:$0xff]
    %v3912 = vld [vmem:[#allocation22 + $0x588] sm:$0xff]
    %v3913 = vld [vmem:[#allocation22 + $0x590] sm:$0xff]
    %v3914 = vld [vmem:[#allocation22 + $0x598] sm:$0xff]
    %v3915 = vld [vmem:[#allocation22 + $0x5a0] sm:$0xff]
    %v3916 = vld [vmem:[#allocation22 + $0x5a8] sm:$0xff]
    %v3917 = vld [vmem:[#allocation22 + $0x5b0] sm:$0xff]
    %v3918 = vld [vmem:[#allocation22 + $0x5b8] sm:$0xff]
    %v3919 = vld [vmem:[#allocation22 + $0x5c0] sm:$0xff]
    %v3920 = vld [vmem:[#allocation22 + $0x5c8] sm:$0xff]
    %v3921 = vld [vmem:[#allocation22 + $0x5d0] sm:$0xff]
    %v3922 = vld [vmem:[#allocation22 + $0x5d8] sm:$0xff]
    %v3923 = vld [vmem:[#allocation22 + $0x5e0] sm:$0xff]
    %v3924 = vld [vmem:[#allocation22 + $0x5e8] sm:$0xff]
    %v3925 = vld [vmem:[#allocation22 + $0x5f0] sm:$0xff]
    %v3926 = vld [vmem:[#allocation22 + $0x5f8] sm:$0xff]
    %v3927 = vld [vmem:[#allocation22 + $0x600] sm:$0xff]
    %v3928 = vld [vmem:[#allocation22 + $0x608] sm:$0xff]
    %v3929 = vld [vmem:[#allocation22 + $0x610] sm:$0xff]
    %v3930 = vld [vmem:[#allocation22 + $0x618] sm:$0xff]
    %v3931 = vld [vmem:[#allocation22 + $0x620] sm:$0xff]
    %v3932 = vld [vmem:[#allocation22 + $0x628] sm:$0xff]
    %v3933 = vld [vmem:[#allocation22 + $0x630] sm:$0xff]
    %v3934 = vld [vmem:[#allocation22 + $0x638] sm:$0xff]
    %v3935 = vld [vmem:[#allocation22 + $0x640] sm:$0xff]
    %v3936 = vld [vmem:[#allocation22 + $0x648] sm:$0xff]
    %v3937 = vld [vmem:[#allocation22 + $0x650] sm:$0xff]
    %v3938 = vld [vmem:[#allocation22 + $0x658] sm:$0xff]
    %v3939 = vld [vmem:[#allocation22 + $0x660] sm:$0xff]
    %v3940 = vld [vmem:[#allocation22 + $0x668] sm:$0xff]
    %v3941 = vld [vmem:[#allocation22 + $0x670] sm:$0xff]
    %v3942 = vld [vmem:[#allocation22 + $0x678] sm:$0xff]
    %v3943 = vld [vmem:[#allocation22 + $0x680] sm:$0xff]
    %v3944 = vld [vmem:[#allocation22 + $0x688] sm:$0xff]
    %v3945 = vld [vmem:[#allocation22 + $0x690] sm:$0xff]
    %v3946 = vld [vmem:[#allocation22 + $0x698] sm:$0xff]
    %v3947 = vld [vmem:[#allocation22 + $0x6a0] sm:$0xff]
    %v3948 = vld [vmem:[#allocation22 + $0x6a8] sm:$0xff]
    %v3949 = vld [vmem:[#allocation22 + $0x6b0] sm:$0xff]
    %v3950 = vld [vmem:[#allocation22 + $0x6b8] sm:$0xff]
    %v3951 = vld [vmem:[#allocation22 + $0x6c0] sm:$0xff]
    %v3952 = vld [vmem:[#allocation22 + $0x6c8] sm:$0xff]
    %v3953 = vld [vmem:[#allocation22 + $0x6d0] sm:$0xff]
    %v3954 = vld [vmem:[#allocation22 + $0x6d8] sm:$0xff]
    %v3955 = vld [vmem:[#allocation22 + $0x6e0] sm:$0xff]
    %v3956 = vld [vmem:[#allocation22 + $0x6e8] sm:$0xff]
    %v3957 = vld [vmem:[#allocation22 + $0x6f0] sm:$0xff]
    %v3958 = vld [vmem:[#allocation22 + $0x6f8] sm:$0xff]
    %v3959 = vld [vmem:[#allocation22 + $0x700] sm:$0xff]
    %v3960 = vld [vmem:[#allocation22 + $0x708] sm:$0xff]
    %v3961 = vld [vmem:[#allocation22 + $0x710] sm:$0xff]
    %v3962 = vld [vmem:[#allocation22 + $0x718] sm:$0xff]
    %v3963 = vld [vmem:[#allocation22 + $0x720] sm:$0xff]
    %v3964 = vld [vmem:[#allocation22 + $0x728] sm:$0xff]
    %v3965 = vld [vmem:[#allocation22 + $0x730] sm:$0xff]
    %v3966 = vld [vmem:[#allocation22 + $0x738] sm:$0xff]
    %v3967 = vld [vmem:[#allocation22 + $0x740] sm:$0xff]
    %v3968 = vld [vmem:[#allocation22 + $0x748] sm:$0xff]
    %v3969 = vld [vmem:[#allocation22 + $0x750] sm:$0xff]
    %v3970 = vld [vmem:[#allocation22 + $0x758] sm:$0xff]
    %v3971 = vld [vmem:[#allocation22 + $0x760] sm:$0xff]
    %v3972 = vld [vmem:[#allocation22 + $0x768] sm:$0xff]
    %v3973 = vld [vmem:[#allocation22 + $0x770] sm:$0xff]
    %v3974 = vld [vmem:[#allocation22 + $0x778] sm:$0xff]
    %v3975 = vld [vmem:[#allocation22 + $0x780] sm:$0xff]
    %v3976 = vld [vmem:[#allocation22 + $0x788] sm:$0xff]
    %v3977 = vld [vmem:[#allocation22 + $0x790] sm:$0xff]
    %v3978 = vld [vmem:[#allocation22 + $0x798] sm:$0xff]
    %v3979 = vld [vmem:[#allocation22 + $0x7a0] sm:$0xff]
    %v3980 = vld [vmem:[#allocation22 + $0x7a8] sm:$0xff]
    %v3981 = vld [vmem:[#allocation22 + $0x7b0] sm:$0xff]
    %v3982 = vld [vmem:[#allocation22 + $0x7b8] sm:$0xff]
    %v3983 = vld [vmem:[#allocation22 + $0x7c0] sm:$0xff]
    %v3984 = vld [vmem:[#allocation22 + $0x7c8] sm:$0xff]
    %v3985 = vld [vmem:[#allocation22 + $0x7d0] sm:$0xff]
    %v3986 = vld [vmem:[#allocation22 + $0x7d8] sm:$0xff]
    %v3987 = vld [vmem:[#allocation22 + $0x7e0] sm:$0xff]
    %v3988 = vld [vmem:[#allocation22 + $0x7e8] sm:$0xff]
    %v3989 = vld [vmem:[#allocation22 + $0x7f0] sm:$0xff]
    %v3990 = vld [vmem:[#allocation22 + $0x7f8] sm:$0xff]
    %v3991 = vld [vmem:[%s17] sm:$0xff]
    %v3993 = vlaneseq
    %v3994 = vshrl.u32 %v3993, 7
    %v3995 = vsub.s32 0, %v3994
    %v3996 = vrot.slane %v3991, %v3995
    %v3997 = vlaneseq
    %v3998 = vshrl.u32 %v3997, 7
    %v3999 = vsub.s32 1, %v3998
    %v4000 = vrot.slane %v3991, %v3999
    %v4001 = vlaneseq
    %v4002 = vshrl.u32 %v4001, 7
    %v4003 = vsub.s32 2, %v4002
    %v4004 = vrot.slane %v3991, %v4003
    %v4005 = vlaneseq
    %v4006 = vshrl.u32 %v4005, 7
    %v4007 = vsub.s32 3, %v4006
    %v4008 = vrot.slane %v3991, %v4007
    %v4009 = vlaneseq
    %v4010 = vshrl.u32 %v4009, 7
    %v4011 = vsub.s32 4, %v4010
    %v4012 = vrot.slane %v3991, %v4011
    %v4013 = vlaneseq
    %v4014 = vshrl.u32 %v4013, 7
    %v4015 = vsub.s32 5, %v4014
    %v4016 = vrot.slane %v3991, %v4015
    %v4017 = vlaneseq
    %v4018 = vshrl.u32 %v4017, 7
    %v4019 = vsub.s32 6, %v4018
    %v4020 = vrot.slane %v3991, %v4019
    %v4021 = vlaneseq
    %v4022 = vshrl.u32 %v4021, 7
    %v4023 = vsub.s32 7, %v4022
    %v4024 = vrot.slane %v3991, %v4023
    %v4289 = vunpack.c.l.b16 %v3735
    %v4290 = vunpack.c.h.b16 %v3735
    %v4291 = vunpack.c.l.b16 %v3736
    %v4292 = vunpack.c.h.b16 %v3736
    %v4293 = vunpack.c.l.b16 %v3737
    %v4294 = vunpack.c.h.b16 %v3737
    %v4295 = vunpack.c.l.b16 %v3738
    %v4296 = vunpack.c.h.b16 %v3738
    %v4297 = vunpack.c.l.b16 %v3739
    %v4298 = vunpack.c.h.b16 %v3739
    %v4299 = vunpack.c.l.b16 %v3740
    %v4300 = vunpack.c.h.b16 %v3740
    %v4301 = vunpack.c.l.b16 %v3741
    %v4302 = vunpack.c.h.b16 %v3741
    %v4303 = vunpack.c.l.b16 %v3742
    %v4304 = vunpack.c.h.b16 %v3742
    %v4305 = vunpack.c.l.b16 %v3743
    %v4306 = vunpack.c.h.b16 %v3743
    %v4307 = vunpack.c.l.b16 %v3744
    %v4308 = vunpack.c.h.b16 %v3744
    %v4309 = vunpack.c.l.b16 %v3745
    %v4310 = vunpack.c.h.b16 %v3745
    %v4311 = vunpack.c.l.b16 %v3746
    %v4312 = vunpack.c.h.b16 %v3746
    %v4313 = vunpack.c.l.b16 %v3747
    %v4314 = vunpack.c.h.b16 %v3747
    %v4315 = vunpack.c.l.b16 %v3748
    %v4316 = vunpack.c.h.b16 %v3748
    %v4317 = vunpack.c.l.b16 %v3749
    %v4318 = vunpack.c.h.b16 %v3749
    %v4319 = vunpack.c.l.b16 %v3750
    %v4320 = vunpack.c.h.b16 %v3750
    %v4321 = vunpack.c.l.b16 %v3751
    %v4322 = vunpack.c.h.b16 %v3751
    %v4323 = vunpack.c.l.b16 %v3752
    %v4324 = vunpack.c.h.b16 %v3752
    %v4325 = vunpack.c.l.b16 %v3753
    %v4326 = vunpack.c.h.b16 %v3753
    %v4327 = vunpack.c.l.b16 %v3754
    %v4328 = vunpack.c.h.b16 %v3754
    %v4329 = vunpack.c.l.b16 %v3755
    %v4330 = vunpack.c.h.b16 %v3755
    %v4331 = vunpack.c.l.b16 %v3756
    %v4332 = vunpack.c.h.b16 %v3756
    %v4333 = vunpack.c.l.b16 %v3757
    %v4334 = vunpack.c.h.b16 %v3757
    %v4335 = vunpack.c.l.b16 %v3758
    %v4336 = vunpack.c.h.b16 %v3758
    %v4337 = vunpack.c.l.b16 %v3759
    %v4338 = vunpack.c.h.b16 %v3759
    %v4339 = vunpack.c.l.b16 %v3760
    %v4340 = vunpack.c.h.b16 %v3760
    %v4341 = vunpack.c.l.b16 %v3761
    %v4342 = vunpack.c.h.b16 %v3761
    %v4343 = vunpack.c.l.b16 %v3762
    %v4344 = vunpack.c.h.b16 %v3762
    %v4345 = vunpack.c.l.b16 %v3763
    %v4346 = vunpack.c.h.b16 %v3763
    %v4347 = vunpack.c.l.b16 %v3764
    %v4348 = vunpack.c.h.b16 %v3764
    %v4349 = vunpack.c.l.b16 %v3765
    %v4350 = vunpack.c.h.b16 %v3765
    %v4351 = vunpack.c.l.b16 %v3766
    %v4352 = vunpack.c.h.b16 %v3766
    %v4353 = vunpack.c.l.b16 %v3767
    %v4354 = vunpack.c.h.b16 %v3767
    %v4355 = vunpack.c.l.b16 %v3768
    %v4356 = vunpack.c.h.b16 %v3768
    %v4357 = vunpack.c.l.b16 %v3769
    %v4358 = vunpack.c.h.b16 %v3769
    %v4359 = vunpack.c.l.b16 %v3770
    %v4360 = vunpack.c.h.b16 %v3770
    %v4361 = vunpack.c.l.b16 %v3771
    %v4362 = vunpack.c.h.b16 %v3771
    %v4363 = vunpack.c.l.b16 %v3772
    %v4364 = vunpack.c.h.b16 %v3772
    %v4365 = vunpack.c.l.b16 %v3773
    %v4366 = vunpack.c.h.b16 %v3773
    %v4367 = vunpack.c.l.b16 %v3774
    %v4368 = vunpack.c.h.b16 %v3774
    %v4369 = vunpack.c.l.b16 %v3775
    %v4370 = vunpack.c.h.b16 %v3775
    %v4371 = vunpack.c.l.b16 %v3776
    %v4372 = vunpack.c.h.b16 %v3776
    %v4373 = vunpack.c.l.b16 %v3777
    %v4374 = vunpack.c.h.b16 %v3777
    %v4375 = vunpack.c.l.b16 %v3778
    %v4376 = vunpack.c.h.b16 %v3778
    %v4377 = vunpack.c.l.b16 %v3779
    %v4378 = vunpack.c.h.b16 %v3779
    %v4379 = vunpack.c.l.b16 %v3780
    %v4380 = vunpack.c.h.b16 %v3780
    %v4381 = vunpack.c.l.b16 %v3781
    %v4382 = vunpack.c.h.b16 %v3781
    %v4383 = vunpack.c.l.b16 %v3782
    %v4384 = vunpack.c.h.b16 %v3782
    %v4385 = vunpack.c.l.b16 %v3783
    %v4386 = vunpack.c.h.b16 %v3783
    %v4387 = vunpack.c.l.b16 %v3784
    %v4388 = vunpack.c.h.b16 %v3784
    %v4389 = vunpack.c.l.b16 %v3785
    %v4390 = vunpack.c.h.b16 %v3785
    %v4391 = vunpack.c.l.b16 %v3786
    %v4392 = vunpack.c.h.b16 %v3786
    %v4393 = vunpack.c.l.b16 %v3787
    %v4394 = vunpack.c.h.b16 %v3787
    %v4395 = vunpack.c.l.b16 %v3788
    %v4396 = vunpack.c.h.b16 %v3788
    %v4397 = vunpack.c.l.b16 %v3789
    %v4398 = vunpack.c.h.b16 %v3789
    %v4399 = vunpack.c.l.b16 %v3790
    %v4400 = vunpack.c.h.b16 %v3790
    %v4401 = vunpack.c.l.b16 %v3791
    %v4402 = vunpack.c.h.b16 %v3791
    %v4403 = vunpack.c.l.b16 %v3792
    %v4404 = vunpack.c.h.b16 %v3792
    %v4405 = vunpack.c.l.b16 %v3793
    %v4406 = vunpack.c.h.b16 %v3793
    %v4407 = vunpack.c.l.b16 %v3794
    %v4408 = vunpack.c.h.b16 %v3794
    %v4409 = vunpack.c.l.b16 %v3795
    %v4410 = vunpack.c.h.b16 %v3795
    %v4411 = vunpack.c.l.b16 %v3796
    %v4412 = vunpack.c.h.b16 %v3796
    %v4413 = vunpack.c.l.b16 %v3797
    %v4414 = vunpack.c.h.b16 %v3797
    %v4415 = vunpack.c.l.b16 %v3798
    %v4416 = vunpack.c.h.b16 %v3798
    %v4417 = vunpack.c.l.b16 %v3799
    %v4418 = vunpack.c.h.b16 %v3799
    %v4419 = vunpack.c.l.b16 %v3800
    %v4420 = vunpack.c.h.b16 %v3800
    %v4421 = vunpack.c.l.b16 %v3801
    %v4422 = vunpack.c.h.b16 %v3801
    %v4423 = vunpack.c.l.b16 %v3802
    %v4424 = vunpack.c.h.b16 %v3802
    %v4425 = vunpack.c.l.b16 %v3803
    %v4426 = vunpack.c.h.b16 %v3803
    %v4427 = vunpack.c.l.b16 %v3804
    %v4428 = vunpack.c.h.b16 %v3804
    %v4429 = vunpack.c.l.b16 %v3805
    %v4430 = vunpack.c.h.b16 %v3805
    %v4431 = vunpack.c.l.b16 %v3806
    %v4432 = vunpack.c.h.b16 %v3806
    %v4433 = vunpack.c.l.b16 %v3807
    %v4434 = vunpack.c.h.b16 %v3807
    %v4435 = vunpack.c.l.b16 %v3808
    %v4436 = vunpack.c.h.b16 %v3808
    %v4437 = vunpack.c.l.b16 %v3809
    %v4438 = vunpack.c.h.b16 %v3809
    %v4439 = vunpack.c.l.b16 %v3810
    %v4440 = vunpack.c.h.b16 %v3810
    %v4441 = vunpack.c.l.b16 %v3811
    %v4442 = vunpack.c.h.b16 %v3811
    %v4443 = vunpack.c.l.b16 %v3812
    %v4444 = vunpack.c.h.b16 %v3812
    %v4445 = vunpack.c.l.b16 %v3813
    %v4446 = vunpack.c.h.b16 %v3813
    %v4447 = vunpack.c.l.b16 %v3814
    %v4448 = vunpack.c.h.b16 %v3814
    %v4449 = vunpack.c.l.b16 %v3815
    %v4450 = vunpack.c.h.b16 %v3815
    %v4451 = vunpack.c.l.b16 %v3816
    %v4452 = vunpack.c.h.b16 %v3816
    %v4453 = vunpack.c.l.b16 %v3817
    %v4454 = vunpack.c.h.b16 %v3817
    %v4455 = vunpack.c.l.b16 %v3818
    %v4456 = vunpack.c.h.b16 %v3818
    %v4457 = vunpack.c.l.b16 %v3819
    %v4458 = vunpack.c.h.b16 %v3819
    %v4459 = vunpack.c.l.b16 %v3820
    %v4460 = vunpack.c.h.b16 %v3820
    %v4461 = vunpack.c.l.b16 %v3821
    %v4462 = vunpack.c.h.b16 %v3821
    %v4463 = vunpack.c.l.b16 %v3822
    %v4464 = vunpack.c.h.b16 %v3822
    %v4465 = vunpack.c.l.b16 %v3823
    %v4466 = vunpack.c.h.b16 %v3823
    %v4467 = vunpack.c.l.b16 %v3824
    %v4468 = vunpack.c.h.b16 %v3824
    %v4469 = vunpack.c.l.b16 %v3825
    %v4470 = vunpack.c.h.b16 %v3825
    %v4471 = vunpack.c.l.b16 %v3826
    %v4472 = vunpack.c.h.b16 %v3826
    %v4473 = vunpack.c.l.b16 %v3827
    %v4474 = vunpack.c.h.b16 %v3827
    %v4475 = vunpack.c.l.b16 %v3828
    %v4476 = vunpack.c.h.b16 %v3828
    %v4477 = vunpack.c.l.b16 %v3829
    %v4478 = vunpack.c.h.b16 %v3829
    %v4479 = vunpack.c.l.b16 %v3830
    %v4480 = vunpack.c.h.b16 %v3830
    %v4481 = vunpack.c.l.b16 %v3831
    %v4482 = vunpack.c.h.b16 %v3831
    %v4483 = vunpack.c.l.b16 %v3832
    %v4484 = vunpack.c.h.b16 %v3832
    %v4485 = vunpack.c.l.b16 %v3833
    %v4486 = vunpack.c.h.b16 %v3833
    %v4487 = vunpack.c.l.b16 %v3834
    %v4488 = vunpack.c.h.b16 %v3834
    %v4489 = vunpack.c.l.b16 %v3835
    %v4490 = vunpack.c.h.b16 %v3835
    %v4491 = vunpack.c.l.b16 %v3836
    %v4492 = vunpack.c.h.b16 %v3836
    %v4493 = vunpack.c.l.b16 %v3837
    %v4494 = vunpack.c.h.b16 %v3837
    %v4495 = vunpack.c.l.b16 %v3838
    %v4496 = vunpack.c.h.b16 %v3838
    %v4497 = vunpack.c.l.b16 %v3839
    %v4498 = vunpack.c.h.b16 %v3839
    %v4499 = vunpack.c.l.b16 %v3840
    %v4500 = vunpack.c.h.b16 %v3840
    %v4501 = vunpack.c.l.b16 %v3841
    %v4502 = vunpack.c.h.b16 %v3841
    %v4503 = vunpack.c.l.b16 %v3842
    %v4504 = vunpack.c.h.b16 %v3842
    %v4505 = vunpack.c.l.b16 %v3843
    %v4506 = vunpack.c.h.b16 %v3843
    %v4507 = vunpack.c.l.b16 %v3844
    %v4508 = vunpack.c.h.b16 %v3844
    %v4509 = vunpack.c.l.b16 %v3845
    %v4510 = vunpack.c.h.b16 %v3845
    %v4511 = vunpack.c.l.b16 %v3846
    %v4512 = vunpack.c.h.b16 %v3846
    %v4513 = vunpack.c.l.b16 %v3847
    %v4514 = vunpack.c.h.b16 %v3847
    %v4515 = vunpack.c.l.b16 %v3848
    %v4516 = vunpack.c.h.b16 %v3848
    %v4517 = vunpack.c.l.b16 %v3849
    %v4518 = vunpack.c.h.b16 %v3849
    %v4519 = vunpack.c.l.b16 %v3850
    %v4520 = vunpack.c.h.b16 %v3850
    %v4521 = vunpack.c.l.b16 %v3851
    %v4522 = vunpack.c.h.b16 %v3851
    %v4523 = vunpack.c.l.b16 %v3852
    %v4524 = vunpack.c.h.b16 %v3852
    %v4525 = vunpack.c.l.b16 %v3853
    %v4526 = vunpack.c.h.b16 %v3853
    %v4527 = vunpack.c.l.b16 %v3854
    %v4528 = vunpack.c.h.b16 %v3854
    %v4529 = vunpack.c.l.b16 %v3855
    %v4530 = vunpack.c.h.b16 %v3855
    %v4531 = vunpack.c.l.b16 %v3856
    %v4532 = vunpack.c.h.b16 %v3856
    %v4533 = vunpack.c.l.b16 %v3857
    %v4534 = vunpack.c.h.b16 %v3857
    %v4535 = vunpack.c.l.b16 %v3858
    %v4536 = vunpack.c.h.b16 %v3858
    %v4537 = vunpack.c.l.b16 %v3859
    %v4538 = vunpack.c.h.b16 %v3859
    %v4539 = vunpack.c.l.b16 %v3860
    %v4540 = vunpack.c.h.b16 %v3860
    %v4541 = vunpack.c.l.b16 %v3861
    %v4542 = vunpack.c.h.b16 %v3861
    %v4543 = vunpack.c.l.b16 %v3862
    %v4544 = vunpack.c.h.b16 %v3862
    %v4545 = vunpack.c.l.b16 %v3863
    %v4546 = vunpack.c.h.b16 %v3863
    %v4547 = vunpack.c.l.b16 %v3864
    %v4548 = vunpack.c.h.b16 %v3864
    %v4549 = vunpack.c.l.b16 %v3865
    %v4550 = vunpack.c.h.b16 %v3865
    %v4551 = vunpack.c.l.b16 %v3866
    %v4552 = vunpack.c.h.b16 %v3866
    %v4553 = vunpack.c.l.b16 %v3867
    %v4554 = vunpack.c.h.b16 %v3867
    %v4555 = vunpack.c.l.b16 %v3868
    %v4556 = vunpack.c.h.b16 %v3868
    %v4557 = vunpack.c.l.b16 %v3869
    %v4558 = vunpack.c.h.b16 %v3869
    %v4559 = vunpack.c.l.b16 %v3870
    %v4560 = vunpack.c.h.b16 %v3870
    %v4561 = vunpack.c.l.b16 %v3871
    %v4562 = vunpack.c.h.b16 %v3871
    %v4563 = vunpack.c.l.b16 %v3872
    %v4564 = vunpack.c.h.b16 %v3872
    %v4565 = vunpack.c.l.b16 %v3873
    %v4566 = vunpack.c.h.b16 %v3873
    %v4567 = vunpack.c.l.b16 %v3874
    %v4568 = vunpack.c.h.b16 %v3874
    %v4569 = vunpack.c.l.b16 %v3875
    %v4570 = vunpack.c.h.b16 %v3875
    %v4571 = vunpack.c.l.b16 %v3876
    %v4572 = vunpack.c.h.b16 %v3876
    %v4573 = vunpack.c.l.b16 %v3877
    %v4574 = vunpack.c.h.b16 %v3877
    %v4575 = vunpack.c.l.b16 %v3878
    %v4576 = vunpack.c.h.b16 %v3878
    %v4577 = vunpack.c.l.b16 %v3879
    %v4578 = vunpack.c.h.b16 %v3879
    %v4579 = vunpack.c.l.b16 %v3880
    %v4580 = vunpack.c.h.b16 %v3880
    %v4581 = vunpack.c.l.b16 %v3881
    %v4582 = vunpack.c.h.b16 %v3881
    %v4583 = vunpack.c.l.b16 %v3882
    %v4584 = vunpack.c.h.b16 %v3882
    %v4585 = vunpack.c.l.b16 %v3883
    %v4586 = vunpack.c.h.b16 %v3883
    %v4587 = vunpack.c.l.b16 %v3884
    %v4588 = vunpack.c.h.b16 %v3884
    %v4589 = vunpack.c.l.b16 %v3885
    %v4590 = vunpack.c.h.b16 %v3885
    %v4591 = vunpack.c.l.b16 %v3886
    %v4592 = vunpack.c.h.b16 %v3886
    %v4593 = vunpack.c.l.b16 %v3887
    %v4594 = vunpack.c.h.b16 %v3887
    %v4595 = vunpack.c.l.b16 %v3888
    %v4596 = vunpack.c.h.b16 %v3888
    %v4597 = vunpack.c.l.b16 %v3889
    %v4598 = vunpack.c.h.b16 %v3889
    %v4599 = vunpack.c.l.b16 %v3890
    %v4600 = vunpack.c.h.b16 %v3890
    %v4601 = vunpack.c.l.b16 %v3891
    %v4602 = vunpack.c.h.b16 %v3891
    %v4603 = vunpack.c.l.b16 %v3892
    %v4604 = vunpack.c.h.b16 %v3892
    %v4605 = vunpack.c.l.b16 %v3893
    %v4606 = vunpack.c.h.b16 %v3893
    %v4607 = vunpack.c.l.b16 %v3894
    %v4608 = vunpack.c.h.b16 %v3894
    %v4609 = vunpack.c.l.b16 %v3895
    %v4610 = vunpack.c.h.b16 %v3895
    %v4611 = vunpack.c.l.b16 %v3896
    %v4612 = vunpack.c.h.b16 %v3896
    %v4613 = vunpack.c.l.b16 %v3897
    %v4614 = vunpack.c.h.b16 %v3897
    %v4615 = vunpack.c.l.b16 %v3898
    %v4616 = vunpack.c.h.b16 %v3898
    %v4617 = vunpack.c.l.b16 %v3899
    %v4618 = vunpack.c.h.b16 %v3899
    %v4619 = vunpack.c.l.b16 %v3900
    %v4620 = vunpack.c.h.b16 %v3900
    %v4621 = vunpack.c.l.b16 %v3901
    %v4622 = vunpack.c.h.b16 %v3901
    %v4623 = vunpack.c.l.b16 %v3902
    %v4624 = vunpack.c.h.b16 %v3902
    %v4625 = vunpack.c.l.b16 %v3903
    %v4626 = vunpack.c.h.b16 %v3903
    %v4627 = vunpack.c.l.b16 %v3904
    %v4628 = vunpack.c.h.b16 %v3904
    %v4629 = vunpack.c.l.b16 %v3905
    %v4630 = vunpack.c.h.b16 %v3905
    %v4631 = vunpack.c.l.b16 %v3906
    %v4632 = vunpack.c.h.b16 %v3906
    %v4633 = vunpack.c.l.b16 %v3907
    %v4634 = vunpack.c.h.b16 %v3907
    %v4635 = vunpack.c.l.b16 %v3908
    %v4636 = vunpack.c.h.b16 %v3908
    %v4637 = vunpack.c.l.b16 %v3909
    %v4638 = vunpack.c.h.b16 %v3909
    %v4639 = vunpack.c.l.b16 %v3910
    %v4640 = vunpack.c.h.b16 %v3910
    %v4641 = vunpack.c.l.b16 %v3911
    %v4642 = vunpack.c.h.b16 %v3911
    %v4643 = vunpack.c.l.b16 %v3912
    %v4644 = vunpack.c.h.b16 %v3912
    %v4645 = vunpack.c.l.b16 %v3913
    %v4646 = vunpack.c.h.b16 %v3913
    %v4647 = vunpack.c.l.b16 %v3914
    %v4648 = vunpack.c.h.b16 %v3914
    %v4649 = vunpack.c.l.b16 %v3915
    %v4650 = vunpack.c.h.b16 %v3915
    %v4651 = vunpack.c.l.b16 %v3916
    %v4652 = vunpack.c.h.b16 %v3916
    %v4653 = vunpack.c.l.b16 %v3917
    %v4654 = vunpack.c.h.b16 %v3917
    %v4655 = vunpack.c.l.b16 %v3918
    %v4656 = vunpack.c.h.b16 %v3918
    %v4657 = vunpack.c.l.b16 %v3919
    %v4658 = vunpack.c.h.b16 %v3919
    %v4659 = vunpack.c.l.b16 %v3920
    %v4660 = vunpack.c.h.b16 %v3920
    %v4661 = vunpack.c.l.b16 %v3921
    %v4662 = vunpack.c.h.b16 %v3921
    %v4663 = vunpack.c.l.b16 %v3922
    %v4664 = vunpack.c.h.b16 %v3922
    %v4665 = vunpack.c.l.b16 %v3923
    %v4666 = vunpack.c.h.b16 %v3923
    %v4667 = vunpack.c.l.b16 %v3924
    %v4668 = vunpack.c.h.b16 %v3924
    %v4669 = vunpack.c.l.b16 %v3925
    %v4670 = vunpack.c.h.b16 %v3925
    %v4671 = vunpack.c.l.b16 %v3926
    %v4672 = vunpack.c.h.b16 %v3926
    %v4673 = vunpack.c.l.b16 %v3927
    %v4674 = vunpack.c.h.b16 %v3927
    %v4675 = vunpack.c.l.b16 %v3928
    %v4676 = vunpack.c.h.b16 %v3928
    %v4677 = vunpack.c.l.b16 %v3929
    %v4678 = vunpack.c.h.b16 %v3929
    %v4679 = vunpack.c.l.b16 %v3930
    %v4680 = vunpack.c.h.b16 %v3930
    %v4681 = vunpack.c.l.b16 %v3931
    %v4682 = vunpack.c.h.b16 %v3931
    %v4683 = vunpack.c.l.b16 %v3932
    %v4684 = vunpack.c.h.b16 %v3932
    %v4685 = vunpack.c.l.b16 %v3933
    %v4686 = vunpack.c.h.b16 %v3933
    %v4687 = vunpack.c.l.b16 %v3934
    %v4688 = vunpack.c.h.b16 %v3934
    %v4689 = vunpack.c.l.b16 %v3935
    %v4690 = vunpack.c.h.b16 %v3935
    %v4691 = vunpack.c.l.b16 %v3936
    %v4692 = vunpack.c.h.b16 %v3936
    %v4693 = vunpack.c.l.b16 %v3937
    %v4694 = vunpack.c.h.b16 %v3937
    %v4695 = vunpack.c.l.b16 %v3938
    %v4696 = vunpack.c.h.b16 %v3938
    %v4697 = vunpack.c.l.b16 %v3939
    %v4698 = vunpack.c.h.b16 %v3939
    %v4699 = vunpack.c.l.b16 %v3940
    %v4700 = vunpack.c.h.b16 %v3940
    %v4701 = vunpack.c.l.b16 %v3941
    %v4702 = vunpack.c.h.b16 %v3941
    %v4703 = vunpack.c.l.b16 %v3942
    %v4704 = vunpack.c.h.b16 %v3942
    %v4705 = vunpack.c.l.b16 %v3943
    %v4706 = vunpack.c.h.b16 %v3943
    %v4707 = vunpack.c.l.b16 %v3944
    %v4708 = vunpack.c.h.b16 %v3944
    %v4709 = vunpack.c.l.b16 %v3945
    %v4710 = vunpack.c.h.b16 %v3945
    %v4711 = vunpack.c.l.b16 %v3946
    %v4712 = vunpack.c.h.b16 %v3946
    %v4713 = vunpack.c.l.b16 %v3947
    %v4714 = vunpack.c.h.b16 %v3947
    %v4715 = vunpack.c.l.b16 %v3948
    %v4716 = vunpack.c.h.b16 %v3948
    %v4717 = vunpack.c.l.b16 %v3949
    %v4718 = vunpack.c.h.b16 %v3949
    %v4719 = vunpack.c.l.b16 %v3950
    %v4720 = vunpack.c.h.b16 %v3950
    %v4721 = vunpack.c.l.b16 %v3951
    %v4722 = vunpack.c.h.b16 %v3951
    %v4723 = vunpack.c.l.b16 %v3952
    %v4724 = vunpack.c.h.b16 %v3952
    %v4725 = vunpack.c.l.b16 %v3953
    %v4726 = vunpack.c.h.b16 %v3953
    %v4727 = vunpack.c.l.b16 %v3954
    %v4728 = vunpack.c.h.b16 %v3954
    %v4729 = vunpack.c.l.b16 %v3955
    %v4730 = vunpack.c.h.b16 %v3955
    %v4731 = vunpack.c.l.b16 %v3956
    %v4732 = vunpack.c.h.b16 %v3956
    %v4733 = vunpack.c.l.b16 %v3957
    %v4734 = vunpack.c.h.b16 %v3957
    %v4735 = vunpack.c.l.b16 %v3958
    %v4736 = vunpack.c.h.b16 %v3958
    %v4737 = vunpack.c.l.b16 %v3959
    %v4738 = vunpack.c.h.b16 %v3959
    %v4739 = vunpack.c.l.b16 %v3960
    %v4740 = vunpack.c.h.b16 %v3960
    %v4741 = vunpack.c.l.b16 %v3961
    %v4742 = vunpack.c.h.b16 %v3961
    %v4743 = vunpack.c.l.b16 %v3962
    %v4744 = vunpack.c.h.b16 %v3962
    %v4745 = vunpack.c.l.b16 %v3963
    %v4746 = vunpack.c.h.b16 %v3963
    %v4747 = vunpack.c.l.b16 %v3964
    %v4748 = vunpack.c.h.b16 %v3964
    %v4749 = vunpack.c.l.b16 %v3965
    %v4750 = vunpack.c.h.b16 %v3965
    %v4751 = vunpack.c.l.b16 %v3966
    %v4752 = vunpack.c.h.b16 %v3966
    %v4753 = vunpack.c.l.b16 %v3967
    %v4754 = vunpack.c.h.b16 %v3967
    %v4755 = vunpack.c.l.b16 %v3968
    %v4756 = vunpack.c.h.b16 %v3968
    %v4757 = vunpack.c.l.b16 %v3969
    %v4758 = vunpack.c.h.b16 %v3969
    %v4759 = vunpack.c.l.b16 %v3970
    %v4760 = vunpack.c.h.b16 %v3970
    %v4761 = vunpack.c.l.b16 %v3971
    %v4762 = vunpack.c.h.b16 %v3971
    %v4763 = vunpack.c.l.b16 %v3972
    %v4764 = vunpack.c.h.b16 %v3972
    %v4765 = vunpack.c.l.b16 %v3973
    %v4766 = vunpack.c.h.b16 %v3973
    %v4767 = vunpack.c.l.b16 %v3974
    %v4768 = vunpack.c.h.b16 %v3974
    %v4769 = vunpack.c.l.b16 %v3975
    %v4770 = vunpack.c.h.b16 %v3975
    %v4771 = vunpack.c.l.b16 %v3976
    %v4772 = vunpack.c.h.b16 %v3976
    %v4773 = vunpack.c.l.b16 %v3977
    %v4774 = vunpack.c.h.b16 %v3977
    %v4775 = vunpack.c.l.b16 %v3978
    %v4776 = vunpack.c.h.b16 %v3978
    %v4777 = vunpack.c.l.b16 %v3979
    %v4778 = vunpack.c.h.b16 %v3979
    %v4779 = vunpack.c.l.b16 %v3980
    %v4780 = vunpack.c.h.b16 %v3980
    %v4781 = vunpack.c.l.b16 %v3981
    %v4782 = vunpack.c.h.b16 %v3981
    %v4783 = vunpack.c.l.b16 %v3982
    %v4784 = vunpack.c.h.b16 %v3982
    %v4785 = vunpack.c.l.b16 %v3983
    %v4786 = vunpack.c.h.b16 %v3983
    %v4787 = vunpack.c.l.b16 %v3984
    %v4788 = vunpack.c.h.b16 %v3984
    %v4789 = vunpack.c.l.b16 %v3985
    %v4790 = vunpack.c.h.b16 %v3985
    %v4791 = vunpack.c.l.b16 %v3986
    %v4792 = vunpack.c.h.b16 %v3986
    %v4793 = vunpack.c.l.b16 %v3987
    %v4794 = vunpack.c.h.b16 %v3987
    %v4795 = vunpack.c.l.b16 %v3988
    %v4796 = vunpack.c.h.b16 %v3988
    %v4797 = vunpack.c.l.b16 %v3989
    %v4798 = vunpack.c.h.b16 %v3989
    %v4799 = vunpack.c.l.b16 %v3990
    %v4800 = vunpack.c.h.b16 %v3990
    %v4801 = vpack.c.b16 %v4297, %v4289
    %v4802 = vpack.c.b16 %v4298, %v4290
    %v4803 = vpack.c.b16 %v4299, %v4291
    %v4804 = vpack.c.b16 %v4300, %v4292
    %v4805 = vpack.c.b16 %v4301, %v4293
    %v4806 = vpack.c.b16 %v4302, %v4294
    %v4807 = vpack.c.b16 %v4303, %v4295
    %v4808 = vpack.c.b16 %v4304, %v4296
    %v4809 = vpack.c.b16 %v4313, %v4305
    %v4810 = vpack.c.b16 %v4314, %v4306
    %v4811 = vpack.c.b16 %v4315, %v4307
    %v4812 = vpack.c.b16 %v4316, %v4308
    %v4813 = vpack.c.b16 %v4317, %v4309
    %v4814 = vpack.c.b16 %v4318, %v4310
    %v4815 = vpack.c.b16 %v4319, %v4311
    %v4816 = vpack.c.b16 %v4320, %v4312
    %v4817 = vpack.c.b16 %v4329, %v4321
    %v4818 = vpack.c.b16 %v4330, %v4322
    %v4819 = vpack.c.b16 %v4331, %v4323
    %v4820 = vpack.c.b16 %v4332, %v4324
    %v4821 = vpack.c.b16 %v4333, %v4325
    %v4822 = vpack.c.b16 %v4334, %v4326
    %v4823 = vpack.c.b16 %v4335, %v4327
    %v4824 = vpack.c.b16 %v4336, %v4328
    %v4825 = vpack.c.b16 %v4345, %v4337
    %v4826 = vpack.c.b16 %v4346, %v4338
    %v4827 = vpack.c.b16 %v4347, %v4339
    %v4828 = vpack.c.b16 %v4348, %v4340
    %v4829 = vpack.c.b16 %v4349, %v4341
    %v4830 = vpack.c.b16 %v4350, %v4342
    %v4831 = vpack.c.b16 %v4351, %v4343
    %v4832 = vpack.c.b16 %v4352, %v4344
    %v4833 = vpack.c.b16 %v4361, %v4353
    %v4834 = vpack.c.b16 %v4362, %v4354
    %v4835 = vpack.c.b16 %v4363, %v4355
    %v4836 = vpack.c.b16 %v4364, %v4356
    %v4837 = vpack.c.b16 %v4365, %v4357
    %v4838 = vpack.c.b16 %v4366, %v4358
    %v4839 = vpack.c.b16 %v4367, %v4359
    %v4840 = vpack.c.b16 %v4368, %v4360
    %v4841 = vpack.c.b16 %v4377, %v4369
    %v4842 = vpack.c.b16 %v4378, %v4370
    %v4843 = vpack.c.b16 %v4379, %v4371
    %v4844 = vpack.c.b16 %v4380, %v4372
    %v4845 = vpack.c.b16 %v4381, %v4373
    %v4846 = vpack.c.b16 %v4382, %v4374
    %v4847 = vpack.c.b16 %v4383, %v4375
    %v4848 = vpack.c.b16 %v4384, %v4376
    %v4849 = vpack.c.b16 %v4393, %v4385
    %v4850 = vpack.c.b16 %v4394, %v4386
    %v4851 = vpack.c.b16 %v4395, %v4387
    %v4852 = vpack.c.b16 %v4396, %v4388
    %v4853 = vpack.c.b16 %v4397, %v4389
    %v4854 = vpack.c.b16 %v4398, %v4390
    %v4855 = vpack.c.b16 %v4399, %v4391
    %v4856 = vpack.c.b16 %v4400, %v4392
    %v4857 = vpack.c.b16 %v4409, %v4401
    %v4858 = vpack.c.b16 %v4410, %v4402
    %v4859 = vpack.c.b16 %v4411, %v4403
    %v4860 = vpack.c.b16 %v4412, %v4404
    %v4861 = vpack.c.b16 %v4413, %v4405
    %v4862 = vpack.c.b16 %v4414, %v4406
    %v4863 = vpack.c.b16 %v4415, %v4407
    %v4864 = vpack.c.b16 %v4416, %v4408
    %v4865 = vpack.c.b16 %v4425, %v4417
    %v4866 = vpack.c.b16 %v4426, %v4418
    %v4867 = vpack.c.b16 %v4427, %v4419
    %v4868 = vpack.c.b16 %v4428, %v4420
    %v4869 = vpack.c.b16 %v4429, %v4421
    %v4870 = vpack.c.b16 %v4430, %v4422
    %v4871 = vpack.c.b16 %v4431, %v4423
    %v4872 = vpack.c.b16 %v4432, %v4424
    %v4873 = vpack.c.b16 %v4441, %v4433
    %v4874 = vpack.c.b16 %v4442, %v4434
    %v4875 = vpack.c.b16 %v4443, %v4435
    %v4876 = vpack.c.b16 %v4444, %v4436
    %v4877 = vpack.c.b16 %v4445, %v4437
    %v4878 = vpack.c.b16 %v4446, %v4438
    %v4879 = vpack.c.b16 %v4447, %v4439
    %v4880 = vpack.c.b16 %v4448, %v4440
    %v4881 = vpack.c.b16 %v4457, %v4449
    %v4882 = vpack.c.b16 %v4458, %v4450
    %v4883 = vpack.c.b16 %v4459, %v4451
    %v4884 = vpack.c.b16 %v4460, %v4452
    %v4885 = vpack.c.b16 %v4461, %v4453
    %v4886 = vpack.c.b16 %v4462, %v4454
    %v4887 = vpack.c.b16 %v4463, %v4455
    %v4888 = vpack.c.b16 %v4464, %v4456
    %v4889 = vpack.c.b16 %v4473, %v4465
    %v4890 = vpack.c.b16 %v4474, %v4466
    %v4891 = vpack.c.b16 %v4475, %v4467
    %v4892 = vpack.c.b16 %v4476, %v4468
    %v4893 = vpack.c.b16 %v4477, %v4469
    %v4894 = vpack.c.b16 %v4478, %v4470
    %v4895 = vpack.c.b16 %v4479, %v4471
    %v4896 = vpack.c.b16 %v4480, %v4472
    %v4897 = vpack.c.b16 %v4489, %v4481
    %v4898 = vpack.c.b16 %v4490, %v4482
    %v4899 = vpack.c.b16 %v4491, %v4483
    %v4900 = vpack.c.b16 %v4492, %v4484
    %v4901 = vpack.c.b16 %v4493, %v4485
    %v4902 = vpack.c.b16 %v4494, %v4486
    %v4903 = vpack.c.b16 %v4495, %v4487
    %v4904 = vpack.c.b16 %v4496, %v4488
    %v4905 = vpack.c.b16 %v4505, %v4497
    %v4906 = vpack.c.b16 %v4506, %v4498
    %v4907 = vpack.c.b16 %v4507, %v4499
    %v4908 = vpack.c.b16 %v4508, %v4500
    %v4909 = vpack.c.b16 %v4509, %v4501
    %v4910 = vpack.c.b16 %v4510, %v4502
    %v4911 = vpack.c.b16 %v4511, %v4503
    %v4912 = vpack.c.b16 %v4512, %v4504
    %v4913 = vpack.c.b16 %v4521, %v4513
    %v4914 = vpack.c.b16 %v4522, %v4514
    %v4915 = vpack.c.b16 %v4523, %v4515
    %v4916 = vpack.c.b16 %v4524, %v4516
    %v4917 = vpack.c.b16 %v4525, %v4517
    %v4918 = vpack.c.b16 %v4526, %v4518
    %v4919 = vpack.c.b16 %v4527, %v4519
    %v4920 = vpack.c.b16 %v4528, %v4520
    %v4921 = vpack.c.b16 %v4537, %v4529
    %v4922 = vpack.c.b16 %v4538, %v4530
    %v4923 = vpack.c.b16 %v4539, %v4531
    %v4924 = vpack.c.b16 %v4540, %v4532
    %v4925 = vpack.c.b16 %v4541, %v4533
    %v4926 = vpack.c.b16 %v4542, %v4534
    %v4927 = vpack.c.b16 %v4543, %v4535
    %v4928 = vpack.c.b16 %v4544, %v4536
    %v4929 = vpack.c.b16 %v4553, %v4545
    %v4930 = vpack.c.b16 %v4554, %v4546
    %v4931 = vpack.c.b16 %v4555, %v4547
    %v4932 = vpack.c.b16 %v4556, %v4548
    %v4933 = vpack.c.b16 %v4557, %v4549
    %v4934 = vpack.c.b16 %v4558, %v4550
    %v4935 = vpack.c.b16 %v4559, %v4551
    %v4936 = vpack.c.b16 %v4560, %v4552
    %v4937 = vpack.c.b16 %v4569, %v4561
    %v4938 = vpack.c.b16 %v4570, %v4562
    %v4939 = vpack.c.b16 %v4571, %v4563
    %v4940 = vpack.c.b16 %v4572, %v4564
    %v4941 = vpack.c.b16 %v4573, %v4565
    %v4942 = vpack.c.b16 %v4574, %v4566
    %v4943 = vpack.c.b16 %v4575, %v4567
    %v4944 = vpack.c.b16 %v4576, %v4568
    %v4945 = vpack.c.b16 %v4585, %v4577
    %v4946 = vpack.c.b16 %v4586, %v4578
    %v4947 = vpack.c.b16 %v4587, %v4579
    %v4948 = vpack.c.b16 %v4588, %v4580
    %v4949 = vpack.c.b16 %v4589, %v4581
    %v4950 = vpack.c.b16 %v4590, %v4582
    %v4951 = vpack.c.b16 %v4591, %v4583
    %v4952 = vpack.c.b16 %v4592, %v4584
    %v4953 = vpack.c.b16 %v4601, %v4593
    %v4954 = vpack.c.b16 %v4602, %v4594
    %v4955 = vpack.c.b16 %v4603, %v4595
    %v4956 = vpack.c.b16 %v4604, %v4596
    %v4957 = vpack.c.b16 %v4605, %v4597
    %v4958 = vpack.c.b16 %v4606, %v4598
    %v4959 = vpack.c.b16 %v4607, %v4599
    %v4960 = vpack.c.b16 %v4608, %v4600
    %v4961 = vpack.c.b16 %v4617, %v4609
    %v4962 = vpack.c.b16 %v4618, %v4610
    %v4963 = vpack.c.b16 %v4619, %v4611
    %v4964 = vpack.c.b16 %v4620, %v4612
    %v4965 = vpack.c.b16 %v4621, %v4613
    %v4966 = vpack.c.b16 %v4622, %v4614
    %v4967 = vpack.c.b16 %v4623, %v4615
    %v4968 = vpack.c.b16 %v4624, %v4616
    %v4969 = vpack.c.b16 %v4633, %v4625
    %v4970 = vpack.c.b16 %v4634, %v4626
    %v4971 = vpack.c.b16 %v4635, %v4627
    %v4972 = vpack.c.b16 %v4636, %v4628
    %v4973 = vpack.c.b16 %v4637, %v4629
    %v4974 = vpack.c.b16 %v4638, %v4630
    %v4975 = vpack.c.b16 %v4639, %v4631
    %v4976 = vpack.c.b16 %v4640, %v4632
    %v4977 = vpack.c.b16 %v4649, %v4641
    %v4978 = vpack.c.b16 %v4650, %v4642
    %v4979 = vpack.c.b16 %v4651, %v4643
    %v4980 = vpack.c.b16 %v4652, %v4644
    %v4981 = vpack.c.b16 %v4653, %v4645
    %v4982 = vpack.c.b16 %v4654, %v4646
    %v4983 = vpack.c.b16 %v4655, %v4647
    %v4984 = vpack.c.b16 %v4656, %v4648
    %v4985 = vpack.c.b16 %v4665, %v4657
    %v4986 = vpack.c.b16 %v4666, %v4658
    %v4987 = vpack.c.b16 %v4667, %v4659
    %v4988 = vpack.c.b16 %v4668, %v4660
    %v4989 = vpack.c.b16 %v4669, %v4661
    %v4990 = vpack.c.b16 %v4670, %v4662
    %v4991 = vpack.c.b16 %v4671, %v4663
    %v4992 = vpack.c.b16 %v4672, %v4664
    %v4993 = vpack.c.b16 %v4681, %v4673
    %v4994 = vpack.c.b16 %v4682, %v4674
    %v4995 = vpack.c.b16 %v4683, %v4675
    %v4996 = vpack.c.b16 %v4684, %v4676
    %v4997 = vpack.c.b16 %v4685, %v4677
    %v4998 = vpack.c.b16 %v4686, %v4678
    %v4999 = vpack.c.b16 %v4687, %v4679
    %v5000 = vpack.c.b16 %v4688, %v4680
    %v5001 = vpack.c.b16 %v4697, %v4689
    %v5002 = vpack.c.b16 %v4698, %v4690
    %v5003 = vpack.c.b16 %v4699, %v4691
    %v5004 = vpack.c.b16 %v4700, %v4692
    %v5005 = vpack.c.b16 %v4701, %v4693
    %v5006 = vpack.c.b16 %v4702, %v4694
    %v5007 = vpack.c.b16 %v4703, %v4695
    %v5008 = vpack.c.b16 %v4704, %v4696
    %v5009 = vpack.c.b16 %v4713, %v4705
    %v5010 = vpack.c.b16 %v4714, %v4706
    %v5011 = vpack.c.b16 %v4715, %v4707
    %v5012 = vpack.c.b16 %v4716, %v4708
    %v5013 = vpack.c.b16 %v4717, %v4709
    %v5014 = vpack.c.b16 %v4718, %v4710
    %v5015 = vpack.c.b16 %v4719, %v4711
    %v5016 = vpack.c.b16 %v4720, %v4712
    %v5017 = vpack.c.b16 %v4729, %v4721
    %v5018 = vpack.c.b16 %v4730, %v4722
    %v5019 = vpack.c.b16 %v4731, %v4723
    %v5020 = vpack.c.b16 %v4732, %v4724
    %v5021 = vpack.c.b16 %v4733, %v4725
    %v5022 = vpack.c.b16 %v4734, %v4726
    %v5023 = vpack.c.b16 %v4735, %v4727
    %v5024 = vpack.c.b16 %v4736, %v4728
    %v5025 = vpack.c.b16 %v4745, %v4737
    %v5026 = vpack.c.b16 %v4746, %v4738
    %v5027 = vpack.c.b16 %v4747, %v4739
    %v5028 = vpack.c.b16 %v4748, %v4740
    %v5029 = vpack.c.b16 %v4749, %v4741
    %v5030 = vpack.c.b16 %v4750, %v4742
    %v5031 = vpack.c.b16 %v4751, %v4743
    %v5032 = vpack.c.b16 %v4752, %v4744
    %v5033 = vpack.c.b16 %v4761, %v4753
    %v5034 = vpack.c.b16 %v4762, %v4754
    %v5035 = vpack.c.b16 %v4763, %v4755
    %v5036 = vpack.c.b16 %v4764, %v4756
    %v5037 = vpack.c.b16 %v4765, %v4757
    %v5038 = vpack.c.b16 %v4766, %v4758
    %v5039 = vpack.c.b16 %v4767, %v4759
    %v5040 = vpack.c.b16 %v4768, %v4760
    %v5041 = vpack.c.b16 %v4777, %v4769
    %v5042 = vpack.c.b16 %v4778, %v4770
    %v5043 = vpack.c.b16 %v4779, %v4771
    %v5044 = vpack.c.b16 %v4780, %v4772
    %v5045 = vpack.c.b16 %v4781, %v4773
    %v5046 = vpack.c.b16 %v4782, %v4774
    %v5047 = vpack.c.b16 %v4783, %v4775
    %v5048 = vpack.c.b16 %v4784, %v4776
    %v5049 = vpack.c.b16 %v4793, %v4785
    %v5050 = vpack.c.b16 %v4794, %v4786
    %v5051 = vpack.c.b16 %v4795, %v4787
    %v5052 = vpack.c.b16 %v4796, %v4788
    %v5053 = vpack.c.b16 %v4797, %v4789
    %v5054 = vpack.c.b16 %v4798, %v4790
    %v5055 = vpack.c.b16 %v4799, %v4791
    %v5056 = vpack.c.b16 %v4800, %v4792
    %5313 = vmatprep.subr.bf16.mxu0 %v4858
    %5314 = vmatpush1.bf16.msra.mxu0 %v4857
    %5315 = vmatprep.subr.bf16.mxu0 %v4850
    %5316 = vmatpush1.bf16.msra.mxu0 %v4849
    %5317 = vmatprep.subr.bf16.mxu0 %v4842
    %5318 = vmatpush1.bf16.msra.mxu0 %v4841
    %5319 = vmatprep.subr.bf16.mxu0 %v4834
    %5320 = vmatpush1.bf16.msra.mxu0 %v4833
    %5321 = vmatprep.subr.bf16.mxu0 %v4826
    %5322 = vmatpush1.bf16.msra.mxu0 %v4825
    %5323 = vmatprep.subr.bf16.mxu0 %v4818
    %5324 = vmatpush1.bf16.msra.mxu0 %v4817
    %5325 = vmatprep.subr.bf16.mxu0 %v4810
    %5326 = vmatpush1.bf16.msra.mxu0 %v4809
    %5327 = vmatprep.subr.bf16.mxu0 %v4802
    %5328 = vmatpush1.bf16.msra.mxu0 %v4801
    %5329 = vmatprep.subr.bf16.mxu0 %v4922
    %5330 = vmatpush2.bf16.msra.mxu0 %v4921
    %5331 = vmatprep.subr.bf16.mxu0 %v4914
    %5332 = vmatpush2.bf16.msra.mxu0 %v4913
    %5333 = vmatprep.subr.bf16.mxu0 %v4906
    %5334 = vmatpush2.bf16.msra.mxu0 %v4905
    %5335 = vmatprep.subr.bf16.mxu0 %v4898
    %5336 = vmatpush2.bf16.msra.mxu0 %v4897
    %5337 = vmatprep.subr.bf16.mxu0 %v4890
    %5338 = vmatpush2.bf16.msra.mxu0 %v4889
    %5339 = vmatprep.subr.bf16.mxu0 %v4882
    %5340 = vmatpush2.bf16.msra.mxu0 %v4881
    %5341 = vmatprep.subr.bf16.mxu0 %v4874
    %5342 = vmatpush2.bf16.msra.mxu0 %v4873
    %5343 = vmatprep.subr.bf16.mxu0 %v4866
    %5344 = vmatpush2.bf16.msra.mxu0 %v4865
    %5345 = vmatprep.mubr.bf16.mxu0 %v3732
    %5346 = vmatmul.mubr.bf16.gmra.mxu0 %v3731
    %v5347 = vpop.f32.mrf.mxu0
    %v5348 = vadd.f32 %v3996, %v5347
    %v5349 = vpop.f32.mrf.mxu0
    %v5350 = vadd.f32 %v4000, %v5349
    %v5351 = vpop.f32.mrf.mxu0
    %v5352 = vpop.f32.mrf.mxu0
    %5353 = vdwg.mxu0
    %5354 = vmatprep.subr.bf16.mxu0 %v4986
    %5355 = vmatpush1.bf16.msra.mxu0 %v4985
    %5356 = vmatprep.subr.bf16.mxu0 %v4978
    %5357 = vmatpush1.bf16.msra.mxu0 %v4977
    %5358 = vmatprep.subr.bf16.mxu0 %v4970
    %5359 = vmatpush1.bf16.msra.mxu0 %v4969
    %5360 = vmatprep.subr.bf16.mxu0 %v4962
    %5361 = vmatpush1.bf16.msra.mxu0 %v4961
    %5362 = vmatprep.subr.bf16.mxu0 %v4954
    %5363 = vmatpush1.bf16.msra.mxu0 %v4953
    %5364 = vmatprep.subr.bf16.mxu0 %v4946
    %5365 = vmatpush1.bf16.msra.mxu0 %v4945
    %5366 = vmatprep.subr.bf16.mxu0 %v4938
    %5367 = vmatpush1.bf16.msra.mxu0 %v4937
    %5368 = vmatprep.subr.bf16.mxu0 %v4930
    %5369 = vmatpush1.bf16.msra.mxu0 %v4929
    %5370 = vmatprep.subr.bf16.mxu0 %v5050
    %5371 = vmatpush2.bf16.msra.mxu0 %v5049
    %5372 = vmatprep.subr.bf16.mxu0 %v5042
    %5373 = vmatpush2.bf16.msra.mxu0 %v5041
    %5374 = vmatprep.subr.bf16.mxu0 %v5034
    %5375 = vmatpush2.bf16.msra.mxu0 %v5033
    %5376 = vmatprep.subr.bf16.mxu0 %v5026
    %5377 = vmatpush2.bf16.msra.mxu0 %v5025
    %5378 = vmatprep.subr.bf16.mxu0 %v5018
    %5379 = vmatpush2.bf16.msra.mxu0 %v5017
    %5380 = vmatprep.subr.bf16.mxu0 %v5010
    %5381 = vmatpush2.bf16.msra.mxu0 %v5009
    %5382 = vmatprep.subr.bf16.mxu0 %v5002
    %5383 = vmatpush2.bf16.msra.mxu0 %v5001
    %5384 = vmatprep.subr.bf16.mxu0 %v4994
    %5385 = vmatpush2.bf16.msra.mxu0 %v4993
    %5386 = vmatprep.mubr.bf16.mxu0 %v3734
    %5387 = vmatmul.mubr.bf16.gmra.mxu0 %v3733
    %v5388 = vpop.f32.mrf.mxu0
    %v5389 = vadd.f32 %v5348, %v5388
    %v5390 = vpop.f32.mrf.mxu0
    %v5391 = vadd.f32 %v5350, %v5390
    %v5392 = vpop.f32.mrf.mxu0
    %v5393 = vpop.f32.mrf.mxu0
    %5394 = vdwg.mxu0
    %5395 = vmatprep.subr.bf16.mxu0 %v4860
    %5396 = vmatpush1.bf16.msra.mxu0 %v4859
    %5397 = vmatprep.subr.bf16.mxu0 %v4852
    %5398 = vmatpush1.bf16.msra.mxu0 %v4851
    %5399 = vmatprep.subr.bf16.mxu0 %v4844
    %5400 = vmatpush1.bf16.msra.mxu0 %v4843
    %5401 = vmatprep.subr.bf16.mxu0 %v4836
    %5402 = vmatpush1.bf16.msra.mxu0 %v4835
    %5403 = vmatprep.subr.bf16.mxu0 %v4828
    %5404 = vmatpush1.bf16.msra.mxu0 %v4827
    %5405 = vmatprep.subr.bf16.mxu0 %v4820
    %5406 = vmatpush1.bf16.msra.mxu0 %v4819
    %5407 = vmatprep.subr.bf16.mxu0 %v4812
    %5408 = vmatpush1.bf16.msra.mxu0 %v4811
    %5409 = vmatprep.subr.bf16.mxu0 %v4804
    %5410 = vmatpush1.bf16.msra.mxu0 %v4803
    %5411 = vmatprep.subr.bf16.mxu0 %v4924
    %5412 = vmatpush2.bf16.msra.mxu0 %v4923
    %5413 = vmatprep.subr.bf16.mxu0 %v4916
    %5414 = vmatpush2.bf16.msra.mxu0 %v4915
    %5415 = vmatprep.subr.bf16.mxu0 %v4908
    %5416 = vmatpush2.bf16.msra.mxu0 %v4907
    %5417 = vmatprep.subr.bf16.mxu0 %v4900
    %5418 = vmatpush2.bf16.msra.mxu0 %v4899
    %5419 = vmatprep.subr.bf16.mxu0 %v4892
    %5420 = vmatpush2.bf16.msra.mxu0 %v4891
    %5421 = vmatprep.subr.bf16.mxu0 %v4884
    %5422 = vmatpush2.bf16.msra.mxu0 %v4883
    %5423 = vmatprep.subr.bf16.mxu0 %v4876
    %5424 = vmatpush2.bf16.msra.mxu0 %v4875
    %5425 = vmatprep.subr.bf16.mxu0 %v4868
    %5426 = vmatpush2.bf16.msra.mxu0 %v4867
    %5427 = vmatprep.mubr.bf16.mxu0 %v3732
    %5428 = vmatmul.mubr.bf16.gmra.mxu0 %v3731
    %v5429 = vpop.f32.mrf.mxu0
    %v5430 = vadd.f32 %v4004, %v5429
    %v5431 = vpop.f32.mrf.mxu0
    %v5432 = vadd.f32 %v4008, %v5431
    %v5433 = vpop.f32.mrf.mxu0
    %v5434 = vpop.f32.mrf.mxu0
    %5435 = vdwg.mxu0
    %5436 = vmatprep.subr.bf16.mxu0 %v4988
    %5437 = vmatpush1.bf16.msra.mxu0 %v4987
    %5438 = vmatprep.subr.bf16.mxu0 %v4980
    %5439 = vmatpush1.bf16.msra.mxu0 %v4979
    %5440 = vmatprep.subr.bf16.mxu0 %v4972
    %5441 = vmatpush1.bf16.msra.mxu0 %v4971
    %5442 = vmatprep.subr.bf16.mxu0 %v4964
    %5443 = vmatpush1.bf16.msra.mxu0 %v4963
    %5444 = vmatprep.subr.bf16.mxu0 %v4956
    %5445 = vmatpush1.bf16.msra.mxu0 %v4955
    %5446 = vmatprep.subr.bf16.mxu0 %v4948
    %5447 = vmatpush1.bf16.msra.mxu0 %v4947
    %5448 = vmatprep.subr.bf16.mxu0 %v4940
    %5449 = vmatpush1.bf16.msra.mxu0 %v4939
    %5450 = vmatprep.subr.bf16.mxu0 %v4932
    %5451 = vmatpush1.bf16.msra.mxu0 %v4931
    %5452 = vmatprep.subr.bf16.mxu0 %v5052
    %5453 = vmatpush2.bf16.msra.mxu0 %v5051
    %5454 = vmatprep.subr.bf16.mxu0 %v5044
    %5455 = vmatpush2.bf16.msra.mxu0 %v5043
    %5456 = vmatprep.subr.bf16.mxu0 %v5036
    %5457 = vmatpush2.bf16.msra.mxu0 %v5035
    %5458 = vmatprep.subr.bf16.mxu0 %v5028
    %5459 = vmatpush2.bf16.msra.mxu0 %v5027
    %5460 = vmatprep.subr.bf16.mxu0 %v5020
    %5461 = vmatpush2.bf16.msra.mxu0 %v5019
    %5462 = vmatprep.subr.bf16.mxu0 %v5012
    %5463 = vmatpush2.bf16.msra.mxu0 %v5011
    %5464 = vmatprep.subr.bf16.mxu0 %v5004
    %5465 = vmatpush2.bf16.msra.mxu0 %v5003
    %5466 = vmatprep.subr.bf16.mxu0 %v4996
    %5467 = vmatpush2.bf16.msra.mxu0 %v4995
    %5468 = vmatprep.mubr.bf16.mxu0 %v3734
    %5469 = vmatmul.mubr.bf16.gmra.mxu0 %v3733
    %v5470 = vpop.f32.mrf.mxu0
    %v5471 = vadd.f32 %v5430, %v5470
    %v5472 = vpop.f32.mrf.mxu0
    %v5473 = vadd.f32 %v5432, %v5472
    %v5474 = vpop.f32.mrf.mxu0
    %v5475 = vpop.f32.mrf.mxu0
    %5476 = vdwg.mxu0
    %5477 = vmatprep.subr.bf16.mxu0 %v4862
    %5478 = vmatpush1.bf16.msra.mxu0 %v4861
    %5479 = vmatprep.subr.bf16.mxu0 %v4854
    %5480 = vmatpush1.bf16.msra.mxu0 %v4853
    %5481 = vmatprep.subr.bf16.mxu0 %v4846
    %5482 = vmatpush1.bf16.msra.mxu0 %v4845
    %5483 = vmatprep.subr.bf16.mxu0 %v4838
    %5484 = vmatpush1.bf16.msra.mxu0 %v4837
    %5485 = vmatprep.subr.bf16.mxu0 %v4830
    %5486 = vmatpush1.bf16.msra.mxu0 %v4829
    %5487 = vmatprep.subr.bf16.mxu0 %v4822
    %5488 = vmatpush1.bf16.msra.mxu0 %v4821
    %5489 = vmatprep.subr.bf16.mxu0 %v4814
    %5490 = vmatpush1.bf16.msra.mxu0 %v4813
    %5491 = vmatprep.subr.bf16.mxu0 %v4806
    %5492 = vmatpush1.bf16.msra.mxu0 %v4805
    %5493 = vmatprep.subr.bf16.mxu0 %v4926
    %5494 = vmatpush2.bf16.msra.mxu0 %v4925
    %5495 = vmatprep.subr.bf16.mxu0 %v4918
    %5496 = vmatpush2.bf16.msra.mxu0 %v4917
    %5497 = vmatprep.subr.bf16.mxu0 %v4910
    %5498 = vmatpush2.bf16.msra.mxu0 %v4909
    %5499 = vmatprep.subr.bf16.mxu0 %v4902
    %5500 = vmatpush2.bf16.msra.mxu0 %v4901
    %5501 = vmatprep.subr.bf16.mxu0 %v4894
    %5502 = vmatpush2.bf16.msra.mxu0 %v4893
    %5503 = vmatprep.subr.bf16.mxu0 %v4886
    %5504 = vmatpush2.bf16.msra.mxu0 %v4885
    %5505 = vmatprep.subr.bf16.mxu0 %v4878
    %5506 = vmatpush2.bf16.msra.mxu0 %v4877
    %5507 = vmatprep.subr.bf16.mxu0 %v4870
    %5508 = vmatpush2.bf16.msra.mxu0 %v4869
    %5509 = vmatprep.mubr.bf16.mxu0 %v3732
    %5510 = vmatmul.mubr.bf16.gmra.mxu0 %v3731
    %v5511 = vpop.f32.mrf.mxu0
    %v5512 = vadd.f32 %v4012, %v5511
    %v5513 = vpop.f32.mrf.mxu0
    %v5514 = vadd.f32 %v4016, %v5513
    %v5515 = vpop.f32.mrf.mxu0
    %v5516 = vpop.f32.mrf.mxu0
    %5517 = vdwg.mxu0
    %5518 = vmatprep.subr.bf16.mxu0 %v4990
    %5519 = vmatpush1.bf16.msra.mxu0 %v4989
    %5520 = vmatprep.subr.bf16.mxu0 %v4982
    %5521 = vmatpush1.bf16.msra.mxu0 %v4981
    %5522 = vmatprep.subr.bf16.mxu0 %v4974
    %5523 = vmatpush1.bf16.msra.mxu0 %v4973
    %5524 = vmatprep.subr.bf16.mxu0 %v4966
    %5525 = vmatpush1.bf16.msra.mxu0 %v4965
    %5526 = vmatprep.subr.bf16.mxu0 %v4958
    %5527 = vmatpush1.bf16.msra.mxu0 %v4957
    %5528 = vmatprep.subr.bf16.mxu0 %v4950
    %5529 = vmatpush1.bf16.msra.mxu0 %v4949
    %5530 = vmatprep.subr.bf16.mxu0 %v4942
    %5531 = vmatpush1.bf16.msra.mxu0 %v4941
    %5532 = vmatprep.subr.bf16.mxu0 %v4934
    %5533 = vmatpush1.bf16.msra.mxu0 %v4933
    %5534 = vmatprep.subr.bf16.mxu0 %v5054
    %5535 = vmatpush2.bf16.msra.mxu0 %v5053
    %5536 = vmatprep.subr.bf16.mxu0 %v5046
    %5537 = vmatpush2.bf16.msra.mxu0 %v5045
    %5538 = vmatprep.subr.bf16.mxu0 %v5038
    %5539 = vmatpush2.bf16.msra.mxu0 %v5037
    %5540 = vmatprep.subr.bf16.mxu0 %v5030
    %5541 = vmatpush2.bf16.msra.mxu0 %v5029
    %5542 = vmatprep.subr.bf16.mxu0 %v5022
    %5543 = vmatpush2.bf16.msra.mxu0 %v5021
    %5544 = vmatprep.subr.bf16.mxu0 %v5014
    %5545 = vmatpush2.bf16.msra.mxu0 %v5013
    %5546 = vmatprep.subr.bf16.mxu0 %v5006
    %5547 = vmatpush2.bf16.msra.mxu0 %v5005
    %5548 = vmatprep.subr.bf16.mxu0 %v4998
    %5549 = vmatpush2.bf16.msra.mxu0 %v4997
    %5550 = vmatprep.mubr.bf16.mxu0 %v3734
    %5551 = vmatmul.mubr.bf16.gmra.mxu0 %v3733
    %v5552 = vpop.f32.mrf.mxu0
    %v5553 = vadd.f32 %v5512, %v5552
    %v5554 = vpop.f32.mrf.mxu0
    %v5555 = vadd.f32 %v5514, %v5554
    %v5556 = vpop.f32.mrf.mxu0
    %v5557 = vpop.f32.mrf.mxu0
    %5558 = vdwg.mxu0
    %5559 = vmatprep.subr.bf16.mxu0 %v4864
    %5560 = vmatpush1.bf16.msra.mxu0 %v4863
    %5561 = vmatprep.subr.bf16.mxu0 %v4856
    %5562 = vmatpush1.bf16.msra.mxu0 %v4855
    %5563 = vmatprep.subr.bf16.mxu0 %v4848
    %5564 = vmatpush1.bf16.msra.mxu0 %v4847
    %5565 = vmatprep.subr.bf16.mxu0 %v4840
    %5566 = vmatpush1.bf16.msra.mxu0 %v4839
    %5567 = vmatprep.subr.bf16.mxu0 %v4832
    %5568 = vmatpush1.bf16.msra.mxu0 %v4831
    %5569 = vmatprep.subr.bf16.mxu0 %v4824
    %5570 = vmatpush1.bf16.msra.mxu0 %v4823
    %5571 = vmatprep.subr.bf16.mxu0 %v4816
    %5572 = vmatpush1.bf16.msra.mxu0 %v4815
    %5573 = vmatprep.subr.bf16.mxu0 %v4808
    %5574 = vmatpush1.bf16.msra.mxu0 %v4807
    %5575 = vmatprep.subr.bf16.mxu0 %v4928
    %5576 = vmatpush2.bf16.msra.mxu0 %v4927
    %5577 = vmatprep.subr.bf16.mxu0 %v4920
    %5578 = vmatpush2.bf16.msra.mxu0 %v4919
    %5579 = vmatprep.subr.bf16.mxu0 %v4912
    %5580 = vmatpush2.bf16.msra.mxu0 %v4911
    %5581 = vmatprep.subr.bf16.mxu0 %v4904
    %5582 = vmatpush2.bf16.msra.mxu0 %v4903
    %5583 = vmatprep.subr.bf16.mxu0 %v4896
    %5584 = vmatpush2.bf16.msra.mxu0 %v4895
    %5585 = vmatprep.subr.bf16.mxu0 %v4888
    %5586 = vmatpush2.bf16.msra.mxu0 %v4887
    %5587 = vmatprep.subr.bf16.mxu0 %v4880
    %5588 = vmatpush2.bf16.msra.mxu0 %v4879
    %5589 = vmatprep.subr.bf16.mxu0 %v4872
    %5590 = vmatpush2.bf16.msra.mxu0 %v4871
    %5591 = vmatprep.mubr.bf16.mxu0 %v3732
    %5592 = vmatmul.mubr.bf16.gmra.mxu0 %v3731
    %v5593 = vpop.f32.mrf.mxu0
    %v5594 = vadd.f32 %v4020, %v5593
    %v5595 = vpop.f32.mrf.mxu0
    %v5596 = vadd.f32 %v4024, %v5595
    %v5597 = vpop.f32.mrf.mxu0
    %v5598 = vpop.f32.mrf.mxu0
    %5599 = vdwg.mxu0
    %5600 = vmatprep.subr.bf16.mxu0 %v4992
    %5601 = vmatpush1.bf16.msra.mxu0 %v4991
    %5602 = vmatprep.subr.bf16.mxu0 %v4984
    %5603 = vmatpush1.bf16.msra.mxu0 %v4983
    %5604 = vmatprep.subr.bf16.mxu0 %v4976
    %5605 = vmatpush1.bf16.msra.mxu0 %v4975
    %5606 = vmatprep.subr.bf16.mxu0 %v4968
    %5607 = vmatpush1.bf16.msra.mxu0 %v4967
    %5608 = vmatprep.subr.bf16.mxu0 %v4960
    %5609 = vmatpush1.bf16.msra.mxu0 %v4959
    %5610 = vmatprep.subr.bf16.mxu0 %v4952
    %5611 = vmatpush1.bf16.msra.mxu0 %v4951
    %5612 = vmatprep.subr.bf16.mxu0 %v4944
    %5613 = vmatpush1.bf16.msra.mxu0 %v4943
    %5614 = vmatprep.subr.bf16.mxu0 %v4936
    %5615 = vmatpush1.bf16.msra.mxu0 %v4935
    %5616 = vmatprep.subr.bf16.mxu0 %v5056
    %5617 = vmatpush2.bf16.msra.mxu0 %v5055
    %5618 = vmatprep.subr.bf16.mxu0 %v5048
    %5619 = vmatpush2.bf16.msra.mxu0 %v5047
    %5620 = vmatprep.subr.bf16.mxu0 %v5040
    %5621 = vmatpush2.bf16.msra.mxu0 %v5039
    %5622 = vmatprep.subr.bf16.mxu0 %v5032
    %5623 = vmatpush2.bf16.msra.mxu0 %v5031
    %5624 = vmatprep.subr.bf16.mxu0 %v5024
    %5625 = vmatpush2.bf16.msra.mxu0 %v5023
    %5626 = vmatprep.subr.bf16.mxu0 %v5016
    %5627 = vmatpush2.bf16.msra.mxu0 %v5015
    %5628 = vmatprep.subr.bf16.mxu0 %v5008
    %5629 = vmatpush2.bf16.msra.mxu0 %v5007
    %5630 = vmatprep.subr.bf16.mxu0 %v5000
    %5631 = vmatpush2.bf16.msra.mxu0 %v4999
    %5632 = vmatprep.mubr.bf16.mxu0 %v3734
    %5633 = vmatmul.mubr.bf16.gmra.mxu0 %v3733
    %v5634 = vpop.f32.mrf.mxu0
    %v5635 = vadd.f32 %v5594, %v5634
    %v5636 = vpop.f32.mrf.mxu0
    %v5637 = vadd.f32 %v5596, %v5636
    %v5638 = vpop.f32.mrf.mxu0
    %v5639 = vpop.f32.mrf.mxu0
    %5640 = vdwg.mxu0
    %v5641 = vmul.f32 %v5389, 0.5
    %v5642 = vmul.f32 %v5391, 0.5
    %v5643 = vmul.f32 %v5471, 0.5
    %v5644 = vmul.f32 %v5473, 0.5
    %v5645 = vmul.f32 %v5553, 0.5
    %v5646 = vmul.f32 %v5555, 0.5
    %v5647 = vmul.f32 %v5635, 0.5
    %v5648 = vmul.f32 %v5637, 0.5
    %v5649 = vtanh.pop %v5641
    %v5650 = vtanh.pop %v5642
    %v5651 = vtanh.pop %v5643
    %v5652 = vtanh.pop %v5644
    %v5653 = vtanh.pop %v5645
    %v5654 = vtanh.pop %v5646
    %v5655 = vtanh.pop %v5647
    %v5656 = vtanh.pop %v5648
    %v5657 = vmul.f32 %v5649, 0.5
    %v5658 = vmul.f32 %v5650, 0.5
    %v5659 = vmul.f32 %v5651, 0.5
    %v5660 = vmul.f32 %v5652, 0.5
    %v5661 = vmul.f32 %v5653, 0.5
    %v5662 = vmul.f32 %v5654, 0.5
    %v5663 = vmul.f32 %v5655, 0.5
    %v5664 = vmul.f32 %v5656, 0.5
    %v5665 = vadd.f32 %v5657, 0.5
    %v5666 = vadd.f32 %v5658, 0.5
    %v5667 = vadd.f32 %v5659, 0.5
    %v5668 = vadd.f32 %v5660, 0.5
    %v5669 = vadd.f32 %v5661, 0.5
    %v5670 = vadd.f32 %v5662, 0.5
    %v5671 = vadd.f32 %v5663, 0.5
    %v5672 = vadd.f32 %v5664, 0.5
    %v5673 = vpack.c.bf16 %v5665, %v5665
    %v5674 = vpack.c.bf16 %v5666, %v5666
    %v5675 = vpack.c.bf16 %v5667, %v5667
    %v5676 = vpack.c.bf16 %v5668, %v5668
    %v5677 = vpack.c.bf16 %v5669, %v5669
    %v5678 = vpack.c.bf16 %v5670, %v5670
    %v5679 = vpack.c.bf16 %v5671, %v5671
    %v5680 = vpack.c.bf16 %v5672, %v5672
    %v5689 = vunpack.c.l.b16 %v5673
    %v5690 = vunpack.c.l.b16 %v5674
    %v5691 = vunpack.c.l.b16 %v5675
    %v5692 = vunpack.c.l.b16 %v5676
    %v5693 = vunpack.c.l.b16 %v5677
    %v5694 = vunpack.c.l.b16 %v5678
    %v5695 = vunpack.c.l.b16 %v5679
    %v5696 = vunpack.c.l.b16 %v5680
    %v5697 = vpack.c.b16 %v5690, %v5689
    %v5698 = vpack.c.b16 %v5692, %v5691
    %v5699 = vpack.c.b16 %v5694, %v5693
    %v5700 = vpack.c.b16 %v5696, %v5695
    %5705 = vst [vmem:[#allocation23] sm:$0xff] %v5697
    %5706 = vst [vmem:[#allocation23 + $0x8] sm:$0xff] %v5698
    %5707 = vst [vmem:[#allocation23 + $0x10] sm:$0xff] %v5699
    %5708 = vst [vmem:[#allocation23 + $0x18] sm:$0xff] %v5700
    // Predicated region
    $region126: #{tpu_custom_call.1} parent=1 // pred_check
      _
    $region127: #{tpu_custom_call.1} parent=1 // pred_check_branch
      %5710 = sbr.rel (0) target = $region129
    $region128: #{tpu_custom_call.1} parent=1 // pred_region
      %s5712 = ssub.s32 512, 512
      %5713 = vsyncadd [#allocation4], %s5712
      %s5715 = sshll.u32 [#allocation23], 4
      %s5716 = int_to_ptr.vmem [resolvable:$true] %s5715
      %5718 = dma.vmem_to_hbm [thread:$0]  %s5716, 512, %s18, [#allocation4]
    $region129: #{tpu_custom_call.1} parent=1 // pred_fallthru
      _
    // Predicated region
    $region130: #{tpu_custom_call.1} parent=1 // pred_check
      _
    $region131: #{tpu_custom_call.1} parent=1 // pred_check_branch
      %5720 = sbr.rel (0) target = $region133
    $region132: #{tpu_custom_call.1} parent=1 // pred_region
      %s5722 = ssub.s32 256, 256
      %5723 = vsyncadd [#allocation25], %s5722
      %s5725 = sshll.u32 [#allocation24], 4
      %s5726 = int_to_ptr.vmem [resolvable:$true] %s5725
      %5728 = dma.vmem_to_hbm [thread:$0]  %s5726, 256, %s19, [#allocation25]
    $region133: #{tpu_custom_call.1} parent=1 // pred_fallthru
      _
    // Predicated region
    $region134: #{tpu_custom_call.1} parent=1 // pred_check
      _
    $region135: #{tpu_custom_call.1} parent=1 // pred_check_branch
      %5730 = sbr.rel (0) target = $region137
    $region136: #{tpu_custom_call.1} parent=1 // pred_region
      %5731 = dma.done [#allocation4], 512
    $region137: #{tpu_custom_call.1} parent=1 // pred_fallthru
      _
    // Predicated region
    $region138: #{tpu_custom_call.1} parent=1 // pred_check
      _
    $region139: #{tpu_custom_call.1} parent=1 // pred_check_branch
      %5733 = sbr.rel (0) target = $region141
    $region140: #{tpu_custom_call.1} parent=1 // pred_region
      %5734 = dma.done [#allocation25], 256
    $region141: #{tpu_custom_call.1} parent=1 // pred_fallthru
      _
    %5735 = vsyncpa [#allocation3], 1
    %5736 = vsyncpa [#allocation6], 1
    %5737 = vsyncpa [#allocation9], 1
    %5738 = vsyncpa [#allocation12], 1
    %5739 = vsyncpa [#allocation15], 1
    %5740 = vsyncpa [#allocation18], 1
    %5741 = vsyncpa [#allocation21], 1
    %5742 = vsyncpa [#allocation4], 1
    %5743 = vsyncpa [#allocation25], 1

</llo_original>
